<compile_context>
chip_gen: v5e
topology: v5e:2x2
jax: 0.10.0
libtpu: 0.0.40
codegen_flags: <defaults>
</compile_context>

<pallas_src>
import numpy as np

import jax
import jax.numpy as jnp
from jax.experimental import pallas as pl
from jax.experimental.pallas import tpu as pltpu


# ---------------------------------------------------------------------------
# Static geometry (fixed by fc1 = Linear(32*3*11, 128) => 13x44 MFCC "image").
# ---------------------------------------------------------------------------
H_IN, W_IN = 13, 44
HP1, WP1 = H_IN + 2, W_IN + 2            # padded input:          15 x 46
L1 = HP1 * WP1                           # flat padded length:    690
LOUT1 = (H_IN - 1) * WP1 + W_IN          # conv1 computed span:   596
H2, W2 = H_IN // 2, W_IN // 2            # after pool1:           6 x 22
HP2, WP2 = H2 + 2, W2 + 2                # padded pooled map:     8 x 24
L2 = HP2 * WP2                           # flat padded length:    192
LOUT2 = (H2 - 1) * WP2 + W2              # conv2 computed span:   142
H3, W3 = H2 // 2, W2 // 2                # after pool2:           3 x 11
MM1 = LOUT1 - WP1 - 1                    # 2x2-window maxima span, stage 1: 549
MM2 = LOUT2 - WP2 - 1                    # 2x2-window maxima span, stage 2: 117
C1, C2 = 16, 32
NSPATIAL = H3 * W3                       # 33
NFEAT = C2 * NSPATIAL                    # 1056
NHID = 128
TB = 8                                   # batch tile packed onto sublanes per grid step

# 3x3 tap shifts in the flat (padded row-major) spatial index space.
S1_TAPS = tuple(ky * WP1 + kx for ky in range(3) for kx in range(3))
S2_TAPS = tuple(ky * WP2 + kx for ky in range(3) for kx in range(3))

# Invariant: "garbage" columns produced at padded spatial positions (they receive
# bias+ReLU but are meaningless) are never referenced by a pooling anchor, and every
# value a pooling window touches lies inside the computed conv span.
_max_r1 = 2 * (H2 - 1) * WP1 + 2 * (W2 - 1)
assert _max_r1 < MM1 and _max_r1 + WP1 + 1 < LOUT1
_max_r2 = 2 * (H3 - 1) * WP2 + 2 * (W3 - 1)
assert _max_r2 < MM2 and _max_r2 + WP2 + 1 < LOUT2


# ---------------------------------------------------------------------------
# Constant 0/1 selection matrices (pool compaction + zero re-padding), applied as
# right-hand matmul operands (activations @ sel).
# ---------------------------------------------------------------------------
def _sel1_t():
    s = np.zeros((MM1, L2), np.float32)
    for h2 in range(H2):
        for w2 in range(W2):
            q = (h2 + 1) * WP2 + (w2 + 1)      # padded pooled flat position
            r = 2 * h2 * WP1 + 2 * w2          # 2x2 window anchor in conv1 flat space
            s[r, q] = 1.0
    return s


def _sel2_t():
    s = np.zeros((MM2, NSPATIAL), np.float32)
    for h3 in range(H3):
        for w3 in range(W3):
            j = h3 * W3 + w3                   # compact pooled position (PyTorch order)
            r = 2 * h3 * WP2 + 2 * w3          # 2x2 window anchor in conv2 flat space
            s[r, j] = 1.0
    return s


# ---------------------------------------------------------------------------
# Fused kernel: one batch tile (TB samples) per grid step.
# Activation layout everywhere: rows = channel*TB + sample, lanes = flat spatial.
# ---------------------------------------------------------------------------
def _mfccnet_kernel(x_ref, w1_ref, b1_ref, sel1_ref, w2_ref, b2_ref, sel2_ref,
                    wfc1_ref, bfc1_ref, wfc2_ref, bfc2_ref, o_ref):
    x = x_ref[...]                                                      # (TB, 690)

    # conv1 (1->16, 3x3, pad 1): sublane im2col of the 9 lane-shifted taps + one
    # block-diagonal-over-batch MXU matmul (K = 9*TB = 72).
    x9 = jnp.concatenate([x[:, s:s + LOUT1] for s in S1_TAPS], axis=0)  # (72, 596)
    a1 = jnp.dot(w1_ref[...], x9, preferred_element_type=jnp.float32)   # (128, 596)
    a1 = jnp.maximum(a1 + b1_ref[...], 0.0)

    # 2x2/2 max-pool: shifted lane-wise maxima, then constant 0/1 matmul that
    # compacts the stride-2 anchors and re-inserts the next conv's zero padding.
    m1 = jnp.maximum(a1[:, :LOUT1 - 1], a1[:, 1:])                      # (128, 595)
    mm1 = jnp.maximum(m1[:, :MM1], m1[:, WP1:WP1 + MM1])                # (128, 549)
    p1 = jnp.dot(mm1, sel1_ref[...], preferred_element_type=jnp.float32)  # (128, 192)

    # conv2 (16->32, 3x3, pad 1): 9-tap sublane im2col + ONE wide block-diagonal
    # matmul (K = 9*C1*TB = 1152) instead of nine K=16 matmuls.
    p9 = jnp.concatenate([p1[:, s:s + LOUT2] for s in S2_TAPS], axis=0)  # (1152, 142)
    a2 = jnp.dot(w2_ref[...], p9, preferred_element_type=jnp.float32)    # (256, 142)
    a2 = jnp.maximum(a2 + b2_ref[...], 0.0)

    m2 = jnp.maximum(a2[:, :LOUT2 - 1], a2[:, 1:])                       # (256, 141)
    mm2 = jnp.maximum(m2[:, :MM2], m2[:, WP2:WP2 + MM2])                 # (256, 117)
    p2 = jnp.dot(mm2, sel2_ref[...], preferred_element_type=jnp.float32)  # (256, 33)

    # fc1 + ReLU + fc2 fused.  p2 rows are channel-major (c2*TB + sample), so the
    # PyTorch NCHW flatten (f = c2*33 + j) is a batched-over-c2 contraction over j
    # followed by a sum over c2 -- no sublane<->lane data movement required.
    p2g = p2.reshape(C2, TB, NSPATIAL)                                   # free row split
    hc = jax.lax.dot_general(
        p2g, wfc1_ref[...],
        dimension_numbers=(((2,), (1,)), ((0,), (0,))),
        preferred_element_type=jnp.float32)                              # (C2, TB, 128)
    h = jnp.maximum(hc.sum(axis=0) + bfc1_ref[...], 0.0)                 # (TB, 128)
    logits = jnp.dot(h, wfc2_ref[...],
                     preferred_element_type=jnp.float32) + bfc2_ref[...]  # (TB, K)
    o_ref[...] = logits.astype(o_ref.dtype)


def mfccnet_forward(x_nchw, params):
    """x_nchw: (B, 1, 13, 44) float32.  Returns (B, num_classes) float32."""
    B = x_nchw.shape[0]
    K = params["w_fc2"].shape[1]

    # Zero padding for the pad=1 convs + flatten; this fuses into a single small XLA
    # op producing the (B, 690) padded-flat layout the kernel consumes directly.
    x = x_nchw.reshape(B, H_IN, W_IN)
    xp = jnp.pad(x, ((0, 0), (1, 1), (1, 1))).reshape(B, L1)
    Bp = ((B + TB - 1) // TB) * TB
    if Bp != B:
        xp = jnp.pad(xp, ((0, Bp - B), (0, 0)))

    out = pl.pallas_call(
        _mfccnet_kernel,
        out_shape=jax.ShapeDtypeStruct((Bp, K), jnp.float32),
        grid=(Bp // TB,),
        in_specs=[
            pl.BlockSpec((TB, L1), lambda b: (b, 0)),                    # input tile
            pl.BlockSpec((C1 * TB, 9 * TB), lambda b: (0, 0)),           # conv1 block-diag W
            pl.BlockSpec((C1 * TB, 1), lambda b: (0, 0)),                # conv1 bias column
            pl.BlockSpec((MM1, L2), lambda b: (0, 0)),                   # pool1 selection
            pl.BlockSpec((C2 * TB, 9 * C1 * TB), lambda b: (0, 0)),      # conv2 block-diag W
            pl.BlockSpec((C2 * TB, 1), lambda b: (0, 0)),                # conv2 bias column
            pl.BlockSpec((MM2, NSPATIAL), lambda b: (0, 0)),             # pool2 selection
            pl.BlockSpec((C2, NSPATIAL, NHID), lambda b: (0, 0, 0)),     # fc1 weight [c2,j,n]
            pl.BlockSpec((1, NHID), lambda b: (0, 0)),                   # fc1 bias
            pl.BlockSpec((NHID, K), lambda b: (0, 0)),                   # fc2 weight
            pl.BlockSpec((1, K), lambda b: (0, 0)),                      # fc2 bias
        ],
        out_specs=pl.BlockSpec((TB, K), lambda b: (b, 0)),
        compiler_params=pltpu.CompilerParams(dimension_semantics=("parallel",)),
    )(xp,
      params["w1_bd"], params["b1_col"], params["sel1_t"],
      params["w2_bd"], params["b2_col"], params["sel2_t"],
      params["w_fc1_g"], params["b_fc1"], params["w_fc2"], params["b_fc2"])
    return out[:B]


# ---------------------------------------------------------------------------
# Parameter packing from native PyTorch layouts -> kernel layouts.
# ---------------------------------------------------------------------------
def pack_params(torch_params):
    """torch_params (PyTorch layouts):
         conv1.weight (16,1,3,3)  conv1.bias (16,)
         conv2.weight (32,16,3,3) conv2.bias (32,)
         fc1.weight (128,1056)    fc1.bias (128,)   (y = x @ W.T + b)
         fc2.weight (K,128)       fc2.bias (K,)
    """
    eye = np.eye(TB, dtype=np.float32)

    # conv1: (Cout,Cin,kh,kw) -> (tap, c1), then block-diagonal over the batch tile.
    w1 = np.transpose(np.asarray(torch_params["conv1.weight"], np.float32),
                      (2, 3, 1, 0)).reshape(9, C1)
    w1_bd = np.einsum("ka,st->askt", w1, eye).reshape(C1 * TB, 9 * TB)
    b1_col = np.repeat(np.asarray(torch_params["conv1.bias"], np.float32),
                       TB).reshape(C1 * TB, 1)

    # conv2: (Cout,Cin,kh,kw) -> (tap, c1, c2), block-diagonal over the batch tile.
    w2 = np.transpose(np.asarray(torch_params["conv2.weight"], np.float32),
                      (2, 3, 1, 0)).reshape(9, C1, C2)
    w2_bd = np.einsum("kac,st->cskat", w2, eye).reshape(C2 * TB, 9 * C1 * TB)
    b2_col = np.repeat(np.asarray(torch_params["conv2.bias"], np.float32),
                       TB).reshape(C2 * TB, 1)

    # fc1: W (128,1056) with feature index f = c2*33 + j  ->  [c2, j, n].
    wfc1 = np.asarray(torch_params["fc1.weight"], np.float32)
    w_fc1_g = np.ascontiguousarray(wfc1.T).reshape(C2, NSPATIAL, NHID)
    b_fc1 = np.asarray(torch_params["fc1.bias"], np.float32).reshape(1, NHID)

    wfc2 = np.asarray(torch_params["fc2.weight"], np.float32)
    w_fc2 = np.ascontiguousarray(wfc2.T)                                 # (128, K)
    b_fc2 = np.asarray(torch_params["fc2.bias"], np.float32).reshape(1, -1)

    packed = dict(w1_bd=w1_bd, b1_col=b1_col, sel1_t=_sel1_t(),
                  w2_bd=w2_bd, b2_col=b2_col, sel2_t=_sel2_t(),
                  w_fc1_g=w_fc1_g, b_fc1=b_fc1, w_fc2=w_fc2, b_fc2=b_fc2)
    return {k: jnp.asarray(v) for k, v in packed.items()}


def init_torch_params(key, num_classes):
    """Deterministic synthetic parameters in the PyTorch module's native layouts."""
    ks = jax.random.split(key, 8)
    return {
        "conv1.weight": 0.1 * jax.random.normal(ks[0], (C1, 1, 3, 3), jnp.float32),
        "conv1.bias": 0.1 * jax.random.normal(ks[1], (C1,), jnp.float32),
        "conv2.weight": 0.1 * jax.random.normal(ks[2], (C2, C1, 3, 3), jnp.float32),
        "conv2.bias": 0.1 * jax.random.normal(ks[3], (C2,), jnp.float32),
        "fc1.weight": 0.05 * jax.random.normal(ks[4], (NHID, NFEAT), jnp.float32),
        "fc1.bias": 0.05 * jax.random.normal(ks[5], (NHID,), jnp.float32),
        "fc2.weight": 0.05 * jax.random.normal(ks[6], (num_classes, NHID), jnp.float32),
        "fc2.bias": 0.05 * jax.random.normal(ks[7], (num_classes,), jnp.float32),
    }


if __name__ == "__main__":
    num_classes = 4
    key = jax.random.PRNGKey(0)
    k_x, k_p = jax.random.split(key)

    # MFCC "image" input, NCHW like the PyTorch module: 13 coeffs x 44 frames.
    x = jax.random.normal(k_x, (2, 1, H_IN, W_IN), jnp.float32)
    params = pack_params(init_torch_params(k_p, num_classes))

    out = jax.jit(mfccnet_forward)(x, params)
    out = jax.block_until_ready(out)
    assert out.shape == (2, num_classes), out.shape
    print("KERNEL_OK")
</pallas_src>

<mosaic_0001>
module attributes {stable_mosaic.version = 11 : i64} {
  func.func @_mfccnet_kernel(%arg0: i32, %arg1: memref<8x690xf32, #tpu.memory_space<vmem>>, %arg2: memref<128x72xf32, #tpu.memory_space<vmem>>, %arg3: memref<128x1xf32, #tpu.memory_space<vmem>>, %arg4: memref<549x192xf32, #tpu.memory_space<vmem>>, %arg5: memref<256x1152xf32, #tpu.memory_space<vmem>>, %arg6: memref<256x1xf32, #tpu.memory_space<vmem>>, %arg7: memref<117x33xf32, #tpu.memory_space<vmem>>, %arg8: memref<32x33x128xf32, #tpu.memory_space<vmem>>, %arg9: memref<1x128xf32, #tpu.memory_space<vmem>>, %arg10: memref<128x4xf32, #tpu.memory_space<vmem>>, %arg11: memref<1x4xf32, #tpu.memory_space<vmem>>, %arg12: memref<8x4xf32, #tpu.memory_space<vmem>>) attributes {dimension_semantics = [#tpu.dimension_semantics<parallel>], iteration_bounds = array<i64: 1>, scalar_prefetch = 0 : i64, scratch_operands = 0 : i64, tpu.core_type = #tpu.core_type<tc>, window_params = [{transform_indices = @transform_0, window_bounds = array<i64: 8, 690>}, {pipeline_mode = #tpu.pipeline_mode<synchronous>, transform_indices = @transform_1, window_bounds = array<i64: 128, 72>}, {pipeline_mode = #tpu.pipeline_mode<synchronous>, transform_indices = @transform_2, window_bounds = array<i64: 128, 1>}, {pipeline_mode = #tpu.pipeline_mode<synchronous>, transform_indices = @transform_3, window_bounds = array<i64: 549, 192>}, {pipeline_mode = #tpu.pipeline_mode<synchronous>, transform_indices = @transform_4, window_bounds = array<i64: 256, 1152>}, {pipeline_mode = #tpu.pipeline_mode<synchronous>, transform_indices = @transform_5, window_bounds = array<i64: 256, 1>}, {pipeline_mode = #tpu.pipeline_mode<synchronous>, transform_indices = @transform_6, window_bounds = array<i64: 117, 33>}, {pipeline_mode = #tpu.pipeline_mode<synchronous>, transform_indices = @transform_7, window_bounds = array<i64: 32, 33, 128>}, {pipeline_mode = #tpu.pipeline_mode<synchronous>, transform_indices = @transform_8, window_bounds = array<i64: 1, 128>}, {pipeline_mode = #tpu.pipeline_mode<synchronous>, transform_indices = @transform_9, window_bounds = array<i64: 128, 4>}, {pipeline_mode = #tpu.pipeline_mode<synchronous>, transform_indices = @transform_10, window_bounds = array<i64: 1, 4>}, {transform_indices = @transform_11, window_bounds = array<i64: 8, 4>}]} {
    %c0 = arith.constant 0 : index
    %c0_0 = arith.constant 0 : index
    %0 = vector.load %arg1[%c0, %c0_0] : memref<8x690xf32, #tpu.memory_space<vmem>>, vector<8x690xf32>
    %1 = vector.extract_strided_slice %0 {offsets = [0, 0], sizes = [8, 596], strides = [1, 1]} : vector<8x690xf32> to vector<8x596xf32>
    %2 = vector.extract_strided_slice %0 {offsets = [0, 1], sizes = [8, 596], strides = [1, 1]} : vector<8x690xf32> to vector<8x596xf32>
    %3 = vector.extract_strided_slice %0 {offsets = [0, 2], sizes = [8, 596], strides = [1, 1]} : vector<8x690xf32> to vector<8x596xf32>
    %4 = vector.extract_strided_slice %0 {offsets = [0, 46], sizes = [8, 596], strides = [1, 1]} : vector<8x690xf32> to vector<8x596xf32>
    %5 = vector.extract_strided_slice %0 {offsets = [0, 47], sizes = [8, 596], strides = [1, 1]} : vector<8x690xf32> to vector<8x596xf32>
    %6 = vector.extract_strided_slice %0 {offsets = [0, 48], sizes = [8, 596], strides = [1, 1]} : vector<8x690xf32> to vector<8x596xf32>
    %7 = vector.extract_strided_slice %0 {offsets = [0, 92], sizes = [8, 596], strides = [1, 1]} : vector<8x690xf32> to vector<8x596xf32>
    %8 = vector.extract_strided_slice %0 {offsets = [0, 93], sizes = [8, 596], strides = [1, 1]} : vector<8x690xf32> to vector<8x596xf32>
    %9 = vector.extract_strided_slice %0 {offsets = [0, 94], sizes = [8, 596], strides = [1, 1]} : vector<8x690xf32> to vector<8x596xf32>
    %10 = tpu.concatenate %1, %2, %3, %4, %5, %6, %7, %8, %9 in 0 : vector<8x596xf32>, vector<8x596xf32>, vector<8x596xf32>, vector<8x596xf32>, vector<8x596xf32>, vector<8x596xf32>, vector<8x596xf32>, vector<8x596xf32>, vector<8x596xf32> -> vector<72x596xf32>
    %c0_1 = arith.constant 0 : index
    %c0_2 = arith.constant 0 : index
    %11 = vector.load %arg2[%c0_1, %c0_2] : memref<128x72xf32, #tpu.memory_space<vmem>>, vector<128x72xf32>
    %cst = arith.constant dense<0.000000e+00> : vector<128x596xf32>
    %12 = tpu.matmul %11, %10, %cst {dimension_numbers = #tpu.dot_dimension_numbers<[1], [0], [0], [1], [0, 0, 1, 1], [], []>} : vector<128x72xf32>, vector<72x596xf32>, vector<128x596xf32> -> vector<128x596xf32>
    %c0_3 = arith.constant 0 : index
    %c0_4 = arith.constant 0 : index
    %13 = vector.load %arg3[%c0_3, %c0_4] : memref<128x1xf32, #tpu.memory_space<vmem>>, vector<128x1xf32>
    %14 = vector.broadcast %13 : vector<128x1xf32> to vector<128x596xf32>
    %15 = arith.addf %12, %14 : vector<128x596xf32>
    %cst_5 = arith.constant 0.000000e+00 : f32
    %16 = vector.broadcast %cst_5 : f32 to vector<128x596xf32>
    %17 = arith.maximumf %15, %16 : vector<128x596xf32>
    %18 = vector.extract_strided_slice %17 {offsets = [0, 0], sizes = [128, 595], strides = [1, 1]} : vector<128x596xf32> to vector<128x595xf32>
    %19 = vector.extract_strided_slice %17 {offsets = [0, 1], sizes = [128, 595], strides = [1, 1]} : vector<128x596xf32> to vector<128x595xf32>
    %20 = arith.maximumf %18, %19 : vector<128x595xf32>
    %21 = vector.extract_strided_slice %20 {offsets = [0, 0], sizes = [128, 549], strides = [1, 1]} : vector<128x595xf32> to vector<128x549xf32>
    %22 = vector.extract_strided_slice %20 {offsets = [0, 46], sizes = [128, 549], strides = [1, 1]} : vector<128x595xf32> to vector<128x549xf32>
    %23 = arith.maximumf %21, %22 : vector<128x549xf32>
    %c0_6 = arith.constant 0 : index
    %c0_7 = arith.constant 0 : index
    %24 = vector.load %arg4[%c0_6, %c0_7] : memref<549x192xf32, #tpu.memory_space<vmem>>, vector<549x192xf32>
    %cst_8 = arith.constant dense<0.000000e+00> : vector<128x192xf32>
    %25 = tpu.matmul %23, %24, %cst_8 {dimension_numbers = #tpu.dot_dimension_numbers<[1], [0], [0], [1], [0, 0, 1, 1], [], []>} : vector<128x549xf32>, vector<549x192xf32>, vector<128x192xf32> -> vector<128x192xf32>
    %26 = vector.extract_strided_slice %25 {offsets = [0, 0], sizes = [128, 142], strides = [1, 1]} : vector<128x192xf32> to vector<128x142xf32>
    %27 = vector.extract_strided_slice %25 {offsets = [0, 1], sizes = [128, 142], strides = [1, 1]} : vector<128x192xf32> to vector<128x142xf32>
    %28 = vector.extract_strided_slice %25 {offsets = [0, 2], sizes = [128, 142], strides = [1, 1]} : vector<128x192xf32> to vector<128x142xf32>
    %29 = vector.extract_strided_slice %25 {offsets = [0, 24], sizes = [128, 142], strides = [1, 1]} : vector<128x192xf32> to vector<128x142xf32>
    %30 = vector.extract_strided_slice %25 {offsets = [0, 25], sizes = [128, 142], strides = [1, 1]} : vector<128x192xf32> to vector<128x142xf32>
    %31 = vector.extract_strided_slice %25 {offsets = [0, 26], sizes = [128, 142], strides = [1, 1]} : vector<128x192xf32> to vector<128x142xf32>
    %32 = vector.extract_strided_slice %25 {offsets = [0, 48], sizes = [128, 142], strides = [1, 1]} : vector<128x192xf32> to vector<128x142xf32>
    %33 = vector.extract_strided_slice %25 {offsets = [0, 49], sizes = [128, 142], strides = [1, 1]} : vector<128x192xf32> to vector<128x142xf32>
    %34 = vector.extract_strided_slice %25 {offsets = [0, 50], sizes = [128, 142], strides = [1, 1]} : vector<128x192xf32> to vector<128x142xf32>
    %35 = tpu.concatenate %26, %27, %28, %29, %30, %31, %32, %33, %34 in 0 : vector<128x142xf32>, vector<128x142xf32>, vector<128x142xf32>, vector<128x142xf32>, vector<128x142xf32>, vector<128x142xf32>, vector<128x142xf32>, vector<128x142xf32>, vector<128x142xf32> -> vector<1152x142xf32>
    %c0_9 = arith.constant 0 : index
    %c0_10 = arith.constant 0 : index
    %36 = vector.load %arg5[%c0_9, %c0_10] : memref<256x1152xf32, #tpu.memory_space<vmem>>, vector<256x1152xf32>
    %cst_11 = arith.constant dense<0.000000e+00> : vector<256x142xf32>
    %37 = tpu.matmul %36, %35, %cst_11 {dimension_numbers = #tpu.dot_dimension_numbers<[1], [0], [0], [1], [0, 0, 1, 1], [], []>} : vector<256x1152xf32>, vector<1152x142xf32>, vector<256x142xf32> -> vector<256x142xf32>
    %c0_12 = arith.constant 0 : index
    %c0_13 = arith.constant 0 : index
    %38 = vector.load %arg6[%c0_12, %c0_13] : memref<256x1xf32, #tpu.memory_space<vmem>>, vector<256x1xf32>
    %39 = vector.broadcast %38 : vector<256x1xf32> to vector<256x142xf32>
    %40 = arith.addf %37, %39 : vector<256x142xf32>
    %cst_14 = arith.constant 0.000000e+00 : f32
    %41 = vector.broadcast %cst_14 : f32 to vector<256x142xf32>
    %42 = arith.maximumf %40, %41 : vector<256x142xf32>
    %43 = vector.extract_strided_slice %42 {offsets = [0, 0], sizes = [256, 141], strides = [1, 1]} : vector<256x142xf32> to vector<256x141xf32>
    %44 = vector.extract_strided_slice %42 {offsets = [0, 1], sizes = [256, 141], strides = [1, 1]} : vector<256x142xf32> to vector<256x141xf32>
    %45 = arith.maximumf %43, %44 : vector<256x141xf32>
    %46 = vector.extract_strided_slice %45 {offsets = [0, 0], sizes = [256, 117], strides = [1, 1]} : vector<256x141xf32> to vector<256x117xf32>
    %47 = vector.extract_strided_slice %45 {offsets = [0, 24], sizes = [256, 117], strides = [1, 1]} : vector<256x141xf32> to vector<256x117xf32>
    %48 = arith.maximumf %46, %47 : vector<256x117xf32>
    %c0_15 = arith.constant 0 : index
    %c0_16 = arith.constant 0 : index
    %49 = vector.load %arg7[%c0_15, %c0_16] : memref<117x33xf32, #tpu.memory_space<vmem>>, vector<117x33xf32>
    %cst_17 = arith.constant dense<0.000000e+00> : vector<256x33xf32>
    %50 = tpu.matmul %48, %49, %cst_17 {dimension_numbers = #tpu.dot_dimension_numbers<[1], [0], [0], [1], [0, 0, 1, 1], [], []>} : vector<256x117xf32>, vector<117x33xf32>, vector<256x33xf32> -> vector<256x33xf32>
    %51 = vector.shape_cast %50 : vector<256x33xf32> to vector<32x8x33xf32>
    %c0_18 = arith.constant 0 : index
    %c0_19 = arith.constant 0 : index
    %c0_20 = arith.constant 0 : index
    %52 = vector.load %arg8[%c0_18, %c0_19, %c0_20] : memref<32x33x128xf32, #tpu.memory_space<vmem>>, vector<32x33x128xf32>
    %cst_21 = arith.constant dense<0.000000e+00> : vector<32x8x128xf32>
    %53 = tpu.matmul %51, %52, %cst_21 {dimension_numbers = #tpu.dot_dimension_numbers<[2], [1], [1], [2], [0, 0, 0, 1, 1, 2], [0], [0]>} : vector<32x8x33xf32>, vector<32x33x128xf32>, vector<32x8x128xf32> -> vector<32x8x128xf32>
    %cst_22 = arith.constant dense<0.000000e+00> : vector<8x128xf32>
    %54 = vector.multi_reduction <add>, %53, %cst_22 [0] : vector<32x8x128xf32> to vector<8x128xf32>
    %c0_23 = arith.constant 0 : index
    %c0_24 = arith.constant 0 : index
    %55 = vector.load %arg9[%c0_23, %c0_24] : memref<1x128xf32, #tpu.memory_space<vmem>>, vector<1x128xf32>
    %56 = vector.broadcast %55 : vector<1x128xf32> to vector<8x128xf32>
    %57 = arith.addf %54, %56 : vector<8x128xf32>
    %cst_25 = arith.constant 0.000000e+00 : f32
    %58 = vector.broadcast %cst_25 : f32 to vector<8x128xf32>
    %59 = arith.maximumf %57, %58 : vector<8x128xf32>
    %c0_26 = arith.constant 0 : index
    %c0_27 = arith.constant 0 : index
    %60 = vector.load %arg10[%c0_26, %c0_27] : memref<128x4xf32, #tpu.memory_space<vmem>>, vector<128x4xf32>
    %cst_28 = arith.constant dense<0.000000e+00> : vector<8x4xf32>
    %61 = tpu.matmul %59, %60, %cst_28 {dimension_numbers = #tpu.dot_dimension_numbers<[1], [0], [0], [1], [0, 0, 1, 1], [], []>} : vector<8x128xf32>, vector<128x4xf32>, vector<8x4xf32> -> vector<8x4xf32>
    %c0_29 = arith.constant 0 : index
    %c0_30 = arith.constant 0 : index
    %62 = vector.load %arg11[%c0_29, %c0_30] : memref<1x4xf32, #tpu.memory_space<vmem>>, vector<1x4xf32>
    %63 = vector.broadcast %62 : vector<1x4xf32> to vector<8x4xf32>
    %64 = arith.addf %61, %63 : vector<8x4xf32>
    %c0_31 = arith.constant 0 : index
    %c0_32 = arith.constant 0 : index
    %65 = vector.load %arg12[%c0_31, %c0_32] : memref<8x4xf32, #tpu.memory_space<vmem>>, vector<8x4xf32>
    tpu.vector_store %arg12[%c0_31, %c0_32], %64 {strides = array<i32>} : memref<8x4xf32, #tpu.memory_space<vmem>>, vector<8x4xf32>,
    return
  }
  func.func @transform_0(%arg0: i32) -> (i32, i32) {
    %c0_i32 = arith.constant 0 : i32
    %c0_i32_0 = arith.constant 0 : i32
    return %arg0, %c0_i32 : i32, i32
  }
  func.func @transform_1(%arg0: i32) -> (i32, i32) {
    %c0_i32 = arith.constant 0 : i32
    %c0_i32_0 = arith.constant 0 : i32
    %c0_i32_1 = arith.constant 0 : i32
    return %c0_i32, %c0_i32_0 : i32, i32
  }
  func.func @transform_2(%arg0: i32) -> (i32, i32) {
    %c0_i32 = arith.constant 0 : i32
    %c0_i32_0 = arith.constant 0 : i32
    %c0_i32_1 = arith.constant 0 : i32
    return %c0_i32, %c0_i32_0 : i32, i32
  }
  func.func @transform_3(%arg0: i32) -> (i32, i32) {
    %c0_i32 = arith.constant 0 : i32
    %c0_i32_0 = arith.constant 0 : i32
    %c0_i32_1 = arith.constant 0 : i32
    return %c0_i32, %c0_i32_0 : i32, i32
  }
  func.func @transform_4(%arg0: i32) -> (i32, i32) {
    %c0_i32 = arith.constant 0 : i32
    %c0_i32_0 = arith.constant 0 : i32
    %c0_i32_1 = arith.constant 0 : i32
    return %c0_i32, %c0_i32_0 : i32, i32
  }
  func.func @transform_5(%arg0: i32) -> (i32, i32) {
    %c0_i32 = arith.constant 0 : i32
    %c0_i32_0 = arith.constant 0 : i32
    %c0_i32_1 = arith.constant 0 : i32
    return %c0_i32, %c0_i32_0 : i32, i32
  }
  func.func @transform_6(%arg0: i32) -> (i32, i32) {
    %c0_i32 = arith.constant 0 : i32
    %c0_i32_0 = arith.constant 0 : i32
    %c0_i32_1 = arith.constant 0 : i32
    return %c0_i32, %c0_i32_0 : i32, i32
  }
  func.func @transform_7(%arg0: i32) -> (i32, i32, i32) {
    %c0_i32 = arith.constant 0 : i32
    %c0_i32_0 = arith.constant 0 : i32
    %c0_i32_1 = arith.constant 0 : i32
    %c0_i32_2 = arith.constant 0 : i32
    return %c0_i32, %c0_i32_0, %c0_i32_1 : i32, i32, i32
  }
  func.func @transform_8(%arg0: i32) -> (i32, i32) {
    %c0_i32 = arith.constant 0 : i32
    %c0_i32_0 = arith.constant 0 : i32
    %c0_i32_1 = arith.constant 0 : i32
    return %c0_i32, %c0_i32_0 : i32, i32
  }
  func.func @transform_9(%arg0: i32) -> (i32, i32) {
    %c0_i32 = arith.constant 0 : i32
    %c0_i32_0 = arith.constant 0 : i32
    %c0_i32_1 = arith.constant 0 : i32
    return %c0_i32, %c0_i32_0 : i32, i32
  }
  func.func @transform_10(%arg0: i32) -> (i32, i32) {
    %c0_i32 = arith.constant 0 : i32
    %c0_i32_0 = arith.constant 0 : i32
    %c0_i32_1 = arith.constant 0 : i32
    return %c0_i32, %c0_i32_0 : i32, i32
  }
  func.func @transform_11(%arg0: i32) -> (i32, i32) {
    %c0_i32 = arith.constant 0 : i32
    %c0_i32_0 = arith.constant 0 : i32
    return %arg0, %c0_i32 : i32, i32
  }
}

</mosaic_0001>

<llo_original>
// kernel: mfccnet_forward.1
$region0: #{mfccnet_forward.1}
  #allocation0 [shape = 'u32[]', space=smem, size = 0x4, offset = 0x4, fixed_abs, tag = 'smem constant byte address 0x4 - core index']
  #allocation1 [shape = 'u32[72,128]{1,0:T(1,128)}', space=vmem, size = 0x9000, scoped, tag = 'internal scratch']
  %s0 = inlined_call_operand.vmem [shape: f32[8,690], index: 0, kind: input, shape index: {}]
  %s1 = inlined_call_operand.vmem [shape: f32[128,72], index: 1, kind: input, shape index: {}]
  %s2 = inlined_call_operand.vmem [shape: f32[128,1], index: 2, kind: input, shape index: {}]
  %s3 = inlined_call_operand.vmem [shape: f32[549,192], index: 3, kind: input, shape index: {}]
  %s4 = inlined_call_operand.vmem [shape: f32[256,1152], index: 4, kind: input, shape index: {}]
  %s5 = inlined_call_operand.vmem [shape: f32[256,1], index: 5, kind: input, shape index: {}]
  %s6 = inlined_call_operand.vmem [shape: f32[117,33], index: 6, kind: input, shape index: {}]
  %s7 = inlined_call_operand.vmem [shape: f32[32,33,128], index: 7, kind: input, shape index: {}]
  %s8 = inlined_call_operand.vmem [shape: f32[1,128], index: 8, kind: input, shape index: {}]
  %s9 = inlined_call_operand.vmem [shape: f32[128,4], index: 9, kind: input, shape index: {}]
  %s10 = inlined_call_operand.vmem [shape: f32[1,4], index: 10, kind: input, shape index: {}]
  %s11 = inlined_call_operand.vmem [shape: f32[8,4], index: 11, kind: output, shape index: {}]
  %s12 = sld [smem:[#allocation0]]
  $region54: #{mfccnet_forward.1} parent=0
    _
  %s14 = ssub.s32 1, %s12
  %s15 = scalar_select 0, %s14, %s12
  // Predicated region
  $region2: #{mfccnet_forward.1} parent=0 // pred_check
    _
  $region3: #{mfccnet_forward.1} parent=0 // pred_check_branch
    %17 = sbr.rel (0) target = $region5
  $region4: #{mfccnet_forward.1} parent=0 // pred_region
    _
  $region5: #{mfccnet_forward.1} parent=0 // pred_fallthru
    _
  // Predicated region
  $region6: #{mfccnet_forward.1} parent=0 // pred_check
    _
  $region7: #{mfccnet_forward.1} parent=0 // pred_check_branch
    %19 = sbr.rel (0) target = $region9
  $region8: #{mfccnet_forward.1} parent=0 // pred_region
    _
  $region9: #{mfccnet_forward.1} parent=0 // pred_fallthru
    _
  // Predicated region
  $region10: #{mfccnet_forward.1} parent=0 // pred_check
    _
  $region11: #{mfccnet_forward.1} parent=0 // pred_check_branch
    %21 = sbr.rel (0) target = $region13
  $region12: #{mfccnet_forward.1} parent=0 // pred_region
    _
  $region13: #{mfccnet_forward.1} parent=0 // pred_fallthru
    _
  // Predicated region
  $region14: #{mfccnet_forward.1} parent=0 // pred_check
    _
  $region15: #{mfccnet_forward.1} parent=0 // pred_check_branch
    %23 = sbr.rel (0) target = $region17
  $region16: #{mfccnet_forward.1} parent=0 // pred_region
    _
  $region17: #{mfccnet_forward.1} parent=0 // pred_fallthru
    _
  // Predicated region
  $region18: #{mfccnet_forward.1} parent=0 // pred_check
    _
  $region19: #{mfccnet_forward.1} parent=0 // pred_check_branch
    %25 = sbr.rel (0) target = $region21
  $region20: #{mfccnet_forward.1} parent=0 // pred_region
    _
  $region21: #{mfccnet_forward.1} parent=0 // pred_fallthru
    _
  // Predicated region
  $region22: #{mfccnet_forward.1} parent=0 // pred_check
    _
  $region23: #{mfccnet_forward.1} parent=0 // pred_check_branch
    %27 = sbr.rel (0) target = $region25
  $region24: #{mfccnet_forward.1} parent=0 // pred_region
    _
  $region25: #{mfccnet_forward.1} parent=0 // pred_fallthru
    _
  // Predicated region
  $region26: #{mfccnet_forward.1} parent=0 // pred_check
    _
  $region27: #{mfccnet_forward.1} parent=0 // pred_check_branch
    %29 = sbr.rel (0) target = $region29
  $region28: #{mfccnet_forward.1} parent=0 // pred_region
    _
  $region29: #{mfccnet_forward.1} parent=0 // pred_fallthru
    _
  // Predicated region
  $region30: #{mfccnet_forward.1} parent=0 // pred_check
    _
  $region31: #{mfccnet_forward.1} parent=0 // pred_check_branch
    %31 = sbr.rel (0) target = $region33
  $region32: #{mfccnet_forward.1} parent=0 // pred_region
    _
  $region33: #{mfccnet_forward.1} parent=0 // pred_fallthru
    _
  // Predicated region
  $region34: #{mfccnet_forward.1} parent=0 // pred_check
    _
  $region35: #{mfccnet_forward.1} parent=0 // pred_check_branch
    %33 = sbr.rel (0) target = $region37
  $region36: #{mfccnet_forward.1} parent=0 // pred_region
    _
  $region37: #{mfccnet_forward.1} parent=0 // pred_fallthru
    _
  // Predicated region
  $region38: #{mfccnet_forward.1} parent=0 // pred_check
    _
  $region39: #{mfccnet_forward.1} parent=0 // pred_check_branch
    %35 = sbr.rel (0) target = $region41
  $region40: #{mfccnet_forward.1} parent=0 // pred_region
    _
  $region41: #{mfccnet_forward.1} parent=0 // pred_fallthru
    _
  // Predicated region
  $region42: #{mfccnet_forward.1} parent=0 // pred_check
    _
  $region43: #{mfccnet_forward.1} parent=0 // pred_check_branch
    %37 = sbr.rel (0) target = $region45
  $region44: #{mfccnet_forward.1} parent=0 // pred_region
    _
  $region45: #{mfccnet_forward.1} parent=0 // pred_fallthru
    _
  %v38 = vld [vmem:[%s0] sm:$0xff]
  %v39 = vld [vmem:[%s0 + $0x8] sm:$0xff]
  %v40 = vld [vmem:[%s0 + $0x10] sm:$0xff]
  %v41 = vld [vmem:[%s0 + $0x18] sm:$0xff]
  %v42 = vld [vmem:[%s0 + $0x20] sm:$0xff]
  %v43 = vld [vmem:[%s0 + $0x28] sm:$0xff]
  %49 = vrot.lane.b32.xlu0 %v38, 127
  %v50 = vpop.permute.xlu0 %49
  %51 = vrot.lane.b32.xlu0 %v39, 127
  %v52 = vpop.permute.xlu0 %51
  %53 = vrot.lane.b32.xlu0 %v40, 127
  %v54 = vpop.permute.xlu0 %53
  %55 = vrot.lane.b32.xlu0 %v41, 127
  %v56 = vpop.permute.xlu0 %55
  %57 = vrot.lane.b32.xlu0 %v42, 127
  %v58 = vpop.permute.xlu0 %57
  %vm59 = vcmask 1039360
  %v60 = vsel %vm59, %v50, %v52
  %v61 = vsel %vm59, %v52, %v54
  %v62 = vsel %vm59, %v54, %v56
  %v63 = vsel %vm59, %v56, %v58
  %69 = vrot.lane.b32.xlu0 %v38, 126
  %v70 = vpop.permute.xlu0 %69
  %71 = vrot.lane.b32.xlu0 %v39, 126
  %v72 = vpop.permute.xlu0 %71
  %73 = vrot.lane.b32.xlu0 %v40, 126
  %v74 = vpop.permute.xlu0 %73
  %75 = vrot.lane.b32.xlu0 %v41, 126
  %v76 = vpop.permute.xlu0 %75
  %77 = vrot.lane.b32.xlu0 %v42, 126
  %v78 = vpop.permute.xlu0 %77
  %vm79 = vcmask 1031168
  %v80 = vsel %vm79, %v70, %v72
  %v81 = vsel %vm79, %v72, %v74
  %v82 = vsel %vm79, %v74, %v76
  %v83 = vsel %vm79, %v76, %v78
  %90 = vrot.lane.b32.xlu0 %v38, 82
  %v91 = vpop.permute.xlu0 %90
  %92 = vrot.lane.b32.xlu0 %v39, 82
  %v93 = vpop.permute.xlu0 %92
  %94 = vrot.lane.b32.xlu0 %v40, 82
  %v95 = vpop.permute.xlu0 %94
  %96 = vrot.lane.b32.xlu0 %v41, 82
  %v97 = vpop.permute.xlu0 %96
  %98 = vrot.lane.b32.xlu0 %v42, 82
  %v99 = vpop.permute.xlu0 %98
  %100 = vrot.lane.b32.xlu0 %v43, 82
  %v101 = vpop.permute.xlu0 %100
  %vm102 = vcmask 670720
  %v103 = vsel %vm102, %v91, %v93
  %v104 = vsel %vm102, %v93, %v95
  %v105 = vsel %vm102, %v95, %v97
  %v106 = vsel %vm102, %v97, %v99
  %v107 = vsel %vm102, %v99, %v101
  %113 = vrot.lane.b32.xlu0 %v38, 81
  %v114 = vpop.permute.xlu0 %113
  %115 = vrot.lane.b32.xlu0 %v39, 81
  %v116 = vpop.permute.xlu0 %115
  %117 = vrot.lane.b32.xlu0 %v40, 81
  %v118 = vpop.permute.xlu0 %117
  %119 = vrot.lane.b32.xlu0 %v41, 81
  %v120 = vpop.permute.xlu0 %119
  %121 = vrot.lane.b32.xlu0 %v42, 81
  %v122 = vpop.permute.xlu0 %121
  %123 = vrot.lane.b32.xlu0 %v43, 81
  %v124 = vpop.permute.xlu0 %123
  %vm125 = vcmask 662528
  %v126 = vsel %vm125, %v114, %v116
  %v127 = vsel %vm125, %v116, %v118
  %v128 = vsel %vm125, %v118, %v120
  %v129 = vsel %vm125, %v120, %v122
  %v130 = vsel %vm125, %v122, %v124
  %136 = vrot.lane.b32.xlu0 %v38, 80
  %v137 = vpop.permute.xlu0 %136
  %138 = vrot.lane.b32.xlu0 %v39, 80
  %v139 = vpop.permute.xlu0 %138
  %140 = vrot.lane.b32.xlu0 %v40, 80
  %v141 = vpop.permute.xlu0 %140
  %142 = vrot.lane.b32.xlu0 %v41, 80
  %v143 = vpop.permute.xlu0 %142
  %144 = vrot.lane.b32.xlu0 %v42, 80
  %v145 = vpop.permute.xlu0 %144
  %146 = vrot.lane.b32.xlu0 %v43, 80
  %v147 = vpop.permute.xlu0 %146
  %vm148 = vcmask 654336
  %v149 = vsel %vm148, %v137, %v139
  %v150 = vsel %vm148, %v139, %v141
  %v151 = vsel %vm148, %v141, %v143
  %v152 = vsel %vm148, %v143, %v145
  %v153 = vsel %vm148, %v145, %v147
  %159 = vrot.lane.b32.xlu0 %v38, 36
  %v160 = vpop.permute.xlu0 %159
  %161 = vrot.lane.b32.xlu0 %v39, 36
  %v162 = vpop.permute.xlu0 %161
  %163 = vrot.lane.b32.xlu0 %v40, 36
  %v164 = vpop.permute.xlu0 %163
  %165 = vrot.lane.b32.xlu0 %v41, 36
  %v166 = vpop.permute.xlu0 %165
  %167 = vrot.lane.b32.xlu0 %v42, 36
  %v168 = vpop.permute.xlu0 %167
  %169 = vrot.lane.b32.xlu0 %v43, 36
  %v170 = vpop.permute.xlu0 %169
  %vm171 = vcmask 293888
  %v172 = vsel %vm171, %v160, %v162
  %v173 = vsel %vm171, %v162, %v164
  %v174 = vsel %vm171, %v164, %v166
  %v175 = vsel %vm171, %v166, %v168
  %v176 = vsel %vm171, %v168, %v170
  %182 = vrot.lane.b32.xlu0 %v38, 35
  %v183 = vpop.permute.xlu0 %182
  %184 = vrot.lane.b32.xlu0 %v39, 35
  %v185 = vpop.permute.xlu0 %184
  %186 = vrot.lane.b32.xlu0 %v40, 35
  %v187 = vpop.permute.xlu0 %186
  %188 = vrot.lane.b32.xlu0 %v41, 35
  %v189 = vpop.permute.xlu0 %188
  %190 = vrot.lane.b32.xlu0 %v42, 35
  %v191 = vpop.permute.xlu0 %190
  %192 = vrot.lane.b32.xlu0 %v43, 35
  %v193 = vpop.permute.xlu0 %192
  %vm194 = vcmask 285696
  %v195 = vsel %vm194, %v183, %v185
  %v196 = vsel %vm194, %v185, %v187
  %v197 = vsel %vm194, %v187, %v189
  %v198 = vsel %vm194, %v189, %v191
  %v199 = vsel %vm194, %v191, %v193
  %205 = vrot.lane.b32.xlu0 %v38, 34
  %v206 = vpop.permute.xlu0 %205
  %207 = vrot.lane.b32.xlu0 %v39, 34
  %v208 = vpop.permute.xlu0 %207
  %209 = vrot.lane.b32.xlu0 %v40, 34
  %v210 = vpop.permute.xlu0 %209
  %211 = vrot.lane.b32.xlu0 %v41, 34
  %v212 = vpop.permute.xlu0 %211
  %213 = vrot.lane.b32.xlu0 %v42, 34
  %v214 = vpop.permute.xlu0 %213
  %215 = vrot.lane.b32.xlu0 %v43, 34
  %v216 = vpop.permute.xlu0 %215
  %vm217 = vcmask 277504
  %v218 = vsel %vm217, %v206, %v208
  %v219 = vsel %vm217, %v208, %v210
  %v220 = vsel %vm217, %v210, %v212
  %v221 = vsel %vm217, %v212, %v214
  %v222 = vsel %vm217, %v214, %v216
  %v228 = vld [vmem:[%s1] sm:$0xff]
  %v229 = vld [vmem:[%s1 + $0x8] sm:$0xff]
  %v230 = vld [vmem:[%s1 + $0x10] sm:$0xff]
  %v231 = vld [vmem:[%s1 + $0x18] sm:$0xff]
  %v232 = vld [vmem:[%s1 + $0x20] sm:$0xff]
  %v233 = vld [vmem:[%s1 + $0x28] sm:$0xff]
  %v234 = vld [vmem:[%s1 + $0x30] sm:$0xff]
  %v235 = vld [vmem:[%s1 + $0x38] sm:$0xff]
  %v236 = vld [vmem:[%s1 + $0x40] sm:$0xff]
  %v237 = vld [vmem:[%s1 + $0x48] sm:$0xff]
  %v238 = vld [vmem:[%s1 + $0x50] sm:$0xff]
  %v239 = vld [vmem:[%s1 + $0x58] sm:$0xff]
  %v240 = vld [vmem:[%s1 + $0x60] sm:$0xff]
  %v241 = vld [vmem:[%s1 + $0x68] sm:$0xff]
  %v242 = vld [vmem:[%s1 + $0x70] sm:$0xff]
  %v243 = vld [vmem:[%s1 + $0x78] sm:$0xff]
  %v244 = vld [vmem:[%s2] sm:$0xff]
  %v245 = vld [vmem:[%s2 + $0x8] sm:$0xff]
  %v246 = vld [vmem:[%s2 + $0x10] sm:$0xff]
  %v247 = vld [vmem:[%s2 + $0x18] sm:$0xff]
  %v248 = vld [vmem:[%s2 + $0x20] sm:$0xff]
  %v249 = vld [vmem:[%s2 + $0x28] sm:$0xff]
  %v250 = vld [vmem:[%s2 + $0x30] sm:$0xff]
  %v251 = vld [vmem:[%s2 + $0x38] sm:$0xff]
  %v252 = vld [vmem:[%s2 + $0x40] sm:$0xff]
  %v253 = vld [vmem:[%s2 + $0x48] sm:$0xff]
  %v254 = vld [vmem:[%s2 + $0x50] sm:$0xff]
  %v255 = vld [vmem:[%s2 + $0x58] sm:$0xff]
  %v256 = vld [vmem:[%s2 + $0x60] sm:$0xff]
  %v257 = vld [vmem:[%s2 + $0x68] sm:$0xff]
  %v258 = vld [vmem:[%s2 + $0x70] sm:$0xff]
  %v259 = vld [vmem:[%s2 + $0x78] sm:$0xff]
  %261 = vset.pattern.permute.xlu0 0
  %262 = vperm.xlu0 %261, %v244
  %v263 = vpop.permute.xlu0 %262
  %266 = vset.pattern.permute.xlu0 0
  %267 = vperm.xlu0 %266, %v245
  %v268 = vpop.permute.xlu0 %267
  %271 = vset.pattern.permute.xlu0 0
  %272 = vperm.xlu0 %271, %v246
  %v273 = vpop.permute.xlu0 %272
  %276 = vset.pattern.permute.xlu0 0
  %277 = vperm.xlu0 %276, %v247
  %v278 = vpop.permute.xlu0 %277
  %281 = vset.pattern.permute.xlu0 0
  %282 = vperm.xlu0 %281, %v248
  %v283 = vpop.permute.xlu0 %282
  %286 = vset.pattern.permute.xlu0 0
  %287 = vperm.xlu0 %286, %v249
  %v288 = vpop.permute.xlu0 %287
  %291 = vset.pattern.permute.xlu0 0
  %292 = vperm.xlu0 %291, %v250
  %v293 = vpop.permute.xlu0 %292
  %296 = vset.pattern.permute.xlu0 0
  %297 = vperm.xlu0 %296, %v251
  %v298 = vpop.permute.xlu0 %297
  %301 = vset.pattern.permute.xlu0 0
  %302 = vperm.xlu0 %301, %v252
  %v303 = vpop.permute.xlu0 %302
  %306 = vset.pattern.permute.xlu0 0
  %307 = vperm.xlu0 %306, %v253
  %v308 = vpop.permute.xlu0 %307
  %311 = vset.pattern.permute.xlu0 0
  %312 = vperm.xlu0 %311, %v254
  %v313 = vpop.permute.xlu0 %312
  %316 = vset.pattern.permute.xlu0 0
  %317 = vperm.xlu0 %316, %v255
  %v318 = vpop.permute.xlu0 %317
  %321 = vset.pattern.permute.xlu0 0
  %322 = vperm.xlu0 %321, %v256
  %v323 = vpop.permute.xlu0 %322
  %326 = vset.pattern.permute.xlu0 0
  %327 = vperm.xlu0 %326, %v257
  %v328 = vpop.permute.xlu0 %327
  %331 = vset.pattern.permute.xlu0 0
  %332 = vperm.xlu0 %331, %v258
  %v333 = vpop.permute.xlu0 %332
  %336 = vset.pattern.permute.xlu0 0
  %337 = vperm.xlu0 %336, %v259
  %v338 = vpop.permute.xlu0 %337
  %vm340 = vcmask 588800
  %v342 = vsel %vm340, %v228, 0
  %v345 = vsel %vm340, %v229, 0
  %v348 = vsel %vm340, %v230, 0
  %v351 = vsel %vm340, %v231, 0
  %v354 = vsel %vm340, %v232, 0
  %v357 = vsel %vm340, %v233, 0
  %v360 = vsel %vm340, %v234, 0
  %v363 = vsel %vm340, %v235, 0
  %v366 = vsel %vm340, %v236, 0
  %v369 = vsel %vm340, %v237, 0
  %v372 = vsel %vm340, %v238, 0
  %v375 = vsel %vm340, %v239, 0
  %v378 = vsel %vm340, %v240, 0
  %v381 = vsel %vm340, %v241, 0
  %v384 = vsel %vm340, %v242, 0
  %v387 = vsel %vm340, %v243, 0
  %389 = vmatpush.msra.mxu0 0.0
  %390 = vmatpush.msra.mxu0 0.0
  %391 = vmatpush.msra.mxu0 0.0
  %392 = vmatpush.msra.mxu0 0.0
  %393 = vmatpush.msra.mxu0 0.0
  %394 = vmatpush.msra.mxu0 0.0
  %395 = vmatpush.msra.mxu0 0.0
  %396 = vmatpush.msra.mxu0 %v218
  %397 = vmatpush.msra.mxu0 %v195
  %398 = vmatpush.msra.mxu0 %v172
  %399 = vmatpush.msra.mxu0 %v149
  %400 = vmatpush.msra.mxu0 %v126
  %401 = vmatpush.msra.mxu0 %v103
  %402 = vmatpush.msra.mxu0 %v80
  %403 = vmatpush.msra.mxu0 %v60
  %404 = vmatpush.msra.mxu0 %v38
  %405 = vmatmul.f32.gmra.mxu0 %v342
  %v406 = vpop.f32.mrf.mxu0
  %v407 = vadd.f32 %v263, %v406
  %408 = vmatmul.f32.gmra.mxu0 %v345
  %v409 = vpop.f32.mrf.mxu0
  %v410 = vadd.f32 %v268, %v409
  %411 = vmatmul.f32.gmra.mxu0 %v348
  %v412 = vpop.f32.mrf.mxu0
  %v413 = vadd.f32 %v273, %v412
  %414 = vmatmul.f32.gmra.mxu0 %v351
  %v415 = vpop.f32.mrf.mxu0
  %v416 = vadd.f32 %v278, %v415
  %417 = vmatmul.f32.gmra.mxu0 %v354
  %v418 = vpop.f32.mrf.mxu0
  %v419 = vadd.f32 %v283, %v418
  %420 = vmatmul.f32.gmra.mxu0 %v357
  %v421 = vpop.f32.mrf.mxu0
  %v422 = vadd.f32 %v288, %v421
  %423 = vmatmul.f32.gmra.mxu0 %v360
  %v424 = vpop.f32.mrf.mxu0
  %v425 = vadd.f32 %v293, %v424
  %426 = vmatmul.f32.gmra.mxu0 %v363
  %v427 = vpop.f32.mrf.mxu0
  %v428 = vadd.f32 %v298, %v427
  %429 = vmatmul.f32.gmra.mxu0 %v366
  %v430 = vpop.f32.mrf.mxu0
  %v431 = vadd.f32 %v303, %v430
  %432 = vmatmul.f32.gmra.mxu0 %v369
  %v433 = vpop.f32.mrf.mxu0
  %v434 = vadd.f32 %v308, %v433
  %435 = vmatmul.f32.gmra.mxu0 %v372
  %v436 = vpop.f32.mrf.mxu0
  %v437 = vadd.f32 %v313, %v436
  %438 = vmatmul.f32.gmra.mxu0 %v375
  %v439 = vpop.f32.mrf.mxu0
  %v440 = vadd.f32 %v318, %v439
  %441 = vmatmul.f32.gmra.mxu0 %v378
  %v442 = vpop.f32.mrf.mxu0
  %v443 = vadd.f32 %v323, %v442
  %444 = vmatmul.f32.gmra.mxu0 %v381
  %v445 = vpop.f32.mrf.mxu0
  %v446 = vadd.f32 %v328, %v445
  %447 = vmatmul.f32.gmra.mxu0 %v384
  %v448 = vpop.f32.mrf.mxu0
  %v449 = vadd.f32 %v333, %v448
  %450 = vmatmul.f32.gmra.mxu0 %v387
  %v451 = vpop.f32.mrf.mxu0
  %v452 = vadd.f32 %v338, %v451
  %453 = vdwg.mxu0
  %454 = vmatpush.msra.mxu0 0.0
  %455 = vmatpush.msra.mxu0 0.0
  %456 = vmatpush.msra.mxu0 0.0
  %457 = vmatpush.msra.mxu0 0.0
  %458 = vmatpush.msra.mxu0 0.0
  %459 = vmatpush.msra.mxu0 0.0
  %460 = vmatpush.msra.mxu0 0.0
  %461 = vmatpush.msra.mxu0 %v219
  %462 = vmatpush.msra.mxu0 %v196
  %463 = vmatpush.msra.mxu0 %v173
  %464 = vmatpush.msra.mxu0 %v150
  %465 = vmatpush.msra.mxu0 %v127
  %466 = vmatpush.msra.mxu0 %v104
  %467 = vmatpush.msra.mxu0 %v81
  %468 = vmatpush.msra.mxu0 %v61
  %469 = vmatpush.msra.mxu0 %v39
  %470 = vmatmul.f32.gmra.mxu0 %v342
  %v471 = vpop.f32.mrf.mxu0
  %v472 = vadd.f32 %v263, %v471
  %473 = vmatmul.f32.gmra.mxu0 %v345
  %v474 = vpop.f32.mrf.mxu0
  %v475 = vadd.f32 %v268, %v474
  %476 = vmatmul.f32.gmra.mxu0 %v348
  %v477 = vpop.f32.mrf.mxu0
  %v478 = vadd.f32 %v273, %v477
  %479 = vmatmul.f32.gmra.mxu0 %v351
  %v480 = vpop.f32.mrf.mxu0
  %v481 = vadd.f32 %v278, %v480
  %482 = vmatmul.f32.gmra.mxu0 %v354
  %v483 = vpop.f32.mrf.mxu0
  %v484 = vadd.f32 %v283, %v483
  %485 = vmatmul.f32.gmra.mxu0 %v357
  %v486 = vpop.f32.mrf.mxu0
  %v487 = vadd.f32 %v288, %v486
  %488 = vmatmul.f32.gmra.mxu0 %v360
  %v489 = vpop.f32.mrf.mxu0
  %v490 = vadd.f32 %v293, %v489
  %491 = vmatmul.f32.gmra.mxu0 %v363
  %v492 = vpop.f32.mrf.mxu0
  %v493 = vadd.f32 %v298, %v492
  %494 = vmatmul.f32.gmra.mxu0 %v366
  %v495 = vpop.f32.mrf.mxu0
  %v496 = vadd.f32 %v303, %v495
  %497 = vmatmul.f32.gmra.mxu0 %v369
  %v498 = vpop.f32.mrf.mxu0
  %v499 = vadd.f32 %v308, %v498
  %500 = vmatmul.f32.gmra.mxu0 %v372
  %v501 = vpop.f32.mrf.mxu0
  %v502 = vadd.f32 %v313, %v501
  %503 = vmatmul.f32.gmra.mxu0 %v375
  %v504 = vpop.f32.mrf.mxu0
  %v505 = vadd.f32 %v318, %v504
  %506 = vmatmul.f32.gmra.mxu0 %v378
  %v507 = vpop.f32.mrf.mxu0
  %v508 = vadd.f32 %v323, %v507
  %509 = vmatmul.f32.gmra.mxu0 %v381
  %v510 = vpop.f32.mrf.mxu0
  %v511 = vadd.f32 %v328, %v510
  %512 = vmatmul.f32.gmra.mxu0 %v384
  %v513 = vpop.f32.mrf.mxu0
  %v514 = vadd.f32 %v333, %v513
  %515 = vmatmul.f32.gmra.mxu0 %v387
  %v516 = vpop.f32.mrf.mxu0
  %v517 = vadd.f32 %v338, %v516
  %518 = vdwg.mxu0
  %519 = vmatpush.msra.mxu0 0.0
  %520 = vmatpush.msra.mxu0 0.0
  %521 = vmatpush.msra.mxu0 0.0
  %522 = vmatpush.msra.mxu0 0.0
  %523 = vmatpush.msra.mxu0 0.0
  %524 = vmatpush.msra.mxu0 0.0
  %525 = vmatpush.msra.mxu0 0.0
  %526 = vmatpush.msra.mxu0 %v220
  %527 = vmatpush.msra.mxu0 %v197
  %528 = vmatpush.msra.mxu0 %v174
  %529 = vmatpush.msra.mxu0 %v151
  %530 = vmatpush.msra.mxu0 %v128
  %531 = vmatpush.msra.mxu0 %v105
  %532 = vmatpush.msra.mxu0 %v82
  %533 = vmatpush.msra.mxu0 %v62
  %534 = vmatpush.msra.mxu0 %v40
  %535 = vmatmul.f32.gmra.mxu0 %v342
  %v536 = vpop.f32.mrf.mxu0
  %v537 = vadd.f32 %v263, %v536
  %538 = vmatmul.f32.gmra.mxu0 %v345
  %v539 = vpop.f32.mrf.mxu0
  %v540 = vadd.f32 %v268, %v539
  %541 = vmatmul.f32.gmra.mxu0 %v348
  %v542 = vpop.f32.mrf.mxu0
  %v543 = vadd.f32 %v273, %v542
  %544 = vmatmul.f32.gmra.mxu0 %v351
  %v545 = vpop.f32.mrf.mxu0
  %v546 = vadd.f32 %v278, %v545
  %547 = vmatmul.f32.gmra.mxu0 %v354
  %v548 = vpop.f32.mrf.mxu0
  %v549 = vadd.f32 %v283, %v548
  %550 = vmatmul.f32.gmra.mxu0 %v357
  %v551 = vpop.f32.mrf.mxu0
  %v552 = vadd.f32 %v288, %v551
  %553 = vmatmul.f32.gmra.mxu0 %v360
  %v554 = vpop.f32.mrf.mxu0
  %v555 = vadd.f32 %v293, %v554
  %556 = vmatmul.f32.gmra.mxu0 %v363
  %v557 = vpop.f32.mrf.mxu0
  %v558 = vadd.f32 %v298, %v557
  %559 = vmatmul.f32.gmra.mxu0 %v366
  %v560 = vpop.f32.mrf.mxu0
  %v561 = vadd.f32 %v303, %v560
  %562 = vmatmul.f32.gmra.mxu0 %v369
  %v563 = vpop.f32.mrf.mxu0
  %v564 = vadd.f32 %v308, %v563
  %565 = vmatmul.f32.gmra.mxu0 %v372
  %v566 = vpop.f32.mrf.mxu0
  %v567 = vadd.f32 %v313, %v566
  %568 = vmatmul.f32.gmra.mxu0 %v375
  %v569 = vpop.f32.mrf.mxu0
  %v570 = vadd.f32 %v318, %v569
  %571 = vmatmul.f32.gmra.mxu0 %v378
  %v572 = vpop.f32.mrf.mxu0
  %v573 = vadd.f32 %v323, %v572
  %574 = vmatmul.f32.gmra.mxu0 %v381
  %v575 = vpop.f32.mrf.mxu0
  %v576 = vadd.f32 %v328, %v575
  %577 = vmatmul.f32.gmra.mxu0 %v384
  %v578 = vpop.f32.mrf.mxu0
  %v579 = vadd.f32 %v333, %v578
  %580 = vmatmul.f32.gmra.mxu0 %v387
  %v581 = vpop.f32.mrf.mxu0
  %v582 = vadd.f32 %v338, %v581
  %583 = vdwg.mxu0
  %584 = vmatpush.msra.mxu0 0.0
  %585 = vmatpush.msra.mxu0 0.0
  %586 = vmatpush.msra.mxu0 0.0
  %587 = vmatpush.msra.mxu0 0.0
  %588 = vmatpush.msra.mxu0 0.0
  %589 = vmatpush.msra.mxu0 0.0
  %590 = vmatpush.msra.mxu0 0.0
  %591 = vmatpush.msra.mxu0 %v221
  %592 = vmatpush.msra.mxu0 %v198
  %593 = vmatpush.msra.mxu0 %v175
  %594 = vmatpush.msra.mxu0 %v152
  %595 = vmatpush.msra.mxu0 %v129
  %596 = vmatpush.msra.mxu0 %v106
  %597 = vmatpush.msra.mxu0 %v83
  %598 = vmatpush.msra.mxu0 %v63
  %599 = vmatpush.msra.mxu0 %v41
  %600 = vmatmul.f32.gmra.mxu0 %v342
  %v601 = vpop.f32.mrf.mxu0
  %v602 = vadd.f32 %v263, %v601
  %603 = vmatmul.f32.gmra.mxu0 %v345
  %v604 = vpop.f32.mrf.mxu0
  %v605 = vadd.f32 %v268, %v604
  %606 = vmatmul.f32.gmra.mxu0 %v348
  %v607 = vpop.f32.mrf.mxu0
  %v608 = vadd.f32 %v273, %v607
  %609 = vmatmul.f32.gmra.mxu0 %v351
  %v610 = vpop.f32.mrf.mxu0
  %v611 = vadd.f32 %v278, %v610
  %612 = vmatmul.f32.gmra.mxu0 %v354
  %v613 = vpop.f32.mrf.mxu0
  %v614 = vadd.f32 %v283, %v613
  %615 = vmatmul.f32.gmra.mxu0 %v357
  %v616 = vpop.f32.mrf.mxu0
  %v617 = vadd.f32 %v288, %v616
  %618 = vmatmul.f32.gmra.mxu0 %v360
  %v619 = vpop.f32.mrf.mxu0
  %v620 = vadd.f32 %v293, %v619
  %621 = vmatmul.f32.gmra.mxu0 %v363
  %v622 = vpop.f32.mrf.mxu0
  %v623 = vadd.f32 %v298, %v622
  %624 = vmatmul.f32.gmra.mxu0 %v366
  %v625 = vpop.f32.mrf.mxu0
  %v626 = vadd.f32 %v303, %v625
  %627 = vmatmul.f32.gmra.mxu0 %v369
  %v628 = vpop.f32.mrf.mxu0
  %v629 = vadd.f32 %v308, %v628
  %630 = vmatmul.f32.gmra.mxu0 %v372
  %v631 = vpop.f32.mrf.mxu0
  %v632 = vadd.f32 %v313, %v631
  %633 = vmatmul.f32.gmra.mxu0 %v375
  %v634 = vpop.f32.mrf.mxu0
  %v635 = vadd.f32 %v318, %v634
  %636 = vmatmul.f32.gmra.mxu0 %v378
  %v637 = vpop.f32.mrf.mxu0
  %v638 = vadd.f32 %v323, %v637
  %639 = vmatmul.f32.gmra.mxu0 %v381
  %v640 = vpop.f32.mrf.mxu0
  %v641 = vadd.f32 %v328, %v640
  %642 = vmatmul.f32.gmra.mxu0 %v384
  %v643 = vpop.f32.mrf.mxu0
  %v644 = vadd.f32 %v333, %v643
  %645 = vmatmul.f32.gmra.mxu0 %v387
  %v646 = vpop.f32.mrf.mxu0
  %v647 = vadd.f32 %v338, %v646
  %648 = vdwg.mxu0
  %649 = vmatpush.msra.mxu0 0.0
  %650 = vmatpush.msra.mxu0 0.0
  %651 = vmatpush.msra.mxu0 0.0
  %652 = vmatpush.msra.mxu0 0.0
  %653 = vmatpush.msra.mxu0 0.0
  %654 = vmatpush.msra.mxu0 0.0
  %655 = vmatpush.msra.mxu0 0.0
  %656 = vmatpush.msra.mxu0 %v222
  %657 = vmatpush.msra.mxu0 %v199
  %658 = vmatpush.msra.mxu0 %v176
  %659 = vmatpush.msra.mxu0 %v153
  %660 = vmatpush.msra.mxu0 %v130
  %661 = vmatpush.msra.mxu0 %v107
  %662 = vmatpush.msra.mxu0 %v78
  %663 = vmatpush.msra.mxu0 %v58
  %664 = vmatpush.msra.mxu0 %v42
  %665 = vmatmul.f32.gmra.mxu0 %v342
  %v666 = vpop.f32.mrf.mxu0
  %v667 = vadd.f32 %v263, %v666
  %668 = vmatmul.f32.gmra.mxu0 %v345
  %v669 = vpop.f32.mrf.mxu0
  %v670 = vadd.f32 %v268, %v669
  %671 = vmatmul.f32.gmra.mxu0 %v348
  %v672 = vpop.f32.mrf.mxu0
  %v673 = vadd.f32 %v273, %v672
  %674 = vmatmul.f32.gmra.mxu0 %v351
  %v675 = vpop.f32.mrf.mxu0
  %v676 = vadd.f32 %v278, %v675
  %677 = vmatmul.f32.gmra.mxu0 %v354
  %v678 = vpop.f32.mrf.mxu0
  %v679 = vadd.f32 %v283, %v678
  %680 = vmatmul.f32.gmra.mxu0 %v357
  %v681 = vpop.f32.mrf.mxu0
  %v682 = vadd.f32 %v288, %v681
  %683 = vmatmul.f32.gmra.mxu0 %v360
  %v684 = vpop.f32.mrf.mxu0
  %v685 = vadd.f32 %v293, %v684
  %686 = vmatmul.f32.gmra.mxu0 %v363
  %v687 = vpop.f32.mrf.mxu0
  %v688 = vadd.f32 %v298, %v687
  %689 = vmatmul.f32.gmra.mxu0 %v366
  %v690 = vpop.f32.mrf.mxu0
  %v691 = vadd.f32 %v303, %v690
  %692 = vmatmul.f32.gmra.mxu0 %v369
  %v693 = vpop.f32.mrf.mxu0
  %v694 = vadd.f32 %v308, %v693
  %695 = vmatmul.f32.gmra.mxu0 %v372
  %v696 = vpop.f32.mrf.mxu0
  %v697 = vadd.f32 %v313, %v696
  %698 = vmatmul.f32.gmra.mxu0 %v375
  %v699 = vpop.f32.mrf.mxu0
  %v700 = vadd.f32 %v318, %v699
  %701 = vmatmul.f32.gmra.mxu0 %v378
  %v702 = vpop.f32.mrf.mxu0
  %v703 = vadd.f32 %v323, %v702
  %704 = vmatmul.f32.gmra.mxu0 %v381
  %v705 = vpop.f32.mrf.mxu0
  %v706 = vadd.f32 %v328, %v705
  %707 = vmatmul.f32.gmra.mxu0 %v384
  %v708 = vpop.f32.mrf.mxu0
  %v709 = vadd.f32 %v333, %v708
  %710 = vmatmul.f32.gmra.mxu0 %v387
  %v711 = vpop.f32.mrf.mxu0
  %v712 = vadd.f32 %v338, %v711
  %713 = vdwg.mxu0
  %v714 = vmax.f32 %v407, 0.0
  %v715 = vmax.f32 %v472, 0.0
  %v716 = vmax.f32 %v537, 0.0
  %v717 = vmax.f32 %v602, 0.0
  %v718 = vmax.f32 %v667, 0.0
  %v719 = vmax.f32 %v410, 0.0
  %v720 = vmax.f32 %v475, 0.0
  %v721 = vmax.f32 %v540, 0.0
  %v722 = vmax.f32 %v605, 0.0
  %v723 = vmax.f32 %v670, 0.0
  %v724 = vmax.f32 %v413, 0.0
  %v725 = vmax.f32 %v478, 0.0
  %v726 = vmax.f32 %v543, 0.0
  %v727 = vmax.f32 %v608, 0.0
  %v728 = vmax.f32 %v673, 0.0
  %v729 = vmax.f32 %v416, 0.0
  %v730 = vmax.f32 %v481, 0.0
  %v731 = vmax.f32 %v546, 0.0
  %v732 = vmax.f32 %v611, 0.0
  %v733 = vmax.f32 %v676, 0.0
  %v734 = vmax.f32 %v419, 0.0
  %v735 = vmax.f32 %v484, 0.0
  %v736 = vmax.f32 %v549, 0.0
  %v737 = vmax.f32 %v614, 0.0
  %v738 = vmax.f32 %v679, 0.0
  %v739 = vmax.f32 %v422, 0.0
  %v740 = vmax.f32 %v487, 0.0
  %v741 = vmax.f32 %v552, 0.0
  %v742 = vmax.f32 %v617, 0.0
  %v743 = vmax.f32 %v682, 0.0
  %v744 = vmax.f32 %v425, 0.0
  %v745 = vmax.f32 %v490, 0.0
  %v746 = vmax.f32 %v555, 0.0
  %v747 = vmax.f32 %v620, 0.0
  %v748 = vmax.f32 %v685, 0.0
  %v749 = vmax.f32 %v428, 0.0
  %v750 = vmax.f32 %v493, 0.0
  %v751 = vmax.f32 %v558, 0.0
  %v752 = vmax.f32 %v623, 0.0
  %v753 = vmax.f32 %v688, 0.0
  %v754 = vmax.f32 %v431, 0.0
  %v755 = vmax.f32 %v496, 0.0
  %v756 = vmax.f32 %v561, 0.0
  %v757 = vmax.f32 %v626, 0.0
  %v758 = vmax.f32 %v691, 0.0
  %v759 = vmax.f32 %v434, 0.0
  %v760 = vmax.f32 %v499, 0.0
  %v761 = vmax.f32 %v564, 0.0
  %v762 = vmax.f32 %v629, 0.0
  %v763 = vmax.f32 %v694, 0.0
  %v764 = vmax.f32 %v437, 0.0
  %v765 = vmax.f32 %v502, 0.0
  %v766 = vmax.f32 %v567, 0.0
  %v767 = vmax.f32 %v632, 0.0
  %v768 = vmax.f32 %v697, 0.0
  %v769 = vmax.f32 %v440, 0.0
  %v770 = vmax.f32 %v505, 0.0
  %v771 = vmax.f32 %v570, 0.0
  %v772 = vmax.f32 %v635, 0.0
  %v773 = vmax.f32 %v700, 0.0
  %v774 = vmax.f32 %v443, 0.0
  %v775 = vmax.f32 %v508, 0.0
  %v776 = vmax.f32 %v573, 0.0
  %v777 = vmax.f32 %v638, 0.0
  %v778 = vmax.f32 %v703, 0.0
  %v779 = vmax.f32 %v446, 0.0
  %v780 = vmax.f32 %v511, 0.0
  %v781 = vmax.f32 %v576, 0.0
  %v782 = vmax.f32 %v641, 0.0
  %v783 = vmax.f32 %v706, 0.0
  %v784 = vmax.f32 %v449, 0.0
  %v785 = vmax.f32 %v514, 0.0
  %v786 = vmax.f32 %v579, 0.0
  %v787 = vmax.f32 %v644, 0.0
  %v788 = vmax.f32 %v709, 0.0
  %v789 = vmax.f32 %v452, 0.0
  %v790 = vmax.f32 %v517, 0.0
  %v791 = vmax.f32 %v582, 0.0
  %v792 = vmax.f32 %v647, 0.0
  %v793 = vmax.f32 %v712, 0.0
  %874 = vrot.lane.b32.xlu0 %v714, 127
  %v875 = vpop.permute.xlu0 %874
  %876 = vrot.lane.b32.xlu0 %v715, 127
  %v877 = vpop.permute.xlu0 %876
  %878 = vrot.lane.b32.xlu0 %v716, 127
  %v879 = vpop.permute.xlu0 %878
  %880 = vrot.lane.b32.xlu0 %v717, 127
  %v881 = vpop.permute.xlu0 %880
  %882 = vrot.lane.b32.xlu0 %v718, 127
  %v883 = vpop.permute.xlu0 %882
  %884 = vrot.lane.b32.xlu0 %v719, 127
  %v885 = vpop.permute.xlu0 %884
  %886 = vrot.lane.b32.xlu0 %v720, 127
  %v887 = vpop.permute.xlu0 %886
  %888 = vrot.lane.b32.xlu0 %v721, 127
  %v889 = vpop.permute.xlu0 %888
  %890 = vrot.lane.b32.xlu0 %v722, 127
  %v891 = vpop.permute.xlu0 %890
  %892 = vrot.lane.b32.xlu0 %v723, 127
  %v893 = vpop.permute.xlu0 %892
  %894 = vrot.lane.b32.xlu0 %v724, 127
  %v895 = vpop.permute.xlu0 %894
  %896 = vrot.lane.b32.xlu0 %v725, 127
  %v897 = vpop.permute.xlu0 %896
  %898 = vrot.lane.b32.xlu0 %v726, 127
  %v899 = vpop.permute.xlu0 %898
  %900 = vrot.lane.b32.xlu0 %v727, 127
  %v901 = vpop.permute.xlu0 %900
  %902 = vrot.lane.b32.xlu0 %v728, 127
  %v903 = vpop.permute.xlu0 %902
  %904 = vrot.lane.b32.xlu0 %v729, 127
  %v905 = vpop.permute.xlu0 %904
  %906 = vrot.lane.b32.xlu0 %v730, 127
  %v907 = vpop.permute.xlu0 %906
  %908 = vrot.lane.b32.xlu0 %v731, 127
  %v909 = vpop.permute.xlu0 %908
  %910 = vrot.lane.b32.xlu0 %v732, 127
  %v911 = vpop.permute.xlu0 %910
  %912 = vrot.lane.b32.xlu0 %v733, 127
  %v913 = vpop.permute.xlu0 %912
  %914 = vrot.lane.b32.xlu0 %v734, 127
  %v915 = vpop.permute.xlu0 %914
  %916 = vrot.lane.b32.xlu0 %v735, 127
  %v917 = vpop.permute.xlu0 %916
  %918 = vrot.lane.b32.xlu0 %v736, 127
  %v919 = vpop.permute.xlu0 %918
  %920 = vrot.lane.b32.xlu0 %v737, 127
  %v921 = vpop.permute.xlu0 %920
  %922 = vrot.lane.b32.xlu0 %v738, 127
  %v923 = vpop.permute.xlu0 %922
  %924 = vrot.lane.b32.xlu0 %v739, 127
  %v925 = vpop.permute.xlu0 %924
  %926 = vrot.lane.b32.xlu0 %v740, 127
  %v927 = vpop.permute.xlu0 %926
  %928 = vrot.lane.b32.xlu0 %v741, 127
  %v929 = vpop.permute.xlu0 %928
  %930 = vrot.lane.b32.xlu0 %v742, 127
  %v931 = vpop.permute.xlu0 %930
  %932 = vrot.lane.b32.xlu0 %v743, 127
  %v933 = vpop.permute.xlu0 %932
  %934 = vrot.lane.b32.xlu0 %v744, 127
  %v935 = vpop.permute.xlu0 %934
  %936 = vrot.lane.b32.xlu0 %v745, 127
  %v937 = vpop.permute.xlu0 %936
  %938 = vrot.lane.b32.xlu0 %v746, 127
  %v939 = vpop.permute.xlu0 %938
  %940 = vrot.lane.b32.xlu0 %v747, 127
  %v941 = vpop.permute.xlu0 %940
  %942 = vrot.lane.b32.xlu0 %v748, 127
  %v943 = vpop.permute.xlu0 %942
  %944 = vrot.lane.b32.xlu0 %v749, 127
  %v945 = vpop.permute.xlu0 %944
  %946 = vrot.lane.b32.xlu0 %v750, 127
  %v947 = vpop.permute.xlu0 %946
  %948 = vrot.lane.b32.xlu0 %v751, 127
  %v949 = vpop.permute.xlu0 %948
  %950 = vrot.lane.b32.xlu0 %v752, 127
  %v951 = vpop.permute.xlu0 %950
  %952 = vrot.lane.b32.xlu0 %v753, 127
  %v953 = vpop.permute.xlu0 %952
  %954 = vrot.lane.b32.xlu0 %v754, 127
  %v955 = vpop.permute.xlu0 %954
  %956 = vrot.lane.b32.xlu0 %v755, 127
  %v957 = vpop.permute.xlu0 %956
  %958 = vrot.lane.b32.xlu0 %v756, 127
  %v959 = vpop.permute.xlu0 %958
  %960 = vrot.lane.b32.xlu0 %v757, 127
  %v961 = vpop.permute.xlu0 %960
  %962 = vrot.lane.b32.xlu0 %v758, 127
  %v963 = vpop.permute.xlu0 %962
  %964 = vrot.lane.b32.xlu0 %v759, 127
  %v965 = vpop.permute.xlu0 %964
  %966 = vrot.lane.b32.xlu0 %v760, 127
  %v967 = vpop.permute.xlu0 %966
  %968 = vrot.lane.b32.xlu0 %v761, 127
  %v969 = vpop.permute.xlu0 %968
  %970 = vrot.lane.b32.xlu0 %v762, 127
  %v971 = vpop.permute.xlu0 %970
  %972 = vrot.lane.b32.xlu0 %v763, 127
  %v973 = vpop.permute.xlu0 %972
  %974 = vrot.lane.b32.xlu0 %v764, 127
  %v975 = vpop.permute.xlu0 %974
  %976 = vrot.lane.b32.xlu0 %v765, 127
  %v977 = vpop.permute.xlu0 %976
  %978 = vrot.lane.b32.xlu0 %v766, 127
  %v979 = vpop.permute.xlu0 %978
  %980 = vrot.lane.b32.xlu0 %v767, 127
  %v981 = vpop.permute.xlu0 %980
  %982 = vrot.lane.b32.xlu0 %v768, 127
  %v983 = vpop.permute.xlu0 %982
  %984 = vrot.lane.b32.xlu0 %v769, 127
  %v985 = vpop.permute.xlu0 %984
  %986 = vrot.lane.b32.xlu0 %v770, 127
  %v987 = vpop.permute.xlu0 %986
  %988 = vrot.lane.b32.xlu0 %v771, 127
  %v989 = vpop.permute.xlu0 %988
  %990 = vrot.lane.b32.xlu0 %v772, 127
  %v991 = vpop.permute.xlu0 %990
  %992 = vrot.lane.b32.xlu0 %v773, 127
  %v993 = vpop.permute.xlu0 %992
  %994 = vrot.lane.b32.xlu0 %v774, 127
  %v995 = vpop.permute.xlu0 %994
  %996 = vrot.lane.b32.xlu0 %v775, 127
  %v997 = vpop.permute.xlu0 %996
  %998 = vrot.lane.b32.xlu0 %v776, 127
  %v999 = vpop.permute.xlu0 %998
  %1000 = vrot.lane.b32.xlu0 %v777, 127
  %v1001 = vpop.permute.xlu0 %1000
  %1002 = vrot.lane.b32.xlu0 %v778, 127
  %v1003 = vpop.permute.xlu0 %1002
  %1004 = vrot.lane.b32.xlu0 %v779, 127
  %v1005 = vpop.permute.xlu0 %1004
  %1006 = vrot.lane.b32.xlu0 %v780, 127
  %v1007 = vpop.permute.xlu0 %1006
  %1008 = vrot.lane.b32.xlu0 %v781, 127
  %v1009 = vpop.permute.xlu0 %1008
  %1010 = vrot.lane.b32.xlu0 %v782, 127
  %v1011 = vpop.permute.xlu0 %1010
  %1012 = vrot.lane.b32.xlu0 %v783, 127
  %v1013 = vpop.permute.xlu0 %1012
  %1014 = vrot.lane.b32.xlu0 %v784, 127
  %v1015 = vpop.permute.xlu0 %1014
  %1016 = vrot.lane.b32.xlu0 %v785, 127
  %v1017 = vpop.permute.xlu0 %1016
  %1018 = vrot.lane.b32.xlu0 %v786, 127
  %v1019 = vpop.permute.xlu0 %1018
  %1020 = vrot.lane.b32.xlu0 %v787, 127
  %v1021 = vpop.permute.xlu0 %1020
  %1022 = vrot.lane.b32.xlu0 %v788, 127
  %v1023 = vpop.permute.xlu0 %1022
  %1024 = vrot.lane.b32.xlu0 %v789, 127
  %v1025 = vpop.permute.xlu0 %1024
  %1026 = vrot.lane.b32.xlu0 %v790, 127
  %v1027 = vpop.permute.xlu0 %1026
  %1028 = vrot.lane.b32.xlu0 %v791, 127
  %v1029 = vpop.permute.xlu0 %1028
  %1030 = vrot.lane.b32.xlu0 %v792, 127
  %v1031 = vpop.permute.xlu0 %1030
  %1032 = vrot.lane.b32.xlu0 %v793, 127
  %v1033 = vpop.permute.xlu0 %1032
  %v1034 = vsel %vm59, %v875, %v877
  %v1035 = vsel %vm59, %v877, %v879
  %v1036 = vsel %vm59, %v879, %v881
  %v1037 = vsel %vm59, %v881, %v883
  %v1038 = vsel %vm59, %v885, %v887
  %v1039 = vsel %vm59, %v887, %v889
  %v1040 = vsel %vm59, %v889, %v891
  %v1041 = vsel %vm59, %v891, %v893
  %v1042 = vsel %vm59, %v895, %v897
  %v1043 = vsel %vm59, %v897, %v899
  %v1044 = vsel %vm59, %v899, %v901
  %v1045 = vsel %vm59, %v901, %v903
  %v1046 = vsel %vm59, %v905, %v907
  %v1047 = vsel %vm59, %v907, %v909
  %v1048 = vsel %vm59, %v909, %v911
  %v1049 = vsel %vm59, %v911, %v913
  %v1050 = vsel %vm59, %v915, %v917
  %v1051 = vsel %vm59, %v917, %v919
  %v1052 = vsel %vm59, %v919, %v921
  %v1053 = vsel %vm59, %v921, %v923
  %v1054 = vsel %vm59, %v925, %v927
  %v1055 = vsel %vm59, %v927, %v929
  %v1056 = vsel %vm59, %v929, %v931
  %v1057 = vsel %vm59, %v931, %v933
  %v1058 = vsel %vm59, %v935, %v937
  %v1059 = vsel %vm59, %v937, %v939
  %v1060 = vsel %vm59, %v939, %v941
  %v1061 = vsel %vm59, %v941, %v943
  %v1062 = vsel %vm59, %v945, %v947
  %v1063 = vsel %vm59, %v947, %v949
  %v1064 = vsel %vm59, %v949, %v951
  %v1065 = vsel %vm59, %v951, %v953
  %v1066 = vsel %vm59, %v955, %v957
  %v1067 = vsel %vm59, %v957, %v959
  %v1068 = vsel %vm59, %v959, %v961
  %v1069 = vsel %vm59, %v961, %v963
  %v1070 = vsel %vm59, %v965, %v967
  %v1071 = vsel %vm59, %v967, %v969
  %v1072 = vsel %vm59, %v969, %v971
  %v1073 = vsel %vm59, %v971, %v973
  %v1074 = vsel %vm59, %v975, %v977
  %v1075 = vsel %vm59, %v977, %v979
  %v1076 = vsel %vm59, %v979, %v981
  %v1077 = vsel %vm59, %v981, %v983
  %v1078 = vsel %vm59, %v985, %v987
  %v1079 = vsel %vm59, %v987, %v989
  %v1080 = vsel %vm59, %v989, %v991
  %v1081 = vsel %vm59, %v991, %v993
  %v1082 = vsel %vm59, %v995, %v997
  %v1083 = vsel %vm59, %v997, %v999
  %v1084 = vsel %vm59, %v999, %v1001
  %v1085 = vsel %vm59, %v1001, %v1003
  %v1086 = vsel %vm59, %v1005, %v1007
  %v1087 = vsel %vm59, %v1007, %v1009
  %v1088 = vsel %vm59, %v1009, %v1011
  %v1089 = vsel %vm59, %v1011, %v1013
  %v1090 = vsel %vm59, %v1015, %v1017
  %v1091 = vsel %vm59, %v1017, %v1019
  %v1092 = vsel %vm59, %v1019, %v1021
  %v1093 = vsel %vm59, %v1021, %v1023
  %v1094 = vsel %vm59, %v1025, %v1027
  %v1095 = vsel %vm59, %v1027, %v1029
  %v1096 = vsel %vm59, %v1029, %v1031
  %v1097 = vsel %vm59, %v1031, %v1033
  %v1178 = vmax.f32 %v714, %v1034
  %v1179 = vmax.f32 %v715, %v1035
  %v1180 = vmax.f32 %v716, %v1036
  %v1181 = vmax.f32 %v717, %v1037
  %v1182 = vmax.f32 %v718, %v883
  %v1183 = vmax.f32 %v719, %v1038
  %v1184 = vmax.f32 %v720, %v1039
  %v1185 = vmax.f32 %v721, %v1040
  %v1186 = vmax.f32 %v722, %v1041
  %v1187 = vmax.f32 %v723, %v893
  %v1188 = vmax.f32 %v724, %v1042
  %v1189 = vmax.f32 %v725, %v1043
  %v1190 = vmax.f32 %v726, %v1044
  %v1191 = vmax.f32 %v727, %v1045
  %v1192 = vmax.f32 %v728, %v903
  %v1193 = vmax.f32 %v729, %v1046
  %v1194 = vmax.f32 %v730, %v1047
  %v1195 = vmax.f32 %v731, %v1048
  %v1196 = vmax.f32 %v732, %v1049
  %v1197 = vmax.f32 %v733, %v913
  %v1198 = vmax.f32 %v734, %v1050
  %v1199 = vmax.f32 %v735, %v1051
  %v1200 = vmax.f32 %v736, %v1052
  %v1201 = vmax.f32 %v737, %v1053
  %v1202 = vmax.f32 %v738, %v923
  %v1203 = vmax.f32 %v739, %v1054
  %v1204 = vmax.f32 %v740, %v1055
  %v1205 = vmax.f32 %v741, %v1056
  %v1206 = vmax.f32 %v742, %v1057
  %v1207 = vmax.f32 %v743, %v933
  %v1208 = vmax.f32 %v744, %v1058
  %v1209 = vmax.f32 %v745, %v1059
  %v1210 = vmax.f32 %v746, %v1060
  %v1211 = vmax.f32 %v747, %v1061
  %v1212 = vmax.f32 %v748, %v943
  %v1213 = vmax.f32 %v749, %v1062
  %v1214 = vmax.f32 %v750, %v1063
  %v1215 = vmax.f32 %v751, %v1064
  %v1216 = vmax.f32 %v752, %v1065
  %v1217 = vmax.f32 %v753, %v953
  %v1218 = vmax.f32 %v754, %v1066
  %v1219 = vmax.f32 %v755, %v1067
  %v1220 = vmax.f32 %v756, %v1068
  %v1221 = vmax.f32 %v757, %v1069
  %v1222 = vmax.f32 %v758, %v963
  %v1223 = vmax.f32 %v759, %v1070
  %v1224 = vmax.f32 %v760, %v1071
  %v1225 = vmax.f32 %v761, %v1072
  %v1226 = vmax.f32 %v762, %v1073
  %v1227 = vmax.f32 %v763, %v973
  %v1228 = vmax.f32 %v764, %v1074
  %v1229 = vmax.f32 %v765, %v1075
  %v1230 = vmax.f32 %v766, %v1076
  %v1231 = vmax.f32 %v767, %v1077
  %v1232 = vmax.f32 %v768, %v983
  %v1233 = vmax.f32 %v769, %v1078
  %v1234 = vmax.f32 %v770, %v1079
  %v1235 = vmax.f32 %v771, %v1080
  %v1236 = vmax.f32 %v772, %v1081
  %v1237 = vmax.f32 %v773, %v993
  %v1238 = vmax.f32 %v774, %v1082
  %v1239 = vmax.f32 %v775, %v1083
  %v1240 = vmax.f32 %v776, %v1084
  %v1241 = vmax.f32 %v777, %v1085
  %v1242 = vmax.f32 %v778, %v1003
  %v1243 = vmax.f32 %v779, %v1086
  %v1244 = vmax.f32 %v780, %v1087
  %v1245 = vmax.f32 %v781, %v1088
  %v1246 = vmax.f32 %v782, %v1089
  %v1247 = vmax.f32 %v783, %v1013
  %v1248 = vmax.f32 %v784, %v1090
  %v1249 = vmax.f32 %v785, %v1091
  %v1250 = vmax.f32 %v786, %v1092
  %v1251 = vmax.f32 %v787, %v1093
  %v1252 = vmax.f32 %v788, %v1023
  %v1253 = vmax.f32 %v789, %v1094
  %v1254 = vmax.f32 %v790, %v1095
  %v1255 = vmax.f32 %v791, %v1096
  %v1256 = vmax.f32 %v792, %v1097
  %v1257 = vmax.f32 %v793, %v1033
  %1338 = vrot.lane.b32.xlu0 %v1178, 82
  %v1339 = vpop.permute.xlu0 %1338
  %1340 = vrot.lane.b32.xlu0 %v1179, 82
  %v1341 = vpop.permute.xlu0 %1340
  %1342 = vrot.lane.b32.xlu0 %v1180, 82
  %v1343 = vpop.permute.xlu0 %1342
  %1344 = vrot.lane.b32.xlu0 %v1181, 82
  %v1345 = vpop.permute.xlu0 %1344
  %1346 = vrot.lane.b32.xlu0 %v1182, 82
  %v1347 = vpop.permute.xlu0 %1346
  %1348 = vrot.lane.b32.xlu0 %v1183, 82
  %v1349 = vpop.permute.xlu0 %1348
  %1350 = vrot.lane.b32.xlu0 %v1184, 82
  %v1351 = vpop.permute.xlu0 %1350
  %1352 = vrot.lane.b32.xlu0 %v1185, 82
  %v1353 = vpop.permute.xlu0 %1352
  %1354 = vrot.lane.b32.xlu0 %v1186, 82
  %v1355 = vpop.permute.xlu0 %1354
  %1356 = vrot.lane.b32.xlu0 %v1187, 82
  %v1357 = vpop.permute.xlu0 %1356
  %1358 = vrot.lane.b32.xlu0 %v1188, 82
  %v1359 = vpop.permute.xlu0 %1358
  %1360 = vrot.lane.b32.xlu0 %v1189, 82
  %v1361 = vpop.permute.xlu0 %1360
  %1362 = vrot.lane.b32.xlu0 %v1190, 82
  %v1363 = vpop.permute.xlu0 %1362
  %1364 = vrot.lane.b32.xlu0 %v1191, 82
  %v1365 = vpop.permute.xlu0 %1364
  %1366 = vrot.lane.b32.xlu0 %v1192, 82
  %v1367 = vpop.permute.xlu0 %1366
  %1368 = vrot.lane.b32.xlu0 %v1193, 82
  %v1369 = vpop.permute.xlu0 %1368
  %1370 = vrot.lane.b32.xlu0 %v1194, 82
  %v1371 = vpop.permute.xlu0 %1370
  %1372 = vrot.lane.b32.xlu0 %v1195, 82
  %v1373 = vpop.permute.xlu0 %1372
  %1374 = vrot.lane.b32.xlu0 %v1196, 82
  %v1375 = vpop.permute.xlu0 %1374
  %1376 = vrot.lane.b32.xlu0 %v1197, 82
  %v1377 = vpop.permute.xlu0 %1376
  %1378 = vrot.lane.b32.xlu0 %v1198, 82
  %v1379 = vpop.permute.xlu0 %1378
  %1380 = vrot.lane.b32.xlu0 %v1199, 82
  %v1381 = vpop.permute.xlu0 %1380
  %1382 = vrot.lane.b32.xlu0 %v1200, 82
  %v1383 = vpop.permute.xlu0 %1382
  %1384 = vrot.lane.b32.xlu0 %v1201, 82
  %v1385 = vpop.permute.xlu0 %1384
  %1386 = vrot.lane.b32.xlu0 %v1202, 82
  %v1387 = vpop.permute.xlu0 %1386
  %1388 = vrot.lane.b32.xlu0 %v1203, 82
  %v1389 = vpop.permute.xlu0 %1388
  %1390 = vrot.lane.b32.xlu0 %v1204, 82
  %v1391 = vpop.permute.xlu0 %1390
  %1392 = vrot.lane.b32.xlu0 %v1205, 82
  %v1393 = vpop.permute.xlu0 %1392
  %1394 = vrot.lane.b32.xlu0 %v1206, 82
  %v1395 = vpop.permute.xlu0 %1394
  %1396 = vrot.lane.b32.xlu0 %v1207, 82
  %v1397 = vpop.permute.xlu0 %1396
  %1398 = vrot.lane.b32.xlu0 %v1208, 82
  %v1399 = vpop.permute.xlu0 %1398
  %1400 = vrot.lane.b32.xlu0 %v1209, 82
  %v1401 = vpop.permute.xlu0 %1400
  %1402 = vrot.lane.b32.xlu0 %v1210, 82
  %v1403 = vpop.permute.xlu0 %1402
  %1404 = vrot.lane.b32.xlu0 %v1211, 82
  %v1405 = vpop.permute.xlu0 %1404
  %1406 = vrot.lane.b32.xlu0 %v1212, 82
  %v1407 = vpop.permute.xlu0 %1406
  %1408 = vrot.lane.b32.xlu0 %v1213, 82
  %v1409 = vpop.permute.xlu0 %1408
  %1410 = vrot.lane.b32.xlu0 %v1214, 82
  %v1411 = vpop.permute.xlu0 %1410
  %1412 = vrot.lane.b32.xlu0 %v1215, 82
  %v1413 = vpop.permute.xlu0 %1412
  %1414 = vrot.lane.b32.xlu0 %v1216, 82
  %v1415 = vpop.permute.xlu0 %1414
  %1416 = vrot.lane.b32.xlu0 %v1217, 82
  %v1417 = vpop.permute.xlu0 %1416
  %1418 = vrot.lane.b32.xlu0 %v1218, 82
  %v1419 = vpop.permute.xlu0 %1418
  %1420 = vrot.lane.b32.xlu0 %v1219, 82
  %v1421 = vpop.permute.xlu0 %1420
  %1422 = vrot.lane.b32.xlu0 %v1220, 82
  %v1423 = vpop.permute.xlu0 %1422
  %1424 = vrot.lane.b32.xlu0 %v1221, 82
  %v1425 = vpop.permute.xlu0 %1424
  %1426 = vrot.lane.b32.xlu0 %v1222, 82
  %v1427 = vpop.permute.xlu0 %1426
  %1428 = vrot.lane.b32.xlu0 %v1223, 82
  %v1429 = vpop.permute.xlu0 %1428
  %1430 = vrot.lane.b32.xlu0 %v1224, 82
  %v1431 = vpop.permute.xlu0 %1430
  %1432 = vrot.lane.b32.xlu0 %v1225, 82
  %v1433 = vpop.permute.xlu0 %1432
  %1434 = vrot.lane.b32.xlu0 %v1226, 82
  %v1435 = vpop.permute.xlu0 %1434
  %1436 = vrot.lane.b32.xlu0 %v1227, 82
  %v1437 = vpop.permute.xlu0 %1436
  %1438 = vrot.lane.b32.xlu0 %v1228, 82
  %v1439 = vpop.permute.xlu0 %1438
  %1440 = vrot.lane.b32.xlu0 %v1229, 82
  %v1441 = vpop.permute.xlu0 %1440
  %1442 = vrot.lane.b32.xlu0 %v1230, 82
  %v1443 = vpop.permute.xlu0 %1442
  %1444 = vrot.lane.b32.xlu0 %v1231, 82
  %v1445 = vpop.permute.xlu0 %1444
  %1446 = vrot.lane.b32.xlu0 %v1232, 82
  %v1447 = vpop.permute.xlu0 %1446
  %1448 = vrot.lane.b32.xlu0 %v1233, 82
  %v1449 = vpop.permute.xlu0 %1448
  %1450 = vrot.lane.b32.xlu0 %v1234, 82
  %v1451 = vpop.permute.xlu0 %1450
  %1452 = vrot.lane.b32.xlu0 %v1235, 82
  %v1453 = vpop.permute.xlu0 %1452
  %1454 = vrot.lane.b32.xlu0 %v1236, 82
  %v1455 = vpop.permute.xlu0 %1454
  %1456 = vrot.lane.b32.xlu0 %v1237, 82
  %v1457 = vpop.permute.xlu0 %1456
  %1458 = vrot.lane.b32.xlu0 %v1238, 82
  %v1459 = vpop.permute.xlu0 %1458
  %1460 = vrot.lane.b32.xlu0 %v1239, 82
  %v1461 = vpop.permute.xlu0 %1460
  %1462 = vrot.lane.b32.xlu0 %v1240, 82
  %v1463 = vpop.permute.xlu0 %1462
  %1464 = vrot.lane.b32.xlu0 %v1241, 82
  %v1465 = vpop.permute.xlu0 %1464
  %1466 = vrot.lane.b32.xlu0 %v1242, 82
  %v1467 = vpop.permute.xlu0 %1466
  %1468 = vrot.lane.b32.xlu0 %v1243, 82
  %v1469 = vpop.permute.xlu0 %1468
  %1470 = vrot.lane.b32.xlu0 %v1244, 82
  %v1471 = vpop.permute.xlu0 %1470
  %1472 = vrot.lane.b32.xlu0 %v1245, 82
  %v1473 = vpop.permute.xlu0 %1472
  %1474 = vrot.lane.b32.xlu0 %v1246, 82
  %v1475 = vpop.permute.xlu0 %1474
  %1476 = vrot.lane.b32.xlu0 %v1247, 82
  %v1477 = vpop.permute.xlu0 %1476
  %1478 = vrot.lane.b32.xlu0 %v1248, 82
  %v1479 = vpop.permute.xlu0 %1478
  %1480 = vrot.lane.b32.xlu0 %v1249, 82
  %v1481 = vpop.permute.xlu0 %1480
  %1482 = vrot.lane.b32.xlu0 %v1250, 82
  %v1483 = vpop.permute.xlu0 %1482
  %1484 = vrot.lane.b32.xlu0 %v1251, 82
  %v1485 = vpop.permute.xlu0 %1484
  %1486 = vrot.lane.b32.xlu0 %v1252, 82
  %v1487 = vpop.permute.xlu0 %1486
  %1488 = vrot.lane.b32.xlu0 %v1253, 82
  %v1489 = vpop.permute.xlu0 %1488
  %1490 = vrot.lane.b32.xlu0 %v1254, 82
  %v1491 = vpop.permute.xlu0 %1490
  %1492 = vrot.lane.b32.xlu0 %v1255, 82
  %v1493 = vpop.permute.xlu0 %1492
  %1494 = vrot.lane.b32.xlu0 %v1256, 82
  %v1495 = vpop.permute.xlu0 %1494
  %1496 = vrot.lane.b32.xlu0 %v1257, 82
  %v1497 = vpop.permute.xlu0 %1496
  %v1498 = vsel %vm102, %v1339, %v1341
  %v1499 = vsel %vm102, %v1341, %v1343
  %v1500 = vsel %vm102, %v1343, %v1345
  %v1501 = vsel %vm102, %v1345, %v1347
  %v1502 = vsel %vm102, %v1349, %v1351
  %v1503 = vsel %vm102, %v1351, %v1353
  %v1504 = vsel %vm102, %v1353, %v1355
  %v1505 = vsel %vm102, %v1355, %v1357
  %v1506 = vsel %vm102, %v1359, %v1361
  %v1507 = vsel %vm102, %v1361, %v1363
  %v1508 = vsel %vm102, %v1363, %v1365
  %v1509 = vsel %vm102, %v1365, %v1367
  %v1510 = vsel %vm102, %v1369, %v1371
  %v1511 = vsel %vm102, %v1371, %v1373
  %v1512 = vsel %vm102, %v1373, %v1375
  %v1513 = vsel %vm102, %v1375, %v1377
  %v1514 = vsel %vm102, %v1379, %v1381
  %v1515 = vsel %vm102, %v1381, %v1383
  %v1516 = vsel %vm102, %v1383, %v1385
  %v1517 = vsel %vm102, %v1385, %v1387
  %v1518 = vsel %vm102, %v1389, %v1391
  %v1519 = vsel %vm102, %v1391, %v1393
  %v1520 = vsel %vm102, %v1393, %v1395
  %v1521 = vsel %vm102, %v1395, %v1397
  %v1522 = vsel %vm102, %v1399, %v1401
  %v1523 = vsel %vm102, %v1401, %v1403
  %v1524 = vsel %vm102, %v1403, %v1405
  %v1525 = vsel %vm102, %v1405, %v1407
  %v1526 = vsel %vm102, %v1409, %v1411
  %v1527 = vsel %vm102, %v1411, %v1413
  %v1528 = vsel %vm102, %v1413, %v1415
  %v1529 = vsel %vm102, %v1415, %v1417
  %v1530 = vsel %vm102, %v1419, %v1421
  %v1531 = vsel %vm102, %v1421, %v1423
  %v1532 = vsel %vm102, %v1423, %v1425
  %v1533 = vsel %vm102, %v1425, %v1427
  %v1534 = vsel %vm102, %v1429, %v1431
  %v1535 = vsel %vm102, %v1431, %v1433
  %v1536 = vsel %vm102, %v1433, %v1435
  %v1537 = vsel %vm102, %v1435, %v1437
  %v1538 = vsel %vm102, %v1439, %v1441
  %v1539 = vsel %vm102, %v1441, %v1443
  %v1540 = vsel %vm102, %v1443, %v1445
  %v1541 = vsel %vm102, %v1445, %v1447
  %v1542 = vsel %vm102, %v1449, %v1451
  %v1543 = vsel %vm102, %v1451, %v1453
  %v1544 = vsel %vm102, %v1453, %v1455
  %v1545 = vsel %vm102, %v1455, %v1457
  %v1546 = vsel %vm102, %v1459, %v1461
  %v1547 = vsel %vm102, %v1461, %v1463
  %v1548 = vsel %vm102, %v1463, %v1465
  %v1549 = vsel %vm102, %v1465, %v1467
  %v1550 = vsel %vm102, %v1469, %v1471
  %v1551 = vsel %vm102, %v1471, %v1473
  %v1552 = vsel %vm102, %v1473, %v1475
  %v1553 = vsel %vm102, %v1475, %v1477
  %v1554 = vsel %vm102, %v1479, %v1481
  %v1555 = vsel %vm102, %v1481, %v1483
  %v1556 = vsel %vm102, %v1483, %v1485
  %v1557 = vsel %vm102, %v1485, %v1487
  %v1558 = vsel %vm102, %v1489, %v1491
  %v1559 = vsel %vm102, %v1491, %v1493
  %v1560 = vsel %vm102, %v1493, %v1495
  %v1561 = vsel %vm102, %v1495, %v1497
  %v1642 = vmax.f32 %v1178, %v1498
  %v1643 = vmax.f32 %v1179, %v1499
  %v1644 = vmax.f32 %v1180, %v1500
  %v1645 = vmax.f32 %v1181, %v1501
  %v1646 = vmax.f32 %v1182, %v1347
  %v1647 = vmax.f32 %v1183, %v1502
  %v1648 = vmax.f32 %v1184, %v1503
  %v1649 = vmax.f32 %v1185, %v1504
  %v1650 = vmax.f32 %v1186, %v1505
  %v1651 = vmax.f32 %v1187, %v1357
  %v1652 = vmax.f32 %v1188, %v1506
  %v1653 = vmax.f32 %v1189, %v1507
  %v1654 = vmax.f32 %v1190, %v1508
  %v1655 = vmax.f32 %v1191, %v1509
  %v1656 = vmax.f32 %v1192, %v1367
  %v1657 = vmax.f32 %v1193, %v1510
  %v1658 = vmax.f32 %v1194, %v1511
  %v1659 = vmax.f32 %v1195, %v1512
  %v1660 = vmax.f32 %v1196, %v1513
  %v1661 = vmax.f32 %v1197, %v1377
  %v1662 = vmax.f32 %v1198, %v1514
  %v1663 = vmax.f32 %v1199, %v1515
  %v1664 = vmax.f32 %v1200, %v1516
  %v1665 = vmax.f32 %v1201, %v1517
  %v1666 = vmax.f32 %v1202, %v1387
  %v1667 = vmax.f32 %v1203, %v1518
  %v1668 = vmax.f32 %v1204, %v1519
  %v1669 = vmax.f32 %v1205, %v1520
  %v1670 = vmax.f32 %v1206, %v1521
  %v1671 = vmax.f32 %v1207, %v1397
  %v1672 = vmax.f32 %v1208, %v1522
  %v1673 = vmax.f32 %v1209, %v1523
  %v1674 = vmax.f32 %v1210, %v1524
  %v1675 = vmax.f32 %v1211, %v1525
  %v1676 = vmax.f32 %v1212, %v1407
  %v1677 = vmax.f32 %v1213, %v1526
  %v1678 = vmax.f32 %v1214, %v1527
  %v1679 = vmax.f32 %v1215, %v1528
  %v1680 = vmax.f32 %v1216, %v1529
  %v1681 = vmax.f32 %v1217, %v1417
  %v1682 = vmax.f32 %v1218, %v1530
  %v1683 = vmax.f32 %v1219, %v1531
  %v1684 = vmax.f32 %v1220, %v1532
  %v1685 = vmax.f32 %v1221, %v1533
  %v1686 = vmax.f32 %v1222, %v1427
  %v1687 = vmax.f32 %v1223, %v1534
  %v1688 = vmax.f32 %v1224, %v1535
  %v1689 = vmax.f32 %v1225, %v1536
  %v1690 = vmax.f32 %v1226, %v1537
  %v1691 = vmax.f32 %v1227, %v1437
  %v1692 = vmax.f32 %v1228, %v1538
  %v1693 = vmax.f32 %v1229, %v1539
  %v1694 = vmax.f32 %v1230, %v1540
  %v1695 = vmax.f32 %v1231, %v1541
  %v1696 = vmax.f32 %v1232, %v1447
  %v1697 = vmax.f32 %v1233, %v1542
  %v1698 = vmax.f32 %v1234, %v1543
  %v1699 = vmax.f32 %v1235, %v1544
  %v1700 = vmax.f32 %v1236, %v1545
  %v1701 = vmax.f32 %v1237, %v1457
  %v1702 = vmax.f32 %v1238, %v1546
  %v1703 = vmax.f32 %v1239, %v1547
  %v1704 = vmax.f32 %v1240, %v1548
  %v1705 = vmax.f32 %v1241, %v1549
  %v1706 = vmax.f32 %v1242, %v1467
  %v1707 = vmax.f32 %v1243, %v1550
  %v1708 = vmax.f32 %v1244, %v1551
  %v1709 = vmax.f32 %v1245, %v1552
  %v1710 = vmax.f32 %v1246, %v1553
  %v1711 = vmax.f32 %v1247, %v1477
  %v1712 = vmax.f32 %v1248, %v1554
  %v1713 = vmax.f32 %v1249, %v1555
  %v1714 = vmax.f32 %v1250, %v1556
  %v1715 = vmax.f32 %v1251, %v1557
  %v1716 = vmax.f32 %v1252, %v1487
  %v1717 = vmax.f32 %v1253, %v1558
  %v1718 = vmax.f32 %v1254, %v1559
  %v1719 = vmax.f32 %v1255, %v1560
  %v1720 = vmax.f32 %v1256, %v1561
  %v1721 = vmax.f32 %v1257, %v1497
  %v1722 = vld [vmem:[%s3] sm:$0xff]
  %v1723 = vld [vmem:[%s3 + $0x8] sm:$0xff]
  %v1724 = vld [vmem:[%s3 + $0x10] sm:$0xff]
  %v1725 = vld [vmem:[%s3 + $0x18] sm:$0xff]
  %v1726 = vld [vmem:[%s3 + $0x20] sm:$0xff]
  %v1727 = vld [vmem:[%s3 + $0x28] sm:$0xff]
  %v1728 = vld [vmem:[%s3 + $0x30] sm:$0xff]
  %v1729 = vld [vmem:[%s3 + $0x38] sm:$0xff]
  %v1730 = vld [vmem:[%s3 + $0x40] sm:$0xff]
  %v1731 = vld [vmem:[%s3 + $0x48] sm:$0xff]
  %v1732 = vld [vmem:[%s3 + $0x50] sm:$0xff]
  %v1733 = vld [vmem:[%s3 + $0x58] sm:$0xff]
  %v1734 = vld [vmem:[%s3 + $0x60] sm:$0xff]
  %v1735 = vld [vmem:[%s3 + $0x68] sm:$0xff]
  %v1736 = vld [vmem:[%s3 + $0x70] sm:$0xff]
  %v1737 = vld [vmem:[%s3 + $0x78] sm:$0xff]
  %v1738 = vld [vmem:[%s3 + $0x80] sm:$0xff]
  %v1739 = vld [vmem:[%s3 + $0x88] sm:$0xff]
  %v1740 = vld [vmem:[%s3 + $0x90] sm:$0xff]
  %v1741 = vld [vmem:[%s3 + $0x98] sm:$0xff]
  %v1742 = vld [vmem:[%s3 + $0xa0] sm:$0xff]
  %v1743 = vld [vmem:[%s3 + $0xa8] sm:$0xff]
  %v1744 = vld [vmem:[%s3 + $0xb0] sm:$0xff]
  %v1745 = vld [vmem:[%s3 + $0xb8] sm:$0xff]
  %v1746 = vld [vmem:[%s3 + $0xc0] sm:$0xff]
  %v1747 = vld [vmem:[%s3 + $0xc8] sm:$0xff]
  %v1748 = vld [vmem:[%s3 + $0xd0] sm:$0xff]
  %v1749 = vld [vmem:[%s3 + $0xd8] sm:$0xff]
  %v1750 = vld [vmem:[%s3 + $0xe0] sm:$0xff]
  %v1751 = vld [vmem:[%s3 + $0xe8] sm:$0xff]
  %v1752 = vld [vmem:[%s3 + $0xf0] sm:$0xff]
  %v1753 = vld [vmem:[%s3 + $0xf8] sm:$0xff]
  %v1754 = vld [vmem:[%s3 + $0x100] sm:$0xff]
  %v1755 = vld [vmem:[%s3 + $0x108] sm:$0xff]
  %v1756 = vld [vmem:[%s3 + $0x110] sm:$0xff]
  %v1757 = vld [vmem:[%s3 + $0x118] sm:$0xff]
  %v1758 = vld [vmem:[%s3 + $0x120] sm:$0xff]
  %v1759 = vld [vmem:[%s3 + $0x128] sm:$0xff]
  %v1760 = vld [vmem:[%s3 + $0x130] sm:$0xff]
  %v1761 = vld [vmem:[%s3 + $0x138] sm:$0xff]
  %v1762 = vld [vmem:[%s3 + $0x140] sm:$0xff]
  %v1763 = vld [vmem:[%s3 + $0x148] sm:$0xff]
  %v1764 = vld [vmem:[%s3 + $0x150] sm:$0xff]
  %v1765 = vld [vmem:[%s3 + $0x158] sm:$0xff]
  %v1766 = vld [vmem:[%s3 + $0x160] sm:$0xff]
  %v1767 = vld [vmem:[%s3 + $0x168] sm:$0xff]
  %v1768 = vld [vmem:[%s3 + $0x170] sm:$0xff]
  %v1769 = vld [vmem:[%s3 + $0x178] sm:$0xff]
  %v1770 = vld [vmem:[%s3 + $0x180] sm:$0xff]
  %v1771 = vld [vmem:[%s3 + $0x188] sm:$0xff]
  %v1772 = vld [vmem:[%s3 + $0x190] sm:$0xff]
  %v1773 = vld [vmem:[%s3 + $0x198] sm:$0xff]
  %v1774 = vld [vmem:[%s3 + $0x1a0] sm:$0xff]
  %v1775 = vld [vmem:[%s3 + $0x1a8] sm:$0xff]
  %v1776 = vld [vmem:[%s3 + $0x1b0] sm:$0xff]
  %v1777 = vld [vmem:[%s3 + $0x1b8] sm:$0xff]
  %v1778 = vld [vmem:[%s3 + $0x1c0] sm:$0xff]
  %v1779 = vld [vmem:[%s3 + $0x1c8] sm:$0xff]
  %v1780 = vld [vmem:[%s3 + $0x1d0] sm:$0xff]
  %v1781 = vld [vmem:[%s3 + $0x1d8] sm:$0xff]
  %v1782 = vld [vmem:[%s3 + $0x1e0] sm:$0xff]
  %v1783 = vld [vmem:[%s3 + $0x1e8] sm:$0xff]
  %v1784 = vld [vmem:[%s3 + $0x1f0] sm:$0xff]
  %v1785 = vld [vmem:[%s3 + $0x1f8] sm:$0xff]
  %v1786 = vld [vmem:[%s3 + $0x200] sm:$0xff]
  %v1787 = vld [vmem:[%s3 + $0x208] sm:$0xff]
  %v1788 = vld [vmem:[%s3 + $0x210] sm:$0xff]
  %v1789 = vld [vmem:[%s3 + $0x218] sm:$0xff]
  %v1790 = vld [vmem:[%s3 + $0x220] sm:$0xff]
  %v1791 = vld [vmem:[%s3 + $0x228] sm:$0xff]
  %v1792 = vld [vmem:[%s3 + $0x230] sm:$0xff]
  %v1793 = vld [vmem:[%s3 + $0x238] sm:$0xff]
  %v1794 = vld [vmem:[%s3 + $0x240] sm:$0xff]
  %v1795 = vld [vmem:[%s3 + $0x248] sm:$0xff]
  %v1796 = vld [vmem:[%s3 + $0x250] sm:$0xff]
  %v1797 = vld [vmem:[%s3 + $0x258] sm:$0xff]
  %v1798 = vld [vmem:[%s3 + $0x260] sm:$0xff]
  %v1799 = vld [vmem:[%s3 + $0x268] sm:$0xff]
  %v1800 = vld [vmem:[%s3 + $0x270] sm:$0xff]
  %v1801 = vld [vmem:[%s3 + $0x278] sm:$0xff]
  %v1802 = vld [vmem:[%s3 + $0x280] sm:$0xff]
  %v1803 = vld [vmem:[%s3 + $0x288] sm:$0xff]
  %v1804 = vld [vmem:[%s3 + $0x290] sm:$0xff]
  %v1805 = vld [vmem:[%s3 + $0x298] sm:$0xff]
  %v1806 = vld [vmem:[%s3 + $0x2a0] sm:$0xff]
  %v1807 = vld [vmem:[%s3 + $0x2a8] sm:$0xff]
  %v1808 = vld [vmem:[%s3 + $0x2b0] sm:$0xff]
  %v1809 = vld [vmem:[%s3 + $0x2b8] sm:$0xff]
  %v1810 = vld [vmem:[%s3 + $0x2c0] sm:$0xff]
  %v1811 = vld [vmem:[%s3 + $0x2c8] sm:$0xff]
  %v1812 = vld [vmem:[%s3 + $0x2d0] sm:$0xff]
  %v1813 = vld [vmem:[%s3 + $0x2d8] sm:$0xff]
  %v1814 = vld [vmem:[%s3 + $0x2e0] sm:$0xff]
  %v1815 = vld [vmem:[%s3 + $0x2e8] sm:$0xff]
  %v1816 = vld [vmem:[%s3 + $0x2f0] sm:$0xff]
  %v1817 = vld [vmem:[%s3 + $0x2f8] sm:$0xff]
  %v1818 = vld [vmem:[%s3 + $0x300] sm:$0xff]
  %v1819 = vld [vmem:[%s3 + $0x308] sm:$0xff]
  %v1820 = vld [vmem:[%s3 + $0x310] sm:$0xff]
  %v1821 = vld [vmem:[%s3 + $0x318] sm:$0xff]
  %v1822 = vld [vmem:[%s3 + $0x320] sm:$0xff]
  %v1823 = vld [vmem:[%s3 + $0x328] sm:$0xff]
  %v1824 = vld [vmem:[%s3 + $0x330] sm:$0xff]
  %v1825 = vld [vmem:[%s3 + $0x338] sm:$0xff]
  %v1826 = vld [vmem:[%s3 + $0x340] sm:$0xff]
  %v1827 = vld [vmem:[%s3 + $0x348] sm:$0xff]
  %v1828 = vld [vmem:[%s3 + $0x350] sm:$0xff]
  %v1829 = vld [vmem:[%s3 + $0x358] sm:$0xff]
  %v1830 = vld [vmem:[%s3 + $0x360] sm:$0xff]
  %v1831 = vld [vmem:[%s3 + $0x368] sm:$0xff]
  %v1832 = vld [vmem:[%s3 + $0x370] sm:$0xff]
  %v1833 = vld [vmem:[%s3 + $0x378] sm:$0xff]
  %v1834 = vld [vmem:[%s3 + $0x380] sm:$0xff]
  %v1835 = vld [vmem:[%s3 + $0x388] sm:$0xff]
  %v1836 = vld [vmem:[%s3 + $0x390] sm:$0xff]
  %v1837 = vld [vmem:[%s3 + $0x398] sm:$0xff]
  %v1838 = vld [vmem:[%s3 + $0x3a0] sm:$0xff]
  %v1839 = vld [vmem:[%s3 + $0x3a8] sm:$0xff]
  %v1840 = vld [vmem:[%s3 + $0x3b0] sm:$0xff]
  %v1841 = vld [vmem:[%s3 + $0x3b8] sm:$0xff]
  %v1842 = vld [vmem:[%s3 + $0x3c0] sm:$0xff]
  %v1843 = vld [vmem:[%s3 + $0x3c8] sm:$0xff]
  %v1844 = vld [vmem:[%s3 + $0x3d0] sm:$0xff]
  %v1845 = vld [vmem:[%s3 + $0x3d8] sm:$0xff]
  %v1846 = vld [vmem:[%s3 + $0x3e0] sm:$0xff]
  %v1847 = vld [vmem:[%s3 + $0x3e8] sm:$0xff]
  %v1848 = vld [vmem:[%s3 + $0x3f0] sm:$0xff]
  %v1849 = vld [vmem:[%s3 + $0x3f8] sm:$0xff]
  %v1850 = vld [vmem:[%s3 + $0x400] sm:$0xff]
  %v1851 = vld [vmem:[%s3 + $0x408] sm:$0xff]
  %v1852 = vld [vmem:[%s3 + $0x410] sm:$0xff]
  %v1853 = vld [vmem:[%s3 + $0x418] sm:$0xff]
  %v1854 = vld [vmem:[%s3 + $0x420] sm:$0xff]
  %v1855 = vld [vmem:[%s3 + $0x428] sm:$0xff]
  %v1856 = vld [vmem:[%s3 + $0x430] sm:$0xff]
  %v1857 = vld [vmem:[%s3 + $0x438] sm:$0xff]
  %v1858 = vld [vmem:[%s3 + $0x440] sm:$0x1f]
  %v1859 = vld [vmem:[%s3 + $0x448] sm:$0x1f]
  %vm1860 = vcmask 302080
  %v1862 = vsel %vm1860, %v1646, 0
  %v1865 = vsel %vm1860, %v1651, 0
  %v1868 = vsel %vm1860, %v1656, 0
  %v1871 = vsel %vm1860, %v1661, 0
  %v1874 = vsel %vm1860, %v1666, 0
  %v1877 = vsel %vm1860, %v1671, 0
  %v1880 = vsel %vm1860, %v1676, 0
  %v1883 = vsel %vm1860, %v1681, 0
  %v1886 = vsel %vm1860, %v1686, 0
  %v1889 = vsel %vm1860, %v1691, 0
  %v1892 = vsel %vm1860, %v1696, 0
  %v1895 = vsel %vm1860, %v1701, 0
  %v1898 = vsel %vm1860, %v1706, 0
  %v1901 = vsel %vm1860, %v1711, 0
  %v1904 = vsel %vm1860, %v1716, 0
  %v1907 = vsel %vm1860, %v1721, 0
  %vm1909 = vcmask 1044480
  %v1911 = vsel %vm1909, %v1858, 0
  %v1914 = vsel %vm1909, %v1859, 0
  %1916 = vmatpush.msra.mxu0 %v1752
  %1917 = vmatpush.msra.mxu0 %v1750
  %1918 = vmatpush.msra.mxu0 %v1748
  %1919 = vmatpush.msra.mxu0 %v1746
  %1920 = vmatpush.msra.mxu0 %v1744
  %1921 = vmatpush.msra.mxu0 %v1742
  %1922 = vmatpush.msra.mxu0 %v1740
  %1923 = vmatpush.msra.mxu0 %v1738
  %1924 = vmatpush.msra.mxu0 %v1736
  %1925 = vmatpush.msra.mxu0 %v1734
  %1926 = vmatpush.msra.mxu0 %v1732
  %1927 = vmatpush.msra.mxu0 %v1730
  %1928 = vmatpush.msra.mxu0 %v1728
  %1929 = vmatpush.msra.mxu0 %v1726
  %1930 = vmatpush.msra.mxu0 %v1724
  %1931 = vmatpush.msra.mxu0 %v1722
  %1932 = vmatmul.f32.gmra.mxu0 %v1642
  %v1933 = vpop.f32.mrf.mxu0
  %v1934 = vadd.f32 0.0, %v1933
  %1935 = vmatmul.f32.gmra.mxu0 %v1647
  %v1936 = vpop.f32.mrf.mxu0
  %v1937 = vadd.f32 0.0, %v1936
  %1938 = vmatmul.f32.gmra.mxu0 %v1652
  %v1939 = vpop.f32.mrf.mxu0
  %v1940 = vadd.f32 0.0, %v1939
  %1941 = vmatmul.f32.gmra.mxu0 %v1657
  %v1942 = vpop.f32.mrf.mxu0
  %v1943 = vadd.f32 0.0, %v1942
  %1944 = vmatmul.f32.gmra.mxu0 %v1662
  %v1945 = vpop.f32.mrf.mxu0
  %v1946 = vadd.f32 0.0, %v1945
  %1947 = vmatmul.f32.gmra.mxu0 %v1667
  %v1948 = vpop.f32.mrf.mxu0
  %v1949 = vadd.f32 0.0, %v1948
  %1950 = vmatmul.f32.gmra.mxu0 %v1672
  %v1951 = vpop.f32.mrf.mxu0
  %v1952 = vadd.f32 0.0, %v1951
  %1953 = vmatmul.f32.gmra.mxu0 %v1677
  %v1954 = vpop.f32.mrf.mxu0
  %v1955 = vadd.f32 0.0, %v1954
  %1956 = vmatmul.f32.gmra.mxu0 %v1682
  %v1957 = vpop.f32.mrf.mxu0
  %v1958 = vadd.f32 0.0, %v1957
  %1959 = vmatmul.f32.gmra.mxu0 %v1687
  %v1960 = vpop.f32.mrf.mxu0
  %v1961 = vadd.f32 0.0, %v1960
  %1962 = vmatmul.f32.gmra.mxu0 %v1692
  %v1963 = vpop.f32.mrf.mxu0
  %v1964 = vadd.f32 0.0, %v1963
  %1965 = vmatmul.f32.gmra.mxu0 %v1697
  %v1966 = vpop.f32.mrf.mxu0
  %v1967 = vadd.f32 0.0, %v1966
  %1968 = vmatmul.f32.gmra.mxu0 %v1702
  %v1969 = vpop.f32.mrf.mxu0
  %v1970 = vadd.f32 0.0, %v1969
  %1971 = vmatmul.f32.gmra.mxu0 %v1707
  %v1972 = vpop.f32.mrf.mxu0
  %v1973 = vadd.f32 0.0, %v1972
  %1974 = vmatmul.f32.gmra.mxu0 %v1712
  %v1975 = vpop.f32.mrf.mxu0
  %v1976 = vadd.f32 0.0, %v1975
  %1977 = vmatmul.f32.gmra.mxu0 %v1717
  %v1978 = vpop.f32.mrf.mxu0
  %v1979 = vadd.f32 0.0, %v1978
  %1980 = vdwg.mxu0
  %1981 = vmatpush.msra.mxu0 %v1784
  %1982 = vmatpush.msra.mxu0 %v1782
  %1983 = vmatpush.msra.mxu0 %v1780
  %1984 = vmatpush.msra.mxu0 %v1778
  %1985 = vmatpush.msra.mxu0 %v1776
  %1986 = vmatpush.msra.mxu0 %v1774
  %1987 = vmatpush.msra.mxu0 %v1772
  %1988 = vmatpush.msra.mxu0 %v1770
  %1989 = vmatpush.msra.mxu0 %v1768
  %1990 = vmatpush.msra.mxu0 %v1766
  %1991 = vmatpush.msra.mxu0 %v1764
  %1992 = vmatpush.msra.mxu0 %v1762
  %1993 = vmatpush.msra.mxu0 %v1760
  %1994 = vmatpush.msra.mxu0 %v1758
  %1995 = vmatpush.msra.mxu0 %v1756
  %1996 = vmatpush.msra.mxu0 %v1754
  %1997 = vmatmul.f32.gmra.mxu0 %v1643
  %v1998 = vpop.f32.mrf.mxu0
  %v1999 = vadd.f32 %v1934, %v1998
  %2000 = vmatmul.f32.gmra.mxu0 %v1648
  %v2001 = vpop.f32.mrf.mxu0
  %v2002 = vadd.f32 %v1937, %v2001
  %2003 = vmatmul.f32.gmra.mxu0 %v1653
  %v2004 = vpop.f32.mrf.mxu0
  %v2005 = vadd.f32 %v1940, %v2004
  %2006 = vmatmul.f32.gmra.mxu0 %v1658
  %v2007 = vpop.f32.mrf.mxu0
  %v2008 = vadd.f32 %v1943, %v2007
  %2009 = vmatmul.f32.gmra.mxu0 %v1663
  %v2010 = vpop.f32.mrf.mxu0
  %v2011 = vadd.f32 %v1946, %v2010
  %2012 = vmatmul.f32.gmra.mxu0 %v1668
  %v2013 = vpop.f32.mrf.mxu0
  %v2014 = vadd.f32 %v1949, %v2013
  %2015 = vmatmul.f32.gmra.mxu0 %v1673
  %v2016 = vpop.f32.mrf.mxu0
  %v2017 = vadd.f32 %v1952, %v2016
  %2018 = vmatmul.f32.gmra.mxu0 %v1678
  %v2019 = vpop.f32.mrf.mxu0
  %v2020 = vadd.f32 %v1955, %v2019
  %2021 = vmatmul.f32.gmra.mxu0 %v1683
  %v2022 = vpop.f32.mrf.mxu0
  %v2023 = vadd.f32 %v1958, %v2022
  %2024 = vmatmul.f32.gmra.mxu0 %v1688
  %v2025 = vpop.f32.mrf.mxu0
  %v2026 = vadd.f32 %v1961, %v2025
  %2027 = vmatmul.f32.gmra.mxu0 %v1693
  %v2028 = vpop.f32.mrf.mxu0
  %v2029 = vadd.f32 %v1964, %v2028
  %2030 = vmatmul.f32.gmra.mxu0 %v1698
  %v2031 = vpop.f32.mrf.mxu0
  %v2032 = vadd.f32 %v1967, %v2031
  %2033 = vmatmul.f32.gmra.mxu0 %v1703
  %v2034 = vpop.f32.mrf.mxu0
  %v2035 = vadd.f32 %v1970, %v2034
  %2036 = vmatmul.f32.gmra.mxu0 %v1708
  %v2037 = vpop.f32.mrf.mxu0
  %v2038 = vadd.f32 %v1973, %v2037
  %2039 = vmatmul.f32.gmra.mxu0 %v1713
  %v2040 = vpop.f32.mrf.mxu0
  %v2041 = vadd.f32 %v1976, %v2040
  %2042 = vmatmul.f32.gmra.mxu0 %v1718
  %v2043 = vpop.f32.mrf.mxu0
  %v2044 = vadd.f32 %v1979, %v2043
  %2045 = vdwg.mxu0
  %2046 = vmatpush.msra.mxu0 %v1816
  %2047 = vmatpush.msra.mxu0 %v1814
  %2048 = vmatpush.msra.mxu0 %v1812
  %2049 = vmatpush.msra.mxu0 %v1810
  %2050 = vmatpush.msra.mxu0 %v1808
  %2051 = vmatpush.msra.mxu0 %v1806
  %2052 = vmatpush.msra.mxu0 %v1804
  %2053 = vmatpush.msra.mxu0 %v1802
  %2054 = vmatpush.msra.mxu0 %v1800
  %2055 = vmatpush.msra.mxu0 %v1798
  %2056 = vmatpush.msra.mxu0 %v1796
  %2057 = vmatpush.msra.mxu0 %v1794
  %2058 = vmatpush.msra.mxu0 %v1792
  %2059 = vmatpush.msra.mxu0 %v1790
  %2060 = vmatpush.msra.mxu0 %v1788
  %2061 = vmatpush.msra.mxu0 %v1786
  %2062 = vmatmul.f32.gmra.mxu0 %v1644
  %v2063 = vpop.f32.mrf.mxu0
  %v2064 = vadd.f32 %v1999, %v2063
  %2065 = vmatmul.f32.gmra.mxu0 %v1649
  %v2066 = vpop.f32.mrf.mxu0
  %v2067 = vadd.f32 %v2002, %v2066
  %2068 = vmatmul.f32.gmra.mxu0 %v1654
  %v2069 = vpop.f32.mrf.mxu0
  %v2070 = vadd.f32 %v2005, %v2069
  %2071 = vmatmul.f32.gmra.mxu0 %v1659
  %v2072 = vpop.f32.mrf.mxu0
  %v2073 = vadd.f32 %v2008, %v2072
  %2074 = vmatmul.f32.gmra.mxu0 %v1664
  %v2075 = vpop.f32.mrf.mxu0
  %v2076 = vadd.f32 %v2011, %v2075
  %2077 = vmatmul.f32.gmra.mxu0 %v1669
  %v2078 = vpop.f32.mrf.mxu0
  %v2079 = vadd.f32 %v2014, %v2078
  %2080 = vmatmul.f32.gmra.mxu0 %v1674
  %v2081 = vpop.f32.mrf.mxu0
  %v2082 = vadd.f32 %v2017, %v2081
  %2083 = vmatmul.f32.gmra.mxu0 %v1679
  %v2084 = vpop.f32.mrf.mxu0
  %v2085 = vadd.f32 %v2020, %v2084
  %2086 = vmatmul.f32.gmra.mxu0 %v1684
  %v2087 = vpop.f32.mrf.mxu0
  %v2088 = vadd.f32 %v2023, %v2087
  %2089 = vmatmul.f32.gmra.mxu0 %v1689
  %v2090 = vpop.f32.mrf.mxu0
  %v2091 = vadd.f32 %v2026, %v2090
  %2092 = vmatmul.f32.gmra.mxu0 %v1694
  %v2093 = vpop.f32.mrf.mxu0
  %v2094 = vadd.f32 %v2029, %v2093
  %2095 = vmatmul.f32.gmra.mxu0 %v1699
  %v2096 = vpop.f32.mrf.mxu0
  %v2097 = vadd.f32 %v2032, %v2096
  %2098 = vmatmul.f32.gmra.mxu0 %v1704
  %v2099 = vpop.f32.mrf.mxu0
  %v2100 = vadd.f32 %v2035, %v2099
  %2101 = vmatmul.f32.gmra.mxu0 %v1709
  %v2102 = vpop.f32.mrf.mxu0
  %v2103 = vadd.f32 %v2038, %v2102
  %2104 = vmatmul.f32.gmra.mxu0 %v1714
  %v2105 = vpop.f32.mrf.mxu0
  %v2106 = vadd.f32 %v2041, %v2105
  %2107 = vmatmul.f32.gmra.mxu0 %v1719
  %v2108 = vpop.f32.mrf.mxu0
  %v2109 = vadd.f32 %v2044, %v2108
  %2110 = vdwg.mxu0
  %2111 = vmatpush.msra.mxu0 %v1848
  %2112 = vmatpush.msra.mxu0 %v1846
  %2113 = vmatpush.msra.mxu0 %v1844
  %2114 = vmatpush.msra.mxu0 %v1842
  %2115 = vmatpush.msra.mxu0 %v1840
  %2116 = vmatpush.msra.mxu0 %v1838
  %2117 = vmatpush.msra.mxu0 %v1836
  %2118 = vmatpush.msra.mxu0 %v1834
  %2119 = vmatpush.msra.mxu0 %v1832
  %2120 = vmatpush.msra.mxu0 %v1830
  %2121 = vmatpush.msra.mxu0 %v1828
  %2122 = vmatpush.msra.mxu0 %v1826
  %2123 = vmatpush.msra.mxu0 %v1824
  %2124 = vmatpush.msra.mxu0 %v1822
  %2125 = vmatpush.msra.mxu0 %v1820
  %2126 = vmatpush.msra.mxu0 %v1818
  %2127 = vmatmul.f32.gmra.mxu0 %v1645
  %v2128 = vpop.f32.mrf.mxu0
  %v2129 = vadd.f32 %v2064, %v2128
  %2130 = vmatmul.f32.gmra.mxu0 %v1650
  %v2131 = vpop.f32.mrf.mxu0
  %v2132 = vadd.f32 %v2067, %v2131
  %2133 = vmatmul.f32.gmra.mxu0 %v1655
  %v2134 = vpop.f32.mrf.mxu0
  %v2135 = vadd.f32 %v2070, %v2134
  %2136 = vmatmul.f32.gmra.mxu0 %v1660
  %v2137 = vpop.f32.mrf.mxu0
  %v2138 = vadd.f32 %v2073, %v2137
  %2139 = vmatmul.f32.gmra.mxu0 %v1665
  %v2140 = vpop.f32.mrf.mxu0
  %v2141 = vadd.f32 %v2076, %v2140
  %2142 = vmatmul.f32.gmra.mxu0 %v1670
  %v2143 = vpop.f32.mrf.mxu0
  %v2144 = vadd.f32 %v2079, %v2143
  %2145 = vmatmul.f32.gmra.mxu0 %v1675
  %v2146 = vpop.f32.mrf.mxu0
  %v2147 = vadd.f32 %v2082, %v2146
  %2148 = vmatmul.f32.gmra.mxu0 %v1680
  %v2149 = vpop.f32.mrf.mxu0
  %v2150 = vadd.f32 %v2085, %v2149
  %2151 = vmatmul.f32.gmra.mxu0 %v1685
  %v2152 = vpop.f32.mrf.mxu0
  %v2153 = vadd.f32 %v2088, %v2152
  %2154 = vmatmul.f32.gmra.mxu0 %v1690
  %v2155 = vpop.f32.mrf.mxu0
  %v2156 = vadd.f32 %v2091, %v2155
  %2157 = vmatmul.f32.gmra.mxu0 %v1695
  %v2158 = vpop.f32.mrf.mxu0
  %v2159 = vadd.f32 %v2094, %v2158
  %2160 = vmatmul.f32.gmra.mxu0 %v1700
  %v2161 = vpop.f32.mrf.mxu0
  %v2162 = vadd.f32 %v2097, %v2161
  %2163 = vmatmul.f32.gmra.mxu0 %v1705
  %v2164 = vpop.f32.mrf.mxu0
  %v2165 = vadd.f32 %v2100, %v2164
  %2166 = vmatmul.f32.gmra.mxu0 %v1710
  %v2167 = vpop.f32.mrf.mxu0
  %v2168 = vadd.f32 %v2103, %v2167
  %2169 = vmatmul.f32.gmra.mxu0 %v1715
  %v2170 = vpop.f32.mrf.mxu0
  %v2171 = vadd.f32 %v2106, %v2170
  %2172 = vmatmul.f32.gmra.mxu0 %v1720
  %v2173 = vpop.f32.mrf.mxu0
  %v2174 = vadd.f32 %v2109, %v2173
  %2175 = vdwg.mxu0
  %2176 = vmatpush.msra.mxu0 0.0
  %2177 = vmatpush.msra.mxu0 0.0
  %2178 = vmatpush.msra.mxu0 0.0
  %2179 = vmatpush.msra.mxu0 0.0
  %2180 = vmatpush.msra.mxu0 0.0
  %2181 = vmatpush.msra.mxu0 0.0
  %2182 = vmatpush.msra.mxu0 0.0
  %2183 = vmatpush.msra.mxu0 0.0
  %2184 = vmatpush.msra.mxu0 0.0
  %2185 = vmatpush.msra.mxu0 0.0
  %2186 = vmatpush.msra.mxu0 0.0
  %2187 = vmatpush.msra.mxu0 %v1911
  %2188 = vmatpush.msra.mxu0 %v1856
  %2189 = vmatpush.msra.mxu0 %v1854
  %2190 = vmatpush.msra.mxu0 %v1852
  %2191 = vmatpush.msra.mxu0 %v1850
  %2192 = vmatmul.f32.gmra.mxu0 %v1862
  %v2193 = vpop.f32.mrf.mxu0
  %v2194 = vadd.f32 %v2129, %v2193
  %2195 = vmatmul.f32.gmra.mxu0 %v1865
  %v2196 = vpop.f32.mrf.mxu0
  %v2197 = vadd.f32 %v2132, %v2196
  %2198 = vmatmul.f32.gmra.mxu0 %v1868
  %v2199 = vpop.f32.mrf.mxu0
  %v2200 = vadd.f32 %v2135, %v2199
  %2201 = vmatmul.f32.gmra.mxu0 %v1871
  %v2202 = vpop.f32.mrf.mxu0
  %v2203 = vadd.f32 %v2138, %v2202
  %2204 = vmatmul.f32.gmra.mxu0 %v1874
  %v2205 = vpop.f32.mrf.mxu0
  %v2206 = vadd.f32 %v2141, %v2205
  %2207 = vmatmul.f32.gmra.mxu0 %v1877
  %v2208 = vpop.f32.mrf.mxu0
  %v2209 = vadd.f32 %v2144, %v2208
  %2210 = vmatmul.f32.gmra.mxu0 %v1880
  %v2211 = vpop.f32.mrf.mxu0
  %v2212 = vadd.f32 %v2147, %v2211
  %2213 = vmatmul.f32.gmra.mxu0 %v1883
  %v2214 = vpop.f32.mrf.mxu0
  %v2215 = vadd.f32 %v2150, %v2214
  %2216 = vmatmul.f32.gmra.mxu0 %v1886
  %v2217 = vpop.f32.mrf.mxu0
  %v2218 = vadd.f32 %v2153, %v2217
  %2219 = vmatmul.f32.gmra.mxu0 %v1889
  %v2220 = vpop.f32.mrf.mxu0
  %v2221 = vadd.f32 %v2156, %v2220
  %2222 = vmatmul.f32.gmra.mxu0 %v1892
  %v2223 = vpop.f32.mrf.mxu0
  %v2224 = vadd.f32 %v2159, %v2223
  %2225 = vmatmul.f32.gmra.mxu0 %v1895
  %v2226 = vpop.f32.mrf.mxu0
  %v2227 = vadd.f32 %v2162, %v2226
  %2228 = vmatmul.f32.gmra.mxu0 %v1898
  %v2229 = vpop.f32.mrf.mxu0
  %v2230 = vadd.f32 %v2165, %v2229
  %2231 = vmatmul.f32.gmra.mxu0 %v1901
  %v2232 = vpop.f32.mrf.mxu0
  %v2233 = vadd.f32 %v2168, %v2232
  %2234 = vmatmul.f32.gmra.mxu0 %v1904
  %v2235 = vpop.f32.mrf.mxu0
  %v2236 = vadd.f32 %v2171, %v2235
  %2237 = vmatmul.f32.gmra.mxu0 %v1907
  %v2238 = vpop.f32.mrf.mxu0
  %v2239 = vadd.f32 %v2174, %v2238
  %2240 = vdwg.mxu0
  %2241 = vmatpush.msra.mxu0 %v1753
  %2242 = vmatpush.msra.mxu0 %v1751
  %2243 = vmatpush.msra.mxu0 %v1749
  %2244 = vmatpush.msra.mxu0 %v1747
  %2245 = vmatpush.msra.mxu0 %v1745
  %2246 = vmatpush.msra.mxu0 %v1743
  %2247 = vmatpush.msra.mxu0 %v1741
  %2248 = vmatpush.msra.mxu0 %v1739
  %2249 = vmatpush.msra.mxu0 %v1737
  %2250 = vmatpush.msra.mxu0 %v1735
  %2251 = vmatpush.msra.mxu0 %v1733
  %2252 = vmatpush.msra.mxu0 %v1731
  %2253 = vmatpush.msra.mxu0 %v1729
  %2254 = vmatpush.msra.mxu0 %v1727
  %2255 = vmatpush.msra.mxu0 %v1725
  %2256 = vmatpush.msra.mxu0 %v1723
  %2257 = vmatmul.f32.gmra.mxu0 %v1642
  %v2258 = vpop.f32.mrf.mxu0
  %v2259 = vadd.f32 0.0, %v2258
  %2260 = vmatmul.f32.gmra.mxu0 %v1647
  %v2261 = vpop.f32.mrf.mxu0
  %v2262 = vadd.f32 0.0, %v2261
  %2263 = vmatmul.f32.gmra.mxu0 %v1652
  %v2264 = vpop.f32.mrf.mxu0
  %v2265 = vadd.f32 0.0, %v2264
  %2266 = vmatmul.f32.gmra.mxu0 %v1657
  %v2267 = vpop.f32.mrf.mxu0
  %v2268 = vadd.f32 0.0, %v2267
  %2269 = vmatmul.f32.gmra.mxu0 %v1662
  %v2270 = vpop.f32.mrf.mxu0
  %v2271 = vadd.f32 0.0, %v2270
  %2272 = vmatmul.f32.gmra.mxu0 %v1667
  %v2273 = vpop.f32.mrf.mxu0
  %v2274 = vadd.f32 0.0, %v2273
  %2275 = vmatmul.f32.gmra.mxu0 %v1672
  %v2276 = vpop.f32.mrf.mxu0
  %v2277 = vadd.f32 0.0, %v2276
  %2278 = vmatmul.f32.gmra.mxu0 %v1677
  %v2279 = vpop.f32.mrf.mxu0
  %v2280 = vadd.f32 0.0, %v2279
  %2281 = vmatmul.f32.gmra.mxu0 %v1682
  %v2282 = vpop.f32.mrf.mxu0
  %v2283 = vadd.f32 0.0, %v2282
  %2284 = vmatmul.f32.gmra.mxu0 %v1687
  %v2285 = vpop.f32.mrf.mxu0
  %v2286 = vadd.f32 0.0, %v2285
  %2287 = vmatmul.f32.gmra.mxu0 %v1692
  %v2288 = vpop.f32.mrf.mxu0
  %v2289 = vadd.f32 0.0, %v2288
  %2290 = vmatmul.f32.gmra.mxu0 %v1697
  %v2291 = vpop.f32.mrf.mxu0
  %v2292 = vadd.f32 0.0, %v2291
  %2293 = vmatmul.f32.gmra.mxu0 %v1702
  %v2294 = vpop.f32.mrf.mxu0
  %v2295 = vadd.f32 0.0, %v2294
  %2296 = vmatmul.f32.gmra.mxu0 %v1707
  %v2297 = vpop.f32.mrf.mxu0
  %v2298 = vadd.f32 0.0, %v2297
  %2299 = vmatmul.f32.gmra.mxu0 %v1712
  %v2300 = vpop.f32.mrf.mxu0
  %v2301 = vadd.f32 0.0, %v2300
  %2302 = vmatmul.f32.gmra.mxu0 %v1717
  %v2303 = vpop.f32.mrf.mxu0
  %v2304 = vadd.f32 0.0, %v2303
  %2305 = vdwg.mxu0
  %2306 = vmatpush.msra.mxu0 %v1785
  %2307 = vmatpush.msra.mxu0 %v1783
  %2308 = vmatpush.msra.mxu0 %v1781
  %2309 = vmatpush.msra.mxu0 %v1779
  %2310 = vmatpush.msra.mxu0 %v1777
  %2311 = vmatpush.msra.mxu0 %v1775
  %2312 = vmatpush.msra.mxu0 %v1773
  %2313 = vmatpush.msra.mxu0 %v1771
  %2314 = vmatpush.msra.mxu0 %v1769
  %2315 = vmatpush.msra.mxu0 %v1767
  %2316 = vmatpush.msra.mxu0 %v1765
  %2317 = vmatpush.msra.mxu0 %v1763
  %2318 = vmatpush.msra.mxu0 %v1761
  %2319 = vmatpush.msra.mxu0 %v1759
  %2320 = vmatpush.msra.mxu0 %v1757
  %2321 = vmatpush.msra.mxu0 %v1755
  %2322 = vmatmul.f32.gmra.mxu0 %v1643
  %v2323 = vpop.f32.mrf.mxu0
  %v2324 = vadd.f32 %v2259, %v2323
  %2325 = vmatmul.f32.gmra.mxu0 %v1648
  %v2326 = vpop.f32.mrf.mxu0
  %v2327 = vadd.f32 %v2262, %v2326
  %2328 = vmatmul.f32.gmra.mxu0 %v1653
  %v2329 = vpop.f32.mrf.mxu0
  %v2330 = vadd.f32 %v2265, %v2329
  %2331 = vmatmul.f32.gmra.mxu0 %v1658
  %v2332 = vpop.f32.mrf.mxu0
  %v2333 = vadd.f32 %v2268, %v2332
  %2334 = vmatmul.f32.gmra.mxu0 %v1663
  %v2335 = vpop.f32.mrf.mxu0
  %v2336 = vadd.f32 %v2271, %v2335
  %2337 = vmatmul.f32.gmra.mxu0 %v1668
  %v2338 = vpop.f32.mrf.mxu0
  %v2339 = vadd.f32 %v2274, %v2338
  %2340 = vmatmul.f32.gmra.mxu0 %v1673
  %v2341 = vpop.f32.mrf.mxu0
  %v2342 = vadd.f32 %v2277, %v2341
  %2343 = vmatmul.f32.gmra.mxu0 %v1678
  %v2344 = vpop.f32.mrf.mxu0
  %v2345 = vadd.f32 %v2280, %v2344
  %2346 = vmatmul.f32.gmra.mxu0 %v1683
  %v2347 = vpop.f32.mrf.mxu0
  %v2348 = vadd.f32 %v2283, %v2347
  %2349 = vmatmul.f32.gmra.mxu0 %v1688
  %v2350 = vpop.f32.mrf.mxu0
  %v2351 = vadd.f32 %v2286, %v2350
  %2352 = vmatmul.f32.gmra.mxu0 %v1693
  %v2353 = vpop.f32.mrf.mxu0
  %v2354 = vadd.f32 %v2289, %v2353
  %2355 = vmatmul.f32.gmra.mxu0 %v1698
  %v2356 = vpop.f32.mrf.mxu0
  %v2357 = vadd.f32 %v2292, %v2356
  %2358 = vmatmul.f32.gmra.mxu0 %v1703
  %v2359 = vpop.f32.mrf.mxu0
  %v2360 = vadd.f32 %v2295, %v2359
  %2361 = vmatmul.f32.gmra.mxu0 %v1708
  %v2362 = vpop.f32.mrf.mxu0
  %v2363 = vadd.f32 %v2298, %v2362
  %2364 = vmatmul.f32.gmra.mxu0 %v1713
  %v2365 = vpop.f32.mrf.mxu0
  %v2366 = vadd.f32 %v2301, %v2365
  %2367 = vmatmul.f32.gmra.mxu0 %v1718
  %v2368 = vpop.f32.mrf.mxu0
  %v2369 = vadd.f32 %v2304, %v2368
  %2370 = vdwg.mxu0
  %2371 = vmatpush.msra.mxu0 %v1817
  %2372 = vmatpush.msra.mxu0 %v1815
  %2373 = vmatpush.msra.mxu0 %v1813
  %2374 = vmatpush.msra.mxu0 %v1811
  %2375 = vmatpush.msra.mxu0 %v1809
  %2376 = vmatpush.msra.mxu0 %v1807
  %2377 = vmatpush.msra.mxu0 %v1805
  %2378 = vmatpush.msra.mxu0 %v1803
  %2379 = vmatpush.msra.mxu0 %v1801
  %2380 = vmatpush.msra.mxu0 %v1799
  %2381 = vmatpush.msra.mxu0 %v1797
  %2382 = vmatpush.msra.mxu0 %v1795
  %2383 = vmatpush.msra.mxu0 %v1793
  %2384 = vmatpush.msra.mxu0 %v1791
  %2385 = vmatpush.msra.mxu0 %v1789
  %2386 = vmatpush.msra.mxu0 %v1787
  %2387 = vmatmul.f32.gmra.mxu0 %v1644
  %v2388 = vpop.f32.mrf.mxu0
  %v2389 = vadd.f32 %v2324, %v2388
  %2390 = vmatmul.f32.gmra.mxu0 %v1649
  %v2391 = vpop.f32.mrf.mxu0
  %v2392 = vadd.f32 %v2327, %v2391
  %2393 = vmatmul.f32.gmra.mxu0 %v1654
  %v2394 = vpop.f32.mrf.mxu0
  %v2395 = vadd.f32 %v2330, %v2394
  %2396 = vmatmul.f32.gmra.mxu0 %v1659
  %v2397 = vpop.f32.mrf.mxu0
  %v2398 = vadd.f32 %v2333, %v2397
  %2399 = vmatmul.f32.gmra.mxu0 %v1664
  %v2400 = vpop.f32.mrf.mxu0
  %v2401 = vadd.f32 %v2336, %v2400
  %2402 = vmatmul.f32.gmra.mxu0 %v1669
  %v2403 = vpop.f32.mrf.mxu0
  %v2404 = vadd.f32 %v2339, %v2403
  %2405 = vmatmul.f32.gmra.mxu0 %v1674
  %v2406 = vpop.f32.mrf.mxu0
  %v2407 = vadd.f32 %v2342, %v2406
  %2408 = vmatmul.f32.gmra.mxu0 %v1679
  %v2409 = vpop.f32.mrf.mxu0
  %v2410 = vadd.f32 %v2345, %v2409
  %2411 = vmatmul.f32.gmra.mxu0 %v1684
  %v2412 = vpop.f32.mrf.mxu0
  %v2413 = vadd.f32 %v2348, %v2412
  %2414 = vmatmul.f32.gmra.mxu0 %v1689
  %v2415 = vpop.f32.mrf.mxu0
  %v2416 = vadd.f32 %v2351, %v2415
  %2417 = vmatmul.f32.gmra.mxu0 %v1694
  %v2418 = vpop.f32.mrf.mxu0
  %v2419 = vadd.f32 %v2354, %v2418
  %2420 = vmatmul.f32.gmra.mxu0 %v1699
  %v2421 = vpop.f32.mrf.mxu0
  %v2422 = vadd.f32 %v2357, %v2421
  %2423 = vmatmul.f32.gmra.mxu0 %v1704
  %v2424 = vpop.f32.mrf.mxu0
  %v2425 = vadd.f32 %v2360, %v2424
  %2426 = vmatmul.f32.gmra.mxu0 %v1709
  %v2427 = vpop.f32.mrf.mxu0
  %v2428 = vadd.f32 %v2363, %v2427
  %2429 = vmatmul.f32.gmra.mxu0 %v1714
  %v2430 = vpop.f32.mrf.mxu0
  %v2431 = vadd.f32 %v2366, %v2430
  %2432 = vmatmul.f32.gmra.mxu0 %v1719
  %v2433 = vpop.f32.mrf.mxu0
  %v2434 = vadd.f32 %v2369, %v2433
  %2435 = vdwg.mxu0
  %2436 = vmatpush.msra.mxu0 %v1849
  %2437 = vmatpush.msra.mxu0 %v1847
  %2438 = vmatpush.msra.mxu0 %v1845
  %2439 = vmatpush.msra.mxu0 %v1843
  %2440 = vmatpush.msra.mxu0 %v1841
  %2441 = vmatpush.msra.mxu0 %v1839
  %2442 = vmatpush.msra.mxu0 %v1837
  %2443 = vmatpush.msra.mxu0 %v1835
  %2444 = vmatpush.msra.mxu0 %v1833
  %2445 = vmatpush.msra.mxu0 %v1831
  %2446 = vmatpush.msra.mxu0 %v1829
  %2447 = vmatpush.msra.mxu0 %v1827
  %2448 = vmatpush.msra.mxu0 %v1825
  %2449 = vmatpush.msra.mxu0 %v1823
  %2450 = vmatpush.msra.mxu0 %v1821
  %2451 = vmatpush.msra.mxu0 %v1819
  %2452 = vmatmul.f32.gmra.mxu0 %v1645
  %v2453 = vpop.f32.mrf.mxu0
  %v2454 = vadd.f32 %v2389, %v2453
  %2455 = vmatmul.f32.gmra.mxu0 %v1650
  %v2456 = vpop.f32.mrf.mxu0
  %v2457 = vadd.f32 %v2392, %v2456
  %2458 = vmatmul.f32.gmra.mxu0 %v1655
  %v2459 = vpop.f32.mrf.mxu0
  %v2460 = vadd.f32 %v2395, %v2459
  %2461 = vmatmul.f32.gmra.mxu0 %v1660
  %v2462 = vpop.f32.mrf.mxu0
  %v2463 = vadd.f32 %v2398, %v2462
  %2464 = vmatmul.f32.gmra.mxu0 %v1665
  %v2465 = vpop.f32.mrf.mxu0
  %v2466 = vadd.f32 %v2401, %v2465
  %2467 = vmatmul.f32.gmra.mxu0 %v1670
  %v2468 = vpop.f32.mrf.mxu0
  %v2469 = vadd.f32 %v2404, %v2468
  %2470 = vmatmul.f32.gmra.mxu0 %v1675
  %v2471 = vpop.f32.mrf.mxu0
  %v2472 = vadd.f32 %v2407, %v2471
  %2473 = vmatmul.f32.gmra.mxu0 %v1680
  %v2474 = vpop.f32.mrf.mxu0
  %v2475 = vadd.f32 %v2410, %v2474
  %2476 = vmatmul.f32.gmra.mxu0 %v1685
  %v2477 = vpop.f32.mrf.mxu0
  %v2478 = vadd.f32 %v2413, %v2477
  %2479 = vmatmul.f32.gmra.mxu0 %v1690
  %v2480 = vpop.f32.mrf.mxu0
  %v2481 = vadd.f32 %v2416, %v2480
  %2482 = vmatmul.f32.gmra.mxu0 %v1695
  %v2483 = vpop.f32.mrf.mxu0
  %v2484 = vadd.f32 %v2419, %v2483
  %2485 = vmatmul.f32.gmra.mxu0 %v1700
  %v2486 = vpop.f32.mrf.mxu0
  %v2487 = vadd.f32 %v2422, %v2486
  %2488 = vmatmul.f32.gmra.mxu0 %v1705
  %v2489 = vpop.f32.mrf.mxu0
  %v2490 = vadd.f32 %v2425, %v2489
  %2491 = vmatmul.f32.gmra.mxu0 %v1710
  %v2492 = vpop.f32.mrf.mxu0
  %v2493 = vadd.f32 %v2428, %v2492
  %2494 = vmatmul.f32.gmra.mxu0 %v1715
  %v2495 = vpop.f32.mrf.mxu0
  %v2496 = vadd.f32 %v2431, %v2495
  %2497 = vmatmul.f32.gmra.mxu0 %v1720
  %v2498 = vpop.f32.mrf.mxu0
  %v2499 = vadd.f32 %v2434, %v2498
  %2500 = vdwg.mxu0
  %2501 = vmatpush.msra.mxu0 0.0
  %2502 = vmatpush.msra.mxu0 0.0
  %2503 = vmatpush.msra.mxu0 0.0
  %2504 = vmatpush.msra.mxu0 0.0
  %2505 = vmatpush.msra.mxu0 0.0
  %2506 = vmatpush.msra.mxu0 0.0
  %2507 = vmatpush.msra.mxu0 0.0
  %2508 = vmatpush.msra.mxu0 0.0
  %2509 = vmatpush.msra.mxu0 0.0
  %2510 = vmatpush.msra.mxu0 0.0
  %2511 = vmatpush.msra.mxu0 0.0
  %2512 = vmatpush.msra.mxu0 %v1914
  %2513 = vmatpush.msra.mxu0 %v1857
  %2514 = vmatpush.msra.mxu0 %v1855
  %2515 = vmatpush.msra.mxu0 %v1853
  %2516 = vmatpush.msra.mxu0 %v1851
  %2517 = vmatmul.f32.gmra.mxu0 %v1862
  %v2518 = vpop.f32.mrf.mxu0
  %v2519 = vadd.f32 %v2454, %v2518
  %2520 = vmatmul.f32.gmra.mxu0 %v1865
  %v2521 = vpop.f32.mrf.mxu0
  %v2522 = vadd.f32 %v2457, %v2521
  %2523 = vmatmul.f32.gmra.mxu0 %v1868
  %v2524 = vpop.f32.mrf.mxu0
  %v2525 = vadd.f32 %v2460, %v2524
  %2526 = vmatmul.f32.gmra.mxu0 %v1871
  %v2527 = vpop.f32.mrf.mxu0
  %v2528 = vadd.f32 %v2463, %v2527
  %2529 = vmatmul.f32.gmra.mxu0 %v1874
  %v2530 = vpop.f32.mrf.mxu0
  %v2531 = vadd.f32 %v2466, %v2530
  %2532 = vmatmul.f32.gmra.mxu0 %v1877
  %v2533 = vpop.f32.mrf.mxu0
  %v2534 = vadd.f32 %v2469, %v2533
  %2535 = vmatmul.f32.gmra.mxu0 %v1880
  %v2536 = vpop.f32.mrf.mxu0
  %v2537 = vadd.f32 %v2472, %v2536
  %2538 = vmatmul.f32.gmra.mxu0 %v1883
  %v2539 = vpop.f32.mrf.mxu0
  %v2540 = vadd.f32 %v2475, %v2539
  %2541 = vmatmul.f32.gmra.mxu0 %v1886
  %v2542 = vpop.f32.mrf.mxu0
  %v2543 = vadd.f32 %v2478, %v2542
  %2544 = vmatmul.f32.gmra.mxu0 %v1889
  %v2545 = vpop.f32.mrf.mxu0
  %v2546 = vadd.f32 %v2481, %v2545
  %2547 = vmatmul.f32.gmra.mxu0 %v1892
  %v2548 = vpop.f32.mrf.mxu0
  %v2549 = vadd.f32 %v2484, %v2548
  %2550 = vmatmul.f32.gmra.mxu0 %v1895
  %v2551 = vpop.f32.mrf.mxu0
  %v2552 = vadd.f32 %v2487, %v2551
  %2553 = vmatmul.f32.gmra.mxu0 %v1898
  %v2554 = vpop.f32.mrf.mxu0
  %v2555 = vadd.f32 %v2490, %v2554
  %2556 = vmatmul.f32.gmra.mxu0 %v1901
  %v2557 = vpop.f32.mrf.mxu0
  %v2558 = vadd.f32 %v2493, %v2557
  %2559 = vmatmul.f32.gmra.mxu0 %v1904
  %v2560 = vpop.f32.mrf.mxu0
  %v2561 = vadd.f32 %v2496, %v2560
  %2562 = vmatmul.f32.gmra.mxu0 %v1907
  %v2563 = vpop.f32.mrf.mxu0
  %v2564 = vadd.f32 %v2499, %v2563
  %2565 = vdwg.mxu0
  %2598 = vrot.lane.b32.xlu0 %v2194, 127
  %v2599 = vpop.permute.xlu0 %2598
  %2600 = vrot.lane.b32.xlu0 %v2519, 127
  %v2601 = vpop.permute.xlu0 %2600
  %2602 = vrot.lane.b32.xlu0 %v2197, 127
  %v2603 = vpop.permute.xlu0 %2602
  %2604 = vrot.lane.b32.xlu0 %v2522, 127
  %v2605 = vpop.permute.xlu0 %2604
  %2606 = vrot.lane.b32.xlu0 %v2200, 127
  %v2607 = vpop.permute.xlu0 %2606
  %2608 = vrot.lane.b32.xlu0 %v2525, 127
  %v2609 = vpop.permute.xlu0 %2608
  %2610 = vrot.lane.b32.xlu0 %v2203, 127
  %v2611 = vpop.permute.xlu0 %2610
  %2612 = vrot.lane.b32.xlu0 %v2528, 127
  %v2613 = vpop.permute.xlu0 %2612
  %2614 = vrot.lane.b32.xlu0 %v2206, 127
  %v2615 = vpop.permute.xlu0 %2614
  %2616 = vrot.lane.b32.xlu0 %v2531, 127
  %v2617 = vpop.permute.xlu0 %2616
  %2618 = vrot.lane.b32.xlu0 %v2209, 127
  %v2619 = vpop.permute.xlu0 %2618
  %2620 = vrot.lane.b32.xlu0 %v2534, 127
  %v2621 = vpop.permute.xlu0 %2620
  %2622 = vrot.lane.b32.xlu0 %v2212, 127
  %v2623 = vpop.permute.xlu0 %2622
  %2624 = vrot.lane.b32.xlu0 %v2537, 127
  %v2625 = vpop.permute.xlu0 %2624
  %2626 = vrot.lane.b32.xlu0 %v2215, 127
  %v2627 = vpop.permute.xlu0 %2626
  %2628 = vrot.lane.b32.xlu0 %v2540, 127
  %v2629 = vpop.permute.xlu0 %2628
  %2630 = vrot.lane.b32.xlu0 %v2218, 127
  %v2631 = vpop.permute.xlu0 %2630
  %2632 = vrot.lane.b32.xlu0 %v2543, 127
  %v2633 = vpop.permute.xlu0 %2632
  %2634 = vrot.lane.b32.xlu0 %v2221, 127
  %v2635 = vpop.permute.xlu0 %2634
  %2636 = vrot.lane.b32.xlu0 %v2546, 127
  %v2637 = vpop.permute.xlu0 %2636
  %2638 = vrot.lane.b32.xlu0 %v2224, 127
  %v2639 = vpop.permute.xlu0 %2638
  %2640 = vrot.lane.b32.xlu0 %v2549, 127
  %v2641 = vpop.permute.xlu0 %2640
  %2642 = vrot.lane.b32.xlu0 %v2227, 127
  %v2643 = vpop.permute.xlu0 %2642
  %2644 = vrot.lane.b32.xlu0 %v2552, 127
  %v2645 = vpop.permute.xlu0 %2644
  %2646 = vrot.lane.b32.xlu0 %v2230, 127
  %v2647 = vpop.permute.xlu0 %2646
  %2648 = vrot.lane.b32.xlu0 %v2555, 127
  %v2649 = vpop.permute.xlu0 %2648
  %2650 = vrot.lane.b32.xlu0 %v2233, 127
  %v2651 = vpop.permute.xlu0 %2650
  %2652 = vrot.lane.b32.xlu0 %v2558, 127
  %v2653 = vpop.permute.xlu0 %2652
  %2654 = vrot.lane.b32.xlu0 %v2236, 127
  %v2655 = vpop.permute.xlu0 %2654
  %2656 = vrot.lane.b32.xlu0 %v2561, 127
  %v2657 = vpop.permute.xlu0 %2656
  %2658 = vrot.lane.b32.xlu0 %v2239, 127
  %v2659 = vpop.permute.xlu0 %2658
  %2660 = vrot.lane.b32.xlu0 %v2564, 127
  %v2661 = vpop.permute.xlu0 %2660
  %v2662 = vsel %vm59, %v2599, %v2601
  %v2663 = vsel %vm59, %v2603, %v2605
  %v2664 = vsel %vm59, %v2607, %v2609
  %v2665 = vsel %vm59, %v2611, %v2613
  %v2666 = vsel %vm59, %v2615, %v2617
  %v2667 = vsel %vm59, %v2619, %v2621
  %v2668 = vsel %vm59, %v2623, %v2625
  %v2669 = vsel %vm59, %v2627, %v2629
  %v2670 = vsel %vm59, %v2631, %v2633
  %v2671 = vsel %vm59, %v2635, %v2637
  %v2672 = vsel %vm59, %v2639, %v2641
  %v2673 = vsel %vm59, %v2643, %v2645
  %v2674 = vsel %vm59, %v2647, %v2649
  %v2675 = vsel %vm59, %v2651, %v2653
  %v2676 = vsel %vm59, %v2655, %v2657
  %v2677 = vsel %vm59, %v2659, %v2661
  %2710 = vrot.lane.b32.xlu0 %v2194, 126
  %v2711 = vpop.permute.xlu0 %2710
  %2712 = vrot.lane.b32.xlu0 %v2519, 126
  %v2713 = vpop.permute.xlu0 %2712
  %2714 = vrot.lane.b32.xlu0 %v2197, 126
  %v2715 = vpop.permute.xlu0 %2714
  %2716 = vrot.lane.b32.xlu0 %v2522, 126
  %v2717 = vpop.permute.xlu0 %2716
  %2718 = vrot.lane.b32.xlu0 %v2200, 126
  %v2719 = vpop.permute.xlu0 %2718
  %2720 = vrot.lane.b32.xlu0 %v2525, 126
  %v2721 = vpop.permute.xlu0 %2720
  %2722 = vrot.lane.b32.xlu0 %v2203, 126
  %v2723 = vpop.permute.xlu0 %2722
  %2724 = vrot.lane.b32.xlu0 %v2528, 126
  %v2725 = vpop.permute.xlu0 %2724
  %2726 = vrot.lane.b32.xlu0 %v2206, 126
  %v2727 = vpop.permute.xlu0 %2726
  %2728 = vrot.lane.b32.xlu0 %v2531, 126
  %v2729 = vpop.permute.xlu0 %2728
  %2730 = vrot.lane.b32.xlu0 %v2209, 126
  %v2731 = vpop.permute.xlu0 %2730
  %2732 = vrot.lane.b32.xlu0 %v2534, 126
  %v2733 = vpop.permute.xlu0 %2732
  %2734 = vrot.lane.b32.xlu0 %v2212, 126
  %v2735 = vpop.permute.xlu0 %2734
  %2736 = vrot.lane.b32.xlu0 %v2537, 126
  %v2737 = vpop.permute.xlu0 %2736
  %2738 = vrot.lane.b32.xlu0 %v2215, 126
  %v2739 = vpop.permute.xlu0 %2738
  %2740 = vrot.lane.b32.xlu0 %v2540, 126
  %v2741 = vpop.permute.xlu0 %2740
  %2742 = vrot.lane.b32.xlu0 %v2218, 126
  %v2743 = vpop.permute.xlu0 %2742
  %2744 = vrot.lane.b32.xlu0 %v2543, 126
  %v2745 = vpop.permute.xlu0 %2744
  %2746 = vrot.lane.b32.xlu0 %v2221, 126
  %v2747 = vpop.permute.xlu0 %2746
  %2748 = vrot.lane.b32.xlu0 %v2546, 126
  %v2749 = vpop.permute.xlu0 %2748
  %2750 = vrot.lane.b32.xlu0 %v2224, 126
  %v2751 = vpop.permute.xlu0 %2750
  %2752 = vrot.lane.b32.xlu0 %v2549, 126
  %v2753 = vpop.permute.xlu0 %2752
  %2754 = vrot.lane.b32.xlu0 %v2227, 126
  %v2755 = vpop.permute.xlu0 %2754
  %2756 = vrot.lane.b32.xlu0 %v2552, 126
  %v2757 = vpop.permute.xlu0 %2756
  %2758 = vrot.lane.b32.xlu0 %v2230, 126
  %v2759 = vpop.permute.xlu0 %2758
  %2760 = vrot.lane.b32.xlu0 %v2555, 126
  %v2761 = vpop.permute.xlu0 %2760
  %2762 = vrot.lane.b32.xlu0 %v2233, 126
  %v2763 = vpop.permute.xlu0 %2762
  %2764 = vrot.lane.b32.xlu0 %v2558, 126
  %v2765 = vpop.permute.xlu0 %2764
  %2766 = vrot.lane.b32.xlu0 %v2236, 126
  %v2767 = vpop.permute.xlu0 %2766
  %2768 = vrot.lane.b32.xlu0 %v2561, 126
  %v2769 = vpop.permute.xlu0 %2768
  %2770 = vrot.lane.b32.xlu0 %v2239, 126
  %v2771 = vpop.permute.xlu0 %2770
  %2772 = vrot.lane.b32.xlu0 %v2564, 126
  %v2773 = vpop.permute.xlu0 %2772
  %v2774 = vsel %vm79, %v2711, %v2713
  %v2775 = vsel %vm79, %v2715, %v2717
  %v2776 = vsel %vm79, %v2719, %v2721
  %v2777 = vsel %vm79, %v2723, %v2725
  %v2778 = vsel %vm79, %v2727, %v2729
  %v2779 = vsel %vm79, %v2731, %v2733
  %v2780 = vsel %vm79, %v2735, %v2737
  %v2781 = vsel %vm79, %v2739, %v2741
  %v2782 = vsel %vm79, %v2743, %v2745
  %v2783 = vsel %vm79, %v2747, %v2749
  %v2784 = vsel %vm79, %v2751, %v2753
  %v2785 = vsel %vm79, %v2755, %v2757
  %v2786 = vsel %vm79, %v2759, %v2761
  %v2787 = vsel %vm79, %v2763, %v2765
  %v2788 = vsel %vm79, %v2767, %v2769
  %v2789 = vsel %vm79, %v2771, %v2773
  %2822 = vrot.lane.b32.xlu0 %v2194, 104
  %v2823 = vpop.permute.xlu0 %2822
  %2824 = vrot.lane.b32.xlu0 %v2519, 104
  %v2825 = vpop.permute.xlu0 %2824
  %2826 = vrot.lane.b32.xlu0 %v2197, 104
  %v2827 = vpop.permute.xlu0 %2826
  %2828 = vrot.lane.b32.xlu0 %v2522, 104
  %v2829 = vpop.permute.xlu0 %2828
  %2830 = vrot.lane.b32.xlu0 %v2200, 104
  %v2831 = vpop.permute.xlu0 %2830
  %2832 = vrot.lane.b32.xlu0 %v2525, 104
  %v2833 = vpop.permute.xlu0 %2832
  %2834 = vrot.lane.b32.xlu0 %v2203, 104
  %v2835 = vpop.permute.xlu0 %2834
  %2836 = vrot.lane.b32.xlu0 %v2528, 104
  %v2837 = vpop.permute.xlu0 %2836
  %2838 = vrot.lane.b32.xlu0 %v2206, 104
  %v2839 = vpop.permute.xlu0 %2838
  %2840 = vrot.lane.b32.xlu0 %v2531, 104
  %v2841 = vpop.permute.xlu0 %2840
  %2842 = vrot.lane.b32.xlu0 %v2209, 104
  %v2843 = vpop.permute.xlu0 %2842
  %2844 = vrot.lane.b32.xlu0 %v2534, 104
  %v2845 = vpop.permute.xlu0 %2844
  %2846 = vrot.lane.b32.xlu0 %v2212, 104
  %v2847 = vpop.permute.xlu0 %2846
  %2848 = vrot.lane.b32.xlu0 %v2537, 104
  %v2849 = vpop.permute.xlu0 %2848
  %2850 = vrot.lane.b32.xlu0 %v2215, 104
  %v2851 = vpop.permute.xlu0 %2850
  %2852 = vrot.lane.b32.xlu0 %v2540, 104
  %v2853 = vpop.permute.xlu0 %2852
  %2854 = vrot.lane.b32.xlu0 %v2218, 104
  %v2855 = vpop.permute.xlu0 %2854
  %2856 = vrot.lane.b32.xlu0 %v2543, 104
  %v2857 = vpop.permute.xlu0 %2856
  %2858 = vrot.lane.b32.xlu0 %v2221, 104
  %v2859 = vpop.permute.xlu0 %2858
  %2860 = vrot.lane.b32.xlu0 %v2546, 104
  %v2861 = vpop.permute.xlu0 %2860
  %2862 = vrot.lane.b32.xlu0 %v2224, 104
  %v2863 = vpop.permute.xlu0 %2862
  %2864 = vrot.lane.b32.xlu0 %v2549, 104
  %v2865 = vpop.permute.xlu0 %2864
  %2866 = vrot.lane.b32.xlu0 %v2227, 104
  %v2867 = vpop.permute.xlu0 %2866
  %2868 = vrot.lane.b32.xlu0 %v2552, 104
  %v2869 = vpop.permute.xlu0 %2868
  %2870 = vrot.lane.b32.xlu0 %v2230, 104
  %v2871 = vpop.permute.xlu0 %2870
  %2872 = vrot.lane.b32.xlu0 %v2555, 104
  %v2873 = vpop.permute.xlu0 %2872
  %2874 = vrot.lane.b32.xlu0 %v2233, 104
  %v2875 = vpop.permute.xlu0 %2874
  %2876 = vrot.lane.b32.xlu0 %v2558, 104
  %v2877 = vpop.permute.xlu0 %2876
  %2878 = vrot.lane.b32.xlu0 %v2236, 104
  %v2879 = vpop.permute.xlu0 %2878
  %2880 = vrot.lane.b32.xlu0 %v2561, 104
  %v2881 = vpop.permute.xlu0 %2880
  %2882 = vrot.lane.b32.xlu0 %v2239, 104
  %v2883 = vpop.permute.xlu0 %2882
  %2884 = vrot.lane.b32.xlu0 %v2564, 104
  %v2885 = vpop.permute.xlu0 %2884
  %vm2886 = vcmask 850944
  %v2887 = vsel %vm2886, %v2823, %v2825
  %v2888 = vsel %vm2886, %v2827, %v2829
  %v2889 = vsel %vm2886, %v2831, %v2833
  %v2890 = vsel %vm2886, %v2835, %v2837
  %v2891 = vsel %vm2886, %v2839, %v2841
  %v2892 = vsel %vm2886, %v2843, %v2845
  %v2893 = vsel %vm2886, %v2847, %v2849
  %v2894 = vsel %vm2886, %v2851, %v2853
  %v2895 = vsel %vm2886, %v2855, %v2857
  %v2896 = vsel %vm2886, %v2859, %v2861
  %v2897 = vsel %vm2886, %v2863, %v2865
  %v2898 = vsel %vm2886, %v2867, %v2869
  %v2899 = vsel %vm2886, %v2871, %v2873
  %v2900 = vsel %vm2886, %v2875, %v2877
  %v2901 = vsel %vm2886, %v2879, %v2881
  %v2902 = vsel %vm2886, %v2883, %v2885
  %2935 = vrot.lane.b32.xlu0 %v2194, 103
  %v2936 = vpop.permute.xlu0 %2935
  %2937 = vrot.lane.b32.xlu0 %v2519, 103
  %v2938 = vpop.permute.xlu0 %2937
  %2939 = vrot.lane.b32.xlu0 %v2197, 103
  %v2940 = vpop.permute.xlu0 %2939
  %2941 = vrot.lane.b32.xlu0 %v2522, 103
  %v2942 = vpop.permute.xlu0 %2941
  %2943 = vrot.lane.b32.xlu0 %v2200, 103
  %v2944 = vpop.permute.xlu0 %2943
  %2945 = vrot.lane.b32.xlu0 %v2525, 103
  %v2946 = vpop.permute.xlu0 %2945
  %2947 = vrot.lane.b32.xlu0 %v2203, 103
  %v2948 = vpop.permute.xlu0 %2947
  %2949 = vrot.lane.b32.xlu0 %v2528, 103
  %v2950 = vpop.permute.xlu0 %2949
  %2951 = vrot.lane.b32.xlu0 %v2206, 103
  %v2952 = vpop.permute.xlu0 %2951
  %2953 = vrot.lane.b32.xlu0 %v2531, 103
  %v2954 = vpop.permute.xlu0 %2953
  %2955 = vrot.lane.b32.xlu0 %v2209, 103
  %v2956 = vpop.permute.xlu0 %2955
  %2957 = vrot.lane.b32.xlu0 %v2534, 103
  %v2958 = vpop.permute.xlu0 %2957
  %2959 = vrot.lane.b32.xlu0 %v2212, 103
  %v2960 = vpop.permute.xlu0 %2959
  %2961 = vrot.lane.b32.xlu0 %v2537, 103
  %v2962 = vpop.permute.xlu0 %2961
  %2963 = vrot.lane.b32.xlu0 %v2215, 103
  %v2964 = vpop.permute.xlu0 %2963
  %2965 = vrot.lane.b32.xlu0 %v2540, 103
  %v2966 = vpop.permute.xlu0 %2965
  %2967 = vrot.lane.b32.xlu0 %v2218, 103
  %v2968 = vpop.permute.xlu0 %2967
  %2969 = vrot.lane.b32.xlu0 %v2543, 103
  %v2970 = vpop.permute.xlu0 %2969
  %2971 = vrot.lane.b32.xlu0 %v2221, 103
  %v2972 = vpop.permute.xlu0 %2971
  %2973 = vrot.lane.b32.xlu0 %v2546, 103
  %v2974 = vpop.permute.xlu0 %2973
  %2975 = vrot.lane.b32.xlu0 %v2224, 103
  %v2976 = vpop.permute.xlu0 %2975
  %2977 = vrot.lane.b32.xlu0 %v2549, 103
  %v2978 = vpop.permute.xlu0 %2977
  %2979 = vrot.lane.b32.xlu0 %v2227, 103
  %v2980 = vpop.permute.xlu0 %2979
  %2981 = vrot.lane.b32.xlu0 %v2552, 103
  %v2982 = vpop.permute.xlu0 %2981
  %2983 = vrot.lane.b32.xlu0 %v2230, 103
  %v2984 = vpop.permute.xlu0 %2983
  %2985 = vrot.lane.b32.xlu0 %v2555, 103
  %v2986 = vpop.permute.xlu0 %2985
  %2987 = vrot.lane.b32.xlu0 %v2233, 103
  %v2988 = vpop.permute.xlu0 %2987
  %2989 = vrot.lane.b32.xlu0 %v2558, 103
  %v2990 = vpop.permute.xlu0 %2989
  %2991 = vrot.lane.b32.xlu0 %v2236, 103
  %v2992 = vpop.permute.xlu0 %2991
  %2993 = vrot.lane.b32.xlu0 %v2561, 103
  %v2994 = vpop.permute.xlu0 %2993
  %2995 = vrot.lane.b32.xlu0 %v2239, 103
  %v2996 = vpop.permute.xlu0 %2995
  %2997 = vrot.lane.b32.xlu0 %v2564, 103
  %v2998 = vpop.permute.xlu0 %2997
  %vm2999 = vcmask 842752
  %v3000 = vsel %vm2999, %v2936, %v2938
  %v3001 = vsel %vm2999, %v2940, %v2942
  %v3002 = vsel %vm2999, %v2944, %v2946
  %v3003 = vsel %vm2999, %v2948, %v2950
  %v3004 = vsel %vm2999, %v2952, %v2954
  %v3005 = vsel %vm2999, %v2956, %v2958
  %v3006 = vsel %vm2999, %v2960, %v2962
  %v3007 = vsel %vm2999, %v2964, %v2966
  %v3008 = vsel %vm2999, %v2968, %v2970
  %v3009 = vsel %vm2999, %v2972, %v2974
  %v3010 = vsel %vm2999, %v2976, %v2978
  %v3011 = vsel %vm2999, %v2980, %v2982
  %v3012 = vsel %vm2999, %v2984, %v2986
  %v3013 = vsel %vm2999, %v2988, %v2990
  %v3014 = vsel %vm2999, %v2992, %v2994
  %v3015 = vsel %vm2999, %v2996, %v2998
  %3048 = vrot.lane.b32.xlu0 %v2194, 102
  %v3049 = vpop.permute.xlu0 %3048
  %3050 = vrot.lane.b32.xlu0 %v2519, 102
  %v3051 = vpop.permute.xlu0 %3050
  %3052 = vrot.lane.b32.xlu0 %v2197, 102
  %v3053 = vpop.permute.xlu0 %3052
  %3054 = vrot.lane.b32.xlu0 %v2522, 102
  %v3055 = vpop.permute.xlu0 %3054
  %3056 = vrot.lane.b32.xlu0 %v2200, 102
  %v3057 = vpop.permute.xlu0 %3056
  %3058 = vrot.lane.b32.xlu0 %v2525, 102
  %v3059 = vpop.permute.xlu0 %3058
  %3060 = vrot.lane.b32.xlu0 %v2203, 102
  %v3061 = vpop.permute.xlu0 %3060
  %3062 = vrot.lane.b32.xlu0 %v2528, 102
  %v3063 = vpop.permute.xlu0 %3062
  %3064 = vrot.lane.b32.xlu0 %v2206, 102
  %v3065 = vpop.permute.xlu0 %3064
  %3066 = vrot.lane.b32.xlu0 %v2531, 102
  %v3067 = vpop.permute.xlu0 %3066
  %3068 = vrot.lane.b32.xlu0 %v2209, 102
  %v3069 = vpop.permute.xlu0 %3068
  %3070 = vrot.lane.b32.xlu0 %v2534, 102
  %v3071 = vpop.permute.xlu0 %3070
  %3072 = vrot.lane.b32.xlu0 %v2212, 102
  %v3073 = vpop.permute.xlu0 %3072
  %3074 = vrot.lane.b32.xlu0 %v2537, 102
  %v3075 = vpop.permute.xlu0 %3074
  %3076 = vrot.lane.b32.xlu0 %v2215, 102
  %v3077 = vpop.permute.xlu0 %3076
  %3078 = vrot.lane.b32.xlu0 %v2540, 102
  %v3079 = vpop.permute.xlu0 %3078
  %3080 = vrot.lane.b32.xlu0 %v2218, 102
  %v3081 = vpop.permute.xlu0 %3080
  %3082 = vrot.lane.b32.xlu0 %v2543, 102
  %v3083 = vpop.permute.xlu0 %3082
  %3084 = vrot.lane.b32.xlu0 %v2221, 102
  %v3085 = vpop.permute.xlu0 %3084
  %3086 = vrot.lane.b32.xlu0 %v2546, 102
  %v3087 = vpop.permute.xlu0 %3086
  %3088 = vrot.lane.b32.xlu0 %v2224, 102
  %v3089 = vpop.permute.xlu0 %3088
  %3090 = vrot.lane.b32.xlu0 %v2549, 102
  %v3091 = vpop.permute.xlu0 %3090
  %3092 = vrot.lane.b32.xlu0 %v2227, 102
  %v3093 = vpop.permute.xlu0 %3092
  %3094 = vrot.lane.b32.xlu0 %v2552, 102
  %v3095 = vpop.permute.xlu0 %3094
  %3096 = vrot.lane.b32.xlu0 %v2230, 102
  %v3097 = vpop.permute.xlu0 %3096
  %3098 = vrot.lane.b32.xlu0 %v2555, 102
  %v3099 = vpop.permute.xlu0 %3098
  %3100 = vrot.lane.b32.xlu0 %v2233, 102
  %v3101 = vpop.permute.xlu0 %3100
  %3102 = vrot.lane.b32.xlu0 %v2558, 102
  %v3103 = vpop.permute.xlu0 %3102
  %3104 = vrot.lane.b32.xlu0 %v2236, 102
  %v3105 = vpop.permute.xlu0 %3104
  %3106 = vrot.lane.b32.xlu0 %v2561, 102
  %v3107 = vpop.permute.xlu0 %3106
  %3108 = vrot.lane.b32.xlu0 %v2239, 102
  %v3109 = vpop.permute.xlu0 %3108
  %3110 = vrot.lane.b32.xlu0 %v2564, 102
  %v3111 = vpop.permute.xlu0 %3110
  %vm3112 = vcmask 834560
  %v3113 = vsel %vm3112, %v3049, %v3051
  %v3114 = vsel %vm3112, %v3053, %v3055
  %v3115 = vsel %vm3112, %v3057, %v3059
  %v3116 = vsel %vm3112, %v3061, %v3063
  %v3117 = vsel %vm3112, %v3065, %v3067
  %v3118 = vsel %vm3112, %v3069, %v3071
  %v3119 = vsel %vm3112, %v3073, %v3075
  %v3120 = vsel %vm3112, %v3077, %v3079
  %v3121 = vsel %vm3112, %v3081, %v3083
  %v3122 = vsel %vm3112, %v3085, %v3087
  %v3123 = vsel %vm3112, %v3089, %v3091
  %v3124 = vsel %vm3112, %v3093, %v3095
  %v3125 = vsel %vm3112, %v3097, %v3099
  %v3126 = vsel %vm3112, %v3101, %v3103
  %v3127 = vsel %vm3112, %v3105, %v3107
  %v3128 = vsel %vm3112, %v3109, %v3111
  %3161 = vrot.lane.b32.xlu0 %v2194, 80
  %v3162 = vpop.permute.xlu0 %3161
  %3163 = vrot.lane.b32.xlu0 %v2519, 80
  %v3164 = vpop.permute.xlu0 %3163
  %3165 = vrot.lane.b32.xlu0 %v2197, 80
  %v3166 = vpop.permute.xlu0 %3165
  %3167 = vrot.lane.b32.xlu0 %v2522, 80
  %v3168 = vpop.permute.xlu0 %3167
  %3169 = vrot.lane.b32.xlu0 %v2200, 80
  %v3170 = vpop.permute.xlu0 %3169
  %3171 = vrot.lane.b32.xlu0 %v2525, 80
  %v3172 = vpop.permute.xlu0 %3171
  %3173 = vrot.lane.b32.xlu0 %v2203, 80
  %v3174 = vpop.permute.xlu0 %3173
  %3175 = vrot.lane.b32.xlu0 %v2528, 80
  %v3176 = vpop.permute.xlu0 %3175
  %3177 = vrot.lane.b32.xlu0 %v2206, 80
  %v3178 = vpop.permute.xlu0 %3177
  %3179 = vrot.lane.b32.xlu0 %v2531, 80
  %v3180 = vpop.permute.xlu0 %3179
  %3181 = vrot.lane.b32.xlu0 %v2209, 80
  %v3182 = vpop.permute.xlu0 %3181
  %3183 = vrot.lane.b32.xlu0 %v2534, 80
  %v3184 = vpop.permute.xlu0 %3183
  %3185 = vrot.lane.b32.xlu0 %v2212, 80
  %v3186 = vpop.permute.xlu0 %3185
  %3187 = vrot.lane.b32.xlu0 %v2537, 80
  %v3188 = vpop.permute.xlu0 %3187
  %3189 = vrot.lane.b32.xlu0 %v2215, 80
  %v3190 = vpop.permute.xlu0 %3189
  %3191 = vrot.lane.b32.xlu0 %v2540, 80
  %v3192 = vpop.permute.xlu0 %3191
  %3193 = vrot.lane.b32.xlu0 %v2218, 80
  %v3194 = vpop.permute.xlu0 %3193
  %3195 = vrot.lane.b32.xlu0 %v2543, 80
  %v3196 = vpop.permute.xlu0 %3195
  %3197 = vrot.lane.b32.xlu0 %v2221, 80
  %v3198 = vpop.permute.xlu0 %3197
  %3199 = vrot.lane.b32.xlu0 %v2546, 80
  %v3200 = vpop.permute.xlu0 %3199
  %3201 = vrot.lane.b32.xlu0 %v2224, 80
  %v3202 = vpop.permute.xlu0 %3201
  %3203 = vrot.lane.b32.xlu0 %v2549, 80
  %v3204 = vpop.permute.xlu0 %3203
  %3205 = vrot.lane.b32.xlu0 %v2227, 80
  %v3206 = vpop.permute.xlu0 %3205
  %3207 = vrot.lane.b32.xlu0 %v2552, 80
  %v3208 = vpop.permute.xlu0 %3207
  %3209 = vrot.lane.b32.xlu0 %v2230, 80
  %v3210 = vpop.permute.xlu0 %3209
  %3211 = vrot.lane.b32.xlu0 %v2555, 80
  %v3212 = vpop.permute.xlu0 %3211
  %3213 = vrot.lane.b32.xlu0 %v2233, 80
  %v3214 = vpop.permute.xlu0 %3213
  %3215 = vrot.lane.b32.xlu0 %v2558, 80
  %v3216 = vpop.permute.xlu0 %3215
  %3217 = vrot.lane.b32.xlu0 %v2236, 80
  %v3218 = vpop.permute.xlu0 %3217
  %3219 = vrot.lane.b32.xlu0 %v2561, 80
  %v3220 = vpop.permute.xlu0 %3219
  %3221 = vrot.lane.b32.xlu0 %v2239, 80
  %v3222 = vpop.permute.xlu0 %3221
  %3223 = vrot.lane.b32.xlu0 %v2564, 80
  %v3224 = vpop.permute.xlu0 %3223
  %v3225 = vsel %vm148, %v3162, %v3164
  %v3226 = vsel %vm148, %v3166, %v3168
  %v3227 = vsel %vm148, %v3170, %v3172
  %v3228 = vsel %vm148, %v3174, %v3176
  %v3229 = vsel %vm148, %v3178, %v3180
  %v3230 = vsel %vm148, %v3182, %v3184
  %v3231 = vsel %vm148, %v3186, %v3188
  %v3232 = vsel %vm148, %v3190, %v3192
  %v3233 = vsel %vm148, %v3194, %v3196
  %v3234 = vsel %vm148, %v3198, %v3200
  %v3235 = vsel %vm148, %v3202, %v3204
  %v3236 = vsel %vm148, %v3206, %v3208
  %v3237 = vsel %vm148, %v3210, %v3212
  %v3238 = vsel %vm148, %v3214, %v3216
  %v3239 = vsel %vm148, %v3218, %v3220
  %v3240 = vsel %vm148, %v3222, %v3224
  %3273 = vrot.lane.b32.xlu0 %v2194, 79
  %v3274 = vpop.permute.xlu0 %3273
  %3275 = vrot.lane.b32.xlu0 %v2519, 79
  %v3276 = vpop.permute.xlu0 %3275
  %3277 = vrot.lane.b32.xlu0 %v2197, 79
  %v3278 = vpop.permute.xlu0 %3277
  %3279 = vrot.lane.b32.xlu0 %v2522, 79
  %v3280 = vpop.permute.xlu0 %3279
  %3281 = vrot.lane.b32.xlu0 %v2200, 79
  %v3282 = vpop.permute.xlu0 %3281
  %3283 = vrot.lane.b32.xlu0 %v2525, 79
  %v3284 = vpop.permute.xlu0 %3283
  %3285 = vrot.lane.b32.xlu0 %v2203, 79
  %v3286 = vpop.permute.xlu0 %3285
  %3287 = vrot.lane.b32.xlu0 %v2528, 79
  %v3288 = vpop.permute.xlu0 %3287
  %3289 = vrot.lane.b32.xlu0 %v2206, 79
  %v3290 = vpop.permute.xlu0 %3289
  %3291 = vrot.lane.b32.xlu0 %v2531, 79
  %v3292 = vpop.permute.xlu0 %3291
  %3293 = vrot.lane.b32.xlu0 %v2209, 79
  %v3294 = vpop.permute.xlu0 %3293
  %3295 = vrot.lane.b32.xlu0 %v2534, 79
  %v3296 = vpop.permute.xlu0 %3295
  %3297 = vrot.lane.b32.xlu0 %v2212, 79
  %v3298 = vpop.permute.xlu0 %3297
  %3299 = vrot.lane.b32.xlu0 %v2537, 79
  %v3300 = vpop.permute.xlu0 %3299
  %3301 = vrot.lane.b32.xlu0 %v2215, 79
  %v3302 = vpop.permute.xlu0 %3301
  %3303 = vrot.lane.b32.xlu0 %v2540, 79
  %v3304 = vpop.permute.xlu0 %3303
  %3305 = vrot.lane.b32.xlu0 %v2218, 79
  %v3306 = vpop.permute.xlu0 %3305
  %3307 = vrot.lane.b32.xlu0 %v2543, 79
  %v3308 = vpop.permute.xlu0 %3307
  %3309 = vrot.lane.b32.xlu0 %v2221, 79
  %v3310 = vpop.permute.xlu0 %3309
  %3311 = vrot.lane.b32.xlu0 %v2546, 79
  %v3312 = vpop.permute.xlu0 %3311
  %3313 = vrot.lane.b32.xlu0 %v2224, 79
  %v3314 = vpop.permute.xlu0 %3313
  %3315 = vrot.lane.b32.xlu0 %v2549, 79
  %v3316 = vpop.permute.xlu0 %3315
  %3317 = vrot.lane.b32.xlu0 %v2227, 79
  %v3318 = vpop.permute.xlu0 %3317
  %3319 = vrot.lane.b32.xlu0 %v2552, 79
  %v3320 = vpop.permute.xlu0 %3319
  %3321 = vrot.lane.b32.xlu0 %v2230, 79
  %v3322 = vpop.permute.xlu0 %3321
  %3323 = vrot.lane.b32.xlu0 %v2555, 79
  %v3324 = vpop.permute.xlu0 %3323
  %3325 = vrot.lane.b32.xlu0 %v2233, 79
  %v3326 = vpop.permute.xlu0 %3325
  %3327 = vrot.lane.b32.xlu0 %v2558, 79
  %v3328 = vpop.permute.xlu0 %3327
  %3329 = vrot.lane.b32.xlu0 %v2236, 79
  %v3330 = vpop.permute.xlu0 %3329
  %3331 = vrot.lane.b32.xlu0 %v2561, 79
  %v3332 = vpop.permute.xlu0 %3331
  %3333 = vrot.lane.b32.xlu0 %v2239, 79
  %v3334 = vpop.permute.xlu0 %3333
  %3335 = vrot.lane.b32.xlu0 %v2564, 79
  %v3336 = vpop.permute.xlu0 %3335
  %vm3337 = vcmask 646144
  %v3338 = vsel %vm3337, %v3274, %v3276
  %v3339 = vsel %vm3337, %v3278, %v3280
  %v3340 = vsel %vm3337, %v3282, %v3284
  %v3341 = vsel %vm3337, %v3286, %v3288
  %v3342 = vsel %vm3337, %v3290, %v3292
  %v3343 = vsel %vm3337, %v3294, %v3296
  %v3344 = vsel %vm3337, %v3298, %v3300
  %v3345 = vsel %vm3337, %v3302, %v3304
  %v3346 = vsel %vm3337, %v3306, %v3308
  %v3347 = vsel %vm3337, %v3310, %v3312
  %v3348 = vsel %vm3337, %v3314, %v3316
  %v3349 = vsel %vm3337, %v3318, %v3320
  %v3350 = vsel %vm3337, %v3322, %v3324
  %v3351 = vsel %vm3337, %v3326, %v3328
  %v3352 = vsel %vm3337, %v3330, %v3332
  %v3353 = vsel %vm3337, %v3334, %v3336
  %3386 = vrot.lane.b32.xlu0 %v2194, 78
  %v3387 = vpop.permute.xlu0 %3386
  %3388 = vrot.lane.b32.xlu0 %v2519, 78
  %v3389 = vpop.permute.xlu0 %3388
  %3390 = vrot.lane.b32.xlu0 %v2197, 78
  %v3391 = vpop.permute.xlu0 %3390
  %3392 = vrot.lane.b32.xlu0 %v2522, 78
  %v3393 = vpop.permute.xlu0 %3392
  %3394 = vrot.lane.b32.xlu0 %v2200, 78
  %v3395 = vpop.permute.xlu0 %3394
  %3396 = vrot.lane.b32.xlu0 %v2525, 78
  %v3397 = vpop.permute.xlu0 %3396
  %3398 = vrot.lane.b32.xlu0 %v2203, 78
  %v3399 = vpop.permute.xlu0 %3398
  %3400 = vrot.lane.b32.xlu0 %v2528, 78
  %v3401 = vpop.permute.xlu0 %3400
  %3402 = vrot.lane.b32.xlu0 %v2206, 78
  %v3403 = vpop.permute.xlu0 %3402
  %3404 = vrot.lane.b32.xlu0 %v2531, 78
  %v3405 = vpop.permute.xlu0 %3404
  %3406 = vrot.lane.b32.xlu0 %v2209, 78
  %v3407 = vpop.permute.xlu0 %3406
  %3408 = vrot.lane.b32.xlu0 %v2534, 78
  %v3409 = vpop.permute.xlu0 %3408
  %3410 = vrot.lane.b32.xlu0 %v2212, 78
  %v3411 = vpop.permute.xlu0 %3410
  %3412 = vrot.lane.b32.xlu0 %v2537, 78
  %v3413 = vpop.permute.xlu0 %3412
  %3414 = vrot.lane.b32.xlu0 %v2215, 78
  %v3415 = vpop.permute.xlu0 %3414
  %3416 = vrot.lane.b32.xlu0 %v2540, 78
  %v3417 = vpop.permute.xlu0 %3416
  %3418 = vrot.lane.b32.xlu0 %v2218, 78
  %v3419 = vpop.permute.xlu0 %3418
  %3420 = vrot.lane.b32.xlu0 %v2543, 78
  %v3421 = vpop.permute.xlu0 %3420
  %3422 = vrot.lane.b32.xlu0 %v2221, 78
  %v3423 = vpop.permute.xlu0 %3422
  %3424 = vrot.lane.b32.xlu0 %v2546, 78
  %v3425 = vpop.permute.xlu0 %3424
  %3426 = vrot.lane.b32.xlu0 %v2224, 78
  %v3427 = vpop.permute.xlu0 %3426
  %3428 = vrot.lane.b32.xlu0 %v2549, 78
  %v3429 = vpop.permute.xlu0 %3428
  %3430 = vrot.lane.b32.xlu0 %v2227, 78
  %v3431 = vpop.permute.xlu0 %3430
  %3432 = vrot.lane.b32.xlu0 %v2552, 78
  %v3433 = vpop.permute.xlu0 %3432
  %3434 = vrot.lane.b32.xlu0 %v2230, 78
  %v3435 = vpop.permute.xlu0 %3434
  %3436 = vrot.lane.b32.xlu0 %v2555, 78
  %v3437 = vpop.permute.xlu0 %3436
  %3438 = vrot.lane.b32.xlu0 %v2233, 78
  %v3439 = vpop.permute.xlu0 %3438
  %3440 = vrot.lane.b32.xlu0 %v2558, 78
  %v3441 = vpop.permute.xlu0 %3440
  %3442 = vrot.lane.b32.xlu0 %v2236, 78
  %v3443 = vpop.permute.xlu0 %3442
  %3444 = vrot.lane.b32.xlu0 %v2561, 78
  %v3445 = vpop.permute.xlu0 %3444
  %3446 = vrot.lane.b32.xlu0 %v2239, 78
  %v3447 = vpop.permute.xlu0 %3446
  %3448 = vrot.lane.b32.xlu0 %v2564, 78
  %v3449 = vpop.permute.xlu0 %3448
  %vm3450 = vcmask 637952
  %v3451 = vsel %vm3450, %v3387, %v3389
  %v3452 = vsel %vm3450, %v3391, %v3393
  %v3453 = vsel %vm3450, %v3395, %v3397
  %v3454 = vsel %vm3450, %v3399, %v3401
  %v3455 = vsel %vm3450, %v3403, %v3405
  %v3456 = vsel %vm3450, %v3407, %v3409
  %v3457 = vsel %vm3450, %v3411, %v3413
  %v3458 = vsel %vm3450, %v3415, %v3417
  %v3459 = vsel %vm3450, %v3419, %v3421
  %v3460 = vsel %vm3450, %v3423, %v3425
  %v3461 = vsel %vm3450, %v3427, %v3429
  %v3462 = vsel %vm3450, %v3431, %v3433
  %v3463 = vsel %vm3450, %v3435, %v3437
  %v3464 = vsel %vm3450, %v3439, %v3441
  %v3465 = vsel %vm3450, %v3443, %v3445
  %v3466 = vsel %vm3450, %v3447, %v3449
  %v3499 = vld [vmem:[%s4] sm:$0xff]
  %v3500 = vld [vmem:[%s4 + $0x8] sm:$0xff]
  %v3501 = vld [vmem:[%s4 + $0x10] sm:$0xff]
  %v3502 = vld [vmem:[%s4 + $0x18] sm:$0xff]
  %v3503 = vld [vmem:[%s4 + $0x20] sm:$0xff]
  %v3504 = vld [vmem:[%s4 + $0x28] sm:$0xff]
  %v3505 = vld [vmem:[%s4 + $0x30] sm:$0xff]
  %v3506 = vld [vmem:[%s4 + $0x38] sm:$0xff]
  %v3507 = vld [vmem:[%s4 + $0x40] sm:$0xff]
  %v3508 = vld [vmem:[%s4 + $0x48] sm:$0xff]
  %v3509 = vld [vmem:[%s4 + $0x50] sm:$0xff]
  %v3510 = vld [vmem:[%s4 + $0x58] sm:$0xff]
  %v3511 = vld [vmem:[%s4 + $0x60] sm:$0xff]
  %v3512 = vld [vmem:[%s4 + $0x68] sm:$0xff]
  %v3513 = vld [vmem:[%s4 + $0x70] sm:$0xff]
  %v3514 = vld [vmem:[%s4 + $0x78] sm:$0xff]
  %v3515 = vld [vmem:[%s4 + $0x80] sm:$0xff]
  %v3516 = vld [vmem:[%s4 + $0x88] sm:$0xff]
  %v3517 = vld [vmem:[%s4 + $0x90] sm:$0xff]
  %v3518 = vld [vmem:[%s4 + $0x98] sm:$0xff]
  %v3519 = vld [vmem:[%s4 + $0xa0] sm:$0xff]
  %v3520 = vld [vmem:[%s4 + $0xa8] sm:$0xff]
  %v3521 = vld [vmem:[%s4 + $0xb0] sm:$0xff]
  %v3522 = vld [vmem:[%s4 + $0xb8] sm:$0xff]
  %v3523 = vld [vmem:[%s4 + $0xc0] sm:$0xff]
  %v3524 = vld [vmem:[%s4 + $0xc8] sm:$0xff]
  %v3525 = vld [vmem:[%s4 + $0xd0] sm:$0xff]
  %v3526 = vld [vmem:[%s4 + $0xd8] sm:$0xff]
  %v3527 = vld [vmem:[%s4 + $0xe0] sm:$0xff]
  %v3528 = vld [vmem:[%s4 + $0xe8] sm:$0xff]
  %v3529 = vld [vmem:[%s4 + $0xf0] sm:$0xff]
  %v3530 = vld [vmem:[%s4 + $0xf8] sm:$0xff]
  %v3531 = vld [vmem:[%s4 + $0x100] sm:$0xff]
  %v3532 = vld [vmem:[%s4 + $0x108] sm:$0xff]
  %v3533 = vld [vmem:[%s4 + $0x110] sm:$0xff]
  %v3534 = vld [vmem:[%s4 + $0x118] sm:$0xff]
  %v3535 = vld [vmem:[%s4 + $0x120] sm:$0xff]
  %v3536 = vld [vmem:[%s4 + $0x128] sm:$0xff]
  %v3537 = vld [vmem:[%s4 + $0x130] sm:$0xff]
  %v3538 = vld [vmem:[%s4 + $0x138] sm:$0xff]
  %v3539 = vld [vmem:[%s4 + $0x140] sm:$0xff]
  %v3540 = vld [vmem:[%s4 + $0x148] sm:$0xff]
  %v3541 = vld [vmem:[%s4 + $0x150] sm:$0xff]
  %v3542 = vld [vmem:[%s4 + $0x158] sm:$0xff]
  %v3543 = vld [vmem:[%s4 + $0x160] sm:$0xff]
  %v3544 = vld [vmem:[%s4 + $0x168] sm:$0xff]
  %v3545 = vld [vmem:[%s4 + $0x170] sm:$0xff]
  %v3546 = vld [vmem:[%s4 + $0x178] sm:$0xff]
  %v3547 = vld [vmem:[%s4 + $0x180] sm:$0xff]
  %v3548 = vld [vmem:[%s4 + $0x188] sm:$0xff]
  %v3549 = vld [vmem:[%s4 + $0x190] sm:$0xff]
  %v3550 = vld [vmem:[%s4 + $0x198] sm:$0xff]
  %v3551 = vld [vmem:[%s4 + $0x1a0] sm:$0xff]
  %v3552 = vld [vmem:[%s4 + $0x1a8] sm:$0xff]
  %v3553 = vld [vmem:[%s4 + $0x1b0] sm:$0xff]
  %v3554 = vld [vmem:[%s4 + $0x1b8] sm:$0xff]
  %v3555 = vld [vmem:[%s4 + $0x1c0] sm:$0xff]
  %v3556 = vld [vmem:[%s4 + $0x1c8] sm:$0xff]
  %v3557 = vld [vmem:[%s4 + $0x1d0] sm:$0xff]
  %v3558 = vld [vmem:[%s4 + $0x1d8] sm:$0xff]
  %v3559 = vld [vmem:[%s4 + $0x1e0] sm:$0xff]
  %v3560 = vld [vmem:[%s4 + $0x1e8] sm:$0xff]
  %v3561 = vld [vmem:[%s4 + $0x1f0] sm:$0xff]
  %v3562 = vld [vmem:[%s4 + $0x1f8] sm:$0xff]
  %v3563 = vld [vmem:[%s4 + $0x200] sm:$0xff]
  %v3564 = vld [vmem:[%s4 + $0x208] sm:$0xff]
  %v3565 = vld [vmem:[%s4 + $0x210] sm:$0xff]
  %v3566 = vld [vmem:[%s4 + $0x218] sm:$0xff]
  %v3567 = vld [vmem:[%s4 + $0x220] sm:$0xff]
  %v3568 = vld [vmem:[%s4 + $0x228] sm:$0xff]
  %v3569 = vld [vmem:[%s4 + $0x230] sm:$0xff]
  %v3570 = vld [vmem:[%s4 + $0x238] sm:$0xff]
  %v3571 = vld [vmem:[%s4 + $0x240] sm:$0xff]
  %v3572 = vld [vmem:[%s4 + $0x248] sm:$0xff]
  %v3573 = vld [vmem:[%s4 + $0x250] sm:$0xff]
  %v3574 = vld [vmem:[%s4 + $0x258] sm:$0xff]
  %v3575 = vld [vmem:[%s4 + $0x260] sm:$0xff]
  %v3576 = vld [vmem:[%s4 + $0x268] sm:$0xff]
  %v3577 = vld [vmem:[%s4 + $0x270] sm:$0xff]
  %v3578 = vld [vmem:[%s4 + $0x278] sm:$0xff]
  %v3579 = vld [vmem:[%s4 + $0x280] sm:$0xff]
  %v3580 = vld [vmem:[%s4 + $0x288] sm:$0xff]
  %v3581 = vld [vmem:[%s4 + $0x290] sm:$0xff]
  %v3582 = vld [vmem:[%s4 + $0x298] sm:$0xff]
  %v3583 = vld [vmem:[%s4 + $0x2a0] sm:$0xff]
  %v3584 = vld [vmem:[%s4 + $0x2a8] sm:$0xff]
  %v3585 = vld [vmem:[%s4 + $0x2b0] sm:$0xff]
  %v3586 = vld [vmem:[%s4 + $0x2b8] sm:$0xff]
  %v3587 = vld [vmem:[%s4 + $0x2c0] sm:$0xff]
  %v3588 = vld [vmem:[%s4 + $0x2c8] sm:$0xff]
  %v3589 = vld [vmem:[%s4 + $0x2d0] sm:$0xff]
  %v3590 = vld [vmem:[%s4 + $0x2d8] sm:$0xff]
  %v3591 = vld [vmem:[%s4 + $0x2e0] sm:$0xff]
  %v3592 = vld [vmem:[%s4 + $0x2e8] sm:$0xff]
  %v3593 = vld [vmem:[%s4 + $0x2f0] sm:$0xff]
  %v3594 = vld [vmem:[%s4 + $0x2f8] sm:$0xff]
  %v3595 = vld [vmem:[%s4 + $0x300] sm:$0xff]
  %v3596 = vld [vmem:[%s4 + $0x308] sm:$0xff]
  %v3597 = vld [vmem:[%s4 + $0x310] sm:$0xff]
  %v3598 = vld [vmem:[%s4 + $0x318] sm:$0xff]
  %v3599 = vld [vmem:[%s4 + $0x320] sm:$0xff]
  %v3600 = vld [vmem:[%s4 + $0x328] sm:$0xff]
  %v3601 = vld [vmem:[%s4 + $0x330] sm:$0xff]
  %v3602 = vld [vmem:[%s4 + $0x338] sm:$0xff]
  %v3603 = vld [vmem:[%s4 + $0x340] sm:$0xff]
  %v3604 = vld [vmem:[%s4 + $0x348] sm:$0xff]
  %v3605 = vld [vmem:[%s4 + $0x350] sm:$0xff]
  %v3606 = vld [vmem:[%s4 + $0x358] sm:$0xff]
  %v3607 = vld [vmem:[%s4 + $0x360] sm:$0xff]
  %v3608 = vld [vmem:[%s4 + $0x368] sm:$0xff]
  %v3609 = vld [vmem:[%s4 + $0x370] sm:$0xff]
  %v3610 = vld [vmem:[%s4 + $0x378] sm:$0xff]
  %v3611 = vld [vmem:[%s4 + $0x380] sm:$0xff]
  %v3612 = vld [vmem:[%s4 + $0x388] sm:$0xff]
  %v3613 = vld [vmem:[%s4 + $0x390] sm:$0xff]
  %v3614 = vld [vmem:[%s4 + $0x398] sm:$0xff]
  %v3615 = vld [vmem:[%s4 + $0x3a0] sm:$0xff]
  %v3616 = vld [vmem:[%s4 + $0x3a8] sm:$0xff]
  %v3617 = vld [vmem:[%s4 + $0x3b0] sm:$0xff]
  %v3618 = vld [vmem:[%s4 + $0x3b8] sm:$0xff]
  %v3619 = vld [vmem:[%s4 + $0x3c0] sm:$0xff]
  %v3620 = vld [vmem:[%s4 + $0x3c8] sm:$0xff]
  %v3621 = vld [vmem:[%s4 + $0x3d0] sm:$0xff]
  %v3622 = vld [vmem:[%s4 + $0x3d8] sm:$0xff]
  %v3623 = vld [vmem:[%s4 + $0x3e0] sm:$0xff]
  %v3624 = vld [vmem:[%s4 + $0x3e8] sm:$0xff]
  %v3625 = vld [vmem:[%s4 + $0x3f0] sm:$0xff]
  %v3626 = vld [vmem:[%s4 + $0x3f8] sm:$0xff]
  %v3627 = vld [vmem:[%s4 + $0x400] sm:$0xff]
  %v3628 = vld [vmem:[%s4 + $0x408] sm:$0xff]
  %v3629 = vld [vmem:[%s4 + $0x410] sm:$0xff]
  %v3630 = vld [vmem:[%s4 + $0x418] sm:$0xff]
  %v3631 = vld [vmem:[%s4 + $0x420] sm:$0xff]
  %v3632 = vld [vmem:[%s4 + $0x428] sm:$0xff]
  %v3633 = vld [vmem:[%s4 + $0x430] sm:$0xff]
  %v3634 = vld [vmem:[%s4 + $0x438] sm:$0xff]
  %v3635 = vld [vmem:[%s4 + $0x440] sm:$0xff]
  %v3636 = vld [vmem:[%s4 + $0x448] sm:$0xff]
  %v3637 = vld [vmem:[%s4 + $0x450] sm:$0xff]
  %v3638 = vld [vmem:[%s4 + $0x458] sm:$0xff]
  %v3639 = vld [vmem:[%s4 + $0x460] sm:$0xff]
  %v3640 = vld [vmem:[%s4 + $0x468] sm:$0xff]
  %v3641 = vld [vmem:[%s4 + $0x470] sm:$0xff]
  %v3642 = vld [vmem:[%s4 + $0x478] sm:$0xff]
  %v3643 = vld [vmem:[%s4 + $0x480] sm:$0xff]
  %v3644 = vld [vmem:[%s4 + $0x488] sm:$0xff]
  %v3645 = vld [vmem:[%s4 + $0x490] sm:$0xff]
  %v3646 = vld [vmem:[%s4 + $0x498] sm:$0xff]
  %v3647 = vld [vmem:[%s4 + $0x4a0] sm:$0xff]
  %v3648 = vld [vmem:[%s4 + $0x4a8] sm:$0xff]
  %v3649 = vld [vmem:[%s4 + $0x4b0] sm:$0xff]
  %v3650 = vld [vmem:[%s4 + $0x4b8] sm:$0xff]
  %v3651 = vld [vmem:[%s4 + $0x4c0] sm:$0xff]
  %v3652 = vld [vmem:[%s4 + $0x4c8] sm:$0xff]
  %v3653 = vld [vmem:[%s4 + $0x4d0] sm:$0xff]
  %v3654 = vld [vmem:[%s4 + $0x4d8] sm:$0xff]
  %v3655 = vld [vmem:[%s4 + $0x4e0] sm:$0xff]
  %v3656 = vld [vmem:[%s4 + $0x4e8] sm:$0xff]
  %v3657 = vld [vmem:[%s4 + $0x4f0] sm:$0xff]
  %v3658 = vld [vmem:[%s4 + $0x4f8] sm:$0xff]
  %v3659 = vld [vmem:[%s4 + $0x500] sm:$0xff]
  %v3660 = vld [vmem:[%s4 + $0x508] sm:$0xff]
  %v3661 = vld [vmem:[%s4 + $0x510] sm:$0xff]
  %v3662 = vld [vmem:[%s4 + $0x518] sm:$0xff]
  %v3663 = vld [vmem:[%s4 + $0x520] sm:$0xff]
  %v3664 = vld [vmem:[%s4 + $0x528] sm:$0xff]
  %v3665 = vld [vmem:[%s4 + $0x530] sm:$0xff]
  %v3666 = vld [vmem:[%s4 + $0x538] sm:$0xff]
  %v3667 = vld [vmem:[%s4 + $0x540] sm:$0xff]
  %v3668 = vld [vmem:[%s4 + $0x548] sm:$0xff]
  %v3669 = vld [vmem:[%s4 + $0x550] sm:$0xff]
  %v3670 = vld [vmem:[%s4 + $0x558] sm:$0xff]
  %v3671 = vld [vmem:[%s4 + $0x560] sm:$0xff]
  %v3672 = vld [vmem:[%s4 + $0x568] sm:$0xff]
  %v3673 = vld [vmem:[%s4 + $0x570] sm:$0xff]
  %v3674 = vld [vmem:[%s4 + $0x578] sm:$0xff]
  %v3675 = vld [vmem:[%s4 + $0x580] sm:$0xff]
  %v3676 = vld [vmem:[%s4 + $0x588] sm:$0xff]
  %v3677 = vld [vmem:[%s4 + $0x590] sm:$0xff]
  %v3678 = vld [vmem:[%s4 + $0x598] sm:$0xff]
  %v3679 = vld [vmem:[%s4 + $0x5a0] sm:$0xff]
  %v3680 = vld [vmem:[%s4 + $0x5a8] sm:$0xff]
  %v3681 = vld [vmem:[%s4 + $0x5b0] sm:$0xff]
  %v3682 = vld [vmem:[%s4 + $0x5b8] sm:$0xff]
  %v3683 = vld [vmem:[%s4 + $0x5c0] sm:$0xff]
  %v3684 = vld [vmem:[%s4 + $0x5c8] sm:$0xff]
  %v3685 = vld [vmem:[%s4 + $0x5d0] sm:$0xff]
  %v3686 = vld [vmem:[%s4 + $0x5d8] sm:$0xff]
  %v3687 = vld [vmem:[%s4 + $0x5e0] sm:$0xff]
  %v3688 = vld [vmem:[%s4 + $0x5e8] sm:$0xff]
  %v3689 = vld [vmem:[%s4 + $0x5f0] sm:$0xff]
  %v3690 = vld [vmem:[%s4 + $0x5f8] sm:$0xff]
  %v3691 = vld [vmem:[%s4 + $0x600] sm:$0xff]
  %v3692 = vld [vmem:[%s4 + $0x608] sm:$0xff]
  %v3693 = vld [vmem:[%s4 + $0x610] sm:$0xff]
  %v3694 = vld [vmem:[%s4 + $0x618] sm:$0xff]
  %v3695 = vld [vmem:[%s4 + $0x620] sm:$0xff]
  %v3696 = vld [vmem:[%s4 + $0x628] sm:$0xff]
  %v3697 = vld [vmem:[%s4 + $0x630] sm:$0xff]
  %v3698 = vld [vmem:[%s4 + $0x638] sm:$0xff]
  %v3699 = vld [vmem:[%s4 + $0x640] sm:$0xff]
  %v3700 = vld [vmem:[%s4 + $0x648] sm:$0xff]
  %v3701 = vld [vmem:[%s4 + $0x650] sm:$0xff]
  %v3702 = vld [vmem:[%s4 + $0x658] sm:$0xff]
  %v3703 = vld [vmem:[%s4 + $0x660] sm:$0xff]
  %v3704 = vld [vmem:[%s4 + $0x668] sm:$0xff]
  %v3705 = vld [vmem:[%s4 + $0x670] sm:$0xff]
  %v3706 = vld [vmem:[%s4 + $0x678] sm:$0xff]
  %v3707 = vld [vmem:[%s4 + $0x680] sm:$0xff]
  %v3708 = vld [vmem:[%s4 + $0x688] sm:$0xff]
  %v3709 = vld [vmem:[%s4 + $0x690] sm:$0xff]
  %v3710 = vld [vmem:[%s4 + $0x698] sm:$0xff]
  %v3711 = vld [vmem:[%s4 + $0x6a0] sm:$0xff]
  %v3712 = vld [vmem:[%s4 + $0x6a8] sm:$0xff]
  %v3713 = vld [vmem:[%s4 + $0x6b0] sm:$0xff]
  %v3714 = vld [vmem:[%s4 + $0x6b8] sm:$0xff]
  %v3715 = vld [vmem:[%s4 + $0x6c0] sm:$0xff]
  %v3716 = vld [vmem:[%s4 + $0x6c8] sm:$0xff]
  %v3717 = vld [vmem:[%s4 + $0x6d0] sm:$0xff]
  %v3718 = vld [vmem:[%s4 + $0x6d8] sm:$0xff]
  %v3719 = vld [vmem:[%s4 + $0x6e0] sm:$0xff]
  %v3720 = vld [vmem:[%s4 + $0x6e8] sm:$0xff]
  %v3721 = vld [vmem:[%s4 + $0x6f0] sm:$0xff]
  %v3722 = vld [vmem:[%s4 + $0x6f8] sm:$0xff]
  %v3723 = vld [vmem:[%s4 + $0x700] sm:$0xff]
  %v3724 = vld [vmem:[%s4 + $0x708] sm:$0xff]
  %v3725 = vld [vmem:[%s4 + $0x710] sm:$0xff]
  %v3726 = vld [vmem:[%s4 + $0x718] sm:$0xff]
  %v3727 = vld [vmem:[%s4 + $0x720] sm:$0xff]
  %v3728 = vld [vmem:[%s4 + $0x728] sm:$0xff]
  %v3729 = vld [vmem:[%s4 + $0x730] sm:$0xff]
  %v3730 = vld [vmem:[%s4 + $0x738] sm:$0xff]
  %v3731 = vld [vmem:[%s4 + $0x740] sm:$0xff]
  %v3732 = vld [vmem:[%s4 + $0x748] sm:$0xff]
  %v3733 = vld [vmem:[%s4 + $0x750] sm:$0xff]
  %v3734 = vld [vmem:[%s4 + $0x758] sm:$0xff]
  %v3735 = vld [vmem:[%s4 + $0x760] sm:$0xff]
  %v3736 = vld [vmem:[%s4 + $0x768] sm:$0xff]
  %v3737 = vld [vmem:[%s4 + $0x770] sm:$0xff]
  %v3738 = vld [vmem:[%s4 + $0x778] sm:$0xff]
  %v3739 = vld [vmem:[%s4 + $0x780] sm:$0xff]
  %v3740 = vld [vmem:[%s4 + $0x788] sm:$0xff]
  %v3741 = vld [vmem:[%s4 + $0x790] sm:$0xff]
  %v3742 = vld [vmem:[%s4 + $0x798] sm:$0xff]
  %v3743 = vld [vmem:[%s4 + $0x7a0] sm:$0xff]
  %v3744 = vld [vmem:[%s4 + $0x7a8] sm:$0xff]
  %v3745 = vld [vmem:[%s4 + $0x7b0] sm:$0xff]
  %v3746 = vld [vmem:[%s4 + $0x7b8] sm:$0xff]
  %v3747 = vld [vmem:[%s4 + $0x7c0] sm:$0xff]
  %v3748 = vld [vmem:[%s4 + $0x7c8] sm:$0xff]
  %v3749 = vld [vmem:[%s4 + $0x7d0] sm:$0xff]
  %v3750 = vld [vmem:[%s4 + $0x7d8] sm:$0xff]
  %v3751 = vld [vmem:[%s4 + $0x7e0] sm:$0xff]
  %v3752 = vld [vmem:[%s4 + $0x7e8] sm:$0xff]
  %v3753 = vld [vmem:[%s4 + $0x7f0] sm:$0xff]
  %v3754 = vld [vmem:[%s4 + $0x7f8] sm:$0xff]
  %v3755 = vld [vmem:[%s4 + $0x800] sm:$0xff]
  %v3756 = vld [vmem:[%s4 + $0x808] sm:$0xff]
  %v3757 = vld [vmem:[%s4 + $0x810] sm:$0xff]
  %v3758 = vld [vmem:[%s4 + $0x818] sm:$0xff]
  %v3759 = vld [vmem:[%s4 + $0x820] sm:$0xff]
  %v3760 = vld [vmem:[%s4 + $0x828] sm:$0xff]
  %v3761 = vld [vmem:[%s4 + $0x830] sm:$0xff]
  %v3762 = vld [vmem:[%s4 + $0x838] sm:$0xff]
  %v3763 = vld [vmem:[%s4 + $0x840] sm:$0xff]
  %v3764 = vld [vmem:[%s4 + $0x848] sm:$0xff]
  %v3765 = vld [vmem:[%s4 + $0x850] sm:$0xff]
  %v3766 = vld [vmem:[%s4 + $0x858] sm:$0xff]
  %v3767 = vld [vmem:[%s4 + $0x860] sm:$0xff]
  %v3768 = vld [vmem:[%s4 + $0x868] sm:$0xff]
  %v3769 = vld [vmem:[%s4 + $0x870] sm:$0xff]
  %v3770 = vld [vmem:[%s4 + $0x878] sm:$0xff]
  %v3771 = vld [vmem:[%s4 + $0x880] sm:$0xff]
  %v3772 = vld [vmem:[%s4 + $0x888] sm:$0xff]
  %v3773 = vld [vmem:[%s4 + $0x890] sm:$0xff]
  %v3774 = vld [vmem:[%s4 + $0x898] sm:$0xff]
  %v3775 = vld [vmem:[%s4 + $0x8a0] sm:$0xff]
  %v3776 = vld [vmem:[%s4 + $0x8a8] sm:$0xff]
  %v3777 = vld [vmem:[%s4 + $0x8b0] sm:$0xff]
  %v3778 = vld [vmem:[%s4 + $0x8b8] sm:$0xff]
  %v3779 = vld [vmem:[%s4 + $0x8c0] sm:$0xff]
  %v3780 = vld [vmem:[%s4 + $0x8c8] sm:$0xff]
  %v3781 = vld [vmem:[%s4 + $0x8d0] sm:$0xff]
  %v3782 = vld [vmem:[%s4 + $0x8d8] sm:$0xff]
  %v3783 = vld [vmem:[%s4 + $0x8e0] sm:$0xff]
  %v3784 = vld [vmem:[%s4 + $0x8e8] sm:$0xff]
  %v3785 = vld [vmem:[%s4 + $0x8f0] sm:$0xff]
  %v3786 = vld [vmem:[%s4 + $0x8f8] sm:$0xff]
  %v3787 = vld [vmem:[%s5] sm:$0xff]
  %v3788 = vld [vmem:[%s5 + $0x8] sm:$0xff]
  %v3789 = vld [vmem:[%s5 + $0x10] sm:$0xff]
  %v3790 = vld [vmem:[%s5 + $0x18] sm:$0xff]
  %v3791 = vld [vmem:[%s5 + $0x20] sm:$0xff]
  %v3792 = vld [vmem:[%s5 + $0x28] sm:$0xff]
  %v3793 = vld [vmem:[%s5 + $0x30] sm:$0xff]
  %v3794 = vld [vmem:[%s5 + $0x38] sm:$0xff]
  %v3795 = vld [vmem:[%s5 + $0x40] sm:$0xff]
  %v3796 = vld [vmem:[%s5 + $0x48] sm:$0xff]
  %v3797 = vld [vmem:[%s5 + $0x50] sm:$0xff]
  %v3798 = vld [vmem:[%s5 + $0x58] sm:$0xff]
  %v3799 = vld [vmem:[%s5 + $0x60] sm:$0xff]
  %v3800 = vld [vmem:[%s5 + $0x68] sm:$0xff]
  %v3801 = vld [vmem:[%s5 + $0x70] sm:$0xff]
  %v3802 = vld [vmem:[%s5 + $0x78] sm:$0xff]
  %v3803 = vld [vmem:[%s5 + $0x80] sm:$0xff]
  %v3804 = vld [vmem:[%s5 + $0x88] sm:$0xff]
  %v3805 = vld [vmem:[%s5 + $0x90] sm:$0xff]
  %v3806 = vld [vmem:[%s5 + $0x98] sm:$0xff]
  %v3807 = vld [vmem:[%s5 + $0xa0] sm:$0xff]
  %v3808 = vld [vmem:[%s5 + $0xa8] sm:$0xff]
  %v3809 = vld [vmem:[%s5 + $0xb0] sm:$0xff]
  %v3810 = vld [vmem:[%s5 + $0xb8] sm:$0xff]
  %v3811 = vld [vmem:[%s5 + $0xc0] sm:$0xff]
  %v3812 = vld [vmem:[%s5 + $0xc8] sm:$0xff]
  %v3813 = vld [vmem:[%s5 + $0xd0] sm:$0xff]
  %v3814 = vld [vmem:[%s5 + $0xd8] sm:$0xff]
  %v3815 = vld [vmem:[%s5 + $0xe0] sm:$0xff]
  %v3816 = vld [vmem:[%s5 + $0xe8] sm:$0xff]
  %v3817 = vld [vmem:[%s5 + $0xf0] sm:$0xff]
  %v3818 = vld [vmem:[%s5 + $0xf8] sm:$0xff]
  %3820 = vset.pattern.permute.xlu0 0
  %3821 = vperm.xlu0 %3820, %v3787
  %v3822 = vpop.permute.xlu0 %3821
  %3825 = vset.pattern.permute.xlu0 0
  %3826 = vperm.xlu0 %3825, %v3788
  %v3827 = vpop.permute.xlu0 %3826
  %3830 = vset.pattern.permute.xlu0 0
  %3831 = vperm.xlu0 %3830, %v3789
  %v3832 = vpop.permute.xlu0 %3831
  %3835 = vset.pattern.permute.xlu0 0
  %3836 = vperm.xlu0 %3835, %v3790
  %v3837 = vpop.permute.xlu0 %3836
  %3840 = vset.pattern.permute.xlu0 0
  %3841 = vperm.xlu0 %3840, %v3791
  %v3842 = vpop.permute.xlu0 %3841
  %3845 = vset.pattern.permute.xlu0 0
  %3846 = vperm.xlu0 %3845, %v3792
  %v3847 = vpop.permute.xlu0 %3846
  %3850 = vset.pattern.permute.xlu0 0
  %3851 = vperm.xlu0 %3850, %v3793
  %v3852 = vpop.permute.xlu0 %3851
  %3855 = vset.pattern.permute.xlu0 0
  %3856 = vperm.xlu0 %3855, %v3794
  %v3857 = vpop.permute.xlu0 %3856
  %3860 = vset.pattern.permute.xlu0 0
  %3861 = vperm.xlu0 %3860, %v3795
  %v3862 = vpop.permute.xlu0 %3861
  %3865 = vset.pattern.permute.xlu0 0
  %3866 = vperm.xlu0 %3865, %v3796
  %v3867 = vpop.permute.xlu0 %3866
  %3870 = vset.pattern.permute.xlu0 0
  %3871 = vperm.xlu0 %3870, %v3797
  %v3872 = vpop.permute.xlu0 %3871
  %3875 = vset.pattern.permute.xlu0 0
  %3876 = vperm.xlu0 %3875, %v3798
  %v3877 = vpop.permute.xlu0 %3876
  %3880 = vset.pattern.permute.xlu0 0
  %3881 = vperm.xlu0 %3880, %v3799
  %v3882 = vpop.permute.xlu0 %3881
  %3885 = vset.pattern.permute.xlu0 0
  %3886 = vperm.xlu0 %3885, %v3800
  %v3887 = vpop.permute.xlu0 %3886
  %3890 = vset.pattern.permute.xlu0 0
  %3891 = vperm.xlu0 %3890, %v3801
  %v3892 = vpop.permute.xlu0 %3891
  %3895 = vset.pattern.permute.xlu0 0
  %3896 = vperm.xlu0 %3895, %v3802
  %v3897 = vpop.permute.xlu0 %3896
  %3900 = vset.pattern.permute.xlu0 0
  %3901 = vperm.xlu0 %3900, %v3803
  %v3902 = vpop.permute.xlu0 %3901
  %3905 = vset.pattern.permute.xlu0 0
  %3906 = vperm.xlu0 %3905, %v3804
  %v3907 = vpop.permute.xlu0 %3906
  %3910 = vset.pattern.permute.xlu0 0
  %3911 = vperm.xlu0 %3910, %v3805
  %v3912 = vpop.permute.xlu0 %3911
  %3915 = vset.pattern.permute.xlu0 0
  %3916 = vperm.xlu0 %3915, %v3806
  %v3917 = vpop.permute.xlu0 %3916
  %3920 = vset.pattern.permute.xlu0 0
  %3921 = vperm.xlu0 %3920, %v3807
  %v3922 = vpop.permute.xlu0 %3921
  %3925 = vset.pattern.permute.xlu0 0
  %3926 = vperm.xlu0 %3925, %v3808
  %v3927 = vpop.permute.xlu0 %3926
  %3930 = vset.pattern.permute.xlu0 0
  %3931 = vperm.xlu0 %3930, %v3809
  %v3932 = vpop.permute.xlu0 %3931
  %3935 = vset.pattern.permute.xlu0 0
  %3936 = vperm.xlu0 %3935, %v3810
  %v3937 = vpop.permute.xlu0 %3936
  %3940 = vset.pattern.permute.xlu0 0
  %3941 = vperm.xlu0 %3940, %v3811
  %v3942 = vpop.permute.xlu0 %3941
  %3945 = vset.pattern.permute.xlu0 0
  %3946 = vperm.xlu0 %3945, %v3812
  %v3947 = vpop.permute.xlu0 %3946
  %3950 = vset.pattern.permute.xlu0 0
  %3951 = vperm.xlu0 %3950, %v3813
  %v3952 = vpop.permute.xlu0 %3951
  %3955 = vset.pattern.permute.xlu0 0
  %3956 = vperm.xlu0 %3955, %v3814
  %v3957 = vpop.permute.xlu0 %3956
  %3960 = vset.pattern.permute.xlu0 0
  %3961 = vperm.xlu0 %3960, %v3815
  %v3962 = vpop.permute.xlu0 %3961
  %3965 = vset.pattern.permute.xlu0 0
  %3966 = vperm.xlu0 %3965, %v3816
  %v3967 = vpop.permute.xlu0 %3966
  %3970 = vset.pattern.permute.xlu0 0
  %3971 = vperm.xlu0 %3970, %v3817
  %v3972 = vpop.permute.xlu0 %3971
  %3975 = vset.pattern.permute.xlu0 0
  %3976 = vperm.xlu0 %3975, %v3818
  %v3977 = vpop.permute.xlu0 %3976
  %3979 = vmatpush.msra.mxu0 %v2239
  %3980 = vmatpush.msra.mxu0 %v2236
  %3981 = vmatpush.msra.mxu0 %v2233
  %3982 = vmatpush.msra.mxu0 %v2230
  %3983 = vmatpush.msra.mxu0 %v2227
  %3984 = vmatpush.msra.mxu0 %v2224
  %3985 = vmatpush.msra.mxu0 %v2221
  %3986 = vmatpush.msra.mxu0 %v2218
  %3987 = vmatpush.msra.mxu0 %v2215
  %3988 = vmatpush.msra.mxu0 %v2212
  %3989 = vmatpush.msra.mxu0 %v2209
  %3990 = vmatpush.msra.mxu0 %v2206
  %3991 = vmatpush.msra.mxu0 %v2203
  %3992 = vmatpush.msra.mxu0 %v2200
  %3993 = vmatpush.msra.mxu0 %v2197
  %3994 = vmatpush.msra.mxu0 %v2194
  %3995 = vmatmul.f32.gmra.mxu0 %v3499
  %v3996 = vpop.f32.mrf.mxu0
  %v3997 = vadd.f32 %v3822, %v3996
  %3998 = vmatmul.f32.gmra.mxu0 %v3508
  %v3999 = vpop.f32.mrf.mxu0
  %v4000 = vadd.f32 %v3827, %v3999
  %4001 = vmatmul.f32.gmra.mxu0 %v3517
  %v4002 = vpop.f32.mrf.mxu0
  %v4003 = vadd.f32 %v3832, %v4002
  %4004 = vmatmul.f32.gmra.mxu0 %v3526
  %v4005 = vpop.f32.mrf.mxu0
  %v4006 = vadd.f32 %v3837, %v4005
  %4007 = vmatmul.f32.gmra.mxu0 %v3535
  %v4008 = vpop.f32.mrf.mxu0
  %v4009 = vadd.f32 %v3842, %v4008
  %4010 = vmatmul.f32.gmra.mxu0 %v3544
  %v4011 = vpop.f32.mrf.mxu0
  %v4012 = vadd.f32 %v3847, %v4011
  %4013 = vmatmul.f32.gmra.mxu0 %v3553
  %v4014 = vpop.f32.mrf.mxu0
  %v4015 = vadd.f32 %v3852, %v4014
  %4016 = vmatmul.f32.gmra.mxu0 %v3562
  %v4017 = vpop.f32.mrf.mxu0
  %v4018 = vadd.f32 %v3857, %v4017
  %4019 = vmatmul.f32.gmra.mxu0 %v3571
  %v4020 = vpop.f32.mrf.mxu0
  %v4021 = vadd.f32 %v3862, %v4020
  %4022 = vmatmul.f32.gmra.mxu0 %v3580
  %v4023 = vpop.f32.mrf.mxu0
  %v4024 = vadd.f32 %v3867, %v4023
  %4025 = vmatmul.f32.gmra.mxu0 %v3589
  %v4026 = vpop.f32.mrf.mxu0
  %v4027 = vadd.f32 %v3872, %v4026
  %4028 = vmatmul.f32.gmra.mxu0 %v3598
  %v4029 = vpop.f32.mrf.mxu0
  %v4030 = vadd.f32 %v3877, %v4029
  %4031 = vmatmul.f32.gmra.mxu0 %v3607
  %v4032 = vpop.f32.mrf.mxu0
  %v4033 = vadd.f32 %v3882, %v4032
  %4034 = vmatmul.f32.gmra.mxu0 %v3616
  %v4035 = vpop.f32.mrf.mxu0
  %v4036 = vadd.f32 %v3887, %v4035
  %4037 = vmatmul.f32.gmra.mxu0 %v3625
  %v4038 = vpop.f32.mrf.mxu0
  %v4039 = vadd.f32 %v3892, %v4038
  %4040 = vmatmul.f32.gmra.mxu0 %v3634
  %v4041 = vpop.f32.mrf.mxu0
  %v4042 = vadd.f32 %v3897, %v4041
  %4043 = vmatmul.f32.gmra.mxu0 %v3643
  %v4044 = vpop.f32.mrf.mxu0
  %v4045 = vadd.f32 %v3902, %v4044
  %4046 = vmatmul.f32.gmra.mxu0 %v3652
  %v4047 = vpop.f32.mrf.mxu0
  %v4048 = vadd.f32 %v3907, %v4047
  %4049 = vmatmul.f32.gmra.mxu0 %v3661
  %v4050 = vpop.f32.mrf.mxu0
  %v4051 = vadd.f32 %v3912, %v4050
  %4052 = vmatmul.f32.gmra.mxu0 %v3670
  %v4053 = vpop.f32.mrf.mxu0
  %v4054 = vadd.f32 %v3917, %v4053
  %4055 = vmatmul.f32.gmra.mxu0 %v3679
  %v4056 = vpop.f32.mrf.mxu0
  %v4057 = vadd.f32 %v3922, %v4056
  %4058 = vmatmul.f32.gmra.mxu0 %v3688
  %v4059 = vpop.f32.mrf.mxu0
  %v4060 = vadd.f32 %v3927, %v4059
  %4061 = vmatmul.f32.gmra.mxu0 %v3697
  %v4062 = vpop.f32.mrf.mxu0
  %v4063 = vadd.f32 %v3932, %v4062
  %4064 = vmatmul.f32.gmra.mxu0 %v3706
  %v4065 = vpop.f32.mrf.mxu0
  %v4066 = vadd.f32 %v3937, %v4065
  %4067 = vmatmul.f32.gmra.mxu0 %v3715
  %v4068 = vpop.f32.mrf.mxu0
  %v4069 = vadd.f32 %v3942, %v4068
  %4070 = vmatmul.f32.gmra.mxu0 %v3724
  %v4071 = vpop.f32.mrf.mxu0
  %v4072 = vadd.f32 %v3947, %v4071
  %4073 = vmatmul.f32.gmra.mxu0 %v3733
  %v4074 = vpop.f32.mrf.mxu0
  %v4075 = vadd.f32 %v3952, %v4074
  %4076 = vmatmul.f32.gmra.mxu0 %v3742
  %v4077 = vpop.f32.mrf.mxu0
  %v4078 = vadd.f32 %v3957, %v4077
  %4079 = vmatmul.f32.gmra.mxu0 %v3751
  %v4080 = vpop.f32.mrf.mxu0
  %v4081 = vadd.f32 %v3962, %v4080
  %4082 = vmatmul.f32.gmra.mxu0 %v3760
  %v4083 = vpop.f32.mrf.mxu0
  %v4084 = vadd.f32 %v3967, %v4083
  %4085 = vmatmul.f32.gmra.mxu0 %v3769
  %v4086 = vpop.f32.mrf.mxu0
  %v4087 = vadd.f32 %v3972, %v4086
  %4088 = vmatmul.f32.gmra.mxu0 %v3778
  %v4089 = vpop.f32.mrf.mxu0
  %v4090 = vadd.f32 %v3977, %v4089
  %4091 = vdwg.mxu0
  %4092 = vmatpush.msra.mxu0 %v2677
  %4093 = vmatpush.msra.mxu0 %v2676
  %4094 = vmatpush.msra.mxu0 %v2675
  %4095 = vmatpush.msra.mxu0 %v2674
  %4096 = vmatpush.msra.mxu0 %v2673
  %4097 = vmatpush.msra.mxu0 %v2672
  %4098 = vmatpush.msra.mxu0 %v2671
  %4099 = vmatpush.msra.mxu0 %v2670
  %4100 = vmatpush.msra.mxu0 %v2669
  %4101 = vmatpush.msra.mxu0 %v2668
  %4102 = vmatpush.msra.mxu0 %v2667
  %4103 = vmatpush.msra.mxu0 %v2666
  %4104 = vmatpush.msra.mxu0 %v2665
  %4105 = vmatpush.msra.mxu0 %v2664
  %4106 = vmatpush.msra.mxu0 %v2663
  %4107 = vmatpush.msra.mxu0 %v2662
  %4108 = vmatmul.f32.gmra.mxu0 %v3500
  %v4109 = vpop.f32.mrf.mxu0
  %v4110 = vadd.f32 %v3997, %v4109
  %4111 = vmatmul.f32.gmra.mxu0 %v3509
  %v4112 = vpop.f32.mrf.mxu0
  %v4113 = vadd.f32 %v4000, %v4112
  %4114 = vmatmul.f32.gmra.mxu0 %v3518
  %v4115 = vpop.f32.mrf.mxu0
  %v4116 = vadd.f32 %v4003, %v4115
  %4117 = vmatmul.f32.gmra.mxu0 %v3527
  %v4118 = vpop.f32.mrf.mxu0
  %v4119 = vadd.f32 %v4006, %v4118
  %4120 = vmatmul.f32.gmra.mxu0 %v3536
  %v4121 = vpop.f32.mrf.mxu0
  %v4122 = vadd.f32 %v4009, %v4121
  %4123 = vmatmul.f32.gmra.mxu0 %v3545
  %v4124 = vpop.f32.mrf.mxu0
  %v4125 = vadd.f32 %v4012, %v4124
  %4126 = vmatmul.f32.gmra.mxu0 %v3554
  %v4127 = vpop.f32.mrf.mxu0
  %v4128 = vadd.f32 %v4015, %v4127
  %4129 = vmatmul.f32.gmra.mxu0 %v3563
  %v4130 = vpop.f32.mrf.mxu0
  %v4131 = vadd.f32 %v4018, %v4130
  %4132 = vmatmul.f32.gmra.mxu0 %v3572
  %v4133 = vpop.f32.mrf.mxu0
  %v4134 = vadd.f32 %v4021, %v4133
  %4135 = vmatmul.f32.gmra.mxu0 %v3581
  %v4136 = vpop.f32.mrf.mxu0
  %v4137 = vadd.f32 %v4024, %v4136
  %4138 = vmatmul.f32.gmra.mxu0 %v3590
  %v4139 = vpop.f32.mrf.mxu0
  %v4140 = vadd.f32 %v4027, %v4139
  %4141 = vmatmul.f32.gmra.mxu0 %v3599
  %v4142 = vpop.f32.mrf.mxu0
  %v4143 = vadd.f32 %v4030, %v4142
  %4144 = vmatmul.f32.gmra.mxu0 %v3608
  %v4145 = vpop.f32.mrf.mxu0
  %v4146 = vadd.f32 %v4033, %v4145
  %4147 = vmatmul.f32.gmra.mxu0 %v3617
  %v4148 = vpop.f32.mrf.mxu0
  %v4149 = vadd.f32 %v4036, %v4148
  %4150 = vmatmul.f32.gmra.mxu0 %v3626
  %v4151 = vpop.f32.mrf.mxu0
  %v4152 = vadd.f32 %v4039, %v4151
  %4153 = vmatmul.f32.gmra.mxu0 %v3635
  %v4154 = vpop.f32.mrf.mxu0
  %v4155 = vadd.f32 %v4042, %v4154
  %4156 = vmatmul.f32.gmra.mxu0 %v3644
  %v4157 = vpop.f32.mrf.mxu0
  %v4158 = vadd.f32 %v4045, %v4157
  %4159 = vmatmul.f32.gmra.mxu0 %v3653
  %v4160 = vpop.f32.mrf.mxu0
  %v4161 = vadd.f32 %v4048, %v4160
  %4162 = vmatmul.f32.gmra.mxu0 %v3662
  %v4163 = vpop.f32.mrf.mxu0
  %v4164 = vadd.f32 %v4051, %v4163
  %4165 = vmatmul.f32.gmra.mxu0 %v3671
  %v4166 = vpop.f32.mrf.mxu0
  %v4167 = vadd.f32 %v4054, %v4166
  %4168 = vmatmul.f32.gmra.mxu0 %v3680
  %v4169 = vpop.f32.mrf.mxu0
  %v4170 = vadd.f32 %v4057, %v4169
  %4171 = vmatmul.f32.gmra.mxu0 %v3689
  %v4172 = vpop.f32.mrf.mxu0
  %v4173 = vadd.f32 %v4060, %v4172
  %4174 = vmatmul.f32.gmra.mxu0 %v3698
  %v4175 = vpop.f32.mrf.mxu0
  %v4176 = vadd.f32 %v4063, %v4175
  %4177 = vmatmul.f32.gmra.mxu0 %v3707
  %v4178 = vpop.f32.mrf.mxu0
  %v4179 = vadd.f32 %v4066, %v4178
  %4180 = vmatmul.f32.gmra.mxu0 %v3716
  %v4181 = vpop.f32.mrf.mxu0
  %v4182 = vadd.f32 %v4069, %v4181
  %4183 = vmatmul.f32.gmra.mxu0 %v3725
  %v4184 = vpop.f32.mrf.mxu0
  %v4185 = vadd.f32 %v4072, %v4184
  %4186 = vmatmul.f32.gmra.mxu0 %v3734
  %v4187 = vpop.f32.mrf.mxu0
  %v4188 = vadd.f32 %v4075, %v4187
  %4189 = vmatmul.f32.gmra.mxu0 %v3743
  %v4190 = vpop.f32.mrf.mxu0
  %v4191 = vadd.f32 %v4078, %v4190
  %4192 = vmatmul.f32.gmra.mxu0 %v3752
  %v4193 = vpop.f32.mrf.mxu0
  %v4194 = vadd.f32 %v4081, %v4193
  %4195 = vmatmul.f32.gmra.mxu0 %v3761
  %v4196 = vpop.f32.mrf.mxu0
  %v4197 = vadd.f32 %v4084, %v4196
  %4198 = vmatmul.f32.gmra.mxu0 %v3770
  %v4199 = vpop.f32.mrf.mxu0
  %v4200 = vadd.f32 %v4087, %v4199
  %4201 = vmatmul.f32.gmra.mxu0 %v3779
  %v4202 = vpop.f32.mrf.mxu0
  %v4203 = vadd.f32 %v4090, %v4202
  %4204 = vdwg.mxu0
  %4205 = vmatpush.msra.mxu0 %v2789
  %4206 = vmatpush.msra.mxu0 %v2788
  %4207 = vmatpush.msra.mxu0 %v2787
  %4208 = vmatpush.msra.mxu0 %v2786
  %4209 = vmatpush.msra.mxu0 %v2785
  %4210 = vmatpush.msra.mxu0 %v2784
  %4211 = vmatpush.msra.mxu0 %v2783
  %4212 = vmatpush.msra.mxu0 %v2782
  %4213 = vmatpush.msra.mxu0 %v2781
  %4214 = vmatpush.msra.mxu0 %v2780
  %4215 = vmatpush.msra.mxu0 %v2779
  %4216 = vmatpush.msra.mxu0 %v2778
  %4217 = vmatpush.msra.mxu0 %v2777
  %4218 = vmatpush.msra.mxu0 %v2776
  %4219 = vmatpush.msra.mxu0 %v2775
  %4220 = vmatpush.msra.mxu0 %v2774
  %4221 = vmatmul.f32.gmra.mxu0 %v3501
  %v4222 = vpop.f32.mrf.mxu0
  %v4223 = vadd.f32 %v4110, %v4222
  %4224 = vmatmul.f32.gmra.mxu0 %v3510
  %v4225 = vpop.f32.mrf.mxu0
  %v4226 = vadd.f32 %v4113, %v4225
  %4227 = vmatmul.f32.gmra.mxu0 %v3519
  %v4228 = vpop.f32.mrf.mxu0
  %v4229 = vadd.f32 %v4116, %v4228
  %4230 = vmatmul.f32.gmra.mxu0 %v3528
  %v4231 = vpop.f32.mrf.mxu0
  %v4232 = vadd.f32 %v4119, %v4231
  %4233 = vmatmul.f32.gmra.mxu0 %v3537
  %v4234 = vpop.f32.mrf.mxu0
  %v4235 = vadd.f32 %v4122, %v4234
  %4236 = vmatmul.f32.gmra.mxu0 %v3546
  %v4237 = vpop.f32.mrf.mxu0
  %v4238 = vadd.f32 %v4125, %v4237
  %4239 = vmatmul.f32.gmra.mxu0 %v3555
  %v4240 = vpop.f32.mrf.mxu0
  %v4241 = vadd.f32 %v4128, %v4240
  %4242 = vmatmul.f32.gmra.mxu0 %v3564
  %v4243 = vpop.f32.mrf.mxu0
  %v4244 = vadd.f32 %v4131, %v4243
  %4245 = vmatmul.f32.gmra.mxu0 %v3573
  %v4246 = vpop.f32.mrf.mxu0
  %v4247 = vadd.f32 %v4134, %v4246
  %4248 = vmatmul.f32.gmra.mxu0 %v3582
  %v4249 = vpop.f32.mrf.mxu0
  %v4250 = vadd.f32 %v4137, %v4249
  %4251 = vmatmul.f32.gmra.mxu0 %v3591
  %v4252 = vpop.f32.mrf.mxu0
  %v4253 = vadd.f32 %v4140, %v4252
  %4254 = vmatmul.f32.gmra.mxu0 %v3600
  %v4255 = vpop.f32.mrf.mxu0
  %v4256 = vadd.f32 %v4143, %v4255
  %4257 = vmatmul.f32.gmra.mxu0 %v3609
  %v4258 = vpop.f32.mrf.mxu0
  %v4259 = vadd.f32 %v4146, %v4258
  %4260 = vmatmul.f32.gmra.mxu0 %v3618
  %v4261 = vpop.f32.mrf.mxu0
  %v4262 = vadd.f32 %v4149, %v4261
  %4263 = vmatmul.f32.gmra.mxu0 %v3627
  %v4264 = vpop.f32.mrf.mxu0
  %v4265 = vadd.f32 %v4152, %v4264
  %4266 = vmatmul.f32.gmra.mxu0 %v3636
  %v4267 = vpop.f32.mrf.mxu0
  %v4268 = vadd.f32 %v4155, %v4267
  %4269 = vmatmul.f32.gmra.mxu0 %v3645
  %v4270 = vpop.f32.mrf.mxu0
  %v4271 = vadd.f32 %v4158, %v4270
  %4272 = vmatmul.f32.gmra.mxu0 %v3654
  %v4273 = vpop.f32.mrf.mxu0
  %v4274 = vadd.f32 %v4161, %v4273
  %4275 = vmatmul.f32.gmra.mxu0 %v3663
  %v4276 = vpop.f32.mrf.mxu0
  %v4277 = vadd.f32 %v4164, %v4276
  %4278 = vmatmul.f32.gmra.mxu0 %v3672
  %v4279 = vpop.f32.mrf.mxu0
  %v4280 = vadd.f32 %v4167, %v4279
  %4281 = vmatmul.f32.gmra.mxu0 %v3681
  %v4282 = vpop.f32.mrf.mxu0
  %v4283 = vadd.f32 %v4170, %v4282
  %4284 = vmatmul.f32.gmra.mxu0 %v3690
  %v4285 = vpop.f32.mrf.mxu0
  %v4286 = vadd.f32 %v4173, %v4285
  %4287 = vmatmul.f32.gmra.mxu0 %v3699
  %v4288 = vpop.f32.mrf.mxu0
  %v4289 = vadd.f32 %v4176, %v4288
  %4290 = vmatmul.f32.gmra.mxu0 %v3708
  %v4291 = vpop.f32.mrf.mxu0
  %v4292 = vadd.f32 %v4179, %v4291
  %4293 = vmatmul.f32.gmra.mxu0 %v3717
  %v4294 = vpop.f32.mrf.mxu0
  %v4295 = vadd.f32 %v4182, %v4294
  %4296 = vmatmul.f32.gmra.mxu0 %v3726
  %v4297 = vpop.f32.mrf.mxu0
  %v4298 = vadd.f32 %v4185, %v4297
  %4299 = vmatmul.f32.gmra.mxu0 %v3735
  %v4300 = vpop.f32.mrf.mxu0
  %v4301 = vadd.f32 %v4188, %v4300
  %4302 = vmatmul.f32.gmra.mxu0 %v3744
  %v4303 = vpop.f32.mrf.mxu0
  %v4304 = vadd.f32 %v4191, %v4303
  %4305 = vmatmul.f32.gmra.mxu0 %v3753
  %v4306 = vpop.f32.mrf.mxu0
  %v4307 = vadd.f32 %v4194, %v4306
  %4308 = vmatmul.f32.gmra.mxu0 %v3762
  %v4309 = vpop.f32.mrf.mxu0
  %v4310 = vadd.f32 %v4197, %v4309
  %4311 = vmatmul.f32.gmra.mxu0 %v3771
  %v4312 = vpop.f32.mrf.mxu0
  %v4313 = vadd.f32 %v4200, %v4312
  %4314 = vmatmul.f32.gmra.mxu0 %v3780
  %v4315 = vpop.f32.mrf.mxu0
  %v4316 = vadd.f32 %v4203, %v4315
  %4317 = vdwg.mxu0
  %4318 = vmatpush.msra.mxu0 %v2902
  %4319 = vmatpush.msra.mxu0 %v2901
  %4320 = vmatpush.msra.mxu0 %v2900
  %4321 = vmatpush.msra.mxu0 %v2899
  %4322 = vmatpush.msra.mxu0 %v2898
  %4323 = vmatpush.msra.mxu0 %v2897
  %4324 = vmatpush.msra.mxu0 %v2896
  %4325 = vmatpush.msra.mxu0 %v2895
  %4326 = vmatpush.msra.mxu0 %v2894
  %4327 = vmatpush.msra.mxu0 %v2893
  %4328 = vmatpush.msra.mxu0 %v2892
  %4329 = vmatpush.msra.mxu0 %v2891
  %4330 = vmatpush.msra.mxu0 %v2890
  %4331 = vmatpush.msra.mxu0 %v2889
  %4332 = vmatpush.msra.mxu0 %v2888
  %4333 = vmatpush.msra.mxu0 %v2887
  %4334 = vmatmul.f32.gmra.mxu0 %v3502
  %v4335 = vpop.f32.mrf.mxu0
  %v4336 = vadd.f32 %v4223, %v4335
  %4337 = vmatmul.f32.gmra.mxu0 %v3511
  %v4338 = vpop.f32.mrf.mxu0
  %v4339 = vadd.f32 %v4226, %v4338
  %4340 = vmatmul.f32.gmra.mxu0 %v3520
  %v4341 = vpop.f32.mrf.mxu0
  %v4342 = vadd.f32 %v4229, %v4341
  %4343 = vmatmul.f32.gmra.mxu0 %v3529
  %v4344 = vpop.f32.mrf.mxu0
  %v4345 = vadd.f32 %v4232, %v4344
  %4346 = vmatmul.f32.gmra.mxu0 %v3538
  %v4347 = vpop.f32.mrf.mxu0
  %v4348 = vadd.f32 %v4235, %v4347
  %4349 = vmatmul.f32.gmra.mxu0 %v3547
  %v4350 = vpop.f32.mrf.mxu0
  %v4351 = vadd.f32 %v4238, %v4350
  %4352 = vmatmul.f32.gmra.mxu0 %v3556
  %v4353 = vpop.f32.mrf.mxu0
  %v4354 = vadd.f32 %v4241, %v4353
  %4355 = vmatmul.f32.gmra.mxu0 %v3565
  %v4356 = vpop.f32.mrf.mxu0
  %v4357 = vadd.f32 %v4244, %v4356
  %4358 = vmatmul.f32.gmra.mxu0 %v3574
  %v4359 = vpop.f32.mrf.mxu0
  %v4360 = vadd.f32 %v4247, %v4359
  %4361 = vmatmul.f32.gmra.mxu0 %v3583
  %v4362 = vpop.f32.mrf.mxu0
  %v4363 = vadd.f32 %v4250, %v4362
  %4364 = vmatmul.f32.gmra.mxu0 %v3592
  %v4365 = vpop.f32.mrf.mxu0
  %v4366 = vadd.f32 %v4253, %v4365
  %4367 = vmatmul.f32.gmra.mxu0 %v3601
  %v4368 = vpop.f32.mrf.mxu0
  %v4369 = vadd.f32 %v4256, %v4368
  %4370 = vmatmul.f32.gmra.mxu0 %v3610
  %v4371 = vpop.f32.mrf.mxu0
  %v4372 = vadd.f32 %v4259, %v4371
  %4373 = vmatmul.f32.gmra.mxu0 %v3619
  %v4374 = vpop.f32.mrf.mxu0
  %v4375 = vadd.f32 %v4262, %v4374
  %4376 = vmatmul.f32.gmra.mxu0 %v3628
  %v4377 = vpop.f32.mrf.mxu0
  %v4378 = vadd.f32 %v4265, %v4377
  %4379 = vmatmul.f32.gmra.mxu0 %v3637
  %v4380 = vpop.f32.mrf.mxu0
  %v4381 = vadd.f32 %v4268, %v4380
  %4382 = vmatmul.f32.gmra.mxu0 %v3646
  %v4383 = vpop.f32.mrf.mxu0
  %v4384 = vadd.f32 %v4271, %v4383
  %4385 = vmatmul.f32.gmra.mxu0 %v3655
  %v4386 = vpop.f32.mrf.mxu0
  %v4387 = vadd.f32 %v4274, %v4386
  %4388 = vmatmul.f32.gmra.mxu0 %v3664
  %v4389 = vpop.f32.mrf.mxu0
  %v4390 = vadd.f32 %v4277, %v4389
  %4391 = vmatmul.f32.gmra.mxu0 %v3673
  %v4392 = vpop.f32.mrf.mxu0
  %v4393 = vadd.f32 %v4280, %v4392
  %4394 = vmatmul.f32.gmra.mxu0 %v3682
  %v4395 = vpop.f32.mrf.mxu0
  %v4396 = vadd.f32 %v4283, %v4395
  %4397 = vmatmul.f32.gmra.mxu0 %v3691
  %v4398 = vpop.f32.mrf.mxu0
  %v4399 = vadd.f32 %v4286, %v4398
  %4400 = vmatmul.f32.gmra.mxu0 %v3700
  %v4401 = vpop.f32.mrf.mxu0
  %v4402 = vadd.f32 %v4289, %v4401
  %4403 = vmatmul.f32.gmra.mxu0 %v3709
  %v4404 = vpop.f32.mrf.mxu0
  %v4405 = vadd.f32 %v4292, %v4404
  %4406 = vmatmul.f32.gmra.mxu0 %v3718
  %v4407 = vpop.f32.mrf.mxu0
  %v4408 = vadd.f32 %v4295, %v4407
  %4409 = vmatmul.f32.gmra.mxu0 %v3727
  %v4410 = vpop.f32.mrf.mxu0
  %v4411 = vadd.f32 %v4298, %v4410
  %4412 = vmatmul.f32.gmra.mxu0 %v3736
  %v4413 = vpop.f32.mrf.mxu0
  %v4414 = vadd.f32 %v4301, %v4413
  %4415 = vmatmul.f32.gmra.mxu0 %v3745
  %v4416 = vpop.f32.mrf.mxu0
  %v4417 = vadd.f32 %v4304, %v4416
  %4418 = vmatmul.f32.gmra.mxu0 %v3754
  %v4419 = vpop.f32.mrf.mxu0
  %v4420 = vadd.f32 %v4307, %v4419
  %4421 = vmatmul.f32.gmra.mxu0 %v3763
  %v4422 = vpop.f32.mrf.mxu0
  %v4423 = vadd.f32 %v4310, %v4422
  %4424 = vmatmul.f32.gmra.mxu0 %v3772
  %v4425 = vpop.f32.mrf.mxu0
  %v4426 = vadd.f32 %v4313, %v4425
  %4427 = vmatmul.f32.gmra.mxu0 %v3781
  %v4428 = vpop.f32.mrf.mxu0
  %v4429 = vadd.f32 %v4316, %v4428
  %4430 = vdwg.mxu0
  %4431 = vmatpush.msra.mxu0 %v3015
  %4432 = vmatpush.msra.mxu0 %v3014
  %4433 = vmatpush.msra.mxu0 %v3013
  %4434 = vmatpush.msra.mxu0 %v3012
  %4435 = vmatpush.msra.mxu0 %v3011
  %4436 = vmatpush.msra.mxu0 %v3010
  %4437 = vmatpush.msra.mxu0 %v3009
  %4438 = vmatpush.msra.mxu0 %v3008
  %4439 = vmatpush.msra.mxu0 %v3007
  %4440 = vmatpush.msra.mxu0 %v3006
  %4441 = vmatpush.msra.mxu0 %v3005
  %4442 = vmatpush.msra.mxu0 %v3004
  %4443 = vmatpush.msra.mxu0 %v3003
  %4444 = vmatpush.msra.mxu0 %v3002
  %4445 = vmatpush.msra.mxu0 %v3001
  %4446 = vmatpush.msra.mxu0 %v3000
  %4447 = vmatmul.f32.gmra.mxu0 %v3503
  %v4448 = vpop.f32.mrf.mxu0
  %v4449 = vadd.f32 %v4336, %v4448
  %4450 = vmatmul.f32.gmra.mxu0 %v3512
  %v4451 = vpop.f32.mrf.mxu0
  %v4452 = vadd.f32 %v4339, %v4451
  %4453 = vmatmul.f32.gmra.mxu0 %v3521
  %v4454 = vpop.f32.mrf.mxu0
  %v4455 = vadd.f32 %v4342, %v4454
  %4456 = vmatmul.f32.gmra.mxu0 %v3530
  %v4457 = vpop.f32.mrf.mxu0
  %v4458 = vadd.f32 %v4345, %v4457
  %4459 = vmatmul.f32.gmra.mxu0 %v3539
  %v4460 = vpop.f32.mrf.mxu0
  %v4461 = vadd.f32 %v4348, %v4460
  %4462 = vmatmul.f32.gmra.mxu0 %v3548
  %v4463 = vpop.f32.mrf.mxu0
  %v4464 = vadd.f32 %v4351, %v4463
  %4465 = vmatmul.f32.gmra.mxu0 %v3557
  %v4466 = vpop.f32.mrf.mxu0
  %v4467 = vadd.f32 %v4354, %v4466
  %4468 = vmatmul.f32.gmra.mxu0 %v3566
  %v4469 = vpop.f32.mrf.mxu0
  %v4470 = vadd.f32 %v4357, %v4469
  %4471 = vmatmul.f32.gmra.mxu0 %v3575
  %v4472 = vpop.f32.mrf.mxu0
  %v4473 = vadd.f32 %v4360, %v4472
  %4474 = vmatmul.f32.gmra.mxu0 %v3584
  %v4475 = vpop.f32.mrf.mxu0
  %v4476 = vadd.f32 %v4363, %v4475
  %4477 = vmatmul.f32.gmra.mxu0 %v3593
  %v4478 = vpop.f32.mrf.mxu0
  %v4479 = vadd.f32 %v4366, %v4478
  %4480 = vmatmul.f32.gmra.mxu0 %v3602
  %v4481 = vpop.f32.mrf.mxu0
  %v4482 = vadd.f32 %v4369, %v4481
  %4483 = vmatmul.f32.gmra.mxu0 %v3611
  %v4484 = vpop.f32.mrf.mxu0
  %v4485 = vadd.f32 %v4372, %v4484
  %4486 = vmatmul.f32.gmra.mxu0 %v3620
  %v4487 = vpop.f32.mrf.mxu0
  %v4488 = vadd.f32 %v4375, %v4487
  %4489 = vmatmul.f32.gmra.mxu0 %v3629
  %v4490 = vpop.f32.mrf.mxu0
  %v4491 = vadd.f32 %v4378, %v4490
  %4492 = vmatmul.f32.gmra.mxu0 %v3638
  %v4493 = vpop.f32.mrf.mxu0
  %v4494 = vadd.f32 %v4381, %v4493
  %4495 = vmatmul.f32.gmra.mxu0 %v3647
  %v4496 = vpop.f32.mrf.mxu0
  %v4497 = vadd.f32 %v4384, %v4496
  %4498 = vmatmul.f32.gmra.mxu0 %v3656
  %v4499 = vpop.f32.mrf.mxu0
  %v4500 = vadd.f32 %v4387, %v4499
  %4501 = vmatmul.f32.gmra.mxu0 %v3665
  %v4502 = vpop.f32.mrf.mxu0
  %v4503 = vadd.f32 %v4390, %v4502
  %4504 = vmatmul.f32.gmra.mxu0 %v3674
  %v4505 = vpop.f32.mrf.mxu0
  %v4506 = vadd.f32 %v4393, %v4505
  %4507 = vmatmul.f32.gmra.mxu0 %v3683
  %v4508 = vpop.f32.mrf.mxu0
  %v4509 = vadd.f32 %v4396, %v4508
  %4510 = vmatmul.f32.gmra.mxu0 %v3692
  %v4511 = vpop.f32.mrf.mxu0
  %v4512 = vadd.f32 %v4399, %v4511
  %4513 = vmatmul.f32.gmra.mxu0 %v3701
  %v4514 = vpop.f32.mrf.mxu0
  %v4515 = vadd.f32 %v4402, %v4514
  %4516 = vmatmul.f32.gmra.mxu0 %v3710
  %v4517 = vpop.f32.mrf.mxu0
  %v4518 = vadd.f32 %v4405, %v4517
  %4519 = vmatmul.f32.gmra.mxu0 %v3719
  %v4520 = vpop.f32.mrf.mxu0
  %v4521 = vadd.f32 %v4408, %v4520
  %4522 = vmatmul.f32.gmra.mxu0 %v3728
  %v4523 = vpop.f32.mrf.mxu0
  %v4524 = vadd.f32 %v4411, %v4523
  %4525 = vmatmul.f32.gmra.mxu0 %v3737
  %v4526 = vpop.f32.mrf.mxu0
  %v4527 = vadd.f32 %v4414, %v4526
  %4528 = vmatmul.f32.gmra.mxu0 %v3746
  %v4529 = vpop.f32.mrf.mxu0
  %v4530 = vadd.f32 %v4417, %v4529
  %4531 = vmatmul.f32.gmra.mxu0 %v3755
  %v4532 = vpop.f32.mrf.mxu0
  %v4533 = vadd.f32 %v4420, %v4532
  %4534 = vmatmul.f32.gmra.mxu0 %v3764
  %v4535 = vpop.f32.mrf.mxu0
  %v4536 = vadd.f32 %v4423, %v4535
  %4537 = vmatmul.f32.gmra.mxu0 %v3773
  %v4538 = vpop.f32.mrf.mxu0
  %v4539 = vadd.f32 %v4426, %v4538
  %4540 = vmatmul.f32.gmra.mxu0 %v3782
  %v4541 = vpop.f32.mrf.mxu0
  %v4542 = vadd.f32 %v4429, %v4541
  %4543 = vdwg.mxu0
  %4544 = vmatpush.msra.mxu0 %v3128
  %4545 = vmatpush.msra.mxu0 %v3127
  %4546 = vmatpush.msra.mxu0 %v3126
  %4547 = vmatpush.msra.mxu0 %v3125
  %4548 = vmatpush.msra.mxu0 %v3124
  %4549 = vmatpush.msra.mxu0 %v3123
  %4550 = vmatpush.msra.mxu0 %v3122
  %4551 = vmatpush.msra.mxu0 %v3121
  %4552 = vmatpush.msra.mxu0 %v3120
  %4553 = vmatpush.msra.mxu0 %v3119
  %4554 = vmatpush.msra.mxu0 %v3118
  %4555 = vmatpush.msra.mxu0 %v3117
  %4556 = vmatpush.msra.mxu0 %v3116
  %4557 = vmatpush.msra.mxu0 %v3115
  %4558 = vmatpush.msra.mxu0 %v3114
  %4559 = vmatpush.msra.mxu0 %v3113
  %4560 = vmatmul.f32.gmra.mxu0 %v3504
  %v4561 = vpop.f32.mrf.mxu0
  %v4562 = vadd.f32 %v4449, %v4561
  %4563 = vmatmul.f32.gmra.mxu0 %v3513
  %v4564 = vpop.f32.mrf.mxu0
  %v4565 = vadd.f32 %v4452, %v4564
  %4566 = vmatmul.f32.gmra.mxu0 %v3522
  %v4567 = vpop.f32.mrf.mxu0
  %v4568 = vadd.f32 %v4455, %v4567
  %4569 = vmatmul.f32.gmra.mxu0 %v3531
  %v4570 = vpop.f32.mrf.mxu0
  %v4571 = vadd.f32 %v4458, %v4570
  %4572 = vmatmul.f32.gmra.mxu0 %v3540
  %v4573 = vpop.f32.mrf.mxu0
  %v4574 = vadd.f32 %v4461, %v4573
  %4575 = vmatmul.f32.gmra.mxu0 %v3549
  %v4576 = vpop.f32.mrf.mxu0
  %v4577 = vadd.f32 %v4464, %v4576
  %4578 = vmatmul.f32.gmra.mxu0 %v3558
  %v4579 = vpop.f32.mrf.mxu0
  %v4580 = vadd.f32 %v4467, %v4579
  %4581 = vmatmul.f32.gmra.mxu0 %v3567
  %v4582 = vpop.f32.mrf.mxu0
  %v4583 = vadd.f32 %v4470, %v4582
  %4584 = vmatmul.f32.gmra.mxu0 %v3576
  %v4585 = vpop.f32.mrf.mxu0
  %v4586 = vadd.f32 %v4473, %v4585
  %4587 = vmatmul.f32.gmra.mxu0 %v3585
  %v4588 = vpop.f32.mrf.mxu0
  %v4589 = vadd.f32 %v4476, %v4588
  %4590 = vmatmul.f32.gmra.mxu0 %v3594
  %v4591 = vpop.f32.mrf.mxu0
  %v4592 = vadd.f32 %v4479, %v4591
  %4593 = vmatmul.f32.gmra.mxu0 %v3603
  %v4594 = vpop.f32.mrf.mxu0
  %v4595 = vadd.f32 %v4482, %v4594
  %4596 = vmatmul.f32.gmra.mxu0 %v3612
  %v4597 = vpop.f32.mrf.mxu0
  %v4598 = vadd.f32 %v4485, %v4597
  %4599 = vmatmul.f32.gmra.mxu0 %v3621
  %v4600 = vpop.f32.mrf.mxu0
  %v4601 = vadd.f32 %v4488, %v4600
  %4602 = vmatmul.f32.gmra.mxu0 %v3630
  %v4603 = vpop.f32.mrf.mxu0
  %v4604 = vadd.f32 %v4491, %v4603
  %4605 = vmatmul.f32.gmra.mxu0 %v3639
  %v4606 = vpop.f32.mrf.mxu0
  %v4607 = vadd.f32 %v4494, %v4606
  %4608 = vmatmul.f32.gmra.mxu0 %v3648
  %v4609 = vpop.f32.mrf.mxu0
  %v4610 = vadd.f32 %v4497, %v4609
  %4611 = vmatmul.f32.gmra.mxu0 %v3657
  %v4612 = vpop.f32.mrf.mxu0
  %v4613 = vadd.f32 %v4500, %v4612
  %4614 = vmatmul.f32.gmra.mxu0 %v3666
  %v4615 = vpop.f32.mrf.mxu0
  %v4616 = vadd.f32 %v4503, %v4615
  %4617 = vmatmul.f32.gmra.mxu0 %v3675
  %v4618 = vpop.f32.mrf.mxu0
  %v4619 = vadd.f32 %v4506, %v4618
  %4620 = vmatmul.f32.gmra.mxu0 %v3684
  %v4621 = vpop.f32.mrf.mxu0
  %v4622 = vadd.f32 %v4509, %v4621
  %4623 = vmatmul.f32.gmra.mxu0 %v3693
  %v4624 = vpop.f32.mrf.mxu0
  %v4625 = vadd.f32 %v4512, %v4624
  %4626 = vmatmul.f32.gmra.mxu0 %v3702
  %v4627 = vpop.f32.mrf.mxu0
  %v4628 = vadd.f32 %v4515, %v4627
  %4629 = vmatmul.f32.gmra.mxu0 %v3711
  %v4630 = vpop.f32.mrf.mxu0
  %v4631 = vadd.f32 %v4518, %v4630
  %4632 = vmatmul.f32.gmra.mxu0 %v3720
  %v4633 = vpop.f32.mrf.mxu0
  %v4634 = vadd.f32 %v4521, %v4633
  %4635 = vmatmul.f32.gmra.mxu0 %v3729
  %v4636 = vpop.f32.mrf.mxu0
  %v4637 = vadd.f32 %v4524, %v4636
  %4638 = vmatmul.f32.gmra.mxu0 %v3738
  %v4639 = vpop.f32.mrf.mxu0
  %v4640 = vadd.f32 %v4527, %v4639
  %4641 = vmatmul.f32.gmra.mxu0 %v3747
  %v4642 = vpop.f32.mrf.mxu0
  %v4643 = vadd.f32 %v4530, %v4642
  %4644 = vmatmul.f32.gmra.mxu0 %v3756
  %v4645 = vpop.f32.mrf.mxu0
  %v4646 = vadd.f32 %v4533, %v4645
  %4647 = vmatmul.f32.gmra.mxu0 %v3765
  %v4648 = vpop.f32.mrf.mxu0
  %v4649 = vadd.f32 %v4536, %v4648
  %4650 = vmatmul.f32.gmra.mxu0 %v3774
  %v4651 = vpop.f32.mrf.mxu0
  %v4652 = vadd.f32 %v4539, %v4651
  %4653 = vmatmul.f32.gmra.mxu0 %v3783
  %v4654 = vpop.f32.mrf.mxu0
  %v4655 = vadd.f32 %v4542, %v4654
  %4656 = vdwg.mxu0
  %4657 = vmatpush.msra.mxu0 %v3240
  %4658 = vmatpush.msra.mxu0 %v3239
  %4659 = vmatpush.msra.mxu0 %v3238
  %4660 = vmatpush.msra.mxu0 %v3237
  %4661 = vmatpush.msra.mxu0 %v3236
  %4662 = vmatpush.msra.mxu0 %v3235
  %4663 = vmatpush.msra.mxu0 %v3234
  %4664 = vmatpush.msra.mxu0 %v3233
  %4665 = vmatpush.msra.mxu0 %v3232
  %4666 = vmatpush.msra.mxu0 %v3231
  %4667 = vmatpush.msra.mxu0 %v3230
  %4668 = vmatpush.msra.mxu0 %v3229
  %4669 = vmatpush.msra.mxu0 %v3228
  %4670 = vmatpush.msra.mxu0 %v3227
  %4671 = vmatpush.msra.mxu0 %v3226
  %4672 = vmatpush.msra.mxu0 %v3225
  %4673 = vmatmul.f32.gmra.mxu0 %v3505
  %v4674 = vpop.f32.mrf.mxu0
  %v4675 = vadd.f32 %v4562, %v4674
  %4676 = vmatmul.f32.gmra.mxu0 %v3514
  %v4677 = vpop.f32.mrf.mxu0
  %v4678 = vadd.f32 %v4565, %v4677
  %4679 = vmatmul.f32.gmra.mxu0 %v3523
  %v4680 = vpop.f32.mrf.mxu0
  %v4681 = vadd.f32 %v4568, %v4680
  %4682 = vmatmul.f32.gmra.mxu0 %v3532
  %v4683 = vpop.f32.mrf.mxu0
  %v4684 = vadd.f32 %v4571, %v4683
  %4685 = vmatmul.f32.gmra.mxu0 %v3541
  %v4686 = vpop.f32.mrf.mxu0
  %v4687 = vadd.f32 %v4574, %v4686
  %4688 = vmatmul.f32.gmra.mxu0 %v3550
  %v4689 = vpop.f32.mrf.mxu0
  %v4690 = vadd.f32 %v4577, %v4689
  %4691 = vmatmul.f32.gmra.mxu0 %v3559
  %v4692 = vpop.f32.mrf.mxu0
  %v4693 = vadd.f32 %v4580, %v4692
  %4694 = vmatmul.f32.gmra.mxu0 %v3568
  %v4695 = vpop.f32.mrf.mxu0
  %v4696 = vadd.f32 %v4583, %v4695
  %4697 = vmatmul.f32.gmra.mxu0 %v3577
  %v4698 = vpop.f32.mrf.mxu0
  %v4699 = vadd.f32 %v4586, %v4698
  %4700 = vmatmul.f32.gmra.mxu0 %v3586
  %v4701 = vpop.f32.mrf.mxu0
  %v4702 = vadd.f32 %v4589, %v4701
  %4703 = vmatmul.f32.gmra.mxu0 %v3595
  %v4704 = vpop.f32.mrf.mxu0
  %v4705 = vadd.f32 %v4592, %v4704
  %4706 = vmatmul.f32.gmra.mxu0 %v3604
  %v4707 = vpop.f32.mrf.mxu0
  %v4708 = vadd.f32 %v4595, %v4707
  %4709 = vmatmul.f32.gmra.mxu0 %v3613
  %v4710 = vpop.f32.mrf.mxu0
  %v4711 = vadd.f32 %v4598, %v4710
  %4712 = vmatmul.f32.gmra.mxu0 %v3622
  %v4713 = vpop.f32.mrf.mxu0
  %v4714 = vadd.f32 %v4601, %v4713
  %4715 = vmatmul.f32.gmra.mxu0 %v3631
  %v4716 = vpop.f32.mrf.mxu0
  %v4717 = vadd.f32 %v4604, %v4716
  %4718 = vmatmul.f32.gmra.mxu0 %v3640
  %v4719 = vpop.f32.mrf.mxu0
  %v4720 = vadd.f32 %v4607, %v4719
  %4721 = vmatmul.f32.gmra.mxu0 %v3649
  %v4722 = vpop.f32.mrf.mxu0
  %v4723 = vadd.f32 %v4610, %v4722
  %4724 = vmatmul.f32.gmra.mxu0 %v3658
  %v4725 = vpop.f32.mrf.mxu0
  %v4726 = vadd.f32 %v4613, %v4725
  %4727 = vmatmul.f32.gmra.mxu0 %v3667
  %v4728 = vpop.f32.mrf.mxu0
  %v4729 = vadd.f32 %v4616, %v4728
  %4730 = vmatmul.f32.gmra.mxu0 %v3676
  %v4731 = vpop.f32.mrf.mxu0
  %v4732 = vadd.f32 %v4619, %v4731
  %4733 = vmatmul.f32.gmra.mxu0 %v3685
  %v4734 = vpop.f32.mrf.mxu0
  %v4735 = vadd.f32 %v4622, %v4734
  %4736 = vmatmul.f32.gmra.mxu0 %v3694
  %v4737 = vpop.f32.mrf.mxu0
  %v4738 = vadd.f32 %v4625, %v4737
  %4739 = vmatmul.f32.gmra.mxu0 %v3703
  %v4740 = vpop.f32.mrf.mxu0
  %v4741 = vadd.f32 %v4628, %v4740
  %4742 = vmatmul.f32.gmra.mxu0 %v3712
  %v4743 = vpop.f32.mrf.mxu0
  %v4744 = vadd.f32 %v4631, %v4743
  %4745 = vmatmul.f32.gmra.mxu0 %v3721
  %v4746 = vpop.f32.mrf.mxu0
  %v4747 = vadd.f32 %v4634, %v4746
  %4748 = vmatmul.f32.gmra.mxu0 %v3730
  %v4749 = vpop.f32.mrf.mxu0
  %v4750 = vadd.f32 %v4637, %v4749
  %4751 = vmatmul.f32.gmra.mxu0 %v3739
  %v4752 = vpop.f32.mrf.mxu0
  %v4753 = vadd.f32 %v4640, %v4752
  %4754 = vmatmul.f32.gmra.mxu0 %v3748
  %v4755 = vpop.f32.mrf.mxu0
  %v4756 = vadd.f32 %v4643, %v4755
  %4757 = vmatmul.f32.gmra.mxu0 %v3757
  %v4758 = vpop.f32.mrf.mxu0
  %v4759 = vadd.f32 %v4646, %v4758
  %4760 = vmatmul.f32.gmra.mxu0 %v3766
  %v4761 = vpop.f32.mrf.mxu0
  %v4762 = vadd.f32 %v4649, %v4761
  %4763 = vmatmul.f32.gmra.mxu0 %v3775
  %v4764 = vpop.f32.mrf.mxu0
  %v4765 = vadd.f32 %v4652, %v4764
  %4766 = vmatmul.f32.gmra.mxu0 %v3784
  %v4767 = vpop.f32.mrf.mxu0
  %v4768 = vadd.f32 %v4655, %v4767
  %4769 = vdwg.mxu0
  %4770 = vmatpush.msra.mxu0 %v3353
  %4771 = vmatpush.msra.mxu0 %v3352
  %4772 = vmatpush.msra.mxu0 %v3351
  %4773 = vmatpush.msra.mxu0 %v3350
  %4774 = vmatpush.msra.mxu0 %v3349
  %4775 = vmatpush.msra.mxu0 %v3348
  %4776 = vmatpush.msra.mxu0 %v3347
  %4777 = vmatpush.msra.mxu0 %v3346
  %4778 = vmatpush.msra.mxu0 %v3345
  %4779 = vmatpush.msra.mxu0 %v3344
  %4780 = vmatpush.msra.mxu0 %v3343
  %4781 = vmatpush.msra.mxu0 %v3342
  %4782 = vmatpush.msra.mxu0 %v3341
  %4783 = vmatpush.msra.mxu0 %v3340
  %4784 = vmatpush.msra.mxu0 %v3339
  %4785 = vmatpush.msra.mxu0 %v3338
  %4786 = vmatmul.f32.gmra.mxu0 %v3506
  %v4787 = vpop.f32.mrf.mxu0
  %v4788 = vadd.f32 %v4675, %v4787
  %4789 = vmatmul.f32.gmra.mxu0 %v3515
  %v4790 = vpop.f32.mrf.mxu0
  %v4791 = vadd.f32 %v4678, %v4790
  %4792 = vmatmul.f32.gmra.mxu0 %v3524
  %v4793 = vpop.f32.mrf.mxu0
  %v4794 = vadd.f32 %v4681, %v4793
  %4795 = vmatmul.f32.gmra.mxu0 %v3533
  %v4796 = vpop.f32.mrf.mxu0
  %v4797 = vadd.f32 %v4684, %v4796
  %4798 = vmatmul.f32.gmra.mxu0 %v3542
  %v4799 = vpop.f32.mrf.mxu0
  %v4800 = vadd.f32 %v4687, %v4799
  %4801 = vmatmul.f32.gmra.mxu0 %v3551
  %v4802 = vpop.f32.mrf.mxu0
  %v4803 = vadd.f32 %v4690, %v4802
  %4804 = vmatmul.f32.gmra.mxu0 %v3560
  %v4805 = vpop.f32.mrf.mxu0
  %v4806 = vadd.f32 %v4693, %v4805
  %4807 = vmatmul.f32.gmra.mxu0 %v3569
  %v4808 = vpop.f32.mrf.mxu0
  %v4809 = vadd.f32 %v4696, %v4808
  %4810 = vmatmul.f32.gmra.mxu0 %v3578
  %v4811 = vpop.f32.mrf.mxu0
  %v4812 = vadd.f32 %v4699, %v4811
  %4813 = vmatmul.f32.gmra.mxu0 %v3587
  %v4814 = vpop.f32.mrf.mxu0
  %v4815 = vadd.f32 %v4702, %v4814
  %4816 = vmatmul.f32.gmra.mxu0 %v3596
  %v4817 = vpop.f32.mrf.mxu0
  %v4818 = vadd.f32 %v4705, %v4817
  %4819 = vmatmul.f32.gmra.mxu0 %v3605
  %v4820 = vpop.f32.mrf.mxu0
  %v4821 = vadd.f32 %v4708, %v4820
  %4822 = vmatmul.f32.gmra.mxu0 %v3614
  %v4823 = vpop.f32.mrf.mxu0
  %v4824 = vadd.f32 %v4711, %v4823
  %4825 = vmatmul.f32.gmra.mxu0 %v3623
  %v4826 = vpop.f32.mrf.mxu0
  %v4827 = vadd.f32 %v4714, %v4826
  %4828 = vmatmul.f32.gmra.mxu0 %v3632
  %v4829 = vpop.f32.mrf.mxu0
  %v4830 = vadd.f32 %v4717, %v4829
  %4831 = vmatmul.f32.gmra.mxu0 %v3641
  %v4832 = vpop.f32.mrf.mxu0
  %v4833 = vadd.f32 %v4720, %v4832
  %4834 = vmatmul.f32.gmra.mxu0 %v3650
  %v4835 = vpop.f32.mrf.mxu0
  %v4836 = vadd.f32 %v4723, %v4835
  %4837 = vmatmul.f32.gmra.mxu0 %v3659
  %v4838 = vpop.f32.mrf.mxu0
  %v4839 = vadd.f32 %v4726, %v4838
  %4840 = vmatmul.f32.gmra.mxu0 %v3668
  %v4841 = vpop.f32.mrf.mxu0
  %v4842 = vadd.f32 %v4729, %v4841
  %4843 = vmatmul.f32.gmra.mxu0 %v3677
  %v4844 = vpop.f32.mrf.mxu0
  %v4845 = vadd.f32 %v4732, %v4844
  %4846 = vmatmul.f32.gmra.mxu0 %v3686
  %v4847 = vpop.f32.mrf.mxu0
  %v4848 = vadd.f32 %v4735, %v4847
  %4849 = vmatmul.f32.gmra.mxu0 %v3695
  %v4850 = vpop.f32.mrf.mxu0
  %v4851 = vadd.f32 %v4738, %v4850
  %4852 = vmatmul.f32.gmra.mxu0 %v3704
  %v4853 = vpop.f32.mrf.mxu0
  %v4854 = vadd.f32 %v4741, %v4853
  %4855 = vmatmul.f32.gmra.mxu0 %v3713
  %v4856 = vpop.f32.mrf.mxu0
  %v4857 = vadd.f32 %v4744, %v4856
  %4858 = vmatmul.f32.gmra.mxu0 %v3722
  %v4859 = vpop.f32.mrf.mxu0
  %v4860 = vadd.f32 %v4747, %v4859
  %4861 = vmatmul.f32.gmra.mxu0 %v3731
  %v4862 = vpop.f32.mrf.mxu0
  %v4863 = vadd.f32 %v4750, %v4862
  %4864 = vmatmul.f32.gmra.mxu0 %v3740
  %v4865 = vpop.f32.mrf.mxu0
  %v4866 = vadd.f32 %v4753, %v4865
  %4867 = vmatmul.f32.gmra.mxu0 %v3749
  %v4868 = vpop.f32.mrf.mxu0
  %v4869 = vadd.f32 %v4756, %v4868
  %4870 = vmatmul.f32.gmra.mxu0 %v3758
  %v4871 = vpop.f32.mrf.mxu0
  %v4872 = vadd.f32 %v4759, %v4871
  %4873 = vmatmul.f32.gmra.mxu0 %v3767
  %v4874 = vpop.f32.mrf.mxu0
  %v4875 = vadd.f32 %v4762, %v4874
  %4876 = vmatmul.f32.gmra.mxu0 %v3776
  %v4877 = vpop.f32.mrf.mxu0
  %v4878 = vadd.f32 %v4765, %v4877
  %4879 = vmatmul.f32.gmra.mxu0 %v3785
  %v4880 = vpop.f32.mrf.mxu0
  %v4881 = vadd.f32 %v4768, %v4880
  %4882 = vdwg.mxu0
  %4883 = vmatpush.msra.mxu0 %v3466
  %4884 = vmatpush.msra.mxu0 %v3465
  %4885 = vmatpush.msra.mxu0 %v3464
  %4886 = vmatpush.msra.mxu0 %v3463
  %4887 = vmatpush.msra.mxu0 %v3462
  %4888 = vmatpush.msra.mxu0 %v3461
  %4889 = vmatpush.msra.mxu0 %v3460
  %4890 = vmatpush.msra.mxu0 %v3459
  %4891 = vmatpush.msra.mxu0 %v3458
  %4892 = vmatpush.msra.mxu0 %v3457
  %4893 = vmatpush.msra.mxu0 %v3456
  %4894 = vmatpush.msra.mxu0 %v3455
  %4895 = vmatpush.msra.mxu0 %v3454
  %4896 = vmatpush.msra.mxu0 %v3453
  %4897 = vmatpush.msra.mxu0 %v3452
  %4898 = vmatpush.msra.mxu0 %v3451
  %4899 = vmatmul.f32.gmra.mxu0 %v3507
  %v4900 = vpop.f32.mrf.mxu0
  %v4901 = vadd.f32 %v4788, %v4900
  %4902 = vmatmul.f32.gmra.mxu0 %v3516
  %v4903 = vpop.f32.mrf.mxu0
  %v4904 = vadd.f32 %v4791, %v4903
  %4905 = vmatmul.f32.gmra.mxu0 %v3525
  %v4906 = vpop.f32.mrf.mxu0
  %v4907 = vadd.f32 %v4794, %v4906
  %4908 = vmatmul.f32.gmra.mxu0 %v3534
  %v4909 = vpop.f32.mrf.mxu0
  %v4910 = vadd.f32 %v4797, %v4909
  %4911 = vmatmul.f32.gmra.mxu0 %v3543
  %v4912 = vpop.f32.mrf.mxu0
  %v4913 = vadd.f32 %v4800, %v4912
  %4914 = vmatmul.f32.gmra.mxu0 %v3552
  %v4915 = vpop.f32.mrf.mxu0
  %v4916 = vadd.f32 %v4803, %v4915
  %4917 = vmatmul.f32.gmra.mxu0 %v3561
  %v4918 = vpop.f32.mrf.mxu0
  %v4919 = vadd.f32 %v4806, %v4918
  %4920 = vmatmul.f32.gmra.mxu0 %v3570
  %v4921 = vpop.f32.mrf.mxu0
  %v4922 = vadd.f32 %v4809, %v4921
  %4923 = vmatmul.f32.gmra.mxu0 %v3579
  %v4924 = vpop.f32.mrf.mxu0
  %v4925 = vadd.f32 %v4812, %v4924
  %4926 = vmatmul.f32.gmra.mxu0 %v3588
  %v4927 = vpop.f32.mrf.mxu0
  %v4928 = vadd.f32 %v4815, %v4927
  %4929 = vmatmul.f32.gmra.mxu0 %v3597
  %v4930 = vpop.f32.mrf.mxu0
  %v4931 = vadd.f32 %v4818, %v4930
  %4932 = vmatmul.f32.gmra.mxu0 %v3606
  %v4933 = vpop.f32.mrf.mxu0
  %v4934 = vadd.f32 %v4821, %v4933
  %4935 = vmatmul.f32.gmra.mxu0 %v3615
  %v4936 = vpop.f32.mrf.mxu0
  %v4937 = vadd.f32 %v4824, %v4936
  %4938 = vmatmul.f32.gmra.mxu0 %v3624
  %v4939 = vpop.f32.mrf.mxu0
  %v4940 = vadd.f32 %v4827, %v4939
  %4941 = vmatmul.f32.gmra.mxu0 %v3633
  %v4942 = vpop.f32.mrf.mxu0
  %v4943 = vadd.f32 %v4830, %v4942
  %4944 = vmatmul.f32.gmra.mxu0 %v3642
  %v4945 = vpop.f32.mrf.mxu0
  %v4946 = vadd.f32 %v4833, %v4945
  %4947 = vmatmul.f32.gmra.mxu0 %v3651
  %v4948 = vpop.f32.mrf.mxu0
  %v4949 = vadd.f32 %v4836, %v4948
  %4950 = vmatmul.f32.gmra.mxu0 %v3660
  %v4951 = vpop.f32.mrf.mxu0
  %v4952 = vadd.f32 %v4839, %v4951
  %4953 = vmatmul.f32.gmra.mxu0 %v3669
  %v4954 = vpop.f32.mrf.mxu0
  %v4955 = vadd.f32 %v4842, %v4954
  %4956 = vmatmul.f32.gmra.mxu0 %v3678
  %v4957 = vpop.f32.mrf.mxu0
  %v4958 = vadd.f32 %v4845, %v4957
  %4959 = vmatmul.f32.gmra.mxu0 %v3687
  %v4960 = vpop.f32.mrf.mxu0
  %v4961 = vadd.f32 %v4848, %v4960
  %4962 = vmatmul.f32.gmra.mxu0 %v3696
  %v4963 = vpop.f32.mrf.mxu0
  %v4964 = vadd.f32 %v4851, %v4963
  %4965 = vmatmul.f32.gmra.mxu0 %v3705
  %v4966 = vpop.f32.mrf.mxu0
  %v4967 = vadd.f32 %v4854, %v4966
  %4968 = vmatmul.f32.gmra.mxu0 %v3714
  %v4969 = vpop.f32.mrf.mxu0
  %v4970 = vadd.f32 %v4857, %v4969
  %4971 = vmatmul.f32.gmra.mxu0 %v3723
  %v4972 = vpop.f32.mrf.mxu0
  %v4973 = vadd.f32 %v4860, %v4972
  %4974 = vmatmul.f32.gmra.mxu0 %v3732
  %v4975 = vpop.f32.mrf.mxu0
  %v4976 = vadd.f32 %v4863, %v4975
  %4977 = vmatmul.f32.gmra.mxu0 %v3741
  %v4978 = vpop.f32.mrf.mxu0
  %v4979 = vadd.f32 %v4866, %v4978
  %4980 = vmatmul.f32.gmra.mxu0 %v3750
  %v4981 = vpop.f32.mrf.mxu0
  %v4982 = vadd.f32 %v4869, %v4981
  %4983 = vmatmul.f32.gmra.mxu0 %v3759
  %v4984 = vpop.f32.mrf.mxu0
  %v4985 = vadd.f32 %v4872, %v4984
  %4986 = vmatmul.f32.gmra.mxu0 %v3768
  %v4987 = vpop.f32.mrf.mxu0
  %v4988 = vadd.f32 %v4875, %v4987
  %4989 = vmatmul.f32.gmra.mxu0 %v3777
  %v4990 = vpop.f32.mrf.mxu0
  %v4991 = vadd.f32 %v4878, %v4990
  %4992 = vmatmul.f32.gmra.mxu0 %v3786
  %v4993 = vpop.f32.mrf.mxu0
  %v4994 = vadd.f32 %v4881, %v4993
  %4995 = vdwg.mxu0
  %4996 = vmatpush.msra.mxu0 %v2564
  %4997 = vmatpush.msra.mxu0 %v2561
  %4998 = vmatpush.msra.mxu0 %v2558
  %4999 = vmatpush.msra.mxu0 %v2555
  %5000 = vmatpush.msra.mxu0 %v2552
  %5001 = vmatpush.msra.mxu0 %v2549
  %5002 = vmatpush.msra.mxu0 %v2546
  %5003 = vmatpush.msra.mxu0 %v2543
  %5004 = vmatpush.msra.mxu0 %v2540
  %5005 = vmatpush.msra.mxu0 %v2537
  %5006 = vmatpush.msra.mxu0 %v2534
  %5007 = vmatpush.msra.mxu0 %v2531
  %5008 = vmatpush.msra.mxu0 %v2528
  %5009 = vmatpush.msra.mxu0 %v2525
  %5010 = vmatpush.msra.mxu0 %v2522
  %5011 = vmatpush.msra.mxu0 %v2519
  %5012 = vmatmul.f32.gmra.mxu0 %v3499
  %v5013 = vpop.f32.mrf.mxu0
  %v5014 = vadd.f32 %v3822, %v5013
  %5015 = vmatmul.f32.gmra.mxu0 %v3508
  %v5016 = vpop.f32.mrf.mxu0
  %v5017 = vadd.f32 %v3827, %v5016
  %5018 = vmatmul.f32.gmra.mxu0 %v3517
  %v5019 = vpop.f32.mrf.mxu0
  %v5020 = vadd.f32 %v3832, %v5019
  %5021 = vmatmul.f32.gmra.mxu0 %v3526
  %v5022 = vpop.f32.mrf.mxu0
  %v5023 = vadd.f32 %v3837, %v5022
  %5024 = vmatmul.f32.gmra.mxu0 %v3535
  %v5025 = vpop.f32.mrf.mxu0
  %v5026 = vadd.f32 %v3842, %v5025
  %5027 = vmatmul.f32.gmra.mxu0 %v3544
  %v5028 = vpop.f32.mrf.mxu0
  %v5029 = vadd.f32 %v3847, %v5028
  %5030 = vmatmul.f32.gmra.mxu0 %v3553
  %v5031 = vpop.f32.mrf.mxu0
  %v5032 = vadd.f32 %v3852, %v5031
  %5033 = vmatmul.f32.gmra.mxu0 %v3562
  %v5034 = vpop.f32.mrf.mxu0
  %v5035 = vadd.f32 %v3857, %v5034
  %5036 = vmatmul.f32.gmra.mxu0 %v3571
  %v5037 = vpop.f32.mrf.mxu0
  %v5038 = vadd.f32 %v3862, %v5037
  %5039 = vmatmul.f32.gmra.mxu0 %v3580
  %v5040 = vpop.f32.mrf.mxu0
  %v5041 = vadd.f32 %v3867, %v5040
  %5042 = vmatmul.f32.gmra.mxu0 %v3589
  %v5043 = vpop.f32.mrf.mxu0
  %v5044 = vadd.f32 %v3872, %v5043
  %5045 = vmatmul.f32.gmra.mxu0 %v3598
  %v5046 = vpop.f32.mrf.mxu0
  %v5047 = vadd.f32 %v3877, %v5046
  %5048 = vmatmul.f32.gmra.mxu0 %v3607
  %v5049 = vpop.f32.mrf.mxu0
  %v5050 = vadd.f32 %v3882, %v5049
  %5051 = vmatmul.f32.gmra.mxu0 %v3616
  %v5052 = vpop.f32.mrf.mxu0
  %v5053 = vadd.f32 %v3887, %v5052
  %5054 = vmatmul.f32.gmra.mxu0 %v3625
  %v5055 = vpop.f32.mrf.mxu0
  %v5056 = vadd.f32 %v3892, %v5055
  %5057 = vmatmul.f32.gmra.mxu0 %v3634
  %v5058 = vpop.f32.mrf.mxu0
  %v5059 = vadd.f32 %v3897, %v5058
  %5060 = vmatmul.f32.gmra.mxu0 %v3643
  %v5061 = vpop.f32.mrf.mxu0
  %v5062 = vadd.f32 %v3902, %v5061
  %5063 = vmatmul.f32.gmra.mxu0 %v3652
  %v5064 = vpop.f32.mrf.mxu0
  %v5065 = vadd.f32 %v3907, %v5064
  %5066 = vmatmul.f32.gmra.mxu0 %v3661
  %v5067 = vpop.f32.mrf.mxu0
  %v5068 = vadd.f32 %v3912, %v5067
  %5069 = vmatmul.f32.gmra.mxu0 %v3670
  %v5070 = vpop.f32.mrf.mxu0
  %v5071 = vadd.f32 %v3917, %v5070
  %5072 = vmatmul.f32.gmra.mxu0 %v3679
  %v5073 = vpop.f32.mrf.mxu0
  %v5074 = vadd.f32 %v3922, %v5073
  %5075 = vmatmul.f32.gmra.mxu0 %v3688
  %v5076 = vpop.f32.mrf.mxu0
  %v5077 = vadd.f32 %v3927, %v5076
  %5078 = vmatmul.f32.gmra.mxu0 %v3697
  %v5079 = vpop.f32.mrf.mxu0
  %v5080 = vadd.f32 %v3932, %v5079
  %5081 = vmatmul.f32.gmra.mxu0 %v3706
  %v5082 = vpop.f32.mrf.mxu0
  %v5083 = vadd.f32 %v3937, %v5082
  %5084 = vmatmul.f32.gmra.mxu0 %v3715
  %v5085 = vpop.f32.mrf.mxu0
  %v5086 = vadd.f32 %v3942, %v5085
  %5087 = vmatmul.f32.gmra.mxu0 %v3724
  %v5088 = vpop.f32.mrf.mxu0
  %v5089 = vadd.f32 %v3947, %v5088
  %5090 = vmatmul.f32.gmra.mxu0 %v3733
  %v5091 = vpop.f32.mrf.mxu0
  %v5092 = vadd.f32 %v3952, %v5091
  %5093 = vmatmul.f32.gmra.mxu0 %v3742
  %v5094 = vpop.f32.mrf.mxu0
  %v5095 = vadd.f32 %v3957, %v5094
  %5096 = vmatmul.f32.gmra.mxu0 %v3751
  %v5097 = vpop.f32.mrf.mxu0
  %v5098 = vadd.f32 %v3962, %v5097
  %5099 = vmatmul.f32.gmra.mxu0 %v3760
  %v5100 = vpop.f32.mrf.mxu0
  %v5101 = vadd.f32 %v3967, %v5100
  %5102 = vmatmul.f32.gmra.mxu0 %v3769
  %v5103 = vpop.f32.mrf.mxu0
  %v5104 = vadd.f32 %v3972, %v5103
  %5105 = vmatmul.f32.gmra.mxu0 %v3778
  %v5106 = vpop.f32.mrf.mxu0
  %v5107 = vadd.f32 %v3977, %v5106
  %5108 = vdwg.mxu0
  %5109 = vmatpush.msra.mxu0 %v2661
  %5110 = vmatpush.msra.mxu0 %v2657
  %5111 = vmatpush.msra.mxu0 %v2653
  %5112 = vmatpush.msra.mxu0 %v2649
  %5113 = vmatpush.msra.mxu0 %v2645
  %5114 = vmatpush.msra.mxu0 %v2641
  %5115 = vmatpush.msra.mxu0 %v2637
  %5116 = vmatpush.msra.mxu0 %v2633
  %5117 = vmatpush.msra.mxu0 %v2629
  %5118 = vmatpush.msra.mxu0 %v2625
  %5119 = vmatpush.msra.mxu0 %v2621
  %5120 = vmatpush.msra.mxu0 %v2617
  %5121 = vmatpush.msra.mxu0 %v2613
  %5122 = vmatpush.msra.mxu0 %v2609
  %5123 = vmatpush.msra.mxu0 %v2605
  %5124 = vmatpush.msra.mxu0 %v2601
  %5125 = vmatmul.f32.gmra.mxu0 %v3500
  %v5126 = vpop.f32.mrf.mxu0
  %v5127 = vadd.f32 %v5014, %v5126
  %5128 = vmatmul.f32.gmra.mxu0 %v3509
  %v5129 = vpop.f32.mrf.mxu0
  %v5130 = vadd.f32 %v5017, %v5129
  %5131 = vmatmul.f32.gmra.mxu0 %v3518
  %v5132 = vpop.f32.mrf.mxu0
  %v5133 = vadd.f32 %v5020, %v5132
  %5134 = vmatmul.f32.gmra.mxu0 %v3527
  %v5135 = vpop.f32.mrf.mxu0
  %v5136 = vadd.f32 %v5023, %v5135
  %5137 = vmatmul.f32.gmra.mxu0 %v3536
  %v5138 = vpop.f32.mrf.mxu0
  %v5139 = vadd.f32 %v5026, %v5138
  %5140 = vmatmul.f32.gmra.mxu0 %v3545
  %v5141 = vpop.f32.mrf.mxu0
  %v5142 = vadd.f32 %v5029, %v5141
  %5143 = vmatmul.f32.gmra.mxu0 %v3554
  %v5144 = vpop.f32.mrf.mxu0
  %v5145 = vadd.f32 %v5032, %v5144
  %5146 = vmatmul.f32.gmra.mxu0 %v3563
  %v5147 = vpop.f32.mrf.mxu0
  %v5148 = vadd.f32 %v5035, %v5147
  %5149 = vmatmul.f32.gmra.mxu0 %v3572
  %v5150 = vpop.f32.mrf.mxu0
  %v5151 = vadd.f32 %v5038, %v5150
  %5152 = vmatmul.f32.gmra.mxu0 %v3581
  %v5153 = vpop.f32.mrf.mxu0
  %v5154 = vadd.f32 %v5041, %v5153
  %5155 = vmatmul.f32.gmra.mxu0 %v3590
  %v5156 = vpop.f32.mrf.mxu0
  %v5157 = vadd.f32 %v5044, %v5156
  %5158 = vmatmul.f32.gmra.mxu0 %v3599
  %v5159 = vpop.f32.mrf.mxu0
  %v5160 = vadd.f32 %v5047, %v5159
  %5161 = vmatmul.f32.gmra.mxu0 %v3608
  %v5162 = vpop.f32.mrf.mxu0
  %v5163 = vadd.f32 %v5050, %v5162
  %5164 = vmatmul.f32.gmra.mxu0 %v3617
  %v5165 = vpop.f32.mrf.mxu0
  %v5166 = vadd.f32 %v5053, %v5165
  %5167 = vmatmul.f32.gmra.mxu0 %v3626
  %v5168 = vpop.f32.mrf.mxu0
  %v5169 = vadd.f32 %v5056, %v5168
  %5170 = vmatmul.f32.gmra.mxu0 %v3635
  %v5171 = vpop.f32.mrf.mxu0
  %v5172 = vadd.f32 %v5059, %v5171
  %5173 = vmatmul.f32.gmra.mxu0 %v3644
  %v5174 = vpop.f32.mrf.mxu0
  %v5175 = vadd.f32 %v5062, %v5174
  %5176 = vmatmul.f32.gmra.mxu0 %v3653
  %v5177 = vpop.f32.mrf.mxu0
  %v5178 = vadd.f32 %v5065, %v5177
  %5179 = vmatmul.f32.gmra.mxu0 %v3662
  %v5180 = vpop.f32.mrf.mxu0
  %v5181 = vadd.f32 %v5068, %v5180
  %5182 = vmatmul.f32.gmra.mxu0 %v3671
  %v5183 = vpop.f32.mrf.mxu0
  %v5184 = vadd.f32 %v5071, %v5183
  %5185 = vmatmul.f32.gmra.mxu0 %v3680
  %v5186 = vpop.f32.mrf.mxu0
  %v5187 = vadd.f32 %v5074, %v5186
  %5188 = vmatmul.f32.gmra.mxu0 %v3689
  %v5189 = vpop.f32.mrf.mxu0
  %v5190 = vadd.f32 %v5077, %v5189
  %5191 = vmatmul.f32.gmra.mxu0 %v3698
  %v5192 = vpop.f32.mrf.mxu0
  %v5193 = vadd.f32 %v5080, %v5192
  %5194 = vmatmul.f32.gmra.mxu0 %v3707
  %v5195 = vpop.f32.mrf.mxu0
  %v5196 = vadd.f32 %v5083, %v5195
  %5197 = vmatmul.f32.gmra.mxu0 %v3716
  %v5198 = vpop.f32.mrf.mxu0
  %v5199 = vadd.f32 %v5086, %v5198
  %5200 = vmatmul.f32.gmra.mxu0 %v3725
  %v5201 = vpop.f32.mrf.mxu0
  %v5202 = vadd.f32 %v5089, %v5201
  %5203 = vmatmul.f32.gmra.mxu0 %v3734
  %v5204 = vpop.f32.mrf.mxu0
  %v5205 = vadd.f32 %v5092, %v5204
  %5206 = vmatmul.f32.gmra.mxu0 %v3743
  %v5207 = vpop.f32.mrf.mxu0
  %v5208 = vadd.f32 %v5095, %v5207
  %5209 = vmatmul.f32.gmra.mxu0 %v3752
  %v5210 = vpop.f32.mrf.mxu0
  %v5211 = vadd.f32 %v5098, %v5210
  %5212 = vmatmul.f32.gmra.mxu0 %v3761
  %v5213 = vpop.f32.mrf.mxu0
  %v5214 = vadd.f32 %v5101, %v5213
  %5215 = vmatmul.f32.gmra.mxu0 %v3770
  %v5216 = vpop.f32.mrf.mxu0
  %v5217 = vadd.f32 %v5104, %v5216
  %5218 = vmatmul.f32.gmra.mxu0 %v3779
  %v5219 = vpop.f32.mrf.mxu0
  %v5220 = vadd.f32 %v5107, %v5219
  %5221 = vdwg.mxu0
  %5222 = vmatpush.msra.mxu0 %v2773
  %5223 = vmatpush.msra.mxu0 %v2769
  %5224 = vmatpush.msra.mxu0 %v2765
  %5225 = vmatpush.msra.mxu0 %v2761
  %5226 = vmatpush.msra.mxu0 %v2757
  %5227 = vmatpush.msra.mxu0 %v2753
  %5228 = vmatpush.msra.mxu0 %v2749
  %5229 = vmatpush.msra.mxu0 %v2745
  %5230 = vmatpush.msra.mxu0 %v2741
  %5231 = vmatpush.msra.mxu0 %v2737
  %5232 = vmatpush.msra.mxu0 %v2733
  %5233 = vmatpush.msra.mxu0 %v2729
  %5234 = vmatpush.msra.mxu0 %v2725
  %5235 = vmatpush.msra.mxu0 %v2721
  %5236 = vmatpush.msra.mxu0 %v2717
  %5237 = vmatpush.msra.mxu0 %v2713
  %5238 = vmatmul.f32.gmra.mxu0 %v3501
  %v5239 = vpop.f32.mrf.mxu0
  %v5240 = vadd.f32 %v5127, %v5239
  %5241 = vmatmul.f32.gmra.mxu0 %v3510
  %v5242 = vpop.f32.mrf.mxu0
  %v5243 = vadd.f32 %v5130, %v5242
  %5244 = vmatmul.f32.gmra.mxu0 %v3519
  %v5245 = vpop.f32.mrf.mxu0
  %v5246 = vadd.f32 %v5133, %v5245
  %5247 = vmatmul.f32.gmra.mxu0 %v3528
  %v5248 = vpop.f32.mrf.mxu0
  %v5249 = vadd.f32 %v5136, %v5248
  %5250 = vmatmul.f32.gmra.mxu0 %v3537
  %v5251 = vpop.f32.mrf.mxu0
  %v5252 = vadd.f32 %v5139, %v5251
  %5253 = vmatmul.f32.gmra.mxu0 %v3546
  %v5254 = vpop.f32.mrf.mxu0
  %v5255 = vadd.f32 %v5142, %v5254
  %5256 = vmatmul.f32.gmra.mxu0 %v3555
  %v5257 = vpop.f32.mrf.mxu0
  %v5258 = vadd.f32 %v5145, %v5257
  %5259 = vmatmul.f32.gmra.mxu0 %v3564
  %v5260 = vpop.f32.mrf.mxu0
  %v5261 = vadd.f32 %v5148, %v5260
  %5262 = vmatmul.f32.gmra.mxu0 %v3573
  %v5263 = vpop.f32.mrf.mxu0
  %v5264 = vadd.f32 %v5151, %v5263
  %5265 = vmatmul.f32.gmra.mxu0 %v3582
  %v5266 = vpop.f32.mrf.mxu0
  %v5267 = vadd.f32 %v5154, %v5266
  %5268 = vmatmul.f32.gmra.mxu0 %v3591
  %v5269 = vpop.f32.mrf.mxu0
  %v5270 = vadd.f32 %v5157, %v5269
  %5271 = vmatmul.f32.gmra.mxu0 %v3600
  %v5272 = vpop.f32.mrf.mxu0
  %v5273 = vadd.f32 %v5160, %v5272
  %5274 = vmatmul.f32.gmra.mxu0 %v3609
  %v5275 = vpop.f32.mrf.mxu0
  %v5276 = vadd.f32 %v5163, %v5275
  %5277 = vmatmul.f32.gmra.mxu0 %v3618
  %v5278 = vpop.f32.mrf.mxu0
  %v5279 = vadd.f32 %v5166, %v5278
  %5280 = vmatmul.f32.gmra.mxu0 %v3627
  %v5281 = vpop.f32.mrf.mxu0
  %v5282 = vadd.f32 %v5169, %v5281
  %5283 = vmatmul.f32.gmra.mxu0 %v3636
  %v5284 = vpop.f32.mrf.mxu0
  %v5285 = vadd.f32 %v5172, %v5284
  %5286 = vmatmul.f32.gmra.mxu0 %v3645
  %v5287 = vpop.f32.mrf.mxu0
  %v5288 = vadd.f32 %v5175, %v5287
  %5289 = vmatmul.f32.gmra.mxu0 %v3654
  %v5290 = vpop.f32.mrf.mxu0
  %v5291 = vadd.f32 %v5178, %v5290
  %5292 = vmatmul.f32.gmra.mxu0 %v3663
  %v5293 = vpop.f32.mrf.mxu0
  %v5294 = vadd.f32 %v5181, %v5293
  %5295 = vmatmul.f32.gmra.mxu0 %v3672
  %v5296 = vpop.f32.mrf.mxu0
  %v5297 = vadd.f32 %v5184, %v5296
  %5298 = vmatmul.f32.gmra.mxu0 %v3681
  %v5299 = vpop.f32.mrf.mxu0
  %v5300 = vadd.f32 %v5187, %v5299
  %5301 = vmatmul.f32.gmra.mxu0 %v3690
  %v5302 = vpop.f32.mrf.mxu0
  %v5303 = vadd.f32 %v5190, %v5302
  %5304 = vmatmul.f32.gmra.mxu0 %v3699
  %v5305 = vpop.f32.mrf.mxu0
  %v5306 = vadd.f32 %v5193, %v5305
  %5307 = vmatmul.f32.gmra.mxu0 %v3708
  %v5308 = vpop.f32.mrf.mxu0
  %v5309 = vadd.f32 %v5196, %v5308
  %5310 = vmatmul.f32.gmra.mxu0 %v3717
  %v5311 = vpop.f32.mrf.mxu0
  %v5312 = vadd.f32 %v5199, %v5311
  %5313 = vmatmul.f32.gmra.mxu0 %v3726
  %v5314 = vpop.f32.mrf.mxu0
  %v5315 = vadd.f32 %v5202, %v5314
  %5316 = vmatmul.f32.gmra.mxu0 %v3735
  %v5317 = vpop.f32.mrf.mxu0
  %v5318 = vadd.f32 %v5205, %v5317
  %5319 = vmatmul.f32.gmra.mxu0 %v3744
  %v5320 = vpop.f32.mrf.mxu0
  %v5321 = vadd.f32 %v5208, %v5320
  %5322 = vmatmul.f32.gmra.mxu0 %v3753
  %v5323 = vpop.f32.mrf.mxu0
  %v5324 = vadd.f32 %v5211, %v5323
  %5325 = vmatmul.f32.gmra.mxu0 %v3762
  %v5326 = vpop.f32.mrf.mxu0
  %v5327 = vadd.f32 %v5214, %v5326
  %5328 = vmatmul.f32.gmra.mxu0 %v3771
  %v5329 = vpop.f32.mrf.mxu0
  %v5330 = vadd.f32 %v5217, %v5329
  %5331 = vmatmul.f32.gmra.mxu0 %v3780
  %v5332 = vpop.f32.mrf.mxu0
  %v5333 = vadd.f32 %v5220, %v5332
  %5334 = vdwg.mxu0
  %5335 = vmatpush.msra.mxu0 %v2885
  %5336 = vmatpush.msra.mxu0 %v2881
  %5337 = vmatpush.msra.mxu0 %v2877
  %5338 = vmatpush.msra.mxu0 %v2873
  %5339 = vmatpush.msra.mxu0 %v2869
  %5340 = vmatpush.msra.mxu0 %v2865
  %5341 = vmatpush.msra.mxu0 %v2861
  %5342 = vmatpush.msra.mxu0 %v2857
  %5343 = vmatpush.msra.mxu0 %v2853
  %5344 = vmatpush.msra.mxu0 %v2849
  %5345 = vmatpush.msra.mxu0 %v2845
  %5346 = vmatpush.msra.mxu0 %v2841
  %5347 = vmatpush.msra.mxu0 %v2837
  %5348 = vmatpush.msra.mxu0 %v2833
  %5349 = vmatpush.msra.mxu0 %v2829
  %5350 = vmatpush.msra.mxu0 %v2825
  %5351 = vmatmul.f32.gmra.mxu0 %v3502
  %v5352 = vpop.f32.mrf.mxu0
  %v5353 = vadd.f32 %v5240, %v5352
  %5354 = vmatmul.f32.gmra.mxu0 %v3511
  %v5355 = vpop.f32.mrf.mxu0
  %v5356 = vadd.f32 %v5243, %v5355
  %5357 = vmatmul.f32.gmra.mxu0 %v3520
  %v5358 = vpop.f32.mrf.mxu0
  %v5359 = vadd.f32 %v5246, %v5358
  %5360 = vmatmul.f32.gmra.mxu0 %v3529
  %v5361 = vpop.f32.mrf.mxu0
  %v5362 = vadd.f32 %v5249, %v5361
  %5363 = vmatmul.f32.gmra.mxu0 %v3538
  %v5364 = vpop.f32.mrf.mxu0
  %v5365 = vadd.f32 %v5252, %v5364
  %5366 = vmatmul.f32.gmra.mxu0 %v3547
  %v5367 = vpop.f32.mrf.mxu0
  %v5368 = vadd.f32 %v5255, %v5367
  %5369 = vmatmul.f32.gmra.mxu0 %v3556
  %v5370 = vpop.f32.mrf.mxu0
  %v5371 = vadd.f32 %v5258, %v5370
  %5372 = vmatmul.f32.gmra.mxu0 %v3565
  %v5373 = vpop.f32.mrf.mxu0
  %v5374 = vadd.f32 %v5261, %v5373
  %5375 = vmatmul.f32.gmra.mxu0 %v3574
  %v5376 = vpop.f32.mrf.mxu0
  %v5377 = vadd.f32 %v5264, %v5376
  %5378 = vmatmul.f32.gmra.mxu0 %v3583
  %v5379 = vpop.f32.mrf.mxu0
  %v5380 = vadd.f32 %v5267, %v5379
  %5381 = vmatmul.f32.gmra.mxu0 %v3592
  %v5382 = vpop.f32.mrf.mxu0
  %v5383 = vadd.f32 %v5270, %v5382
  %5384 = vmatmul.f32.gmra.mxu0 %v3601
  %v5385 = vpop.f32.mrf.mxu0
  %v5386 = vadd.f32 %v5273, %v5385
  %5387 = vmatmul.f32.gmra.mxu0 %v3610
  %v5388 = vpop.f32.mrf.mxu0
  %v5389 = vadd.f32 %v5276, %v5388
  %5390 = vmatmul.f32.gmra.mxu0 %v3619
  %v5391 = vpop.f32.mrf.mxu0
  %v5392 = vadd.f32 %v5279, %v5391
  %5393 = vmatmul.f32.gmra.mxu0 %v3628
  %v5394 = vpop.f32.mrf.mxu0
  %v5395 = vadd.f32 %v5282, %v5394
  %5396 = vmatmul.f32.gmra.mxu0 %v3637
  %v5397 = vpop.f32.mrf.mxu0
  %v5398 = vadd.f32 %v5285, %v5397
  %5399 = vmatmul.f32.gmra.mxu0 %v3646
  %v5400 = vpop.f32.mrf.mxu0
  %v5401 = vadd.f32 %v5288, %v5400
  %5402 = vmatmul.f32.gmra.mxu0 %v3655
  %v5403 = vpop.f32.mrf.mxu0
  %v5404 = vadd.f32 %v5291, %v5403
  %5405 = vmatmul.f32.gmra.mxu0 %v3664
  %v5406 = vpop.f32.mrf.mxu0
  %v5407 = vadd.f32 %v5294, %v5406
  %5408 = vmatmul.f32.gmra.mxu0 %v3673
  %v5409 = vpop.f32.mrf.mxu0
  %v5410 = vadd.f32 %v5297, %v5409
  %5411 = vmatmul.f32.gmra.mxu0 %v3682
  %v5412 = vpop.f32.mrf.mxu0
  %v5413 = vadd.f32 %v5300, %v5412
  %5414 = vmatmul.f32.gmra.mxu0 %v3691
  %v5415 = vpop.f32.mrf.mxu0
  %v5416 = vadd.f32 %v5303, %v5415
  %5417 = vmatmul.f32.gmra.mxu0 %v3700
  %v5418 = vpop.f32.mrf.mxu0
  %v5419 = vadd.f32 %v5306, %v5418
  %5420 = vmatmul.f32.gmra.mxu0 %v3709
  %v5421 = vpop.f32.mrf.mxu0
  %v5422 = vadd.f32 %v5309, %v5421
  %5423 = vmatmul.f32.gmra.mxu0 %v3718
  %v5424 = vpop.f32.mrf.mxu0
  %v5425 = vadd.f32 %v5312, %v5424
  %5426 = vmatmul.f32.gmra.mxu0 %v3727
  %v5427 = vpop.f32.mrf.mxu0
  %v5428 = vadd.f32 %v5315, %v5427
  %5429 = vmatmul.f32.gmra.mxu0 %v3736
  %v5430 = vpop.f32.mrf.mxu0
  %v5431 = vadd.f32 %v5318, %v5430
  %5432 = vmatmul.f32.gmra.mxu0 %v3745
  %v5433 = vpop.f32.mrf.mxu0
  %v5434 = vadd.f32 %v5321, %v5433
  %5435 = vmatmul.f32.gmra.mxu0 %v3754
  %v5436 = vpop.f32.mrf.mxu0
  %v5437 = vadd.f32 %v5324, %v5436
  %5438 = vmatmul.f32.gmra.mxu0 %v3763
  %v5439 = vpop.f32.mrf.mxu0
  %v5440 = vadd.f32 %v5327, %v5439
  %5441 = vmatmul.f32.gmra.mxu0 %v3772
  %v5442 = vpop.f32.mrf.mxu0
  %v5443 = vadd.f32 %v5330, %v5442
  %5444 = vmatmul.f32.gmra.mxu0 %v3781
  %v5445 = vpop.f32.mrf.mxu0
  %v5446 = vadd.f32 %v5333, %v5445
  %5447 = vdwg.mxu0
  %5448 = vmatpush.msra.mxu0 %v2998
  %5449 = vmatpush.msra.mxu0 %v2994
  %5450 = vmatpush.msra.mxu0 %v2990
  %5451 = vmatpush.msra.mxu0 %v2986
  %5452 = vmatpush.msra.mxu0 %v2982
  %5453 = vmatpush.msra.mxu0 %v2978
  %5454 = vmatpush.msra.mxu0 %v2974
  %5455 = vmatpush.msra.mxu0 %v2970
  %5456 = vmatpush.msra.mxu0 %v2966
  %5457 = vmatpush.msra.mxu0 %v2962
  %5458 = vmatpush.msra.mxu0 %v2958
  %5459 = vmatpush.msra.mxu0 %v2954
  %5460 = vmatpush.msra.mxu0 %v2950
  %5461 = vmatpush.msra.mxu0 %v2946
  %5462 = vmatpush.msra.mxu0 %v2942
  %5463 = vmatpush.msra.mxu0 %v2938
  %5464 = vmatmul.f32.gmra.mxu0 %v3503
  %v5465 = vpop.f32.mrf.mxu0
  %v5466 = vadd.f32 %v5353, %v5465
  %5467 = vmatmul.f32.gmra.mxu0 %v3512
  %v5468 = vpop.f32.mrf.mxu0
  %v5469 = vadd.f32 %v5356, %v5468
  %5470 = vmatmul.f32.gmra.mxu0 %v3521
  %v5471 = vpop.f32.mrf.mxu0
  %v5472 = vadd.f32 %v5359, %v5471
  %5473 = vmatmul.f32.gmra.mxu0 %v3530
  %v5474 = vpop.f32.mrf.mxu0
  %v5475 = vadd.f32 %v5362, %v5474
  %5476 = vmatmul.f32.gmra.mxu0 %v3539
  %v5477 = vpop.f32.mrf.mxu0
  %v5478 = vadd.f32 %v5365, %v5477
  %5479 = vmatmul.f32.gmra.mxu0 %v3548
  %v5480 = vpop.f32.mrf.mxu0
  %v5481 = vadd.f32 %v5368, %v5480
  %5482 = vmatmul.f32.gmra.mxu0 %v3557
  %v5483 = vpop.f32.mrf.mxu0
  %v5484 = vadd.f32 %v5371, %v5483
  %5485 = vmatmul.f32.gmra.mxu0 %v3566
  %v5486 = vpop.f32.mrf.mxu0
  %v5487 = vadd.f32 %v5374, %v5486
  %5488 = vmatmul.f32.gmra.mxu0 %v3575
  %v5489 = vpop.f32.mrf.mxu0
  %v5490 = vadd.f32 %v5377, %v5489
  %5491 = vmatmul.f32.gmra.mxu0 %v3584
  %v5492 = vpop.f32.mrf.mxu0
  %v5493 = vadd.f32 %v5380, %v5492
  %5494 = vmatmul.f32.gmra.mxu0 %v3593
  %v5495 = vpop.f32.mrf.mxu0
  %v5496 = vadd.f32 %v5383, %v5495
  %5497 = vmatmul.f32.gmra.mxu0 %v3602
  %v5498 = vpop.f32.mrf.mxu0
  %v5499 = vadd.f32 %v5386, %v5498
  %5500 = vmatmul.f32.gmra.mxu0 %v3611
  %v5501 = vpop.f32.mrf.mxu0
  %v5502 = vadd.f32 %v5389, %v5501
  %5503 = vmatmul.f32.gmra.mxu0 %v3620
  %v5504 = vpop.f32.mrf.mxu0
  %v5505 = vadd.f32 %v5392, %v5504
  %5506 = vmatmul.f32.gmra.mxu0 %v3629
  %v5507 = vpop.f32.mrf.mxu0
  %v5508 = vadd.f32 %v5395, %v5507
  %5509 = vmatmul.f32.gmra.mxu0 %v3638
  %v5510 = vpop.f32.mrf.mxu0
  %v5511 = vadd.f32 %v5398, %v5510
  %5512 = vmatmul.f32.gmra.mxu0 %v3647
  %v5513 = vpop.f32.mrf.mxu0
  %v5514 = vadd.f32 %v5401, %v5513
  %5515 = vmatmul.f32.gmra.mxu0 %v3656
  %v5516 = vpop.f32.mrf.mxu0
  %v5517 = vadd.f32 %v5404, %v5516
  %5518 = vmatmul.f32.gmra.mxu0 %v3665
  %v5519 = vpop.f32.mrf.mxu0
  %v5520 = vadd.f32 %v5407, %v5519
  %5521 = vmatmul.f32.gmra.mxu0 %v3674
  %v5522 = vpop.f32.mrf.mxu0
  %v5523 = vadd.f32 %v5410, %v5522
  %5524 = vmatmul.f32.gmra.mxu0 %v3683
  %v5525 = vpop.f32.mrf.mxu0
  %v5526 = vadd.f32 %v5413, %v5525
  %5527 = vmatmul.f32.gmra.mxu0 %v3692
  %v5528 = vpop.f32.mrf.mxu0
  %v5529 = vadd.f32 %v5416, %v5528
  %5530 = vmatmul.f32.gmra.mxu0 %v3701
  %v5531 = vpop.f32.mrf.mxu0
  %v5532 = vadd.f32 %v5419, %v5531
  %5533 = vmatmul.f32.gmra.mxu0 %v3710
  %v5534 = vpop.f32.mrf.mxu0
  %v5535 = vadd.f32 %v5422, %v5534
  %5536 = vmatmul.f32.gmra.mxu0 %v3719
  %v5537 = vpop.f32.mrf.mxu0
  %v5538 = vadd.f32 %v5425, %v5537
  %5539 = vmatmul.f32.gmra.mxu0 %v3728
  %v5540 = vpop.f32.mrf.mxu0
  %v5541 = vadd.f32 %v5428, %v5540
  %5542 = vmatmul.f32.gmra.mxu0 %v3737
  %v5543 = vpop.f32.mrf.mxu0
  %v5544 = vadd.f32 %v5431, %v5543
  %5545 = vmatmul.f32.gmra.mxu0 %v3746
  %v5546 = vpop.f32.mrf.mxu0
  %v5547 = vadd.f32 %v5434, %v5546
  %5548 = vmatmul.f32.gmra.mxu0 %v3755
  %v5549 = vpop.f32.mrf.mxu0
  %v5550 = vadd.f32 %v5437, %v5549
  %5551 = vmatmul.f32.gmra.mxu0 %v3764
  %v5552 = vpop.f32.mrf.mxu0
  %v5553 = vadd.f32 %v5440, %v5552
  %5554 = vmatmul.f32.gmra.mxu0 %v3773
  %v5555 = vpop.f32.mrf.mxu0
  %v5556 = vadd.f32 %v5443, %v5555
  %5557 = vmatmul.f32.gmra.mxu0 %v3782
  %v5558 = vpop.f32.mrf.mxu0
  %v5559 = vadd.f32 %v5446, %v5558
  %5560 = vdwg.mxu0
  %5561 = vmatpush.msra.mxu0 %v3111
  %5562 = vmatpush.msra.mxu0 %v3107
  %5563 = vmatpush.msra.mxu0 %v3103
  %5564 = vmatpush.msra.mxu0 %v3099
  %5565 = vmatpush.msra.mxu0 %v3095
  %5566 = vmatpush.msra.mxu0 %v3091
  %5567 = vmatpush.msra.mxu0 %v3087
  %5568 = vmatpush.msra.mxu0 %v3083
  %5569 = vmatpush.msra.mxu0 %v3079
  %5570 = vmatpush.msra.mxu0 %v3075
  %5571 = vmatpush.msra.mxu0 %v3071
  %5572 = vmatpush.msra.mxu0 %v3067
  %5573 = vmatpush.msra.mxu0 %v3063
  %5574 = vmatpush.msra.mxu0 %v3059
  %5575 = vmatpush.msra.mxu0 %v3055
  %5576 = vmatpush.msra.mxu0 %v3051
  %5577 = vmatmul.f32.gmra.mxu0 %v3504
  %v5578 = vpop.f32.mrf.mxu0
  %v5579 = vadd.f32 %v5466, %v5578
  %5580 = vmatmul.f32.gmra.mxu0 %v3513
  %v5581 = vpop.f32.mrf.mxu0
  %v5582 = vadd.f32 %v5469, %v5581
  %5583 = vmatmul.f32.gmra.mxu0 %v3522
  %v5584 = vpop.f32.mrf.mxu0
  %v5585 = vadd.f32 %v5472, %v5584
  %5586 = vmatmul.f32.gmra.mxu0 %v3531
  %v5587 = vpop.f32.mrf.mxu0
  %v5588 = vadd.f32 %v5475, %v5587
  %5589 = vmatmul.f32.gmra.mxu0 %v3540
  %v5590 = vpop.f32.mrf.mxu0
  %v5591 = vadd.f32 %v5478, %v5590
  %5592 = vmatmul.f32.gmra.mxu0 %v3549
  %v5593 = vpop.f32.mrf.mxu0
  %v5594 = vadd.f32 %v5481, %v5593
  %5595 = vmatmul.f32.gmra.mxu0 %v3558
  %v5596 = vpop.f32.mrf.mxu0
  %v5597 = vadd.f32 %v5484, %v5596
  %5598 = vmatmul.f32.gmra.mxu0 %v3567
  %v5599 = vpop.f32.mrf.mxu0
  %v5600 = vadd.f32 %v5487, %v5599
  %5601 = vmatmul.f32.gmra.mxu0 %v3576
  %v5602 = vpop.f32.mrf.mxu0
  %v5603 = vadd.f32 %v5490, %v5602
  %5604 = vmatmul.f32.gmra.mxu0 %v3585
  %v5605 = vpop.f32.mrf.mxu0
  %v5606 = vadd.f32 %v5493, %v5605
  %5607 = vmatmul.f32.gmra.mxu0 %v3594
  %v5608 = vpop.f32.mrf.mxu0
  %v5609 = vadd.f32 %v5496, %v5608
  %5610 = vmatmul.f32.gmra.mxu0 %v3603
  %v5611 = vpop.f32.mrf.mxu0
  %v5612 = vadd.f32 %v5499, %v5611
  %5613 = vmatmul.f32.gmra.mxu0 %v3612
  %v5614 = vpop.f32.mrf.mxu0
  %v5615 = vadd.f32 %v5502, %v5614
  %5616 = vmatmul.f32.gmra.mxu0 %v3621
  %v5617 = vpop.f32.mrf.mxu0
  %v5618 = vadd.f32 %v5505, %v5617
  %5619 = vmatmul.f32.gmra.mxu0 %v3630
  %v5620 = vpop.f32.mrf.mxu0
  %v5621 = vadd.f32 %v5508, %v5620
  %5622 = vmatmul.f32.gmra.mxu0 %v3639
  %v5623 = vpop.f32.mrf.mxu0
  %v5624 = vadd.f32 %v5511, %v5623
  %5625 = vmatmul.f32.gmra.mxu0 %v3648
  %v5626 = vpop.f32.mrf.mxu0
  %v5627 = vadd.f32 %v5514, %v5626
  %5628 = vmatmul.f32.gmra.mxu0 %v3657
  %v5629 = vpop.f32.mrf.mxu0
  %v5630 = vadd.f32 %v5517, %v5629
  %5631 = vmatmul.f32.gmra.mxu0 %v3666
  %v5632 = vpop.f32.mrf.mxu0
  %v5633 = vadd.f32 %v5520, %v5632
  %5634 = vmatmul.f32.gmra.mxu0 %v3675
  %v5635 = vpop.f32.mrf.mxu0
  %v5636 = vadd.f32 %v5523, %v5635
  %5637 = vmatmul.f32.gmra.mxu0 %v3684
  %v5638 = vpop.f32.mrf.mxu0
  %v5639 = vadd.f32 %v5526, %v5638
  %5640 = vmatmul.f32.gmra.mxu0 %v3693
  %v5641 = vpop.f32.mrf.mxu0
  %v5642 = vadd.f32 %v5529, %v5641
  %5643 = vmatmul.f32.gmra.mxu0 %v3702
  %v5644 = vpop.f32.mrf.mxu0
  %v5645 = vadd.f32 %v5532, %v5644
  %5646 = vmatmul.f32.gmra.mxu0 %v3711
  %v5647 = vpop.f32.mrf.mxu0
  %v5648 = vadd.f32 %v5535, %v5647
  %5649 = vmatmul.f32.gmra.mxu0 %v3720
  %v5650 = vpop.f32.mrf.mxu0
  %v5651 = vadd.f32 %v5538, %v5650
  %5652 = vmatmul.f32.gmra.mxu0 %v3729
  %v5653 = vpop.f32.mrf.mxu0
  %v5654 = vadd.f32 %v5541, %v5653
  %5655 = vmatmul.f32.gmra.mxu0 %v3738
  %v5656 = vpop.f32.mrf.mxu0
  %v5657 = vadd.f32 %v5544, %v5656
  %5658 = vmatmul.f32.gmra.mxu0 %v3747
  %v5659 = vpop.f32.mrf.mxu0
  %v5660 = vadd.f32 %v5547, %v5659
  %5661 = vmatmul.f32.gmra.mxu0 %v3756
  %v5662 = vpop.f32.mrf.mxu0
  %v5663 = vadd.f32 %v5550, %v5662
  %5664 = vmatmul.f32.gmra.mxu0 %v3765
  %v5665 = vpop.f32.mrf.mxu0
  %v5666 = vadd.f32 %v5553, %v5665
  %5667 = vmatmul.f32.gmra.mxu0 %v3774
  %v5668 = vpop.f32.mrf.mxu0
  %v5669 = vadd.f32 %v5556, %v5668
  %5670 = vmatmul.f32.gmra.mxu0 %v3783
  %v5671 = vpop.f32.mrf.mxu0
  %v5672 = vadd.f32 %v5559, %v5671
  %5673 = vdwg.mxu0
  %5674 = vmatpush.msra.mxu0 %v3224
  %5675 = vmatpush.msra.mxu0 %v3220
  %5676 = vmatpush.msra.mxu0 %v3216
  %5677 = vmatpush.msra.mxu0 %v3212
  %5678 = vmatpush.msra.mxu0 %v3208
  %5679 = vmatpush.msra.mxu0 %v3204
  %5680 = vmatpush.msra.mxu0 %v3200
  %5681 = vmatpush.msra.mxu0 %v3196
  %5682 = vmatpush.msra.mxu0 %v3192
  %5683 = vmatpush.msra.mxu0 %v3188
  %5684 = vmatpush.msra.mxu0 %v3184
  %5685 = vmatpush.msra.mxu0 %v3180
  %5686 = vmatpush.msra.mxu0 %v3176
  %5687 = vmatpush.msra.mxu0 %v3172
  %5688 = vmatpush.msra.mxu0 %v3168
  %5689 = vmatpush.msra.mxu0 %v3164
  %5690 = vmatmul.f32.gmra.mxu0 %v3505
  %v5691 = vpop.f32.mrf.mxu0
  %v5692 = vadd.f32 %v5579, %v5691
  %5693 = vmatmul.f32.gmra.mxu0 %v3514
  %v5694 = vpop.f32.mrf.mxu0
  %v5695 = vadd.f32 %v5582, %v5694
  %5696 = vmatmul.f32.gmra.mxu0 %v3523
  %v5697 = vpop.f32.mrf.mxu0
  %v5698 = vadd.f32 %v5585, %v5697
  %5699 = vmatmul.f32.gmra.mxu0 %v3532
  %v5700 = vpop.f32.mrf.mxu0
  %v5701 = vadd.f32 %v5588, %v5700
  %5702 = vmatmul.f32.gmra.mxu0 %v3541
  %v5703 = vpop.f32.mrf.mxu0
  %v5704 = vadd.f32 %v5591, %v5703
  %5705 = vmatmul.f32.gmra.mxu0 %v3550
  %v5706 = vpop.f32.mrf.mxu0
  %v5707 = vadd.f32 %v5594, %v5706
  %5708 = vmatmul.f32.gmra.mxu0 %v3559
  %v5709 = vpop.f32.mrf.mxu0
  %v5710 = vadd.f32 %v5597, %v5709
  %5711 = vmatmul.f32.gmra.mxu0 %v3568
  %v5712 = vpop.f32.mrf.mxu0
  %v5713 = vadd.f32 %v5600, %v5712
  %5714 = vmatmul.f32.gmra.mxu0 %v3577
  %v5715 = vpop.f32.mrf.mxu0
  %v5716 = vadd.f32 %v5603, %v5715
  %5717 = vmatmul.f32.gmra.mxu0 %v3586
  %v5718 = vpop.f32.mrf.mxu0
  %v5719 = vadd.f32 %v5606, %v5718
  %5720 = vmatmul.f32.gmra.mxu0 %v3595
  %v5721 = vpop.f32.mrf.mxu0
  %v5722 = vadd.f32 %v5609, %v5721
  %5723 = vmatmul.f32.gmra.mxu0 %v3604
  %v5724 = vpop.f32.mrf.mxu0
  %v5725 = vadd.f32 %v5612, %v5724
  %5726 = vmatmul.f32.gmra.mxu0 %v3613
  %v5727 = vpop.f32.mrf.mxu0
  %v5728 = vadd.f32 %v5615, %v5727
  %5729 = vmatmul.f32.gmra.mxu0 %v3622
  %v5730 = vpop.f32.mrf.mxu0
  %v5731 = vadd.f32 %v5618, %v5730
  %5732 = vmatmul.f32.gmra.mxu0 %v3631
  %v5733 = vpop.f32.mrf.mxu0
  %v5734 = vadd.f32 %v5621, %v5733
  %5735 = vmatmul.f32.gmra.mxu0 %v3640
  %v5736 = vpop.f32.mrf.mxu0
  %v5737 = vadd.f32 %v5624, %v5736
  %5738 = vmatmul.f32.gmra.mxu0 %v3649
  %v5739 = vpop.f32.mrf.mxu0
  %v5740 = vadd.f32 %v5627, %v5739
  %5741 = vmatmul.f32.gmra.mxu0 %v3658
  %v5742 = vpop.f32.mrf.mxu0
  %v5743 = vadd.f32 %v5630, %v5742
  %5744 = vmatmul.f32.gmra.mxu0 %v3667
  %v5745 = vpop.f32.mrf.mxu0
  %v5746 = vadd.f32 %v5633, %v5745
  %5747 = vmatmul.f32.gmra.mxu0 %v3676
  %v5748 = vpop.f32.mrf.mxu0
  %v5749 = vadd.f32 %v5636, %v5748
  %5750 = vmatmul.f32.gmra.mxu0 %v3685
  %v5751 = vpop.f32.mrf.mxu0
  %v5752 = vadd.f32 %v5639, %v5751
  %5753 = vmatmul.f32.gmra.mxu0 %v3694
  %v5754 = vpop.f32.mrf.mxu0
  %v5755 = vadd.f32 %v5642, %v5754
  %5756 = vmatmul.f32.gmra.mxu0 %v3703
  %v5757 = vpop.f32.mrf.mxu0
  %v5758 = vadd.f32 %v5645, %v5757
  %5759 = vmatmul.f32.gmra.mxu0 %v3712
  %v5760 = vpop.f32.mrf.mxu0
  %v5761 = vadd.f32 %v5648, %v5760
  %5762 = vmatmul.f32.gmra.mxu0 %v3721
  %v5763 = vpop.f32.mrf.mxu0
  %v5764 = vadd.f32 %v5651, %v5763
  %5765 = vmatmul.f32.gmra.mxu0 %v3730
  %v5766 = vpop.f32.mrf.mxu0
  %v5767 = vadd.f32 %v5654, %v5766
  %5768 = vmatmul.f32.gmra.mxu0 %v3739
  %v5769 = vpop.f32.mrf.mxu0
  %v5770 = vadd.f32 %v5657, %v5769
  %5771 = vmatmul.f32.gmra.mxu0 %v3748
  %v5772 = vpop.f32.mrf.mxu0
  %v5773 = vadd.f32 %v5660, %v5772
  %5774 = vmatmul.f32.gmra.mxu0 %v3757
  %v5775 = vpop.f32.mrf.mxu0
  %v5776 = vadd.f32 %v5663, %v5775
  %5777 = vmatmul.f32.gmra.mxu0 %v3766
  %v5778 = vpop.f32.mrf.mxu0
  %v5779 = vadd.f32 %v5666, %v5778
  %5780 = vmatmul.f32.gmra.mxu0 %v3775
  %v5781 = vpop.f32.mrf.mxu0
  %v5782 = vadd.f32 %v5669, %v5781
  %5783 = vmatmul.f32.gmra.mxu0 %v3784
  %v5784 = vpop.f32.mrf.mxu0
  %v5785 = vadd.f32 %v5672, %v5784
  %5786 = vdwg.mxu0
  %5787 = vmatpush.msra.mxu0 %v3336
  %5788 = vmatpush.msra.mxu0 %v3332
  %5789 = vmatpush.msra.mxu0 %v3328
  %5790 = vmatpush.msra.mxu0 %v3324
  %5791 = vmatpush.msra.mxu0 %v3320
  %5792 = vmatpush.msra.mxu0 %v3316
  %5793 = vmatpush.msra.mxu0 %v3312
  %5794 = vmatpush.msra.mxu0 %v3308
  %5795 = vmatpush.msra.mxu0 %v3304
  %5796 = vmatpush.msra.mxu0 %v3300
  %5797 = vmatpush.msra.mxu0 %v3296
  %5798 = vmatpush.msra.mxu0 %v3292
  %5799 = vmatpush.msra.mxu0 %v3288
  %5800 = vmatpush.msra.mxu0 %v3284
  %5801 = vmatpush.msra.mxu0 %v3280
  %5802 = vmatpush.msra.mxu0 %v3276
  %5803 = vmatmul.f32.gmra.mxu0 %v3506
  %v5804 = vpop.f32.mrf.mxu0
  %v5805 = vadd.f32 %v5692, %v5804
  %5806 = vmatmul.f32.gmra.mxu0 %v3515
  %v5807 = vpop.f32.mrf.mxu0
  %v5808 = vadd.f32 %v5695, %v5807
  %5809 = vmatmul.f32.gmra.mxu0 %v3524
  %v5810 = vpop.f32.mrf.mxu0
  %v5811 = vadd.f32 %v5698, %v5810
  %5812 = vmatmul.f32.gmra.mxu0 %v3533
  %v5813 = vpop.f32.mrf.mxu0
  %v5814 = vadd.f32 %v5701, %v5813
  %5815 = vmatmul.f32.gmra.mxu0 %v3542
  %v5816 = vpop.f32.mrf.mxu0
  %v5817 = vadd.f32 %v5704, %v5816
  %5818 = vmatmul.f32.gmra.mxu0 %v3551
  %v5819 = vpop.f32.mrf.mxu0
  %v5820 = vadd.f32 %v5707, %v5819
  %5821 = vmatmul.f32.gmra.mxu0 %v3560
  %v5822 = vpop.f32.mrf.mxu0
  %v5823 = vadd.f32 %v5710, %v5822
  %5824 = vmatmul.f32.gmra.mxu0 %v3569
  %v5825 = vpop.f32.mrf.mxu0
  %v5826 = vadd.f32 %v5713, %v5825
  %5827 = vmatmul.f32.gmra.mxu0 %v3578
  %v5828 = vpop.f32.mrf.mxu0
  %v5829 = vadd.f32 %v5716, %v5828
  %5830 = vmatmul.f32.gmra.mxu0 %v3587
  %v5831 = vpop.f32.mrf.mxu0
  %v5832 = vadd.f32 %v5719, %v5831
  %5833 = vmatmul.f32.gmra.mxu0 %v3596
  %v5834 = vpop.f32.mrf.mxu0
  %v5835 = vadd.f32 %v5722, %v5834
  %5836 = vmatmul.f32.gmra.mxu0 %v3605
  %v5837 = vpop.f32.mrf.mxu0
  %v5838 = vadd.f32 %v5725, %v5837
  %5839 = vmatmul.f32.gmra.mxu0 %v3614
  %v5840 = vpop.f32.mrf.mxu0
  %v5841 = vadd.f32 %v5728, %v5840
  %5842 = vmatmul.f32.gmra.mxu0 %v3623
  %v5843 = vpop.f32.mrf.mxu0
  %v5844 = vadd.f32 %v5731, %v5843
  %5845 = vmatmul.f32.gmra.mxu0 %v3632
  %v5846 = vpop.f32.mrf.mxu0
  %v5847 = vadd.f32 %v5734, %v5846
  %5848 = vmatmul.f32.gmra.mxu0 %v3641
  %v5849 = vpop.f32.mrf.mxu0
  %v5850 = vadd.f32 %v5737, %v5849
  %5851 = vmatmul.f32.gmra.mxu0 %v3650
  %v5852 = vpop.f32.mrf.mxu0
  %v5853 = vadd.f32 %v5740, %v5852
  %5854 = vmatmul.f32.gmra.mxu0 %v3659
  %v5855 = vpop.f32.mrf.mxu0
  %v5856 = vadd.f32 %v5743, %v5855
  %5857 = vmatmul.f32.gmra.mxu0 %v3668
  %v5858 = vpop.f32.mrf.mxu0
  %v5859 = vadd.f32 %v5746, %v5858
  %5860 = vmatmul.f32.gmra.mxu0 %v3677
  %v5861 = vpop.f32.mrf.mxu0
  %v5862 = vadd.f32 %v5749, %v5861
  %5863 = vmatmul.f32.gmra.mxu0 %v3686
  %v5864 = vpop.f32.mrf.mxu0
  %v5865 = vadd.f32 %v5752, %v5864
  %5866 = vmatmul.f32.gmra.mxu0 %v3695
  %v5867 = vpop.f32.mrf.mxu0
  %v5868 = vadd.f32 %v5755, %v5867
  %5869 = vmatmul.f32.gmra.mxu0 %v3704
  %v5870 = vpop.f32.mrf.mxu0
  %v5871 = vadd.f32 %v5758, %v5870
  %5872 = vmatmul.f32.gmra.mxu0 %v3713
  %v5873 = vpop.f32.mrf.mxu0
  %v5874 = vadd.f32 %v5761, %v5873
  %5875 = vmatmul.f32.gmra.mxu0 %v3722
  %v5876 = vpop.f32.mrf.mxu0
  %v5877 = vadd.f32 %v5764, %v5876
  %5878 = vmatmul.f32.gmra.mxu0 %v3731
  %v5879 = vpop.f32.mrf.mxu0
  %v5880 = vadd.f32 %v5767, %v5879
  %5881 = vmatmul.f32.gmra.mxu0 %v3740
  %v5882 = vpop.f32.mrf.mxu0
  %v5883 = vadd.f32 %v5770, %v5882
  %5884 = vmatmul.f32.gmra.mxu0 %v3749
  %v5885 = vpop.f32.mrf.mxu0
  %v5886 = vadd.f32 %v5773, %v5885
  %5887 = vmatmul.f32.gmra.mxu0 %v3758
  %v5888 = vpop.f32.mrf.mxu0
  %v5889 = vadd.f32 %v5776, %v5888
  %5890 = vmatmul.f32.gmra.mxu0 %v3767
  %v5891 = vpop.f32.mrf.mxu0
  %v5892 = vadd.f32 %v5779, %v5891
  %5893 = vmatmul.f32.gmra.mxu0 %v3776
  %v5894 = vpop.f32.mrf.mxu0
  %v5895 = vadd.f32 %v5782, %v5894
  %5896 = vmatmul.f32.gmra.mxu0 %v3785
  %v5897 = vpop.f32.mrf.mxu0
  %v5898 = vadd.f32 %v5785, %v5897
  %5899 = vdwg.mxu0
  %5900 = vmatpush.msra.mxu0 %v3449
  %5901 = vmatpush.msra.mxu0 %v3445
  %5902 = vmatpush.msra.mxu0 %v3441
  %5903 = vmatpush.msra.mxu0 %v3437
  %5904 = vmatpush.msra.mxu0 %v3433
  %5905 = vmatpush.msra.mxu0 %v3429
  %5906 = vmatpush.msra.mxu0 %v3425
  %5907 = vmatpush.msra.mxu0 %v3421
  %5908 = vmatpush.msra.mxu0 %v3417
  %5909 = vmatpush.msra.mxu0 %v3413
  %5910 = vmatpush.msra.mxu0 %v3409
  %5911 = vmatpush.msra.mxu0 %v3405
  %5912 = vmatpush.msra.mxu0 %v3401
  %5913 = vmatpush.msra.mxu0 %v3397
  %5914 = vmatpush.msra.mxu0 %v3393
  %5915 = vmatpush.msra.mxu0 %v3389
  %5916 = vmatmul.f32.gmra.mxu0 %v3507
  %v5917 = vpop.f32.mrf.mxu0
  %v5918 = vadd.f32 %v5805, %v5917
  %5919 = vmatmul.f32.gmra.mxu0 %v3516
  %v5920 = vpop.f32.mrf.mxu0
  %v5921 = vadd.f32 %v5808, %v5920
  %5922 = vmatmul.f32.gmra.mxu0 %v3525
  %v5923 = vpop.f32.mrf.mxu0
  %v5924 = vadd.f32 %v5811, %v5923
  %5925 = vmatmul.f32.gmra.mxu0 %v3534
  %v5926 = vpop.f32.mrf.mxu0
  %v5927 = vadd.f32 %v5814, %v5926
  %5928 = vmatmul.f32.gmra.mxu0 %v3543
  %v5929 = vpop.f32.mrf.mxu0
  %v5930 = vadd.f32 %v5817, %v5929
  %5931 = vmatmul.f32.gmra.mxu0 %v3552
  %v5932 = vpop.f32.mrf.mxu0
  %v5933 = vadd.f32 %v5820, %v5932
  %5934 = vmatmul.f32.gmra.mxu0 %v3561
  %v5935 = vpop.f32.mrf.mxu0
  %v5936 = vadd.f32 %v5823, %v5935
  %5937 = vmatmul.f32.gmra.mxu0 %v3570
  %v5938 = vpop.f32.mrf.mxu0
  %v5939 = vadd.f32 %v5826, %v5938
  %5940 = vmatmul.f32.gmra.mxu0 %v3579
  %v5941 = vpop.f32.mrf.mxu0
  %v5942 = vadd.f32 %v5829, %v5941
  %5943 = vmatmul.f32.gmra.mxu0 %v3588
  %v5944 = vpop.f32.mrf.mxu0
  %v5945 = vadd.f32 %v5832, %v5944
  %5946 = vmatmul.f32.gmra.mxu0 %v3597
  %v5947 = vpop.f32.mrf.mxu0
  %v5948 = vadd.f32 %v5835, %v5947
  %5949 = vmatmul.f32.gmra.mxu0 %v3606
  %v5950 = vpop.f32.mrf.mxu0
  %v5951 = vadd.f32 %v5838, %v5950
  %5952 = vmatmul.f32.gmra.mxu0 %v3615
  %v5953 = vpop.f32.mrf.mxu0
  %v5954 = vadd.f32 %v5841, %v5953
  %5955 = vmatmul.f32.gmra.mxu0 %v3624
  %v5956 = vpop.f32.mrf.mxu0
  %v5957 = vadd.f32 %v5844, %v5956
  %5958 = vmatmul.f32.gmra.mxu0 %v3633
  %v5959 = vpop.f32.mrf.mxu0
  %v5960 = vadd.f32 %v5847, %v5959
  %5961 = vmatmul.f32.gmra.mxu0 %v3642
  %v5962 = vpop.f32.mrf.mxu0
  %v5963 = vadd.f32 %v5850, %v5962
  %5964 = vmatmul.f32.gmra.mxu0 %v3651
  %v5965 = vpop.f32.mrf.mxu0
  %v5966 = vadd.f32 %v5853, %v5965
  %5967 = vmatmul.f32.gmra.mxu0 %v3660
  %v5968 = vpop.f32.mrf.mxu0
  %v5969 = vadd.f32 %v5856, %v5968
  %5970 = vmatmul.f32.gmra.mxu0 %v3669
  %v5971 = vpop.f32.mrf.mxu0
  %v5972 = vadd.f32 %v5859, %v5971
  %5973 = vmatmul.f32.gmra.mxu0 %v3678
  %v5974 = vpop.f32.mrf.mxu0
  %v5975 = vadd.f32 %v5862, %v5974
  %5976 = vmatmul.f32.gmra.mxu0 %v3687
  %v5977 = vpop.f32.mrf.mxu0
  %v5978 = vadd.f32 %v5865, %v5977
  %5979 = vmatmul.f32.gmra.mxu0 %v3696
  %v5980 = vpop.f32.mrf.mxu0
  %v5981 = vadd.f32 %v5868, %v5980
  %5982 = vmatmul.f32.gmra.mxu0 %v3705
  %v5983 = vpop.f32.mrf.mxu0
  %v5984 = vadd.f32 %v5871, %v5983
  %5985 = vmatmul.f32.gmra.mxu0 %v3714
  %v5986 = vpop.f32.mrf.mxu0
  %v5987 = vadd.f32 %v5874, %v5986
  %5988 = vmatmul.f32.gmra.mxu0 %v3723
  %v5989 = vpop.f32.mrf.mxu0
  %v5990 = vadd.f32 %v5877, %v5989
  %5991 = vmatmul.f32.gmra.mxu0 %v3732
  %v5992 = vpop.f32.mrf.mxu0
  %v5993 = vadd.f32 %v5880, %v5992
  %5994 = vmatmul.f32.gmra.mxu0 %v3741
  %v5995 = vpop.f32.mrf.mxu0
  %v5996 = vadd.f32 %v5883, %v5995
  %5997 = vmatmul.f32.gmra.mxu0 %v3750
  %v5998 = vpop.f32.mrf.mxu0
  %v5999 = vadd.f32 %v5886, %v5998
  %6000 = vmatmul.f32.gmra.mxu0 %v3759
  %v6001 = vpop.f32.mrf.mxu0
  %v6002 = vadd.f32 %v5889, %v6001
  %6003 = vmatmul.f32.gmra.mxu0 %v3768
  %v6004 = vpop.f32.mrf.mxu0
  %v6005 = vadd.f32 %v5892, %v6004
  %6006 = vmatmul.f32.gmra.mxu0 %v3777
  %v6007 = vpop.f32.mrf.mxu0
  %v6008 = vadd.f32 %v5895, %v6007
  %6009 = vmatmul.f32.gmra.mxu0 %v3786
  %v6010 = vpop.f32.mrf.mxu0
  %v6011 = vadd.f32 %v5898, %v6010
  %6012 = vdwg.mxu0
  %v6013 = vmax.f32 %v4901, 0.0
  %v6014 = vmax.f32 %v5918, 0.0
  %v6015 = vmax.f32 %v4904, 0.0
  %v6016 = vmax.f32 %v5921, 0.0
  %v6017 = vmax.f32 %v4907, 0.0
  %v6018 = vmax.f32 %v5924, 0.0
  %v6019 = vmax.f32 %v4910, 0.0
  %v6020 = vmax.f32 %v5927, 0.0
  %v6021 = vmax.f32 %v4913, 0.0
  %v6022 = vmax.f32 %v5930, 0.0
  %v6023 = vmax.f32 %v4916, 0.0
  %v6024 = vmax.f32 %v5933, 0.0
  %v6025 = vmax.f32 %v4919, 0.0
  %v6026 = vmax.f32 %v5936, 0.0
  %v6027 = vmax.f32 %v4922, 0.0
  %v6028 = vmax.f32 %v5939, 0.0
  %v6029 = vmax.f32 %v4925, 0.0
  %v6030 = vmax.f32 %v5942, 0.0
  %v6031 = vmax.f32 %v4928, 0.0
  %v6032 = vmax.f32 %v5945, 0.0
  %v6033 = vmax.f32 %v4931, 0.0
  %v6034 = vmax.f32 %v5948, 0.0
  %v6035 = vmax.f32 %v4934, 0.0
  %v6036 = vmax.f32 %v5951, 0.0
  %v6037 = vmax.f32 %v4937, 0.0
  %v6038 = vmax.f32 %v5954, 0.0
  %v6039 = vmax.f32 %v4940, 0.0
  %v6040 = vmax.f32 %v5957, 0.0
  %v6041 = vmax.f32 %v4943, 0.0
  %v6042 = vmax.f32 %v5960, 0.0
  %v6043 = vmax.f32 %v4946, 0.0
  %v6044 = vmax.f32 %v5963, 0.0
  %v6045 = vmax.f32 %v4949, 0.0
  %v6046 = vmax.f32 %v5966, 0.0
  %v6047 = vmax.f32 %v4952, 0.0
  %v6048 = vmax.f32 %v5969, 0.0
  %v6049 = vmax.f32 %v4955, 0.0
  %v6050 = vmax.f32 %v5972, 0.0
  %v6051 = vmax.f32 %v4958, 0.0
  %v6052 = vmax.f32 %v5975, 0.0
  %v6053 = vmax.f32 %v4961, 0.0
  %v6054 = vmax.f32 %v5978, 0.0
  %v6055 = vmax.f32 %v4964, 0.0
  %v6056 = vmax.f32 %v5981, 0.0
  %v6057 = vmax.f32 %v4967, 0.0
  %v6058 = vmax.f32 %v5984, 0.0
  %v6059 = vmax.f32 %v4970, 0.0
  %v6060 = vmax.f32 %v5987, 0.0
  %v6061 = vmax.f32 %v4973, 0.0
  %v6062 = vmax.f32 %v5990, 0.0
  %v6063 = vmax.f32 %v4976, 0.0
  %v6064 = vmax.f32 %v5993, 0.0
  %v6065 = vmax.f32 %v4979, 0.0
  %v6066 = vmax.f32 %v5996, 0.0
  %v6067 = vmax.f32 %v4982, 0.0
  %v6068 = vmax.f32 %v5999, 0.0
  %v6069 = vmax.f32 %v4985, 0.0
  %v6070 = vmax.f32 %v6002, 0.0
  %v6071 = vmax.f32 %v4988, 0.0
  %v6072 = vmax.f32 %v6005, 0.0
  %v6073 = vmax.f32 %v4991, 0.0
  %v6074 = vmax.f32 %v6008, 0.0
  %v6075 = vmax.f32 %v4994, 0.0
  %v6076 = vmax.f32 %v6011, 0.0
  %6141 = vrot.lane.b32.xlu0 %v6013, 127
  %v6142 = vpop.permute.xlu0 %6141
  %6143 = vrot.lane.b32.xlu0 %v6014, 127
  %v6144 = vpop.permute.xlu0 %6143
  %6145 = vrot.lane.b32.xlu0 %v6015, 127
  %v6146 = vpop.permute.xlu0 %6145
  %6147 = vrot.lane.b32.xlu0 %v6016, 127
  %v6148 = vpop.permute.xlu0 %6147
  %6149 = vrot.lane.b32.xlu0 %v6017, 127
  %v6150 = vpop.permute.xlu0 %6149
  %6151 = vrot.lane.b32.xlu0 %v6018, 127
  %v6152 = vpop.permute.xlu0 %6151
  %6153 = vrot.lane.b32.xlu0 %v6019, 127
  %v6154 = vpop.permute.xlu0 %6153
  %6155 = vrot.lane.b32.xlu0 %v6020, 127
  %v6156 = vpop.permute.xlu0 %6155
  %6157 = vrot.lane.b32.xlu0 %v6021, 127
  %v6158 = vpop.permute.xlu0 %6157
  %6159 = vrot.lane.b32.xlu0 %v6022, 127
  %v6160 = vpop.permute.xlu0 %6159
  %6161 = vrot.lane.b32.xlu0 %v6023, 127
  %v6162 = vpop.permute.xlu0 %6161
  %6163 = vrot.lane.b32.xlu0 %v6024, 127
  %v6164 = vpop.permute.xlu0 %6163
  %6165 = vrot.lane.b32.xlu0 %v6025, 127
  %v6166 = vpop.permute.xlu0 %6165
  %6167 = vrot.lane.b32.xlu0 %v6026, 127
  %v6168 = vpop.permute.xlu0 %6167
  %6169 = vrot.lane.b32.xlu0 %v6027, 127
  %v6170 = vpop.permute.xlu0 %6169
  %6171 = vrot.lane.b32.xlu0 %v6028, 127
  %v6172 = vpop.permute.xlu0 %6171
  %6173 = vrot.lane.b32.xlu0 %v6029, 127
  %v6174 = vpop.permute.xlu0 %6173
  %6175 = vrot.lane.b32.xlu0 %v6030, 127
  %v6176 = vpop.permute.xlu0 %6175
  %6177 = vrot.lane.b32.xlu0 %v6031, 127
  %v6178 = vpop.permute.xlu0 %6177
  %6179 = vrot.lane.b32.xlu0 %v6032, 127
  %v6180 = vpop.permute.xlu0 %6179
  %6181 = vrot.lane.b32.xlu0 %v6033, 127
  %v6182 = vpop.permute.xlu0 %6181
  %6183 = vrot.lane.b32.xlu0 %v6034, 127
  %v6184 = vpop.permute.xlu0 %6183
  %6185 = vrot.lane.b32.xlu0 %v6035, 127
  %v6186 = vpop.permute.xlu0 %6185
  %6187 = vrot.lane.b32.xlu0 %v6036, 127
  %v6188 = vpop.permute.xlu0 %6187
  %6189 = vrot.lane.b32.xlu0 %v6037, 127
  %v6190 = vpop.permute.xlu0 %6189
  %6191 = vrot.lane.b32.xlu0 %v6038, 127
  %v6192 = vpop.permute.xlu0 %6191
  %6193 = vrot.lane.b32.xlu0 %v6039, 127
  %v6194 = vpop.permute.xlu0 %6193
  %6195 = vrot.lane.b32.xlu0 %v6040, 127
  %v6196 = vpop.permute.xlu0 %6195
  %6197 = vrot.lane.b32.xlu0 %v6041, 127
  %v6198 = vpop.permute.xlu0 %6197
  %6199 = vrot.lane.b32.xlu0 %v6042, 127
  %v6200 = vpop.permute.xlu0 %6199
  %6201 = vrot.lane.b32.xlu0 %v6043, 127
  %v6202 = vpop.permute.xlu0 %6201
  %6203 = vrot.lane.b32.xlu0 %v6044, 127
  %v6204 = vpop.permute.xlu0 %6203
  %6205 = vrot.lane.b32.xlu0 %v6045, 127
  %v6206 = vpop.permute.xlu0 %6205
  %6207 = vrot.lane.b32.xlu0 %v6046, 127
  %v6208 = vpop.permute.xlu0 %6207
  %6209 = vrot.lane.b32.xlu0 %v6047, 127
  %v6210 = vpop.permute.xlu0 %6209
  %6211 = vrot.lane.b32.xlu0 %v6048, 127
  %v6212 = vpop.permute.xlu0 %6211
  %6213 = vrot.lane.b32.xlu0 %v6049, 127
  %v6214 = vpop.permute.xlu0 %6213
  %6215 = vrot.lane.b32.xlu0 %v6050, 127
  %v6216 = vpop.permute.xlu0 %6215
  %6217 = vrot.lane.b32.xlu0 %v6051, 127
  %v6218 = vpop.permute.xlu0 %6217
  %6219 = vrot.lane.b32.xlu0 %v6052, 127
  %v6220 = vpop.permute.xlu0 %6219
  %6221 = vrot.lane.b32.xlu0 %v6053, 127
  %v6222 = vpop.permute.xlu0 %6221
  %6223 = vrot.lane.b32.xlu0 %v6054, 127
  %v6224 = vpop.permute.xlu0 %6223
  %6225 = vrot.lane.b32.xlu0 %v6055, 127
  %v6226 = vpop.permute.xlu0 %6225
  %6227 = vrot.lane.b32.xlu0 %v6056, 127
  %v6228 = vpop.permute.xlu0 %6227
  %6229 = vrot.lane.b32.xlu0 %v6057, 127
  %v6230 = vpop.permute.xlu0 %6229
  %6231 = vrot.lane.b32.xlu0 %v6058, 127
  %v6232 = vpop.permute.xlu0 %6231
  %6233 = vrot.lane.b32.xlu0 %v6059, 127
  %v6234 = vpop.permute.xlu0 %6233
  %6235 = vrot.lane.b32.xlu0 %v6060, 127
  %v6236 = vpop.permute.xlu0 %6235
  %6237 = vrot.lane.b32.xlu0 %v6061, 127
  %v6238 = vpop.permute.xlu0 %6237
  %6239 = vrot.lane.b32.xlu0 %v6062, 127
  %v6240 = vpop.permute.xlu0 %6239
  %6241 = vrot.lane.b32.xlu0 %v6063, 127
  %v6242 = vpop.permute.xlu0 %6241
  %6243 = vrot.lane.b32.xlu0 %v6064, 127
  %v6244 = vpop.permute.xlu0 %6243
  %6245 = vrot.lane.b32.xlu0 %v6065, 127
  %v6246 = vpop.permute.xlu0 %6245
  %6247 = vrot.lane.b32.xlu0 %v6066, 127
  %v6248 = vpop.permute.xlu0 %6247
  %6249 = vrot.lane.b32.xlu0 %v6067, 127
  %v6250 = vpop.permute.xlu0 %6249
  %6251 = vrot.lane.b32.xlu0 %v6068, 127
  %v6252 = vpop.permute.xlu0 %6251
  %6253 = vrot.lane.b32.xlu0 %v6069, 127
  %v6254 = vpop.permute.xlu0 %6253
  %6255 = vrot.lane.b32.xlu0 %v6070, 127
  %v6256 = vpop.permute.xlu0 %6255
  %6257 = vrot.lane.b32.xlu0 %v6071, 127
  %v6258 = vpop.permute.xlu0 %6257
  %6259 = vrot.lane.b32.xlu0 %v6072, 127
  %v6260 = vpop.permute.xlu0 %6259
  %6261 = vrot.lane.b32.xlu0 %v6073, 127
  %v6262 = vpop.permute.xlu0 %6261
  %6263 = vrot.lane.b32.xlu0 %v6074, 127
  %v6264 = vpop.permute.xlu0 %6263
  %6265 = vrot.lane.b32.xlu0 %v6075, 127
  %v6266 = vpop.permute.xlu0 %6265
  %6267 = vrot.lane.b32.xlu0 %v6076, 127
  %v6268 = vpop.permute.xlu0 %6267
  %v6269 = vsel %vm59, %v6142, %v6144
  %v6270 = vsel %vm59, %v6146, %v6148
  %v6271 = vsel %vm59, %v6150, %v6152
  %v6272 = vsel %vm59, %v6154, %v6156
  %v6273 = vsel %vm59, %v6158, %v6160
  %v6274 = vsel %vm59, %v6162, %v6164
  %v6275 = vsel %vm59, %v6166, %v6168
  %v6276 = vsel %vm59, %v6170, %v6172
  %v6277 = vsel %vm59, %v6174, %v6176
  %v6278 = vsel %vm59, %v6178, %v6180
  %v6279 = vsel %vm59, %v6182, %v6184
  %v6280 = vsel %vm59, %v6186, %v6188
  %v6281 = vsel %vm59, %v6190, %v6192
  %v6282 = vsel %vm59, %v6194, %v6196
  %v6283 = vsel %vm59, %v6198, %v6200
  %v6284 = vsel %vm59, %v6202, %v6204
  %v6285 = vsel %vm59, %v6206, %v6208
  %v6286 = vsel %vm59, %v6210, %v6212
  %v6287 = vsel %vm59, %v6214, %v6216
  %v6288 = vsel %vm59, %v6218, %v6220
  %v6289 = vsel %vm59, %v6222, %v6224
  %v6290 = vsel %vm59, %v6226, %v6228
  %v6291 = vsel %vm59, %v6230, %v6232
  %v6292 = vsel %vm59, %v6234, %v6236
  %v6293 = vsel %vm59, %v6238, %v6240
  %v6294 = vsel %vm59, %v6242, %v6244
  %v6295 = vsel %vm59, %v6246, %v6248
  %v6296 = vsel %vm59, %v6250, %v6252
  %v6297 = vsel %vm59, %v6254, %v6256
  %v6298 = vsel %vm59, %v6258, %v6260
  %v6299 = vsel %vm59, %v6262, %v6264
  %v6300 = vsel %vm59, %v6266, %v6268
  %v6365 = vmax.f32 %v6013, %v6269
  %v6366 = vmax.f32 %v6014, %v6144
  %v6367 = vmax.f32 %v6015, %v6270
  %v6368 = vmax.f32 %v6016, %v6148
  %v6369 = vmax.f32 %v6017, %v6271
  %v6370 = vmax.f32 %v6018, %v6152
  %v6371 = vmax.f32 %v6019, %v6272
  %v6372 = vmax.f32 %v6020, %v6156
  %v6373 = vmax.f32 %v6021, %v6273
  %v6374 = vmax.f32 %v6022, %v6160
  %v6375 = vmax.f32 %v6023, %v6274
  %v6376 = vmax.f32 %v6024, %v6164
  %v6377 = vmax.f32 %v6025, %v6275
  %v6378 = vmax.f32 %v6026, %v6168
  %v6379 = vmax.f32 %v6027, %v6276
  %v6380 = vmax.f32 %v6028, %v6172
  %v6381 = vmax.f32 %v6029, %v6277
  %v6382 = vmax.f32 %v6030, %v6176
  %v6383 = vmax.f32 %v6031, %v6278
  %v6384 = vmax.f32 %v6032, %v6180
  %v6385 = vmax.f32 %v6033, %v6279
  %v6386 = vmax.f32 %v6034, %v6184
  %v6387 = vmax.f32 %v6035, %v6280
  %v6388 = vmax.f32 %v6036, %v6188
  %v6389 = vmax.f32 %v6037, %v6281
  %v6390 = vmax.f32 %v6038, %v6192
  %v6391 = vmax.f32 %v6039, %v6282
  %v6392 = vmax.f32 %v6040, %v6196
  %v6393 = vmax.f32 %v6041, %v6283
  %v6394 = vmax.f32 %v6042, %v6200
  %v6395 = vmax.f32 %v6043, %v6284
  %v6396 = vmax.f32 %v6044, %v6204
  %v6397 = vmax.f32 %v6045, %v6285
  %v6398 = vmax.f32 %v6046, %v6208
  %v6399 = vmax.f32 %v6047, %v6286
  %v6400 = vmax.f32 %v6048, %v6212
  %v6401 = vmax.f32 %v6049, %v6287
  %v6402 = vmax.f32 %v6050, %v6216
  %v6403 = vmax.f32 %v6051, %v6288
  %v6404 = vmax.f32 %v6052, %v6220
  %v6405 = vmax.f32 %v6053, %v6289
  %v6406 = vmax.f32 %v6054, %v6224
  %v6407 = vmax.f32 %v6055, %v6290
  %v6408 = vmax.f32 %v6056, %v6228
  %v6409 = vmax.f32 %v6057, %v6291
  %v6410 = vmax.f32 %v6058, %v6232
  %v6411 = vmax.f32 %v6059, %v6292
  %v6412 = vmax.f32 %v6060, %v6236
  %v6413 = vmax.f32 %v6061, %v6293
  %v6414 = vmax.f32 %v6062, %v6240
  %v6415 = vmax.f32 %v6063, %v6294
  %v6416 = vmax.f32 %v6064, %v6244
  %v6417 = vmax.f32 %v6065, %v6295
  %v6418 = vmax.f32 %v6066, %v6248
  %v6419 = vmax.f32 %v6067, %v6296
  %v6420 = vmax.f32 %v6068, %v6252
  %v6421 = vmax.f32 %v6069, %v6297
  %v6422 = vmax.f32 %v6070, %v6256
  %v6423 = vmax.f32 %v6071, %v6298
  %v6424 = vmax.f32 %v6072, %v6260
  %v6425 = vmax.f32 %v6073, %v6299
  %v6426 = vmax.f32 %v6074, %v6264
  %v6427 = vmax.f32 %v6075, %v6300
  %v6428 = vmax.f32 %v6076, %v6268
  %6493 = vrot.lane.b32.xlu0 %v6365, 104
  %v6494 = vpop.permute.xlu0 %6493
  %6495 = vrot.lane.b32.xlu0 %v6366, 104
  %v6496 = vpop.permute.xlu0 %6495
  %6497 = vrot.lane.b32.xlu0 %v6367, 104
  %v6498 = vpop.permute.xlu0 %6497
  %6499 = vrot.lane.b32.xlu0 %v6368, 104
  %v6500 = vpop.permute.xlu0 %6499
  %6501 = vrot.lane.b32.xlu0 %v6369, 104
  %v6502 = vpop.permute.xlu0 %6501
  %6503 = vrot.lane.b32.xlu0 %v6370, 104
  %v6504 = vpop.permute.xlu0 %6503
  %6505 = vrot.lane.b32.xlu0 %v6371, 104
  %v6506 = vpop.permute.xlu0 %6505
  %6507 = vrot.lane.b32.xlu0 %v6372, 104
  %v6508 = vpop.permute.xlu0 %6507
  %6509 = vrot.lane.b32.xlu0 %v6373, 104
  %v6510 = vpop.permute.xlu0 %6509
  %6511 = vrot.lane.b32.xlu0 %v6374, 104
  %v6512 = vpop.permute.xlu0 %6511
  %6513 = vrot.lane.b32.xlu0 %v6375, 104
  %v6514 = vpop.permute.xlu0 %6513
  %6515 = vrot.lane.b32.xlu0 %v6376, 104
  %v6516 = vpop.permute.xlu0 %6515
  %6517 = vrot.lane.b32.xlu0 %v6377, 104
  %v6518 = vpop.permute.xlu0 %6517
  %6519 = vrot.lane.b32.xlu0 %v6378, 104
  %v6520 = vpop.permute.xlu0 %6519
  %6521 = vrot.lane.b32.xlu0 %v6379, 104
  %v6522 = vpop.permute.xlu0 %6521
  %6523 = vrot.lane.b32.xlu0 %v6380, 104
  %v6524 = vpop.permute.xlu0 %6523
  %6525 = vrot.lane.b32.xlu0 %v6381, 104
  %v6526 = vpop.permute.xlu0 %6525
  %6527 = vrot.lane.b32.xlu0 %v6382, 104
  %v6528 = vpop.permute.xlu0 %6527
  %6529 = vrot.lane.b32.xlu0 %v6383, 104
  %v6530 = vpop.permute.xlu0 %6529
  %6531 = vrot.lane.b32.xlu0 %v6384, 104
  %v6532 = vpop.permute.xlu0 %6531
  %6533 = vrot.lane.b32.xlu0 %v6385, 104
  %v6534 = vpop.permute.xlu0 %6533
  %6535 = vrot.lane.b32.xlu0 %v6386, 104
  %v6536 = vpop.permute.xlu0 %6535
  %6537 = vrot.lane.b32.xlu0 %v6387, 104
  %v6538 = vpop.permute.xlu0 %6537
  %6539 = vrot.lane.b32.xlu0 %v6388, 104
  %v6540 = vpop.permute.xlu0 %6539
  %6541 = vrot.lane.b32.xlu0 %v6389, 104
  %v6542 = vpop.permute.xlu0 %6541
  %6543 = vrot.lane.b32.xlu0 %v6390, 104
  %v6544 = vpop.permute.xlu0 %6543
  %6545 = vrot.lane.b32.xlu0 %v6391, 104
  %v6546 = vpop.permute.xlu0 %6545
  %6547 = vrot.lane.b32.xlu0 %v6392, 104
  %v6548 = vpop.permute.xlu0 %6547
  %6549 = vrot.lane.b32.xlu0 %v6393, 104
  %v6550 = vpop.permute.xlu0 %6549
  %6551 = vrot.lane.b32.xlu0 %v6394, 104
  %v6552 = vpop.permute.xlu0 %6551
  %6553 = vrot.lane.b32.xlu0 %v6395, 104
  %v6554 = vpop.permute.xlu0 %6553
  %6555 = vrot.lane.b32.xlu0 %v6396, 104
  %v6556 = vpop.permute.xlu0 %6555
  %6557 = vrot.lane.b32.xlu0 %v6397, 104
  %v6558 = vpop.permute.xlu0 %6557
  %6559 = vrot.lane.b32.xlu0 %v6398, 104
  %v6560 = vpop.permute.xlu0 %6559
  %6561 = vrot.lane.b32.xlu0 %v6399, 104
  %v6562 = vpop.permute.xlu0 %6561
  %6563 = vrot.lane.b32.xlu0 %v6400, 104
  %v6564 = vpop.permute.xlu0 %6563
  %6565 = vrot.lane.b32.xlu0 %v6401, 104
  %v6566 = vpop.permute.xlu0 %6565
  %6567 = vrot.lane.b32.xlu0 %v6402, 104
  %v6568 = vpop.permute.xlu0 %6567
  %6569 = vrot.lane.b32.xlu0 %v6403, 104
  %v6570 = vpop.permute.xlu0 %6569
  %6571 = vrot.lane.b32.xlu0 %v6404, 104
  %v6572 = vpop.permute.xlu0 %6571
  %6573 = vrot.lane.b32.xlu0 %v6405, 104
  %v6574 = vpop.permute.xlu0 %6573
  %6575 = vrot.lane.b32.xlu0 %v6406, 104
  %v6576 = vpop.permute.xlu0 %6575
  %6577 = vrot.lane.b32.xlu0 %v6407, 104
  %v6578 = vpop.permute.xlu0 %6577
  %6579 = vrot.lane.b32.xlu0 %v6408, 104
  %v6580 = vpop.permute.xlu0 %6579
  %6581 = vrot.lane.b32.xlu0 %v6409, 104
  %v6582 = vpop.permute.xlu0 %6581
  %6583 = vrot.lane.b32.xlu0 %v6410, 104
  %v6584 = vpop.permute.xlu0 %6583
  %6585 = vrot.lane.b32.xlu0 %v6411, 104
  %v6586 = vpop.permute.xlu0 %6585
  %6587 = vrot.lane.b32.xlu0 %v6412, 104
  %v6588 = vpop.permute.xlu0 %6587
  %6589 = vrot.lane.b32.xlu0 %v6413, 104
  %v6590 = vpop.permute.xlu0 %6589
  %6591 = vrot.lane.b32.xlu0 %v6414, 104
  %v6592 = vpop.permute.xlu0 %6591
  %6593 = vrot.lane.b32.xlu0 %v6415, 104
  %v6594 = vpop.permute.xlu0 %6593
  %6595 = vrot.lane.b32.xlu0 %v6416, 104
  %v6596 = vpop.permute.xlu0 %6595
  %6597 = vrot.lane.b32.xlu0 %v6417, 104
  %v6598 = vpop.permute.xlu0 %6597
  %6599 = vrot.lane.b32.xlu0 %v6418, 104
  %v6600 = vpop.permute.xlu0 %6599
  %6601 = vrot.lane.b32.xlu0 %v6419, 104
  %v6602 = vpop.permute.xlu0 %6601
  %6603 = vrot.lane.b32.xlu0 %v6420, 104
  %v6604 = vpop.permute.xlu0 %6603
  %6605 = vrot.lane.b32.xlu0 %v6421, 104
  %v6606 = vpop.permute.xlu0 %6605
  %6607 = vrot.lane.b32.xlu0 %v6422, 104
  %v6608 = vpop.permute.xlu0 %6607
  %6609 = vrot.lane.b32.xlu0 %v6423, 104
  %v6610 = vpop.permute.xlu0 %6609
  %6611 = vrot.lane.b32.xlu0 %v6424, 104
  %v6612 = vpop.permute.xlu0 %6611
  %6613 = vrot.lane.b32.xlu0 %v6425, 104
  %v6614 = vpop.permute.xlu0 %6613
  %6615 = vrot.lane.b32.xlu0 %v6426, 104
  %v6616 = vpop.permute.xlu0 %6615
  %6617 = vrot.lane.b32.xlu0 %v6427, 104
  %v6618 = vpop.permute.xlu0 %6617
  %6619 = vrot.lane.b32.xlu0 %v6428, 104
  %v6620 = vpop.permute.xlu0 %6619
  %v6621 = vsel %vm2886, %v6494, %v6496
  %v6622 = vsel %vm2886, %v6498, %v6500
  %v6623 = vsel %vm2886, %v6502, %v6504
  %v6624 = vsel %vm2886, %v6506, %v6508
  %v6625 = vsel %vm2886, %v6510, %v6512
  %v6626 = vsel %vm2886, %v6514, %v6516
  %v6627 = vsel %vm2886, %v6518, %v6520
  %v6628 = vsel %vm2886, %v6522, %v6524
  %v6629 = vsel %vm2886, %v6526, %v6528
  %v6630 = vsel %vm2886, %v6530, %v6532
  %v6631 = vsel %vm2886, %v6534, %v6536
  %v6632 = vsel %vm2886, %v6538, %v6540
  %v6633 = vsel %vm2886, %v6542, %v6544
  %v6634 = vsel %vm2886, %v6546, %v6548
  %v6635 = vsel %vm2886, %v6550, %v6552
  %v6636 = vsel %vm2886, %v6554, %v6556
  %v6637 = vsel %vm2886, %v6558, %v6560
  %v6638 = vsel %vm2886, %v6562, %v6564
  %v6639 = vsel %vm2886, %v6566, %v6568
  %v6640 = vsel %vm2886, %v6570, %v6572
  %v6641 = vsel %vm2886, %v6574, %v6576
  %v6642 = vsel %vm2886, %v6578, %v6580
  %v6643 = vsel %vm2886, %v6582, %v6584
  %v6644 = vsel %vm2886, %v6586, %v6588
  %v6645 = vsel %vm2886, %v6590, %v6592
  %v6646 = vsel %vm2886, %v6594, %v6596
  %v6647 = vsel %vm2886, %v6598, %v6600
  %v6648 = vsel %vm2886, %v6602, %v6604
  %v6649 = vsel %vm2886, %v6606, %v6608
  %v6650 = vsel %vm2886, %v6610, %v6612
  %v6651 = vsel %vm2886, %v6614, %v6616
  %v6652 = vsel %vm2886, %v6618, %v6620
  %v6685 = vmax.f32 %v6365, %v6621
  %v6686 = vmax.f32 %v6367, %v6622
  %v6687 = vmax.f32 %v6369, %v6623
  %v6688 = vmax.f32 %v6371, %v6624
  %v6689 = vmax.f32 %v6373, %v6625
  %v6690 = vmax.f32 %v6375, %v6626
  %v6691 = vmax.f32 %v6377, %v6627
  %v6692 = vmax.f32 %v6379, %v6628
  %v6693 = vmax.f32 %v6381, %v6629
  %v6694 = vmax.f32 %v6383, %v6630
  %v6695 = vmax.f32 %v6385, %v6631
  %v6696 = vmax.f32 %v6387, %v6632
  %v6697 = vmax.f32 %v6389, %v6633
  %v6698 = vmax.f32 %v6391, %v6634
  %v6699 = vmax.f32 %v6393, %v6635
  %v6700 = vmax.f32 %v6395, %v6636
  %v6701 = vmax.f32 %v6397, %v6637
  %v6702 = vmax.f32 %v6399, %v6638
  %v6703 = vmax.f32 %v6401, %v6639
  %v6704 = vmax.f32 %v6403, %v6640
  %v6705 = vmax.f32 %v6405, %v6641
  %v6706 = vmax.f32 %v6407, %v6642
  %v6707 = vmax.f32 %v6409, %v6643
  %v6708 = vmax.f32 %v6411, %v6644
  %v6709 = vmax.f32 %v6413, %v6645
  %v6710 = vmax.f32 %v6415, %v6646
  %v6711 = vmax.f32 %v6417, %v6647
  %v6712 = vmax.f32 %v6419, %v6648
  %v6713 = vmax.f32 %v6421, %v6649
  %v6714 = vmax.f32 %v6423, %v6650
  %v6715 = vmax.f32 %v6425, %v6651
  %v6716 = vmax.f32 %v6427, %v6652
  %v6717 = vld [vmem:[%s6] sm:$0xff]
  %v6718 = vld [vmem:[%s6 + $0x8] sm:$0xff]
  %v6719 = vld [vmem:[%s6 + $0x10] sm:$0xff]
  %v6720 = vld [vmem:[%s6 + $0x18] sm:$0xff]
  %v6721 = vld [vmem:[%s6 + $0x20] sm:$0xff]
  %v6722 = vld [vmem:[%s6 + $0x28] sm:$0xff]
  %v6723 = vld [vmem:[%s6 + $0x30] sm:$0xff]
  %v6724 = vld [vmem:[%s6 + $0x38] sm:$0xff]
  %v6725 = vld [vmem:[%s6 + $0x40] sm:$0xff]
  %v6726 = vld [vmem:[%s6 + $0x48] sm:$0xff]
  %v6727 = vld [vmem:[%s6 + $0x50] sm:$0xff]
  %v6728 = vld [vmem:[%s6 + $0x58] sm:$0xff]
  %v6729 = vld [vmem:[%s6 + $0x60] sm:$0xff]
  %v6730 = vld [vmem:[%s6 + $0x68] sm:$0xff]
  %v6731 = vld [vmem:[%s6 + $0x70] sm:$0x1f]
  %vm6732 = vcmask 957440
  %v6734 = vsel %vm6732, %v6685, 0
  %v6737 = vsel %vm6732, %v6686, 0
  %v6740 = vsel %vm6732, %v6687, 0
  %v6743 = vsel %vm6732, %v6688, 0
  %v6746 = vsel %vm6732, %v6689, 0
  %v6749 = vsel %vm6732, %v6690, 0
  %v6752 = vsel %vm6732, %v6691, 0
  %v6755 = vsel %vm6732, %v6692, 0
  %v6758 = vsel %vm6732, %v6693, 0
  %v6761 = vsel %vm6732, %v6694, 0
  %v6764 = vsel %vm6732, %v6695, 0
  %v6767 = vsel %vm6732, %v6696, 0
  %v6770 = vsel %vm6732, %v6697, 0
  %v6773 = vsel %vm6732, %v6698, 0
  %v6776 = vsel %vm6732, %v6699, 0
  %v6779 = vsel %vm6732, %v6700, 0
  %v6782 = vsel %vm6732, %v6701, 0
  %v6785 = vsel %vm6732, %v6702, 0
  %v6788 = vsel %vm6732, %v6703, 0
  %v6791 = vsel %vm6732, %v6704, 0
  %v6794 = vsel %vm6732, %v6705, 0
  %v6797 = vsel %vm6732, %v6706, 0
  %v6800 = vsel %vm6732, %v6707, 0
  %v6803 = vsel %vm6732, %v6708, 0
  %v6806 = vsel %vm6732, %v6709, 0
  %v6809 = vsel %vm6732, %v6710, 0
  %v6812 = vsel %vm6732, %v6711, 0
  %v6815 = vsel %vm6732, %v6712, 0
  %v6818 = vsel %vm6732, %v6713, 0
  %v6821 = vsel %vm6732, %v6714, 0
  %v6824 = vsel %vm6732, %v6715, 0
  %v6827 = vsel %vm6732, %v6716, 0
  %v6830 = vsel %vm1909, %v6731, 0
  %6832 = vmatpush.msra.mxu0 0.0
  %6833 = vmatpush.msra.mxu0 %v6830
  %6834 = vmatpush.msra.mxu0 %v6730
  %6835 = vmatpush.msra.mxu0 %v6729
  %6836 = vmatpush.msra.mxu0 %v6728
  %6837 = vmatpush.msra.mxu0 %v6727
  %6838 = vmatpush.msra.mxu0 %v6726
  %6839 = vmatpush.msra.mxu0 %v6725
  %6840 = vmatpush.msra.mxu0 %v6724
  %6841 = vmatpush.msra.mxu0 %v6723
  %6842 = vmatpush.msra.mxu0 %v6722
  %6843 = vmatpush.msra.mxu0 %v6721
  %6844 = vmatpush.msra.mxu0 %v6720
  %6845 = vmatpush.msra.mxu0 %v6719
  %6846 = vmatpush.msra.mxu0 %v6718
  %6847 = vmatpush.msra.mxu0 %v6717
  %6848 = vmatmul.f32.gmra.mxu0 %v6734
  %v6849 = vpop.f32.mrf.mxu0
  %v6850 = vadd.f32 0.0, %v6849
  %6851 = vmatmul.f32.gmra.mxu0 %v6737
  %v6852 = vpop.f32.mrf.mxu0
  %v6853 = vadd.f32 0.0, %v6852
  %6854 = vmatmul.f32.gmra.mxu0 %v6740
  %v6855 = vpop.f32.mrf.mxu0
  %v6856 = vadd.f32 0.0, %v6855
  %6857 = vmatmul.f32.gmra.mxu0 %v6743
  %v6858 = vpop.f32.mrf.mxu0
  %v6859 = vadd.f32 0.0, %v6858
  %6860 = vmatmul.f32.gmra.mxu0 %v6746
  %v6861 = vpop.f32.mrf.mxu0
  %v6862 = vadd.f32 0.0, %v6861
  %6863 = vmatmul.f32.gmra.mxu0 %v6749
  %v6864 = vpop.f32.mrf.mxu0
  %v6865 = vadd.f32 0.0, %v6864
  %6866 = vmatmul.f32.gmra.mxu0 %v6752
  %v6867 = vpop.f32.mrf.mxu0
  %v6868 = vadd.f32 0.0, %v6867
  %6869 = vmatmul.f32.gmra.mxu0 %v6755
  %v6870 = vpop.f32.mrf.mxu0
  %v6871 = vadd.f32 0.0, %v6870
  %6872 = vmatmul.f32.gmra.mxu0 %v6758
  %v6873 = vpop.f32.mrf.mxu0
  %v6874 = vadd.f32 0.0, %v6873
  %6875 = vmatmul.f32.gmra.mxu0 %v6761
  %v6876 = vpop.f32.mrf.mxu0
  %v6877 = vadd.f32 0.0, %v6876
  %6878 = vmatmul.f32.gmra.mxu0 %v6764
  %v6879 = vpop.f32.mrf.mxu0
  %v6880 = vadd.f32 0.0, %v6879
  %6881 = vmatmul.f32.gmra.mxu0 %v6767
  %v6882 = vpop.f32.mrf.mxu0
  %v6883 = vadd.f32 0.0, %v6882
  %6884 = vmatmul.f32.gmra.mxu0 %v6770
  %v6885 = vpop.f32.mrf.mxu0
  %v6886 = vadd.f32 0.0, %v6885
  %6887 = vmatmul.f32.gmra.mxu0 %v6773
  %v6888 = vpop.f32.mrf.mxu0
  %v6889 = vadd.f32 0.0, %v6888
  %6890 = vmatmul.f32.gmra.mxu0 %v6776
  %v6891 = vpop.f32.mrf.mxu0
  %v6892 = vadd.f32 0.0, %v6891
  %6893 = vmatmul.f32.gmra.mxu0 %v6779
  %v6894 = vpop.f32.mrf.mxu0
  %v6895 = vadd.f32 0.0, %v6894
  %6896 = vmatmul.f32.gmra.mxu0 %v6782
  %v6897 = vpop.f32.mrf.mxu0
  %v6898 = vadd.f32 0.0, %v6897
  %6899 = vmatmul.f32.gmra.mxu0 %v6785
  %v6900 = vpop.f32.mrf.mxu0
  %v6901 = vadd.f32 0.0, %v6900
  %6902 = vmatmul.f32.gmra.mxu0 %v6788
  %v6903 = vpop.f32.mrf.mxu0
  %v6904 = vadd.f32 0.0, %v6903
  %6905 = vmatmul.f32.gmra.mxu0 %v6791
  %v6906 = vpop.f32.mrf.mxu0
  %v6907 = vadd.f32 0.0, %v6906
  %6908 = vmatmul.f32.gmra.mxu0 %v6794
  %v6909 = vpop.f32.mrf.mxu0
  %v6910 = vadd.f32 0.0, %v6909
  %6911 = vmatmul.f32.gmra.mxu0 %v6797
  %v6912 = vpop.f32.mrf.mxu0
  %v6913 = vadd.f32 0.0, %v6912
  %6914 = vmatmul.f32.gmra.mxu0 %v6800
  %v6915 = vpop.f32.mrf.mxu0
  %v6916 = vadd.f32 0.0, %v6915
  %6917 = vmatmul.f32.gmra.mxu0 %v6803
  %v6918 = vpop.f32.mrf.mxu0
  %v6919 = vadd.f32 0.0, %v6918
  %6920 = vmatmul.f32.gmra.mxu0 %v6806
  %v6921 = vpop.f32.mrf.mxu0
  %v6922 = vadd.f32 0.0, %v6921
  %6923 = vmatmul.f32.gmra.mxu0 %v6809
  %v6924 = vpop.f32.mrf.mxu0
  %v6925 = vadd.f32 0.0, %v6924
  %6926 = vmatmul.f32.gmra.mxu0 %v6812
  %v6927 = vpop.f32.mrf.mxu0
  %v6928 = vadd.f32 0.0, %v6927
  %6929 = vmatmul.f32.gmra.mxu0 %v6815
  %v6930 = vpop.f32.mrf.mxu0
  %v6931 = vadd.f32 0.0, %v6930
  %6932 = vmatmul.f32.gmra.mxu0 %v6818
  %v6933 = vpop.f32.mrf.mxu0
  %v6934 = vadd.f32 0.0, %v6933
  %6935 = vmatmul.f32.gmra.mxu0 %v6821
  %v6936 = vpop.f32.mrf.mxu0
  %v6937 = vadd.f32 0.0, %v6936
  %6938 = vmatmul.f32.gmra.mxu0 %v6824
  %v6939 = vpop.f32.mrf.mxu0
  %v6940 = vadd.f32 0.0, %v6939
  %6941 = vmatmul.f32.gmra.mxu0 %v6827
  %v6942 = vpop.f32.mrf.mxu0
  %v6943 = vadd.f32 0.0, %v6942
  %6944 = vdwg.mxu0
  %v6945 = vld [vmem:[%s7] sm:$0xff]
  %v6946 = vld [vmem:[%s7 + $0x8] sm:$0xff]
  %v6947 = vld [vmem:[%s7 + $0x10] sm:$0xff]
  %v6948 = vld [vmem:[%s7 + $0x18] sm:$0xff]
  %v6949 = vld [vmem:[%s7 + $0x20] sm:$0x1]
  %v6950 = vld [vmem:[%s7 + $0x28] sm:$0xff]
  %v6951 = vld [vmem:[%s7 + $0x30] sm:$0xff]
  %v6952 = vld [vmem:[%s7 + $0x38] sm:$0xff]
  %v6953 = vld [vmem:[%s7 + $0x40] sm:$0xff]
  %v6954 = vld [vmem:[%s7 + $0x48] sm:$0x1]
  %v6955 = vld [vmem:[%s7 + $0x50] sm:$0xff]
  %v6956 = vld [vmem:[%s7 + $0x58] sm:$0xff]
  %v6957 = vld [vmem:[%s7 + $0x60] sm:$0xff]
  %v6958 = vld [vmem:[%s7 + $0x68] sm:$0xff]
  %v6959 = vld [vmem:[%s7 + $0x70] sm:$0x1]
  %v6960 = vld [vmem:[%s7 + $0x78] sm:$0xff]
  %v6961 = vld [vmem:[%s7 + $0x80] sm:$0xff]
  %v6962 = vld [vmem:[%s7 + $0x88] sm:$0xff]
  %v6963 = vld [vmem:[%s7 + $0x90] sm:$0xff]
  %v6964 = vld [vmem:[%s7 + $0x98] sm:$0x1]
  %v6965 = vld [vmem:[%s7 + $0xa0] sm:$0xff]
  %v6966 = vld [vmem:[%s7 + $0xa8] sm:$0xff]
  %v6967 = vld [vmem:[%s7 + $0xb0] sm:$0xff]
  %v6968 = vld [vmem:[%s7 + $0xb8] sm:$0xff]
  %v6969 = vld [vmem:[%s7 + $0xc0] sm:$0x1]
  %v6970 = vld [vmem:[%s7 + $0xc8] sm:$0xff]
  %v6971 = vld [vmem:[%s7 + $0xd0] sm:$0xff]
  %v6972 = vld [vmem:[%s7 + $0xd8] sm:$0xff]
  %v6973 = vld [vmem:[%s7 + $0xe0] sm:$0xff]
  %v6974 = vld [vmem:[%s7 + $0xe8] sm:$0x1]
  %v6975 = vld [vmem:[%s7 + $0xf0] sm:$0xff]
  %v6976 = vld [vmem:[%s7 + $0xf8] sm:$0xff]
  %v6977 = vld [vmem:[%s7 + $0x100] sm:$0xff]
  %v6978 = vld [vmem:[%s7 + $0x108] sm:$0xff]
  %v6979 = vld [vmem:[%s7 + $0x110] sm:$0x1]
  %v6980 = vld [vmem:[%s7 + $0x118] sm:$0xff]
  %v6981 = vld [vmem:[%s7 + $0x120] sm:$0xff]
  %v6982 = vld [vmem:[%s7 + $0x128] sm:$0xff]
  %v6983 = vld [vmem:[%s7 + $0x130] sm:$0xff]
  %v6984 = vld [vmem:[%s7 + $0x138] sm:$0x1]
  %v6985 = vld [vmem:[%s7 + $0x140] sm:$0xff]
  %v6986 = vld [vmem:[%s7 + $0x148] sm:$0xff]
  %v6987 = vld [vmem:[%s7 + $0x150] sm:$0xff]
  %v6988 = vld [vmem:[%s7 + $0x158] sm:$0xff]
  %v6989 = vld [vmem:[%s7 + $0x160] sm:$0x1]
  %v6990 = vld [vmem:[%s7 + $0x168] sm:$0xff]
  %v6991 = vld [vmem:[%s7 + $0x170] sm:$0xff]
  %v6992 = vld [vmem:[%s7 + $0x178] sm:$0xff]
  %v6993 = vld [vmem:[%s7 + $0x180] sm:$0xff]
  %v6994 = vld [vmem:[%s7 + $0x188] sm:$0x1]
  %v6995 = vld [vmem:[%s7 + $0x190] sm:$0xff]
  %v6996 = vld [vmem:[%s7 + $0x198] sm:$0xff]
  %v6997 = vld [vmem:[%s7 + $0x1a0] sm:$0xff]
  %v6998 = vld [vmem:[%s7 + $0x1a8] sm:$0xff]
  %v6999 = vld [vmem:[%s7 + $0x1b0] sm:$0x1]
  %v7000 = vld [vmem:[%s7 + $0x1b8] sm:$0xff]
  %v7001 = vld [vmem:[%s7 + $0x1c0] sm:$0xff]
  %v7002 = vld [vmem:[%s7 + $0x1c8] sm:$0xff]
  %v7003 = vld [vmem:[%s7 + $0x1d0] sm:$0xff]
  %v7004 = vld [vmem:[%s7 + $0x1d8] sm:$0x1]
  %v7005 = vld [vmem:[%s7 + $0x1e0] sm:$0xff]
  %v7006 = vld [vmem:[%s7 + $0x1e8] sm:$0xff]
  %v7007 = vld [vmem:[%s7 + $0x1f0] sm:$0xff]
  %v7008 = vld [vmem:[%s7 + $0x1f8] sm:$0xff]
  %v7009 = vld [vmem:[%s7 + $0x200] sm:$0x1]
  %v7010 = vld [vmem:[%s7 + $0x208] sm:$0xff]
  %v7011 = vld [vmem:[%s7 + $0x210] sm:$0xff]
  %v7012 = vld [vmem:[%s7 + $0x218] sm:$0xff]
  %v7013 = vld [vmem:[%s7 + $0x220] sm:$0xff]
  %v7014 = vld [vmem:[%s7 + $0x228] sm:$0x1]
  %v7015 = vld [vmem:[%s7 + $0x230] sm:$0xff]
  %v7016 = vld [vmem:[%s7 + $0x238] sm:$0xff]
  %v7017 = vld [vmem:[%s7 + $0x240] sm:$0xff]
  %v7018 = vld [vmem:[%s7 + $0x248] sm:$0xff]
  %v7019 = vld [vmem:[%s7 + $0x250] sm:$0x1]
  %v7020 = vld [vmem:[%s7 + $0x258] sm:$0xff]
  %v7021 = vld [vmem:[%s7 + $0x260] sm:$0xff]
  %v7022 = vld [vmem:[%s7 + $0x268] sm:$0xff]
  %v7023 = vld [vmem:[%s7 + $0x270] sm:$0xff]
  %v7024 = vld [vmem:[%s7 + $0x278] sm:$0x1]
  %v7025 = vld [vmem:[%s7 + $0x280] sm:$0xff]
  %v7026 = vld [vmem:[%s7 + $0x288] sm:$0xff]
  %v7027 = vld [vmem:[%s7 + $0x290] sm:$0xff]
  %v7028 = vld [vmem:[%s7 + $0x298] sm:$0xff]
  %v7029 = vld [vmem:[%s7 + $0x2a0] sm:$0x1]
  %v7030 = vld [vmem:[%s7 + $0x2a8] sm:$0xff]
  %v7031 = vld [vmem:[%s7 + $0x2b0] sm:$0xff]
  %v7032 = vld [vmem:[%s7 + $0x2b8] sm:$0xff]
  %v7033 = vld [vmem:[%s7 + $0x2c0] sm:$0xff]
  %v7034 = vld [vmem:[%s7 + $0x2c8] sm:$0x1]
  %v7035 = vld [vmem:[%s7 + $0x2d0] sm:$0xff]
  %v7036 = vld [vmem:[%s7 + $0x2d8] sm:$0xff]
  %v7037 = vld [vmem:[%s7 + $0x2e0] sm:$0xff]
  %v7038 = vld [vmem:[%s7 + $0x2e8] sm:$0xff]
  %v7039 = vld [vmem:[%s7 + $0x2f0] sm:$0x1]
  %v7040 = vld [vmem:[%s7 + $0x2f8] sm:$0xff]
  %v7041 = vld [vmem:[%s7 + $0x300] sm:$0xff]
  %v7042 = vld [vmem:[%s7 + $0x308] sm:$0xff]
  %v7043 = vld [vmem:[%s7 + $0x310] sm:$0xff]
  %v7044 = vld [vmem:[%s7 + $0x318] sm:$0x1]
  %v7045 = vld [vmem:[%s7 + $0x320] sm:$0xff]
  %v7046 = vld [vmem:[%s7 + $0x328] sm:$0xff]
  %v7047 = vld [vmem:[%s7 + $0x330] sm:$0xff]
  %v7048 = vld [vmem:[%s7 + $0x338] sm:$0xff]
  %v7049 = vld [vmem:[%s7 + $0x340] sm:$0x1]
  %v7050 = vld [vmem:[%s7 + $0x348] sm:$0xff]
  %v7051 = vld [vmem:[%s7 + $0x350] sm:$0xff]
  %v7052 = vld [vmem:[%s7 + $0x358] sm:$0xff]
  %v7053 = vld [vmem:[%s7 + $0x360] sm:$0xff]
  %v7054 = vld [vmem:[%s7 + $0x368] sm:$0x1]
  %v7055 = vld [vmem:[%s7 + $0x370] sm:$0xff]
  %v7056 = vld [vmem:[%s7 + $0x378] sm:$0xff]
  %v7057 = vld [vmem:[%s7 + $0x380] sm:$0xff]
  %v7058 = vld [vmem:[%s7 + $0x388] sm:$0xff]
  %v7059 = vld [vmem:[%s7 + $0x390] sm:$0x1]
  %v7060 = vld [vmem:[%s7 + $0x398] sm:$0xff]
  %v7061 = vld [vmem:[%s7 + $0x3a0] sm:$0xff]
  %v7062 = vld [vmem:[%s7 + $0x3a8] sm:$0xff]
  %v7063 = vld [vmem:[%s7 + $0x3b0] sm:$0xff]
  %v7064 = vld [vmem:[%s7 + $0x3b8] sm:$0x1]
  %v7065 = vld [vmem:[%s7 + $0x3c0] sm:$0xff]
  %v7066 = vld [vmem:[%s7 + $0x3c8] sm:$0xff]
  %v7067 = vld [vmem:[%s7 + $0x3d0] sm:$0xff]
  %v7068 = vld [vmem:[%s7 + $0x3d8] sm:$0xff]
  %v7069 = vld [vmem:[%s7 + $0x3e0] sm:$0x1]
  %v7070 = vld [vmem:[%s7 + $0x3e8] sm:$0xff]
  %v7071 = vld [vmem:[%s7 + $0x3f0] sm:$0xff]
  %v7072 = vld [vmem:[%s7 + $0x3f8] sm:$0xff]
  %v7073 = vld [vmem:[%s7 + $0x400] sm:$0xff]
  %v7074 = vld [vmem:[%s7 + $0x408] sm:$0x1]
  %v7075 = vld [vmem:[%s7 + $0x410] sm:$0xff]
  %v7076 = vld [vmem:[%s7 + $0x418] sm:$0xff]
  %v7077 = vld [vmem:[%s7 + $0x420] sm:$0xff]
  %v7078 = vld [vmem:[%s7 + $0x428] sm:$0xff]
  %v7079 = vld [vmem:[%s7 + $0x430] sm:$0x1]
  %v7080 = vld [vmem:[%s7 + $0x438] sm:$0xff]
  %v7081 = vld [vmem:[%s7 + $0x440] sm:$0xff]
  %v7082 = vld [vmem:[%s7 + $0x448] sm:$0xff]
  %v7083 = vld [vmem:[%s7 + $0x450] sm:$0xff]
  %v7084 = vld [vmem:[%s7 + $0x458] sm:$0x1]
  %v7085 = vld [vmem:[%s7 + $0x460] sm:$0xff]
  %v7086 = vld [vmem:[%s7 + $0x468] sm:$0xff]
  %v7087 = vld [vmem:[%s7 + $0x470] sm:$0xff]
  %v7088 = vld [vmem:[%s7 + $0x478] sm:$0xff]
  %v7089 = vld [vmem:[%s7 + $0x480] sm:$0x1]
  %v7090 = vld [vmem:[%s7 + $0x488] sm:$0xff]
  %v7091 = vld [vmem:[%s7 + $0x490] sm:$0xff]
  %v7092 = vld [vmem:[%s7 + $0x498] sm:$0xff]
  %v7093 = vld [vmem:[%s7 + $0x4a0] sm:$0xff]
  %v7094 = vld [vmem:[%s7 + $0x4a8] sm:$0x1]
  %v7095 = vld [vmem:[%s7 + $0x4b0] sm:$0xff]
  %v7096 = vld [vmem:[%s7 + $0x4b8] sm:$0xff]
  %v7097 = vld [vmem:[%s7 + $0x4c0] sm:$0xff]
  %v7098 = vld [vmem:[%s7 + $0x4c8] sm:$0xff]
  %v7099 = vld [vmem:[%s7 + $0x4d0] sm:$0x1]
  %v7100 = vld [vmem:[%s7 + $0x4d8] sm:$0xff]
  %v7101 = vld [vmem:[%s7 + $0x4e0] sm:$0xff]
  %v7102 = vld [vmem:[%s7 + $0x4e8] sm:$0xff]
  %v7103 = vld [vmem:[%s7 + $0x4f0] sm:$0xff]
  %v7104 = vld [vmem:[%s7 + $0x4f8] sm:$0x1]
  %vm7105 = vcmask 269312
  %v7107 = vsel %vm7105, %v6850, 0
  %vm7109 = vcmask 1040384
  %v7111 = vsel %vm7109, %v6949, 0
  %7113 = vmatpush.msra.mxu0 0.0
  %7114 = vmatpush.msra.mxu0 0.0
  %7115 = vmatpush.msra.mxu0 0.0
  %7116 = vmatpush.msra.mxu0 0.0
  %7117 = vmatpush.msra.mxu0 0.0
  %7118 = vmatpush.msra.mxu0 0.0
  %7119 = vmatpush.msra.mxu0 0.0
  %7120 = vmatpush.msra.mxu0 0.0
  %7121 = vmatpush.msra.mxu0 0.0
  %7122 = vmatpush.msra.mxu0 0.0
  %7123 = vmatpush.msra.mxu0 0.0
  %7124 = vmatpush.msra.mxu0 %v7111
  %7125 = vmatpush.msra.mxu0 %v6948
  %7126 = vmatpush.msra.mxu0 %v6947
  %7127 = vmatpush.msra.mxu0 %v6946
  %7128 = vmatpush.msra.mxu0 %v6945
  %7129 = vmatmul.f32.gmra.mxu0 %v7107
  %v7130 = vpop.f32.mrf.mxu0
  %v7131 = vadd.f32 0.0, %v7130
  %7132 = vdwg.mxu0
  %v7134 = vsel %vm7105, %v6853, 0
  %v7137 = vsel %vm7109, %v6954, 0
  %7139 = vmatpush.msra.mxu0 0.0
  %7140 = vmatpush.msra.mxu0 0.0
  %7141 = vmatpush.msra.mxu0 0.0
  %7142 = vmatpush.msra.mxu0 0.0
  %7143 = vmatpush.msra.mxu0 0.0
  %7144 = vmatpush.msra.mxu0 0.0
  %7145 = vmatpush.msra.mxu0 0.0
  %7146 = vmatpush.msra.mxu0 0.0
  %7147 = vmatpush.msra.mxu0 0.0
  %7148 = vmatpush.msra.mxu0 0.0
  %7149 = vmatpush.msra.mxu0 0.0
  %7150 = vmatpush.msra.mxu0 %v7137
  %7151 = vmatpush.msra.mxu0 %v6953
  %7152 = vmatpush.msra.mxu0 %v6952
  %7153 = vmatpush.msra.mxu0 %v6951
  %7154 = vmatpush.msra.mxu0 %v6950
  %7155 = vmatmul.f32.gmra.mxu0 %v7134
  %v7156 = vpop.f32.mrf.mxu0
  %v7157 = vadd.f32 0.0, %v7156
  %7158 = vdwg.mxu0
  %v7160 = vsel %vm7105, %v6856, 0
  %v7163 = vsel %vm7109, %v6959, 0
  %7165 = vmatpush.msra.mxu0 0.0
  %7166 = vmatpush.msra.mxu0 0.0
  %7167 = vmatpush.msra.mxu0 0.0
  %7168 = vmatpush.msra.mxu0 0.0
  %7169 = vmatpush.msra.mxu0 0.0
  %7170 = vmatpush.msra.mxu0 0.0
  %7171 = vmatpush.msra.mxu0 0.0
  %7172 = vmatpush.msra.mxu0 0.0
  %7173 = vmatpush.msra.mxu0 0.0
  %7174 = vmatpush.msra.mxu0 0.0
  %7175 = vmatpush.msra.mxu0 0.0
  %7176 = vmatpush.msra.mxu0 %v7163
  %7177 = vmatpush.msra.mxu0 %v6958
  %7178 = vmatpush.msra.mxu0 %v6957
  %7179 = vmatpush.msra.mxu0 %v6956
  %7180 = vmatpush.msra.mxu0 %v6955
  %7181 = vmatmul.f32.gmra.mxu0 %v7160
  %v7182 = vpop.f32.mrf.mxu0
  %v7183 = vadd.f32 0.0, %v7182
  %7184 = vdwg.mxu0
  %v7186 = vsel %vm7105, %v6859, 0
  %v7189 = vsel %vm7109, %v6964, 0
  %7191 = vmatpush.msra.mxu0 0.0
  %7192 = vmatpush.msra.mxu0 0.0
  %7193 = vmatpush.msra.mxu0 0.0
  %7194 = vmatpush.msra.mxu0 0.0
  %7195 = vmatpush.msra.mxu0 0.0
  %7196 = vmatpush.msra.mxu0 0.0
  %7197 = vmatpush.msra.mxu0 0.0
  %7198 = vmatpush.msra.mxu0 0.0
  %7199 = vmatpush.msra.mxu0 0.0
  %7200 = vmatpush.msra.mxu0 0.0
  %7201 = vmatpush.msra.mxu0 0.0
  %7202 = vmatpush.msra.mxu0 %v7189
  %7203 = vmatpush.msra.mxu0 %v6963
  %7204 = vmatpush.msra.mxu0 %v6962
  %7205 = vmatpush.msra.mxu0 %v6961
  %7206 = vmatpush.msra.mxu0 %v6960
  %7207 = vmatmul.f32.gmra.mxu0 %v7186
  %v7208 = vpop.f32.mrf.mxu0
  %v7209 = vadd.f32 0.0, %v7208
  %7210 = vdwg.mxu0
  %v7212 = vsel %vm7105, %v6862, 0
  %v7215 = vsel %vm7109, %v6969, 0
  %7217 = vmatpush.msra.mxu0 0.0
  %7218 = vmatpush.msra.mxu0 0.0
  %7219 = vmatpush.msra.mxu0 0.0
  %7220 = vmatpush.msra.mxu0 0.0
  %7221 = vmatpush.msra.mxu0 0.0
  %7222 = vmatpush.msra.mxu0 0.0
  %7223 = vmatpush.msra.mxu0 0.0
  %7224 = vmatpush.msra.mxu0 0.0
  %7225 = vmatpush.msra.mxu0 0.0
  %7226 = vmatpush.msra.mxu0 0.0
  %7227 = vmatpush.msra.mxu0 0.0
  %7228 = vmatpush.msra.mxu0 %v7215
  %7229 = vmatpush.msra.mxu0 %v6968
  %7230 = vmatpush.msra.mxu0 %v6967
  %7231 = vmatpush.msra.mxu0 %v6966
  %7232 = vmatpush.msra.mxu0 %v6965
  %7233 = vmatmul.f32.gmra.mxu0 %v7212
  %v7234 = vpop.f32.mrf.mxu0
  %v7235 = vadd.f32 0.0, %v7234
  %7236 = vdwg.mxu0
  %v7238 = vsel %vm7105, %v6865, 0
  %v7241 = vsel %vm7109, %v6974, 0
  %7243 = vmatpush.msra.mxu0 0.0
  %7244 = vmatpush.msra.mxu0 0.0
  %7245 = vmatpush.msra.mxu0 0.0
  %7246 = vmatpush.msra.mxu0 0.0
  %7247 = vmatpush.msra.mxu0 0.0
  %7248 = vmatpush.msra.mxu0 0.0
  %7249 = vmatpush.msra.mxu0 0.0
  %7250 = vmatpush.msra.mxu0 0.0
  %7251 = vmatpush.msra.mxu0 0.0
  %7252 = vmatpush.msra.mxu0 0.0
  %7253 = vmatpush.msra.mxu0 0.0
  %7254 = vmatpush.msra.mxu0 %v7241
  %7255 = vmatpush.msra.mxu0 %v6973
  %7256 = vmatpush.msra.mxu0 %v6972
  %7257 = vmatpush.msra.mxu0 %v6971
  %7258 = vmatpush.msra.mxu0 %v6970
  %7259 = vmatmul.f32.gmra.mxu0 %v7238
  %v7260 = vpop.f32.mrf.mxu0
  %v7261 = vadd.f32 0.0, %v7260
  %7262 = vdwg.mxu0
  %v7264 = vsel %vm7105, %v6868, 0
  %v7267 = vsel %vm7109, %v6979, 0
  %7269 = vmatpush.msra.mxu0 0.0
  %7270 = vmatpush.msra.mxu0 0.0
  %7271 = vmatpush.msra.mxu0 0.0
  %7272 = vmatpush.msra.mxu0 0.0
  %7273 = vmatpush.msra.mxu0 0.0
  %7274 = vmatpush.msra.mxu0 0.0
  %7275 = vmatpush.msra.mxu0 0.0
  %7276 = vmatpush.msra.mxu0 0.0
  %7277 = vmatpush.msra.mxu0 0.0
  %7278 = vmatpush.msra.mxu0 0.0
  %7279 = vmatpush.msra.mxu0 0.0
  %7280 = vmatpush.msra.mxu0 %v7267
  %7281 = vmatpush.msra.mxu0 %v6978
  %7282 = vmatpush.msra.mxu0 %v6977
  %7283 = vmatpush.msra.mxu0 %v6976
  %7284 = vmatpush.msra.mxu0 %v6975
  %7285 = vmatmul.f32.gmra.mxu0 %v7264
  %v7286 = vpop.f32.mrf.mxu0
  %v7287 = vadd.f32 0.0, %v7286
  %7288 = vdwg.mxu0
  %v7290 = vsel %vm7105, %v6871, 0
  %v7293 = vsel %vm7109, %v6984, 0
  %7295 = vmatpush.msra.mxu0 0.0
  %7296 = vmatpush.msra.mxu0 0.0
  %7297 = vmatpush.msra.mxu0 0.0
  %7298 = vmatpush.msra.mxu0 0.0
  %7299 = vmatpush.msra.mxu0 0.0
  %7300 = vmatpush.msra.mxu0 0.0
  %7301 = vmatpush.msra.mxu0 0.0
  %7302 = vmatpush.msra.mxu0 0.0
  %7303 = vmatpush.msra.mxu0 0.0
  %7304 = vmatpush.msra.mxu0 0.0
  %7305 = vmatpush.msra.mxu0 0.0
  %7306 = vmatpush.msra.mxu0 %v7293
  %7307 = vmatpush.msra.mxu0 %v6983
  %7308 = vmatpush.msra.mxu0 %v6982
  %7309 = vmatpush.msra.mxu0 %v6981
  %7310 = vmatpush.msra.mxu0 %v6980
  %7311 = vmatmul.f32.gmra.mxu0 %v7290
  %v7312 = vpop.f32.mrf.mxu0
  %v7313 = vadd.f32 0.0, %v7312
  %7314 = vdwg.mxu0
  %v7316 = vsel %vm7105, %v6874, 0
  %v7319 = vsel %vm7109, %v6989, 0
  %7321 = vmatpush.msra.mxu0 0.0
  %7322 = vmatpush.msra.mxu0 0.0
  %7323 = vmatpush.msra.mxu0 0.0
  %7324 = vmatpush.msra.mxu0 0.0
  %7325 = vmatpush.msra.mxu0 0.0
  %7326 = vmatpush.msra.mxu0 0.0
  %7327 = vmatpush.msra.mxu0 0.0
  %7328 = vmatpush.msra.mxu0 0.0
  %7329 = vmatpush.msra.mxu0 0.0
  %7330 = vmatpush.msra.mxu0 0.0
  %7331 = vmatpush.msra.mxu0 0.0
  %7332 = vmatpush.msra.mxu0 %v7319
  %7333 = vmatpush.msra.mxu0 %v6988
  %7334 = vmatpush.msra.mxu0 %v6987
  %7335 = vmatpush.msra.mxu0 %v6986
  %7336 = vmatpush.msra.mxu0 %v6985
  %7337 = vmatmul.f32.gmra.mxu0 %v7316
  %v7338 = vpop.f32.mrf.mxu0
  %v7339 = vadd.f32 0.0, %v7338
  %7340 = vdwg.mxu0
  %v7342 = vsel %vm7105, %v6877, 0
  %v7345 = vsel %vm7109, %v6994, 0
  %7347 = vmatpush.msra.mxu0 0.0
  %7348 = vmatpush.msra.mxu0 0.0
  %7349 = vmatpush.msra.mxu0 0.0
  %7350 = vmatpush.msra.mxu0 0.0
  %7351 = vmatpush.msra.mxu0 0.0
  %7352 = vmatpush.msra.mxu0 0.0
  %7353 = vmatpush.msra.mxu0 0.0
  %7354 = vmatpush.msra.mxu0 0.0
  %7355 = vmatpush.msra.mxu0 0.0
  %7356 = vmatpush.msra.mxu0 0.0
  %7357 = vmatpush.msra.mxu0 0.0
  %7358 = vmatpush.msra.mxu0 %v7345
  %7359 = vmatpush.msra.mxu0 %v6993
  %7360 = vmatpush.msra.mxu0 %v6992
  %7361 = vmatpush.msra.mxu0 %v6991
  %7362 = vmatpush.msra.mxu0 %v6990
  %7363 = vmatmul.f32.gmra.mxu0 %v7342
  %v7364 = vpop.f32.mrf.mxu0
  %v7365 = vadd.f32 0.0, %v7364
  %7366 = vdwg.mxu0
  %v7368 = vsel %vm7105, %v6880, 0
  %v7371 = vsel %vm7109, %v6999, 0
  %7373 = vmatpush.msra.mxu0 0.0
  %7374 = vmatpush.msra.mxu0 0.0
  %7375 = vmatpush.msra.mxu0 0.0
  %7376 = vmatpush.msra.mxu0 0.0
  %7377 = vmatpush.msra.mxu0 0.0
  %7378 = vmatpush.msra.mxu0 0.0
  %7379 = vmatpush.msra.mxu0 0.0
  %7380 = vmatpush.msra.mxu0 0.0
  %7381 = vmatpush.msra.mxu0 0.0
  %7382 = vmatpush.msra.mxu0 0.0
  %7383 = vmatpush.msra.mxu0 0.0
  %7384 = vmatpush.msra.mxu0 %v7371
  %7385 = vmatpush.msra.mxu0 %v6998
  %7386 = vmatpush.msra.mxu0 %v6997
  %7387 = vmatpush.msra.mxu0 %v6996
  %7388 = vmatpush.msra.mxu0 %v6995
  %7389 = vmatmul.f32.gmra.mxu0 %v7368
  %v7390 = vpop.f32.mrf.mxu0
  %v7391 = vadd.f32 0.0, %v7390
  %7392 = vdwg.mxu0
  %v7394 = vsel %vm7105, %v6883, 0
  %v7397 = vsel %vm7109, %v7004, 0
  %7399 = vmatpush.msra.mxu0 0.0
  %7400 = vmatpush.msra.mxu0 0.0
  %7401 = vmatpush.msra.mxu0 0.0
  %7402 = vmatpush.msra.mxu0 0.0
  %7403 = vmatpush.msra.mxu0 0.0
  %7404 = vmatpush.msra.mxu0 0.0
  %7405 = vmatpush.msra.mxu0 0.0
  %7406 = vmatpush.msra.mxu0 0.0
  %7407 = vmatpush.msra.mxu0 0.0
  %7408 = vmatpush.msra.mxu0 0.0
  %7409 = vmatpush.msra.mxu0 0.0
  %7410 = vmatpush.msra.mxu0 %v7397
  %7411 = vmatpush.msra.mxu0 %v7003
  %7412 = vmatpush.msra.mxu0 %v7002
  %7413 = vmatpush.msra.mxu0 %v7001
  %7414 = vmatpush.msra.mxu0 %v7000
  %7415 = vmatmul.f32.gmra.mxu0 %v7394
  %v7416 = vpop.f32.mrf.mxu0
  %v7417 = vadd.f32 0.0, %v7416
  %7418 = vdwg.mxu0
  %v7420 = vsel %vm7105, %v6886, 0
  %v7423 = vsel %vm7109, %v7009, 0
  %7425 = vmatpush.msra.mxu0 0.0
  %7426 = vmatpush.msra.mxu0 0.0
  %7427 = vmatpush.msra.mxu0 0.0
  %7428 = vmatpush.msra.mxu0 0.0
  %7429 = vmatpush.msra.mxu0 0.0
  %7430 = vmatpush.msra.mxu0 0.0
  %7431 = vmatpush.msra.mxu0 0.0
  %7432 = vmatpush.msra.mxu0 0.0
  %7433 = vmatpush.msra.mxu0 0.0
  %7434 = vmatpush.msra.mxu0 0.0
  %7435 = vmatpush.msra.mxu0 0.0
  %7436 = vmatpush.msra.mxu0 %v7423
  %7437 = vmatpush.msra.mxu0 %v7008
  %7438 = vmatpush.msra.mxu0 %v7007
  %7439 = vmatpush.msra.mxu0 %v7006
  %7440 = vmatpush.msra.mxu0 %v7005
  %7441 = vmatmul.f32.gmra.mxu0 %v7420
  %v7442 = vpop.f32.mrf.mxu0
  %v7443 = vadd.f32 0.0, %v7442
  %7444 = vdwg.mxu0
  %v7446 = vsel %vm7105, %v6889, 0
  %v7449 = vsel %vm7109, %v7014, 0
  %7451 = vmatpush.msra.mxu0 0.0
  %7452 = vmatpush.msra.mxu0 0.0
  %7453 = vmatpush.msra.mxu0 0.0
  %7454 = vmatpush.msra.mxu0 0.0
  %7455 = vmatpush.msra.mxu0 0.0
  %7456 = vmatpush.msra.mxu0 0.0
  %7457 = vmatpush.msra.mxu0 0.0
  %7458 = vmatpush.msra.mxu0 0.0
  %7459 = vmatpush.msra.mxu0 0.0
  %7460 = vmatpush.msra.mxu0 0.0
  %7461 = vmatpush.msra.mxu0 0.0
  %7462 = vmatpush.msra.mxu0 %v7449
  %7463 = vmatpush.msra.mxu0 %v7013
  %7464 = vmatpush.msra.mxu0 %v7012
  %7465 = vmatpush.msra.mxu0 %v7011
  %7466 = vmatpush.msra.mxu0 %v7010
  %7467 = vmatmul.f32.gmra.mxu0 %v7446
  %v7468 = vpop.f32.mrf.mxu0
  %v7469 = vadd.f32 0.0, %v7468
  %7470 = vdwg.mxu0
  %v7472 = vsel %vm7105, %v6892, 0
  %v7475 = vsel %vm7109, %v7019, 0
  %7477 = vmatpush.msra.mxu0 0.0
  %7478 = vmatpush.msra.mxu0 0.0
  %7479 = vmatpush.msra.mxu0 0.0
  %7480 = vmatpush.msra.mxu0 0.0
  %7481 = vmatpush.msra.mxu0 0.0
  %7482 = vmatpush.msra.mxu0 0.0
  %7483 = vmatpush.msra.mxu0 0.0
  %7484 = vmatpush.msra.mxu0 0.0
  %7485 = vmatpush.msra.mxu0 0.0
  %7486 = vmatpush.msra.mxu0 0.0
  %7487 = vmatpush.msra.mxu0 0.0
  %7488 = vmatpush.msra.mxu0 %v7475
  %7489 = vmatpush.msra.mxu0 %v7018
  %7490 = vmatpush.msra.mxu0 %v7017
  %7491 = vmatpush.msra.mxu0 %v7016
  %7492 = vmatpush.msra.mxu0 %v7015
  %7493 = vmatmul.f32.gmra.mxu0 %v7472
  %v7494 = vpop.f32.mrf.mxu0
  %v7495 = vadd.f32 0.0, %v7494
  %7496 = vdwg.mxu0
  %v7498 = vsel %vm7105, %v6895, 0
  %v7501 = vsel %vm7109, %v7024, 0
  %7503 = vmatpush.msra.mxu0 0.0
  %7504 = vmatpush.msra.mxu0 0.0
  %7505 = vmatpush.msra.mxu0 0.0
  %7506 = vmatpush.msra.mxu0 0.0
  %7507 = vmatpush.msra.mxu0 0.0
  %7508 = vmatpush.msra.mxu0 0.0
  %7509 = vmatpush.msra.mxu0 0.0
  %7510 = vmatpush.msra.mxu0 0.0
  %7511 = vmatpush.msra.mxu0 0.0
  %7512 = vmatpush.msra.mxu0 0.0
  %7513 = vmatpush.msra.mxu0 0.0
  %7514 = vmatpush.msra.mxu0 %v7501
  %7515 = vmatpush.msra.mxu0 %v7023
  %7516 = vmatpush.msra.mxu0 %v7022
  %7517 = vmatpush.msra.mxu0 %v7021
  %7518 = vmatpush.msra.mxu0 %v7020
  %7519 = vmatmul.f32.gmra.mxu0 %v7498
  %v7520 = vpop.f32.mrf.mxu0
  %v7521 = vadd.f32 0.0, %v7520
  %7522 = vdwg.mxu0
  %v7524 = vsel %vm7105, %v6898, 0
  %v7527 = vsel %vm7109, %v7029, 0
  %7529 = vmatpush.msra.mxu0 0.0
  %7530 = vmatpush.msra.mxu0 0.0
  %7531 = vmatpush.msra.mxu0 0.0
  %7532 = vmatpush.msra.mxu0 0.0
  %7533 = vmatpush.msra.mxu0 0.0
  %7534 = vmatpush.msra.mxu0 0.0
  %7535 = vmatpush.msra.mxu0 0.0
  %7536 = vmatpush.msra.mxu0 0.0
  %7537 = vmatpush.msra.mxu0 0.0
  %7538 = vmatpush.msra.mxu0 0.0
  %7539 = vmatpush.msra.mxu0 0.0
  %7540 = vmatpush.msra.mxu0 %v7527
  %7541 = vmatpush.msra.mxu0 %v7028
  %7542 = vmatpush.msra.mxu0 %v7027
  %7543 = vmatpush.msra.mxu0 %v7026
  %7544 = vmatpush.msra.mxu0 %v7025
  %7545 = vmatmul.f32.gmra.mxu0 %v7524
  %v7546 = vpop.f32.mrf.mxu0
  %v7547 = vadd.f32 0.0, %v7546
  %7548 = vdwg.mxu0
  %v7550 = vsel %vm7105, %v6901, 0
  %v7553 = vsel %vm7109, %v7034, 0
  %7555 = vmatpush.msra.mxu0 0.0
  %7556 = vmatpush.msra.mxu0 0.0
  %7557 = vmatpush.msra.mxu0 0.0
  %7558 = vmatpush.msra.mxu0 0.0
  %7559 = vmatpush.msra.mxu0 0.0
  %7560 = vmatpush.msra.mxu0 0.0
  %7561 = vmatpush.msra.mxu0 0.0
  %7562 = vmatpush.msra.mxu0 0.0
  %7563 = vmatpush.msra.mxu0 0.0
  %7564 = vmatpush.msra.mxu0 0.0
  %7565 = vmatpush.msra.mxu0 0.0
  %7566 = vmatpush.msra.mxu0 %v7553
  %7567 = vmatpush.msra.mxu0 %v7033
  %7568 = vmatpush.msra.mxu0 %v7032
  %7569 = vmatpush.msra.mxu0 %v7031
  %7570 = vmatpush.msra.mxu0 %v7030
  %7571 = vmatmul.f32.gmra.mxu0 %v7550
  %v7572 = vpop.f32.mrf.mxu0
  %v7573 = vadd.f32 0.0, %v7572
  %7574 = vdwg.mxu0
  %v7576 = vsel %vm7105, %v6904, 0
  %v7579 = vsel %vm7109, %v7039, 0
  %7581 = vmatpush.msra.mxu0 0.0
  %7582 = vmatpush.msra.mxu0 0.0
  %7583 = vmatpush.msra.mxu0 0.0
  %7584 = vmatpush.msra.mxu0 0.0
  %7585 = vmatpush.msra.mxu0 0.0
  %7586 = vmatpush.msra.mxu0 0.0
  %7587 = vmatpush.msra.mxu0 0.0
  %7588 = vmatpush.msra.mxu0 0.0
  %7589 = vmatpush.msra.mxu0 0.0
  %7590 = vmatpush.msra.mxu0 0.0
  %7591 = vmatpush.msra.mxu0 0.0
  %7592 = vmatpush.msra.mxu0 %v7579
  %7593 = vmatpush.msra.mxu0 %v7038
  %7594 = vmatpush.msra.mxu0 %v7037
  %7595 = vmatpush.msra.mxu0 %v7036
  %7596 = vmatpush.msra.mxu0 %v7035
  %7597 = vmatmul.f32.gmra.mxu0 %v7576
  %v7598 = vpop.f32.mrf.mxu0
  %v7599 = vadd.f32 0.0, %v7598
  %7600 = vdwg.mxu0
  %v7602 = vsel %vm7105, %v6907, 0
  %v7605 = vsel %vm7109, %v7044, 0
  %7607 = vmatpush.msra.mxu0 0.0
  %7608 = vmatpush.msra.mxu0 0.0
  %7609 = vmatpush.msra.mxu0 0.0
  %7610 = vmatpush.msra.mxu0 0.0
  %7611 = vmatpush.msra.mxu0 0.0
  %7612 = vmatpush.msra.mxu0 0.0
  %7613 = vmatpush.msra.mxu0 0.0
  %7614 = vmatpush.msra.mxu0 0.0
  %7615 = vmatpush.msra.mxu0 0.0
  %7616 = vmatpush.msra.mxu0 0.0
  %7617 = vmatpush.msra.mxu0 0.0
  %7618 = vmatpush.msra.mxu0 %v7605
  %7619 = vmatpush.msra.mxu0 %v7043
  %7620 = vmatpush.msra.mxu0 %v7042
  %7621 = vmatpush.msra.mxu0 %v7041
  %7622 = vmatpush.msra.mxu0 %v7040
  %7623 = vmatmul.f32.gmra.mxu0 %v7602
  %v7624 = vpop.f32.mrf.mxu0
  %v7625 = vadd.f32 0.0, %v7624
  %7626 = vdwg.mxu0
  %v7628 = vsel %vm7105, %v6910, 0
  %v7631 = vsel %vm7109, %v7049, 0
  %7633 = vmatpush.msra.mxu0 0.0
  %7634 = vmatpush.msra.mxu0 0.0
  %7635 = vmatpush.msra.mxu0 0.0
  %7636 = vmatpush.msra.mxu0 0.0
  %7637 = vmatpush.msra.mxu0 0.0
  %7638 = vmatpush.msra.mxu0 0.0
  %7639 = vmatpush.msra.mxu0 0.0
  %7640 = vmatpush.msra.mxu0 0.0
  %7641 = vmatpush.msra.mxu0 0.0
  %7642 = vmatpush.msra.mxu0 0.0
  %7643 = vmatpush.msra.mxu0 0.0
  %7644 = vmatpush.msra.mxu0 %v7631
  %7645 = vmatpush.msra.mxu0 %v7048
  %7646 = vmatpush.msra.mxu0 %v7047
  %7647 = vmatpush.msra.mxu0 %v7046
  %7648 = vmatpush.msra.mxu0 %v7045
  %7649 = vmatmul.f32.gmra.mxu0 %v7628
  %v7650 = vpop.f32.mrf.mxu0
  %v7651 = vadd.f32 0.0, %v7650
  %7652 = vdwg.mxu0
  %v7654 = vsel %vm7105, %v6913, 0
  %v7657 = vsel %vm7109, %v7054, 0
  %7659 = vmatpush.msra.mxu0 0.0
  %7660 = vmatpush.msra.mxu0 0.0
  %7661 = vmatpush.msra.mxu0 0.0
  %7662 = vmatpush.msra.mxu0 0.0
  %7663 = vmatpush.msra.mxu0 0.0
  %7664 = vmatpush.msra.mxu0 0.0
  %7665 = vmatpush.msra.mxu0 0.0
  %7666 = vmatpush.msra.mxu0 0.0
  %7667 = vmatpush.msra.mxu0 0.0
  %7668 = vmatpush.msra.mxu0 0.0
  %7669 = vmatpush.msra.mxu0 0.0
  %7670 = vmatpush.msra.mxu0 %v7657
  %7671 = vmatpush.msra.mxu0 %v7053
  %7672 = vmatpush.msra.mxu0 %v7052
  %7673 = vmatpush.msra.mxu0 %v7051
  %7674 = vmatpush.msra.mxu0 %v7050
  %7675 = vmatmul.f32.gmra.mxu0 %v7654
  %v7676 = vpop.f32.mrf.mxu0
  %v7677 = vadd.f32 0.0, %v7676
  %7678 = vdwg.mxu0
  %v7680 = vsel %vm7105, %v6916, 0
  %v7683 = vsel %vm7109, %v7059, 0
  %7685 = vmatpush.msra.mxu0 0.0
  %7686 = vmatpush.msra.mxu0 0.0
  %7687 = vmatpush.msra.mxu0 0.0
  %7688 = vmatpush.msra.mxu0 0.0
  %7689 = vmatpush.msra.mxu0 0.0
  %7690 = vmatpush.msra.mxu0 0.0
  %7691 = vmatpush.msra.mxu0 0.0
  %7692 = vmatpush.msra.mxu0 0.0
  %7693 = vmatpush.msra.mxu0 0.0
  %7694 = vmatpush.msra.mxu0 0.0
  %7695 = vmatpush.msra.mxu0 0.0
  %7696 = vmatpush.msra.mxu0 %v7683
  %7697 = vmatpush.msra.mxu0 %v7058
  %7698 = vmatpush.msra.mxu0 %v7057
  %7699 = vmatpush.msra.mxu0 %v7056
  %7700 = vmatpush.msra.mxu0 %v7055
  %7701 = vmatmul.f32.gmra.mxu0 %v7680
  %v7702 = vpop.f32.mrf.mxu0
  %v7703 = vadd.f32 0.0, %v7702
  %7704 = vdwg.mxu0
  %v7706 = vsel %vm7105, %v6919, 0
  %v7709 = vsel %vm7109, %v7064, 0
  %7711 = vmatpush.msra.mxu0 0.0
  %7712 = vmatpush.msra.mxu0 0.0
  %7713 = vmatpush.msra.mxu0 0.0
  %7714 = vmatpush.msra.mxu0 0.0
  %7715 = vmatpush.msra.mxu0 0.0
  %7716 = vmatpush.msra.mxu0 0.0
  %7717 = vmatpush.msra.mxu0 0.0
  %7718 = vmatpush.msra.mxu0 0.0
  %7719 = vmatpush.msra.mxu0 0.0
  %7720 = vmatpush.msra.mxu0 0.0
  %7721 = vmatpush.msra.mxu0 0.0
  %7722 = vmatpush.msra.mxu0 %v7709
  %7723 = vmatpush.msra.mxu0 %v7063
  %7724 = vmatpush.msra.mxu0 %v7062
  %7725 = vmatpush.msra.mxu0 %v7061
  %7726 = vmatpush.msra.mxu0 %v7060
  %7727 = vmatmul.f32.gmra.mxu0 %v7706
  %v7728 = vpop.f32.mrf.mxu0
  %v7729 = vadd.f32 0.0, %v7728
  %7730 = vdwg.mxu0
  %v7732 = vsel %vm7105, %v6922, 0
  %v7735 = vsel %vm7109, %v7069, 0
  %7737 = vmatpush.msra.mxu0 0.0
  %7738 = vmatpush.msra.mxu0 0.0
  %7739 = vmatpush.msra.mxu0 0.0
  %7740 = vmatpush.msra.mxu0 0.0
  %7741 = vmatpush.msra.mxu0 0.0
  %7742 = vmatpush.msra.mxu0 0.0
  %7743 = vmatpush.msra.mxu0 0.0
  %7744 = vmatpush.msra.mxu0 0.0
  %7745 = vmatpush.msra.mxu0 0.0
  %7746 = vmatpush.msra.mxu0 0.0
  %7747 = vmatpush.msra.mxu0 0.0
  %7748 = vmatpush.msra.mxu0 %v7735
  %7749 = vmatpush.msra.mxu0 %v7068
  %7750 = vmatpush.msra.mxu0 %v7067
  %7751 = vmatpush.msra.mxu0 %v7066
  %7752 = vmatpush.msra.mxu0 %v7065
  %7753 = vmatmul.f32.gmra.mxu0 %v7732
  %v7754 = vpop.f32.mrf.mxu0
  %v7755 = vadd.f32 0.0, %v7754
  %7756 = vdwg.mxu0
  %v7758 = vsel %vm7105, %v6925, 0
  %v7761 = vsel %vm7109, %v7074, 0
  %7763 = vmatpush.msra.mxu0 0.0
  %7764 = vmatpush.msra.mxu0 0.0
  %7765 = vmatpush.msra.mxu0 0.0
  %7766 = vmatpush.msra.mxu0 0.0
  %7767 = vmatpush.msra.mxu0 0.0
  %7768 = vmatpush.msra.mxu0 0.0
  %7769 = vmatpush.msra.mxu0 0.0
  %7770 = vmatpush.msra.mxu0 0.0
  %7771 = vmatpush.msra.mxu0 0.0
  %7772 = vmatpush.msra.mxu0 0.0
  %7773 = vmatpush.msra.mxu0 0.0
  %7774 = vmatpush.msra.mxu0 %v7761
  %7775 = vmatpush.msra.mxu0 %v7073
  %7776 = vmatpush.msra.mxu0 %v7072
  %7777 = vmatpush.msra.mxu0 %v7071
  %7778 = vmatpush.msra.mxu0 %v7070
  %7779 = vmatmul.f32.gmra.mxu0 %v7758
  %v7780 = vpop.f32.mrf.mxu0
  %v7781 = vadd.f32 0.0, %v7780
  %7782 = vdwg.mxu0
  %v7784 = vsel %vm7105, %v6928, 0
  %v7787 = vsel %vm7109, %v7079, 0
  %7789 = vmatpush.msra.mxu0 0.0
  %7790 = vmatpush.msra.mxu0 0.0
  %7791 = vmatpush.msra.mxu0 0.0
  %7792 = vmatpush.msra.mxu0 0.0
  %7793 = vmatpush.msra.mxu0 0.0
  %7794 = vmatpush.msra.mxu0 0.0
  %7795 = vmatpush.msra.mxu0 0.0
  %7796 = vmatpush.msra.mxu0 0.0
  %7797 = vmatpush.msra.mxu0 0.0
  %7798 = vmatpush.msra.mxu0 0.0
  %7799 = vmatpush.msra.mxu0 0.0
  %7800 = vmatpush.msra.mxu0 %v7787
  %7801 = vmatpush.msra.mxu0 %v7078
  %7802 = vmatpush.msra.mxu0 %v7077
  %7803 = vmatpush.msra.mxu0 %v7076
  %7804 = vmatpush.msra.mxu0 %v7075
  %7805 = vmatmul.f32.gmra.mxu0 %v7784
  %v7806 = vpop.f32.mrf.mxu0
  %v7807 = vadd.f32 0.0, %v7806
  %7808 = vdwg.mxu0
  %v7810 = vsel %vm7105, %v6931, 0
  %v7813 = vsel %vm7109, %v7084, 0
  %7815 = vmatpush.msra.mxu0 0.0
  %7816 = vmatpush.msra.mxu0 0.0
  %7817 = vmatpush.msra.mxu0 0.0
  %7818 = vmatpush.msra.mxu0 0.0
  %7819 = vmatpush.msra.mxu0 0.0
  %7820 = vmatpush.msra.mxu0 0.0
  %7821 = vmatpush.msra.mxu0 0.0
  %7822 = vmatpush.msra.mxu0 0.0
  %7823 = vmatpush.msra.mxu0 0.0
  %7824 = vmatpush.msra.mxu0 0.0
  %7825 = vmatpush.msra.mxu0 0.0
  %7826 = vmatpush.msra.mxu0 %v7813
  %7827 = vmatpush.msra.mxu0 %v7083
  %7828 = vmatpush.msra.mxu0 %v7082
  %7829 = vmatpush.msra.mxu0 %v7081
  %7830 = vmatpush.msra.mxu0 %v7080
  %7831 = vmatmul.f32.gmra.mxu0 %v7810
  %v7832 = vpop.f32.mrf.mxu0
  %v7833 = vadd.f32 0.0, %v7832
  %7834 = vdwg.mxu0
  %v7836 = vsel %vm7105, %v6934, 0
  %v7839 = vsel %vm7109, %v7089, 0
  %7841 = vmatpush.msra.mxu0 0.0
  %7842 = vmatpush.msra.mxu0 0.0
  %7843 = vmatpush.msra.mxu0 0.0
  %7844 = vmatpush.msra.mxu0 0.0
  %7845 = vmatpush.msra.mxu0 0.0
  %7846 = vmatpush.msra.mxu0 0.0
  %7847 = vmatpush.msra.mxu0 0.0
  %7848 = vmatpush.msra.mxu0 0.0
  %7849 = vmatpush.msra.mxu0 0.0
  %7850 = vmatpush.msra.mxu0 0.0
  %7851 = vmatpush.msra.mxu0 0.0
  %7852 = vmatpush.msra.mxu0 %v7839
  %7853 = vmatpush.msra.mxu0 %v7088
  %7854 = vmatpush.msra.mxu0 %v7087
  %7855 = vmatpush.msra.mxu0 %v7086
  %7856 = vmatpush.msra.mxu0 %v7085
  %7857 = vmatmul.f32.gmra.mxu0 %v7836
  %v7858 = vpop.f32.mrf.mxu0
  %v7859 = vadd.f32 0.0, %v7858
  %7860 = vdwg.mxu0
  %v7862 = vsel %vm7105, %v6937, 0
  %v7865 = vsel %vm7109, %v7094, 0
  %7867 = vmatpush.msra.mxu0 0.0
  %7868 = vmatpush.msra.mxu0 0.0
  %7869 = vmatpush.msra.mxu0 0.0
  %7870 = vmatpush.msra.mxu0 0.0
  %7871 = vmatpush.msra.mxu0 0.0
  %7872 = vmatpush.msra.mxu0 0.0
  %7873 = vmatpush.msra.mxu0 0.0
  %7874 = vmatpush.msra.mxu0 0.0
  %7875 = vmatpush.msra.mxu0 0.0
  %7876 = vmatpush.msra.mxu0 0.0
  %7877 = vmatpush.msra.mxu0 0.0
  %7878 = vmatpush.msra.mxu0 %v7865
  %7879 = vmatpush.msra.mxu0 %v7093
  %7880 = vmatpush.msra.mxu0 %v7092
  %7881 = vmatpush.msra.mxu0 %v7091
  %7882 = vmatpush.msra.mxu0 %v7090
  %7883 = vmatmul.f32.gmra.mxu0 %v7862
  %v7884 = vpop.f32.mrf.mxu0
  %v7885 = vadd.f32 0.0, %v7884
  %7886 = vdwg.mxu0
  %v7888 = vsel %vm7105, %v6940, 0
  %v7891 = vsel %vm7109, %v7099, 0
  %7893 = vmatpush.msra.mxu0 0.0
  %7894 = vmatpush.msra.mxu0 0.0
  %7895 = vmatpush.msra.mxu0 0.0
  %7896 = vmatpush.msra.mxu0 0.0
  %7897 = vmatpush.msra.mxu0 0.0
  %7898 = vmatpush.msra.mxu0 0.0
  %7899 = vmatpush.msra.mxu0 0.0
  %7900 = vmatpush.msra.mxu0 0.0
  %7901 = vmatpush.msra.mxu0 0.0
  %7902 = vmatpush.msra.mxu0 0.0
  %7903 = vmatpush.msra.mxu0 0.0
  %7904 = vmatpush.msra.mxu0 %v7891
  %7905 = vmatpush.msra.mxu0 %v7098
  %7906 = vmatpush.msra.mxu0 %v7097
  %7907 = vmatpush.msra.mxu0 %v7096
  %7908 = vmatpush.msra.mxu0 %v7095
  %7909 = vmatmul.f32.gmra.mxu0 %v7888
  %v7910 = vpop.f32.mrf.mxu0
  %v7911 = vadd.f32 0.0, %v7910
  %7912 = vdwg.mxu0
  %v7914 = vsel %vm7105, %v6943, 0
  %v7917 = vsel %vm7109, %v7104, 0
  %7919 = vmatpush.msra.mxu0 0.0
  %7920 = vmatpush.msra.mxu0 0.0
  %7921 = vmatpush.msra.mxu0 0.0
  %7922 = vmatpush.msra.mxu0 0.0
  %7923 = vmatpush.msra.mxu0 0.0
  %7924 = vmatpush.msra.mxu0 0.0
  %7925 = vmatpush.msra.mxu0 0.0
  %7926 = vmatpush.msra.mxu0 0.0
  %7927 = vmatpush.msra.mxu0 0.0
  %7928 = vmatpush.msra.mxu0 0.0
  %7929 = vmatpush.msra.mxu0 0.0
  %7930 = vmatpush.msra.mxu0 %v7917
  %7931 = vmatpush.msra.mxu0 %v7103
  %7932 = vmatpush.msra.mxu0 %v7102
  %7933 = vmatpush.msra.mxu0 %v7101
  %7934 = vmatpush.msra.mxu0 %v7100
  %7935 = vmatmul.f32.gmra.mxu0 %v7914
  %v7936 = vpop.f32.mrf.mxu0
  %v7937 = vadd.f32 0.0, %v7936
  %7938 = vdwg.mxu0
  %v7939 = vadd.f32 %v7131, %v7157
  %v7940 = vadd.f32 %v7939, %v7183
  %v7941 = vadd.f32 %v7940, %v7209
  %v7942 = vadd.f32 %v7941, %v7235
  %v7943 = vadd.f32 %v7942, %v7261
  %v7944 = vadd.f32 %v7943, %v7287
  %v7945 = vadd.f32 %v7944, %v7313
  %v7946 = vadd.f32 %v7945, %v7339
  %v7947 = vadd.f32 %v7946, %v7365
  %v7948 = vadd.f32 %v7947, %v7391
  %v7949 = vadd.f32 %v7948, %v7417
  %v7950 = vadd.f32 %v7949, %v7443
  %v7951 = vadd.f32 %v7950, %v7469
  %v7952 = vadd.f32 %v7951, %v7495
  %v7953 = vadd.f32 %v7952, %v7521
  %v7954 = vadd.f32 %v7953, %v7547
  %v7955 = vadd.f32 %v7954, %v7573
  %v7956 = vadd.f32 %v7955, %v7599
  %v7957 = vadd.f32 %v7956, %v7625
  %v7958 = vadd.f32 %v7957, %v7651
  %v7959 = vadd.f32 %v7958, %v7677
  %v7960 = vadd.f32 %v7959, %v7703
  %v7961 = vadd.f32 %v7960, %v7729
  %v7962 = vadd.f32 %v7961, %v7755
  %v7963 = vadd.f32 %v7962, %v7781
  %v7964 = vadd.f32 %v7963, %v7807
  %v7965 = vadd.f32 %v7964, %v7833
  %v7966 = vadd.f32 %v7965, %v7859
  %v7967 = vadd.f32 %v7966, %v7885
  %v7968 = vadd.f32 %v7967, %v7911
  %v7969 = vadd.f32 %v7968, %v7937
  %v7970 = vld [vmem:[%s8] sm:$0x1]
  %v7972 = vperm.slane %v7970, 0
  %v7974 = vadd.f32 %v7969, %v7972
  %v7975 = vmax.f32 %v7974, 0.0
  %v7976 = vld [vmem:[%s9] sm:$0xff]
  %v7977 = vld [vmem:[%s9 + $0x8] sm:$0xff]
  %v7978 = vld [vmem:[%s9 + $0x10] sm:$0xff]
  %v7979 = vld [vmem:[%s9 + $0x18] sm:$0xff]
  %v7980 = vld [vmem:[%s9 + $0x20] sm:$0xff]
  %v7981 = vld [vmem:[%s9 + $0x28] sm:$0xff]
  %v7982 = vld [vmem:[%s9 + $0x30] sm:$0xff]
  %v7983 = vld [vmem:[%s9 + $0x38] sm:$0xff]
  %v7984 = vld [vmem:[%s9 + $0x40] sm:$0xff]
  %v7985 = vld [vmem:[%s9 + $0x48] sm:$0xff]
  %v7986 = vld [vmem:[%s9 + $0x50] sm:$0xff]
  %v7987 = vld [vmem:[%s9 + $0x58] sm:$0xff]
  %v7988 = vld [vmem:[%s9 + $0x60] sm:$0xff]
  %v7989 = vld [vmem:[%s9 + $0x68] sm:$0xff]
  %v7990 = vld [vmem:[%s9 + $0x70] sm:$0xff]
  %v7991 = vld [vmem:[%s9 + $0x78] sm:$0xff]
  %v7992 = vld [vmem:[%s10] sm:$0x1]
  %v7994 = vperm.slane %v7992, 0
  %7996 = vmatpush.msra.mxu0 %v7991
  %7997 = vmatpush.msra.mxu0 %v7990
  %7998 = vmatpush.msra.mxu0 %v7989
  %7999 = vmatpush.msra.mxu0 %v7988
  %8000 = vmatpush.msra.mxu0 %v7987
  %8001 = vmatpush.msra.mxu0 %v7986
  %8002 = vmatpush.msra.mxu0 %v7985
  %8003 = vmatpush.msra.mxu0 %v7984
  %8004 = vmatpush.msra.mxu0 %v7983
  %8005 = vmatpush.msra.mxu0 %v7982
  %8006 = vmatpush.msra.mxu0 %v7981
  %8007 = vmatpush.msra.mxu0 %v7980
  %8008 = vmatpush.msra.mxu0 %v7979
  %8009 = vmatpush.msra.mxu0 %v7978
  %8010 = vmatpush.msra.mxu0 %v7977
  %8011 = vmatpush.msra.mxu0 %v7976
  %8012 = vmatmul.f32.gmra.mxu0 %v7975
  %v8013 = vpop.f32.mrf.mxu0
  %v8014 = vadd.f32 %v7994, %v8013
  %8015 = vdwg.mxu0
  %vm8016 = vcmask 31744
  %8017 = vst.msk [vmem:[%s11] sm:$0xff] %vm8016, %v8014
  // Predicated region
  $region46: #{mfccnet_forward.1} parent=0 // pred_check
    _
  $region47: #{mfccnet_forward.1} parent=0 // pred_check_branch
    %8019 = sbr.rel (0) target = $region49
  $region48: #{mfccnet_forward.1} parent=0 // pred_region
    _
  $region49: #{mfccnet_forward.1} parent=0 // pred_fallthru
    _
  // Predicated region
  $region50: #{mfccnet_forward.1} parent=0 // pred_check
    _
  $region51: #{mfccnet_forward.1} parent=0 // pred_check_branch
    %8021 = sbr.rel (0) target = $region53
  $region52: #{mfccnet_forward.1} parent=0 // pred_region
    _
  $region53: #{mfccnet_forward.1} parent=0 // pred_fallthru
    _

</llo_original>
